<compile_context>
chip_gen: v6e
topology: v6e:2x2x1
jax: 0.10.0
libtpu: 0.0.40
codegen_flags: <defaults>
</compile_context>

<pallas_src>
import math

import jax
import jax.numpy as jnp
from jax.experimental import pallas as pl
from jax.experimental.pallas import tpu as pltpu


_VMEM_LIMIT = 32 * 1024 * 1024  # explicit scoped-VMEM budget (fits v5e..v7x)


def _tile(c):
    """Lane-dense Cout tile: 128 when it divides Cout, else the full dim."""
    return 128 if c % 128 == 0 else c


# --------------------------------------------------------------------------
# Conv1d (any K / dilation) over a *sum* of inputs (fused residual adds),
# + bias + optional ReLU + folded BatchNorm.  Grid: (B, Cout // TILE_N).
# Halo (conv zero padding) is built in a VMEM scratch, no HBM jnp.pad.
# --------------------------------------------------------------------------
def _make_conv_kernel(T, K, dil, pad, relu, n_in, use_halo):
    def kernel(*refs):
        x_refs = refs[:n_in]
        w_ref, b_ref, s_ref, t_ref, o_ref = refs[n_in:n_in + 5]

        # Sum the fused-residual inputs in f32 (VPU); feed the MXU in bf16.
        if n_in == 1:
            x = x_refs[0][0]                               # (T, Cin) bf16
        else:
            acc_in = x_refs[0][0].astype(jnp.float32)
            for r in x_refs[1:]:
                acc_in = acc_in + r[0].astype(jnp.float32)
            x = acc_in.astype(jnp.bfloat16)

        if use_halo:
            xp_ref = refs[n_in + 5]                        # (T + 2*pad, Cin) f32
            xp_ref[...] = jnp.zeros_like(xp_ref)           # zero halo rows
            xp_ref[pl.ds(pad, T), :] = x.astype(jnp.float32)
            taps = [xp_ref[pl.ds(j * dil, T), :].astype(jnp.bfloat16)
                    for j in range(K)]
        else:                                              # K == 1, no halo
            taps = [x]

        # Initialize the accumulator from the first tap's dot (no zeros+add).
        acc = jnp.dot(taps[0], w_ref[0], preferred_element_type=jnp.float32)
        for j in range(1, K):
            acc = acc + jnp.dot(taps[j], w_ref[j],
                                preferred_element_type=jnp.float32)

        z = acc + b_ref[...]
        if relu:
            z = jnp.maximum(z, 0.0)
        z = z * s_ref[...] + t_ref[...]                    # folded eval-mode BN
        o_ref[0] = z.astype(o_ref.dtype)
    return kernel


def conv1d_fused(xs, w, b, scale, shift, *, dil=1, relu=True,
                 out_dtype=jnp.bfloat16):
    """sum(xs) -> Conv1d(K, dilation) -> +bias -> [ReLU] -> folded BN.

    xs: list of (B, T, Cin) bf16 tensors whose sum is the conv input
        (this fuses the network's residual adds into the conv kernel).
    w:  (K, Cin, Cout) bf16.  Returns (B, T, Cout) in out_dtype.
    """
    if not isinstance(xs, (list, tuple)):
        xs = [xs]
    B, T, Cin = xs[0].shape
    K, _, Cout = w.shape
    pad = dil * (K - 1) // 2
    assert K == 1 or pad > 0
    tile_n = _tile(Cout)
    n_in = len(xs)
    use_halo = K > 1

    kernel = _make_conv_kernel(T, K, dil, pad, relu, n_in, use_halo)
    in_specs = [pl.BlockSpec((1, T, Cin), lambda i, j: (i, 0, 0))
                for _ in range(n_in)]
    in_specs += [
        pl.BlockSpec((K, Cin, tile_n), lambda i, j: (0, 0, j)),   # weights
        pl.BlockSpec((1, tile_n), lambda i, j: (0, j)),           # bias
        pl.BlockSpec((1, tile_n), lambda i, j: (0, j)),           # bn scale
        pl.BlockSpec((1, tile_n), lambda i, j: (0, j)),           # bn shift
    ]
    scratch = [pltpu.VMEM((T + 2 * pad, Cin), jnp.float32)] if use_halo else []
    return pl.pallas_call(
        kernel,
        out_shape=jax.ShapeDtypeStruct((B, T, Cout), out_dtype),
        grid=(B, Cout // tile_n),
        in_specs=in_specs,
        out_specs=pl.BlockSpec((1, T, tile_n), lambda i, j: (i, 0, j)),
        scratch_shapes=scratch,
        compiler_params=pltpu.CompilerParams(
            dimension_semantics=("parallel", "parallel"),
            vmem_limit_bytes=_VMEM_LIMIT),
    )(*xs, w, b.reshape(1, -1), scale.reshape(1, -1), shift.reshape(1, -1))


# --------------------------------------------------------------------------
# layer4: 1x1 conv over channel-concat(out1,out2,out3) WITHOUT materializing
# the concat — one matmul per input against its pre-split weight slice.
# --------------------------------------------------------------------------
def _make_cat_conv_kernel(n_in, relu):
    def kernel(*refs):
        x_refs = refs[:n_in]
        w_ref, b_ref, o_ref = refs[n_in:n_in + 3]
        acc = jnp.dot(x_refs[0][0], w_ref[0], preferred_element_type=jnp.float32)
        for i in range(1, n_in):
            acc = acc + jnp.dot(x_refs[i][0], w_ref[i],
                                preferred_element_type=jnp.float32)
        z = acc + b_ref[...]
        if relu:
            z = jnp.maximum(z, 0.0)
        o_ref[0] = z.astype(o_ref.dtype)
    return kernel


def concat_conv1x1(xs, w, b, *, relu=True, out_dtype=jnp.bfloat16):
    """xs: n tensors (B, T, C);  w: (n, C, Cout) bf16 (pre-split weight)."""
    n_in = len(xs)
    B, T, C = xs[0].shape
    Cout = w.shape[2]
    tile_n = _tile(Cout)
    kernel = _make_cat_conv_kernel(n_in, relu)
    in_specs = [pl.BlockSpec((1, T, C), lambda i, j: (i, 0, 0))
                for _ in range(n_in)]
    in_specs += [
        pl.BlockSpec((n_in, C, tile_n), lambda i, j: (0, 0, j)),
        pl.BlockSpec((1, tile_n), lambda i, j: (0, j)),
    ]
    return pl.pallas_call(
        kernel,
        out_shape=jax.ShapeDtypeStruct((B, T, Cout), out_dtype),
        grid=(B, Cout // tile_n),
        in_specs=in_specs,
        out_specs=pl.BlockSpec((1, T, tile_n), lambda i, j: (i, 0, j)),
        compiler_params=pltpu.CompilerParams(
            dimension_semantics=("parallel", "parallel"),
            vmem_limit_bytes=_VMEM_LIMIT),
    )(*xs, w, b.reshape(1, -1))


# --------------------------------------------------------------------------
# Bottleneck tail: residual add(s) + SEModule (avg-pool -> 1x1 -> ReLU ->
# 1x1 -> Sigmoid -> channel gate), fused in one kernel.  Grid over batch.
# --------------------------------------------------------------------------
def _make_se_kernel(n_res, inv_t):
    def kernel(*refs):
        x_ref = refs[0]
        r_refs = refs[1:1 + n_res]
        w1_ref, b1_ref, w2_ref, b2_ref, o_ref = refs[1 + n_res:1 + n_res + 5]
        y = x_ref[0].astype(jnp.float32)                   # conv3 output
        for r in r_refs:                                   # fused residual adds
            y = y + r[0].astype(jnp.float32)
        s = jnp.sum(y, axis=0, keepdims=True) * inv_t      # AdaptiveAvgPool1d(1)
        h = jnp.dot(s.astype(jnp.bfloat16), w1_ref[...],
                    preferred_element_type=jnp.float32) + b1_ref[...]
        h = jnp.maximum(h, 0.0)                            # ReLU
        g = jax.nn.sigmoid(jnp.dot(h.astype(jnp.bfloat16), w2_ref[...],
                                   preferred_element_type=jnp.float32)
                           + b2_ref[...])                  # Sigmoid gate
        o_ref[0] = (y * g).astype(o_ref.dtype)             # x * se(x)
    return kernel


def se_block(x, residuals, w1, b1, w2, b2):
    B, T, C = x.shape
    bot = w1.shape[1]
    n_res = len(residuals)
    kernel = _make_se_kernel(n_res, 1.0 / T)
    in_specs = [pl.BlockSpec((1, T, C), lambda i: (i, 0, 0))
                for _ in range(1 + n_res)]
    in_specs += [
        pl.BlockSpec((C, bot), lambda i: (0, 0)),
        pl.BlockSpec((1, bot), lambda i: (0, 0)),
        pl.BlockSpec((bot, C), lambda i: (0, 0)),
        pl.BlockSpec((1, C), lambda i: (0, 0)),
    ]
    return pl.pallas_call(
        kernel,
        out_shape=jax.ShapeDtypeStruct((B, T, C), jnp.bfloat16),
        grid=(B,),
        in_specs=in_specs,
        out_specs=pl.BlockSpec((1, T, C), lambda i: (i, 0, 0)),
        compiler_params=pltpu.CompilerParams(
            dimension_semantics=("parallel",),
            vmem_limit_bytes=_VMEM_LIMIT),
    )(x, *residuals, w1, b1.reshape(1, -1), w2, b2.reshape(1, -1))


# --------------------------------------------------------------------------
# Attention (1x1 -> ReLU -> BN -> Tanh -> 1x1 -> softmax over time) +
# attentive statistics pooling (mu, sigma), fused.  Grid over batch.
# --------------------------------------------------------------------------
def _attn_pool_kernel(h_ref, w1_ref, b1_ref, s_ref, t_ref, w2_ref, b2_ref,
                      mu_ref, sg_ref):
    h = h_ref[0]                                            # (T, A) bf16
    e = jnp.dot(h, w1_ref[...], preferred_element_type=jnp.float32) + b1_ref[...]
    e = jnp.maximum(e, 0.0)                                 # ReLU
    e = e * s_ref[...] + t_ref[...]                         # folded BatchNorm1d
    e = jnp.tanh(e)                                         # Tanh
    logits = jnp.dot(e.astype(jnp.bfloat16), w2_ref[...],
                     preferred_element_type=jnp.float32) + b2_ref[...]
    m = jnp.max(logits, axis=0, keepdims=True)              # softmax over time
    p = jnp.exp(logits - m)
    w = p * pl.reciprocal(jnp.sum(p, axis=0, keepdims=True), approx=True)
    hf = h.astype(jnp.float32)
    mu = jnp.sum(hf * w, axis=0, keepdims=True)             # (1, A)
    ex2 = jnp.sum(hf * hf * w, axis=0, keepdims=True)
    mu_ref[0] = mu
    sg_ref[0] = jnp.sqrt(jnp.maximum(ex2 - mu * mu, 1e-9))


def attn_stat_pool(h, w1, b1, s, t, w2, b2):
    B, T, A = h.shape
    bot = w1.shape[1]
    in_specs = [
        pl.BlockSpec((1, T, A), lambda i: (i, 0, 0)),
        pl.BlockSpec((A, bot), lambda i: (0, 0)),
        pl.BlockSpec((1, bot), lambda i: (0, 0)),
        pl.BlockSpec((1, bot), lambda i: (0, 0)),
        pl.BlockSpec((1, bot), lambda i: (0, 0)),
        pl.BlockSpec((bot, A), lambda i: (0, 0)),
        pl.BlockSpec((1, A), lambda i: (0, 0)),
    ]
    out_specs = (pl.BlockSpec((1, 1, A), lambda i: (i, 0, 0)),
                 pl.BlockSpec((1, 1, A), lambda i: (i, 0, 0)))
    mu, sg = pl.pallas_call(
        _attn_pool_kernel,
        out_shape=(jax.ShapeDtypeStruct((B, 1, A), jnp.float32),
                   jax.ShapeDtypeStruct((B, 1, A), jnp.float32)),
        grid=(B,),
        in_specs=in_specs,
        out_specs=out_specs,
        compiler_params=pltpu.CompilerParams(
            dimension_semantics=("parallel",),
            vmem_limit_bytes=_VMEM_LIMIT),
    )(h, w1, b1.reshape(1, -1), s.reshape(1, -1), t.reshape(1, -1),
      w2, b2.reshape(1, -1))
    return mu[:, 0, :], sg[:, 0, :]


# --------------------------------------------------------------------------
# Head: bn_agg -> Linear -> bn_emb, fused.  (Tiny (B, 2A) problem: whole
# thing fits VMEM comfortably at production dims, so no grid.)
# --------------------------------------------------------------------------
def _head_kernel(x_ref, s1_ref, t1_ref, w_ref, b_ref, s2_ref, t2_ref, o_ref):
    z = x_ref[...] * s1_ref[...] + t1_ref[...]                       # bn_agg
    z = jnp.dot(z.astype(jnp.bfloat16), w_ref[...],
                preferred_element_type=jnp.float32) + b_ref[...]     # fc
    o_ref[...] = z * s2_ref[...] + t2_ref[...]                       # bn_emb


def head(x, s1, t1, w, b, s2, t2):
    B = x.shape[0]
    E = w.shape[1]
    return pl.pallas_call(
        _head_kernel,
        out_shape=jax.ShapeDtypeStruct((B, E), jnp.float32),
        compiler_params=pltpu.CompilerParams(vmem_limit_bytes=_VMEM_LIMIT),
    )(x, s1.reshape(1, -1), t1.reshape(1, -1), w, b.reshape(1, -1),
      s2.reshape(1, -1), t2.reshape(1, -1))


# --------------------------------------------------------------------------
# Deterministic parameter construction (synthetic, no checkpoint loading).
# Matmul weights are stored in bf16; biases and folded-BN scale/shift in f32.
# --------------------------------------------------------------------------
def _init_conv(key, cin, cout, k):
    kw, kb = jax.random.split(key)
    w = (jax.random.normal(kw, (k, cin, cout), jnp.float32)
         / math.sqrt(cin * k)).astype(jnp.bfloat16)
    b = 0.05 * jax.random.normal(kb, (cout,), jnp.float32)
    return {'w': w, 'b': b}


def _init_dense(key, cin, cout):
    kw, kb = jax.random.split(key)
    w = (jax.random.normal(kw, (cin, cout), jnp.float32)
         / math.sqrt(cin)).astype(jnp.bfloat16)
    b = 0.05 * jax.random.normal(kb, (cout,), jnp.float32)
    return {'w': w, 'b': b}


def _init_bn(key, c, eps=1e-5):
    k1, k2, k3, k4 = jax.random.split(key, 4)
    gamma = 1.0 + 0.1 * jax.random.normal(k1, (c,), jnp.float32)
    beta = 0.1 * jax.random.normal(k2, (c,), jnp.float32)
    mean = 0.1 * jax.random.normal(k3, (c,), jnp.float32)
    var = jax.random.uniform(k4, (c,), jnp.float32, 0.5, 1.5)
    scale = gamma / jnp.sqrt(var + eps)   # eval-mode BN folded to scale/shift
    shift = beta - mean * scale
    return {'s': scale, 't': shift}


def _init_bottleneck(key, c, se_bot):
    ks = jax.random.split(key, 8)
    return {
        'conv1': _init_conv(ks[0], c, c, 1), 'bn1': _init_bn(ks[1], c),
        'conv2': _init_conv(ks[2], c, c, 3), 'bn2': _init_bn(ks[3], c),
        'conv3': _init_conv(ks[4], c, c, 1), 'bn3': _init_bn(ks[5], c),
        'se1': _init_dense(ks[6], c, se_bot),
        'se2': _init_dense(ks[7], se_bot, c),
    }


def init_params(key, in_ch, ch, se_bot, att_ch, att_bot, emb):
    ks = jax.random.split(key, 13)
    p = {}
    p['conv1'] = _init_conv(ks[0], in_ch, ch, 5)
    p['bn1'] = _init_bn(ks[1], ch)
    p['layer1'] = _init_bottleneck(ks[2], ch, se_bot)
    p['layer2'] = _init_bottleneck(ks[3], ch, se_bot)
    p['layer3'] = _init_bottleneck(ks[4], ch, se_bot)
    # layer4 1x1 conv over cat(out1,out2,out3): weight stored pre-split as
    # (3, ch, att_ch) so the concat never has to be materialized.
    kw, kb = jax.random.split(ks[5])
    p['layer4'] = {
        'w': (jax.random.normal(kw, (3, ch, att_ch), jnp.float32)
              / math.sqrt(3 * ch)).astype(jnp.bfloat16),
        'b': 0.05 * jax.random.normal(kb, (att_ch,), jnp.float32),
    }
    a1 = _init_dense(ks[6], att_ch, att_bot)
    a2 = _init_dense(ks[7], att_bot, att_ch)
    p['attention'] = {'w1': a1['w'], 'b1': a1['b'],
                      'bn': _init_bn(ks[8], att_bot),
                      'w2': a2['w'], 'b2': a2['b']}
    p['bn_agg'] = _init_bn(ks[9], 2 * att_ch)
    p['fc'] = _init_dense(ks[10], 2 * att_ch, emb)
    p['bn_emb'] = _init_bn(ks[12], emb)
    return p


# --------------------------------------------------------------------------
# Forward pass.  All hot compute runs inside Pallas kernels; the only plain
# JAX ops are the boundary transpose/cast and the tiny (B, 2A) stat concat.
# --------------------------------------------------------------------------
def _bottleneck_fwd(xs, p, dil):
    """xs: list of tensors whose SUM is the bottleneck input (residual fused)."""
    out = conv1d_fused(xs, p['conv1']['w'], p['conv1']['b'],
                       p['bn1']['s'], p['bn1']['t'], dil=1, relu=True)
    out = conv1d_fused([out], p['conv2']['w'], p['conv2']['b'],
                       p['bn2']['s'], p['bn2']['t'], dil=dil, relu=True)
    out = conv1d_fused([out], p['conv3']['w'], p['conv3']['b'],
                       p['bn3']['s'], p['bn3']['t'], dil=1, relu=False)
    # residual add (sum of xs) + SEModule fused in one kernel
    return se_block(out, xs, p['se1']['w'], p['se1']['b'],
                    p['se2']['w'], p['se2']['b'])


def ecapa_forward(params, x_ncl):
    p = params
    # PyTorch NCL (B, C, T) -> channels-last (B, T, C); bf16 activations
    x = jnp.transpose(x_ncl, (0, 2, 1)).astype(jnp.bfloat16)
    out = conv1d_fused([x], p['conv1']['w'], p['conv1']['b'],
                       p['bn1']['s'], p['bn1']['t'], dil=1, relu=True)
    out1 = _bottleneck_fwd([out], p['layer1'], dil=2)
    out2 = _bottleneck_fwd([out, out1], p['layer2'], dil=3)          # out+out1
    out3 = _bottleneck_fwd([out, out1, out2], p['layer3'], dil=4)    # +out2
    # layer4 + ReLU over cat(out1,out2,out3) without materializing the concat
    h = concat_conv1x1([out1, out2, out3], p['layer4']['w'], p['layer4']['b'],
                       relu=True)
    a = p['attention']
    mu, sg = attn_stat_pool(h, a['w1'], a['b1'], a['bn']['s'], a['bn']['t'],
                            a['w2'], a['b2'])
    stat = jnp.concatenate([mu, sg], axis=-1)                        # (B, 2A)
    return head(stat, p['bn_agg']['s'], p['bn_agg']['t'],
                p['fc']['w'], p['fc']['b'],
                p['bn_emb']['s'], p['bn_emb']['t'])


if __name__ == "__main__":
    # Scaled-down dims (originals: in=80, ch=1024, se_bot=128, att=1536,
    # att_bot=256, emb=192).  CH/ATT kept at 128 so the hot activation lane
    # dim stays dense (feedback: last dim < 128 forces masked partial stores).
    IN_CH, CH, SE_BOT = 16, 128, 32
    ATT_CH, ATT_BOT, EMB = 128, 32, 32
    B, T = 2, 32

    key = jax.random.PRNGKey(0)
    kp, kx = jax.random.split(key)
    params = init_params(kp, IN_CH, CH, SE_BOT, ATT_CH, ATT_BOT, EMB)
    x = jax.random.normal(kx, (B, IN_CH, T), jnp.float32)   # PyTorch NCL input

    emb = jax.jit(ecapa_forward)(params, x)
    jax.block_until_ready(emb)
    assert emb.shape == (B, EMB) and emb.dtype == jnp.float32
    assert bool(jnp.all(jnp.isfinite(emb)))
    print("KERNEL_OK")
</pallas_src>

<mosaic_0001>
module attributes {stable_mosaic.version = 11 : i64} {
  func.func @kernel(%arg0: i32, %arg1: i32, %arg2: memref<1x32x128xbf16, #tpu.memory_space<vmem>>, %arg3: memref<1x128x128xbf16, #tpu.memory_space<vmem>>, %arg4: memref<1x128xf32, #tpu.memory_space<vmem>>, %arg5: memref<1x128xf32, #tpu.memory_space<vmem>>, %arg6: memref<1x128xf32, #tpu.memory_space<vmem>>, %arg7: memref<1x32x128xbf16, #tpu.memory_space<vmem>>) attributes {dimension_semantics = [#tpu.dimension_semantics<parallel>, #tpu.dimension_semantics<parallel>], iteration_bounds = array<i64: 2, 1>, scalar_prefetch = 0 : i64, scratch_operands = 0 : i64, tpu.core_type = #tpu.core_type<tc>, window_params = [{transform_indices = @transform_0, window_bounds = array<i64: 1, 32, 128>}, {transform_indices = @transform_1, window_bounds = array<i64: 1, 128, 128>}, {transform_indices = @transform_2, window_bounds = array<i64: 1, 128>}, {transform_indices = @transform_3, window_bounds = array<i64: 1, 128>}, {transform_indices = @transform_4, window_bounds = array<i64: 1, 128>}, {transform_indices = @transform_5, window_bounds = array<i64: 1, 32, 128>}]} {
    %c0 = arith.constant 0 : index
    %c0_0 = arith.constant 0 : index
    %c0_1 = arith.constant 0 : index
    %0 = vector.load %arg2[%c0, %c0_0, %c0_1] : memref<1x32x128xbf16, #tpu.memory_space<vmem>>, vector<1x32x128xbf16>
    %1 = vector.shape_cast %0 : vector<1x32x128xbf16> to vector<32x128xbf16>
    %c0_2 = arith.constant 0 : index
    %c0_3 = arith.constant 0 : index
    %c0_4 = arith.constant 0 : index
    %2 = vector.load %arg3[%c0_2, %c0_3, %c0_4] : memref<1x128x128xbf16, #tpu.memory_space<vmem>>, vector<1x128x128xbf16>
    %3 = vector.shape_cast %2 : vector<1x128x128xbf16> to vector<128x128xbf16>
    %cst = arith.constant dense<0.000000e+00> : vector<32x128xf32>
    %4 = tpu.matmul %1, %3, %cst {dimension_numbers = #tpu.dot_dimension_numbers<[1], [0], [0], [1], [0, 0, 1, 1], [], []>} : vector<32x128xbf16>, vector<128x128xbf16>, vector<32x128xf32> -> vector<32x128xf32>
    %c0_5 = arith.constant 0 : index
    %c0_6 = arith.constant 0 : index
    %5 = vector.load %arg4[%c0_5, %c0_6] : memref<1x128xf32, #tpu.memory_space<vmem>>, vector<1x128xf32>
    %6 = vector.broadcast %5 : vector<1x128xf32> to vector<32x128xf32>
    %7 = arith.addf %4, %6 : vector<32x128xf32>
    %cst_7 = arith.constant 0.000000e+00 : f32
    %8 = vector.broadcast %cst_7 : f32 to vector<32x128xf32>
    %9 = arith.maximumf %7, %8 : vector<32x128xf32>
    %c0_8 = arith.constant 0 : index
    %c0_9 = arith.constant 0 : index
    %10 = vector.load %arg5[%c0_8, %c0_9] : memref<1x128xf32, #tpu.memory_space<vmem>>, vector<1x128xf32>
    %11 = vector.broadcast %10 : vector<1x128xf32> to vector<32x128xf32>
    %12 = arith.mulf %9, %11 : vector<32x128xf32>
    %c0_10 = arith.constant 0 : index
    %c0_11 = arith.constant 0 : index
    %13 = vector.load %arg6[%c0_10, %c0_11] : memref<1x128xf32, #tpu.memory_space<vmem>>, vector<1x128xf32>
    %14 = vector.broadcast %13 : vector<1x128xf32> to vector<32x128xf32>
    %15 = arith.addf %12, %14 : vector<32x128xf32>
    %16 = arith.truncf %15 : vector<32x128xf32> to vector<32x128xbf16>
    %c0_12 = arith.constant 0 : index
    %c0_13 = arith.constant 0 : index
    %c0_14 = arith.constant 0 : index
    %17 = vector.load %arg7[%c0_12, %c0_13, %c0_14] : memref<1x32x128xbf16, #tpu.memory_space<vmem>>, vector<1x32x128xbf16>
    %18 = vector.shape_cast %17 : vector<1x32x128xbf16> to vector<32x128xbf16>
    %19 = vector.shape_cast %16 : vector<32x128xbf16> to vector<1x32x128xbf16>
    tpu.vector_store %arg7[%c0_12, %c0_13, %c0_14], %19 {strides = array<i32>} : memref<1x32x128xbf16, #tpu.memory_space<vmem>>, vector<1x32x128xbf16>,
    return
  }
  func.func @transform_0(%arg0: i32, %arg1: i32) -> (i32, i32, i32) {
    %c0_i32 = arith.constant 0 : i32
    %c0_i32_0 = arith.constant 0 : i32
    %c0_i32_1 = arith.constant 0 : i32
    return %arg0, %c0_i32, %c0_i32_0 : i32, i32, i32
  }
  func.func @transform_1(%arg0: i32, %arg1: i32) -> (i32, i32, i32) {
    %c0_i32 = arith.constant 0 : i32
    %c0_i32_0 = arith.constant 0 : i32
    %c0_i32_1 = arith.constant 0 : i32
    return %c0_i32, %c0_i32_0, %arg1 : i32, i32, i32
  }
  func.func @transform_2(%arg0: i32, %arg1: i32) -> (i32, i32) {
    %c0_i32 = arith.constant 0 : i32
    %c0_i32_0 = arith.constant 0 : i32
    return %c0_i32, %arg1 : i32, i32
  }
  func.func @transform_3(%arg0: i32, %arg1: i32) -> (i32, i32) {
    %c0_i32 = arith.constant 0 : i32
    %c0_i32_0 = arith.constant 0 : i32
    return %c0_i32, %arg1 : i32, i32
  }
  func.func @transform_4(%arg0: i32, %arg1: i32) -> (i32, i32) {
    %c0_i32 = arith.constant 0 : i32
    %c0_i32_0 = arith.constant 0 : i32
    return %c0_i32, %arg1 : i32, i32
  }
  func.func @transform_5(%arg0: i32, %arg1: i32) -> (i32, i32, i32) {
    %c0_i32 = arith.constant 0 : i32
    %c0_i32_0 = arith.constant 0 : i32
    return %arg0, %c0_i32, %arg1 : i32, i32, i32
  }
}

module attributes {stable_mosaic.version = 11 : i64} {
  func.func @kernel(%arg0: i32, %arg1: i32, %arg2: memref<1x32x16xbf16, #tpu.memory_space<vmem>>, %arg3: memref<5x16x128xbf16, #tpu.memory_space<vmem>>, %arg4: memref<1x128xf32, #tpu.memory_space<vmem>>, %arg5: memref<1x128xf32, #tpu.memory_space<vmem>>, %arg6: memref<1x128xf32, #tpu.memory_space<vmem>>, %arg7: memref<1x32x128xbf16, #tpu.memory_space<vmem>>, %arg8: memref<36x16xf32, #tpu.memory_space<vmem>>) attributes {dimension_semantics = [#tpu.dimension_semantics<parallel>, #tpu.dimension_semantics<parallel>], iteration_bounds = array<i64: 2, 1>, scalar_prefetch = 0 : i64, scratch_operands = 1 : i64, tpu.core_type = #tpu.core_type<tc>, window_params = [{transform_indices = @transform_0, window_bounds = array<i64: 1, 32, 16>}, {transform_indices = @transform_1, window_bounds = array<i64: 5, 16, 128>}, {transform_indices = @transform_2, window_bounds = array<i64: 1, 128>}, {transform_indices = @transform_3, window_bounds = array<i64: 1, 128>}, {transform_indices = @transform_4, window_bounds = array<i64: 1, 128>}, {transform_indices = @transform_5, window_bounds = array<i64: 1, 32, 128>}]} {
    %c0 = arith.constant 0 : index
    %c0_0 = arith.constant 0 : index
    %c0_1 = arith.constant 0 : index
    %0 = vector.load %arg2[%c0, %c0_0, %c0_1] : memref<1x32x16xbf16, #tpu.memory_space<vmem>>, vector<1x32x16xbf16>
    %1 = vector.shape_cast %0 : vector<1x32x16xbf16> to vector<32x16xbf16>
    %cst = arith.constant 0.000000e+00 : f32
    %2 = vector.broadcast %cst : f32 to vector<36x16xf32>
    %c0_2 = arith.constant 0 : index
    %c0_3 = arith.constant 0 : index
    %3 = vector.load %arg8[%c0_2, %c0_3] : memref<36x16xf32, #tpu.memory_space<vmem>>, vector<36x16xf32>
    tpu.vector_store %arg8[%c0_2, %c0_3], %2 {strides = array<i32>} : memref<36x16xf32, #tpu.memory_space<vmem>>, vector<36x16xf32>,
    %4 = arith.extf %1 : vector<32x16xbf16> to vector<32x16xf32>
    %c2 = arith.constant 2 : index
    %c0_4 = arith.constant 0 : index
    %5 = vector.load %arg8[%c2, %c0_4] : memref<36x16xf32, #tpu.memory_space<vmem>>, vector<32x16xf32>
    tpu.vector_store %arg8[%c2, %c0_4], %4 {strides = array<i32>} : memref<36x16xf32, #tpu.memory_space<vmem>>, vector<32x16xf32>,
    %c0_5 = arith.constant 0 : index
    %c0_6 = arith.constant 0 : index
    %6 = vector.load %arg8[%c0_5, %c0_6] : memref<36x16xf32, #tpu.memory_space<vmem>>, vector<32x16xf32>
    %7 = arith.truncf %6 : vector<32x16xf32> to vector<32x16xbf16>
    %c1 = arith.constant 1 : index
    %c0_7 = arith.constant 0 : index
    %8 = vector.load %arg8[%c1, %c0_7] : memref<36x16xf32, #tpu.memory_space<vmem>>, vector<32x16xf32>
    %9 = arith.truncf %8 : vector<32x16xf32> to vector<32x16xbf16>
    %c2_8 = arith.constant 2 : index
    %c0_9 = arith.constant 0 : index
    %10 = vector.load %arg8[%c2_8, %c0_9] : memref<36x16xf32, #tpu.memory_space<vmem>>, vector<32x16xf32>
    %11 = arith.truncf %10 : vector<32x16xf32> to vector<32x16xbf16>
    %c3 = arith.constant 3 : index
    %c0_10 = arith.constant 0 : index
    %12 = vector.load %arg8[%c3, %c0_10] : memref<36x16xf32, #tpu.memory_space<vmem>>, vector<32x16xf32>
    %13 = arith.truncf %12 : vector<32x16xf32> to vector<32x16xbf16>
    %c4 = arith.constant 4 : index
    %c0_11 = arith.constant 0 : index
    %14 = vector.load %arg8[%c4, %c0_11] : memref<36x16xf32, #tpu.memory_space<vmem>>, vector<32x16xf32>
    %15 = arith.truncf %14 : vector<32x16xf32> to vector<32x16xbf16>
    %c0_12 = arith.constant 0 : index
    %c0_13 = arith.constant 0 : index
    %c0_14 = arith.constant 0 : index
    %16 = vector.load %arg3[%c0_12, %c0_13, %c0_14] : memref<5x16x128xbf16, #tpu.memory_space<vmem>>, vector<1x16x128xbf16>
    %17 = vector.shape_cast %16 : vector<1x16x128xbf16> to vector<16x128xbf16>
    %cst_15 = arith.constant dense<0.000000e+00> : vector<32x128xf32>
    %18 = tpu.matmul %7, %17, %cst_15 {dimension_numbers = #tpu.dot_dimension_numbers<[1], [0], [0], [1], [0, 0, 1, 1], [], []>} : vector<32x16xbf16>, vector<16x128xbf16>, vector<32x128xf32> -> vector<32x128xf32>
    %c1_16 = arith.constant 1 : index
    %c0_17 = arith.constant 0 : index
    %c0_18 = arith.constant 0 : index
    %19 = vector.load %arg3[%c1_16, %c0_17, %c0_18] : memref<5x16x128xbf16, #tpu.memory_space<vmem>>, vector<1x16x128xbf16>
    %20 = vector.shape_cast %19 : vector<1x16x128xbf16> to vector<16x128xbf16>
    %cst_19 = arith.constant dense<0.000000e+00> : vector<32x128xf32>
    %21 = tpu.matmul %9, %20, %cst_19 {dimension_numbers = #tpu.dot_dimension_numbers<[1], [0], [0], [1], [0, 0, 1, 1], [], []>} : vector<32x16xbf16>, vector<16x128xbf16>, vector<32x128xf32> -> vector<32x128xf32>
    %22 = arith.addf %18, %21 : vector<32x128xf32>
    %c2_20 = arith.constant 2 : index
    %c0_21 = arith.constant 0 : index
    %c0_22 = arith.constant 0 : index
    %23 = vector.load %arg3[%c2_20, %c0_21, %c0_22] : memref<5x16x128xbf16, #tpu.memory_space<vmem>>, vector<1x16x128xbf16>
    %24 = vector.shape_cast %23 : vector<1x16x128xbf16> to vector<16x128xbf16>
    %cst_23 = arith.constant dense<0.000000e+00> : vector<32x128xf32>
    %25 = tpu.matmul %11, %24, %cst_23 {dimension_numbers = #tpu.dot_dimension_numbers<[1], [0], [0], [1], [0, 0, 1, 1], [], []>} : vector<32x16xbf16>, vector<16x128xbf16>, vector<32x128xf32> -> vector<32x128xf32>
    %26 = arith.addf %22, %25 : vector<32x128xf32>
    %c3_24 = arith.constant 3 : index
    %c0_25 = arith.constant 0 : index
    %c0_26 = arith.constant 0 : index
    %27 = vector.load %arg3[%c3_24, %c0_25, %c0_26] : memref<5x16x128xbf16, #tpu.memory_space<vmem>>, vector<1x16x128xbf16>
    %28 = vector.shape_cast %27 : vector<1x16x128xbf16> to vector<16x128xbf16>
    %cst_27 = arith.constant dense<0.000000e+00> : vector<32x128xf32>
    %29 = tpu.matmul %13, %28, %cst_27 {dimension_numbers = #tpu.dot_dimension_numbers<[1], [0], [0], [1], [0, 0, 1, 1], [], []>} : vector<32x16xbf16>, vector<16x128xbf16>, vector<32x128xf32> -> vector<32x128xf32>
    %30 = arith.addf %26, %29 : vector<32x128xf32>
    %c4_28 = arith.constant 4 : index
    %c0_29 = arith.constant 0 : index
    %c0_30 = arith.constant 0 : index
    %31 = vector.load %arg3[%c4_28, %c0_29, %c0_30] : memref<5x16x128xbf16, #tpu.memory_space<vmem>>, vector<1x16x128xbf16>
    %32 = vector.shape_cast %31 : vector<1x16x128xbf16> to vector<16x128xbf16>
    %cst_31 = arith.constant dense<0.000000e+00> : vector<32x128xf32>
    %33 = tpu.matmul %15, %32, %cst_31 {dimension_numbers = #tpu.dot_dimension_numbers<[1], [0], [0], [1], [0, 0, 1, 1], [], []>} : vector<32x16xbf16>, vector<16x128xbf16>, vector<32x128xf32> -> vector<32x128xf32>
    %34 = arith.addf %30, %33 : vector<32x128xf32>
    %c0_32 = arith.constant 0 : index
    %c0_33 = arith.constant 0 : index
    %35 = vector.load %arg4[%c0_32, %c0_33] : memref<1x128xf32, #tpu.memory_space<vmem>>, vector<1x128xf32>
    %36 = vector.broadcast %35 : vector<1x128xf32> to vector<32x128xf32>
    %37 = arith.addf %34, %36 : vector<32x128xf32>
    %cst_34 = arith.constant 0.000000e+00 : f32
    %38 = vector.broadcast %cst_34 : f32 to vector<32x128xf32>
    %39 = arith.maximumf %37, %38 : vector<32x128xf32>
    %c0_35 = arith.constant 0 : index
    %c0_36 = arith.constant 0 : index
    %40 = vector.load %arg5[%c0_35, %c0_36] : memref<1x128xf32, #tpu.memory_space<vmem>>, vector<1x128xf32>
    %41 = vector.broadcast %40 : vector<1x128xf32> to vector<32x128xf32>
    %42 = arith.mulf %39, %41 : vector<32x128xf32>
    %c0_37 = arith.constant 0 : index
    %c0_38 = arith.constant 0 : index
    %43 = vector.load %arg6[%c0_37, %c0_38] : memref<1x128xf32, #tpu.memory_space<vmem>>, vector<1x128xf32>
    %44 = vector.broadcast %43 : vector<1x128xf32> to vector<32x128xf32>
    %45 = arith.addf %42, %44 : vector<32x128xf32>
    %46 = arith.truncf %45 : vector<32x128xf32> to vector<32x128xbf16>
    %c0_39 = arith.constant 0 : index
    %c0_40 = arith.constant 0 : index
    %c0_41 = arith.constant 0 : index
    %47 = vector.load %arg7[%c0_39, %c0_40, %c0_41] : memref<1x32x128xbf16, #tpu.memory_space<vmem>>, vector<1x32x128xbf16>
    %48 = vector.shape_cast %47 : vector<1x32x128xbf16> to vector<32x128xbf16>
    %49 = vector.shape_cast %46 : vector<32x128xbf16> to vector<1x32x128xbf16>
    tpu.vector_store %arg7[%c0_39, %c0_40, %c0_41], %49 {strides = array<i32>} : memref<1x32x128xbf16, #tpu.memory_space<vmem>>, vector<1x32x128xbf16>,
    return
  }
  func.func @transform_0(%arg0: i32, %arg1: i32) -> (i32, i32, i32) {
    %c0_i32 = arith.constant 0 : i32
    %c0_i32_0 = arith.constant 0 : i32
    %c0_i32_1 = arith.constant 0 : i32
    return %arg0, %c0_i32, %c0_i32_0 : i32, i32, i32
  }
  func.func @transform_1(%arg0: i32, %arg1: i32) -> (i32, i32, i32) {
    %c0_i32 = arith.constant 0 : i32
    %c0_i32_0 = arith.constant 0 : i32
    %c0_i32_1 = arith.constant 0 : i32
    return %c0_i32, %c0_i32_0, %arg1 : i32, i32, i32
  }
  func.func @transform_2(%arg0: i32, %arg1: i32) -> (i32, i32) {
    %c0_i32 = arith.constant 0 : i32
    %c0_i32_0 = arith.constant 0 : i32
    return %c0_i32, %arg1 : i32, i32
  }
  func.func @transform_3(%arg0: i32, %arg1: i32) -> (i32, i32) {
    %c0_i32 = arith.constant 0 : i32
    %c0_i32_0 = arith.constant 0 : i32
    return %c0_i32, %arg1 : i32, i32
  }
  func.func @transform_4(%arg0: i32, %arg1: i32) -> (i32, i32) {
    %c0_i32 = arith.constant 0 : i32
    %c0_i32_0 = arith.constant 0 : i32
    return %c0_i32, %arg1 : i32, i32
  }
  func.func @transform_5(%arg0: i32, %arg1: i32) -> (i32, i32, i32) {
    %c0_i32 = arith.constant 0 : i32
    %c0_i32_0 = arith.constant 0 : i32
    return %arg0, %c0_i32, %arg1 : i32, i32, i32
  }
}

module attributes {stable_mosaic.version = 11 : i64} {
  func.func @kernel(%arg0: i32, %arg1: i32, %arg2: memref<1x32x128xbf16, #tpu.memory_space<vmem>>, %arg3: memref<1x128x128xbf16, #tpu.memory_space<vmem>>, %arg4: memref<1x128xf32, #tpu.memory_space<vmem>>, %arg5: memref<1x128xf32, #tpu.memory_space<vmem>>, %arg6: memref<1x128xf32, #tpu.memory_space<vmem>>, %arg7: memref<1x32x128xbf16, #tpu.memory_space<vmem>>) attributes {dimension_semantics = [#tpu.dimension_semantics<parallel>, #tpu.dimension_semantics<parallel>], iteration_bounds = array<i64: 2, 1>, scalar_prefetch = 0 : i64, scratch_operands = 0 : i64, tpu.core_type = #tpu.core_type<tc>, window_params = [{transform_indices = @transform_0, window_bounds = array<i64: 1, 32, 128>}, {transform_indices = @transform_1, window_bounds = array<i64: 1, 128, 128>}, {transform_indices = @transform_2, window_bounds = array<i64: 1, 128>}, {transform_indices = @transform_3, window_bounds = array<i64: 1, 128>}, {transform_indices = @transform_4, window_bounds = array<i64: 1, 128>}, {transform_indices = @transform_5, window_bounds = array<i64: 1, 32, 128>}]} {
    %c0 = arith.constant 0 : index
    %c0_0 = arith.constant 0 : index
    %c0_1 = arith.constant 0 : index
    %0 = vector.load %arg2[%c0, %c0_0, %c0_1] : memref<1x32x128xbf16, #tpu.memory_space<vmem>>, vector<1x32x128xbf16>
    %1 = vector.shape_cast %0 : vector<1x32x128xbf16> to vector<32x128xbf16>
    %c0_2 = arith.constant 0 : index
    %c0_3 = arith.constant 0 : index
    %c0_4 = arith.constant 0 : index
    %2 = vector.load %arg3[%c0_2, %c0_3, %c0_4] : memref<1x128x128xbf16, #tpu.memory_space<vmem>>, vector<1x128x128xbf16>
    %3 = vector.shape_cast %2 : vector<1x128x128xbf16> to vector<128x128xbf16>
    %cst = arith.constant dense<0.000000e+00> : vector<32x128xf32>
    %4 = tpu.matmul %1, %3, %cst {dimension_numbers = #tpu.dot_dimension_numbers<[1], [0], [0], [1], [0, 0, 1, 1], [], []>} : vector<32x128xbf16>, vector<128x128xbf16>, vector<32x128xf32> -> vector<32x128xf32>
    %c0_5 = arith.constant 0 : index
    %c0_6 = arith.constant 0 : index
    %5 = vector.load %arg4[%c0_5, %c0_6] : memref<1x128xf32, #tpu.memory_space<vmem>>, vector<1x128xf32>
    %6 = vector.broadcast %5 : vector<1x128xf32> to vector<32x128xf32>
    %7 = arith.addf %4, %6 : vector<32x128xf32>
    %c0_7 = arith.constant 0 : index
    %c0_8 = arith.constant 0 : index
    %8 = vector.load %arg5[%c0_7, %c0_8] : memref<1x128xf32, #tpu.memory_space<vmem>>, vector<1x128xf32>
    %9 = vector.broadcast %8 : vector<1x128xf32> to vector<32x128xf32>
    %10 = arith.mulf %7, %9 : vector<32x128xf32>
    %c0_9 = arith.constant 0 : index
    %c0_10 = arith.constant 0 : index
    %11 = vector.load %arg6[%c0_9, %c0_10] : memref<1x128xf32, #tpu.memory_space<vmem>>, vector<1x128xf32>
    %12 = vector.broadcast %11 : vector<1x128xf32> to vector<32x128xf32>
    %13 = arith.addf %10, %12 : vector<32x128xf32>
    %14 = arith.truncf %13 : vector<32x128xf32> to vector<32x128xbf16>
    %c0_11 = arith.constant 0 : index
    %c0_12 = arith.constant 0 : index
    %c0_13 = arith.constant 0 : index
    %15 = vector.load %arg7[%c0_11, %c0_12, %c0_13] : memref<1x32x128xbf16, #tpu.memory_space<vmem>>, vector<1x32x128xbf16>
    %16 = vector.shape_cast %15 : vector<1x32x128xbf16> to vector<32x128xbf16>
    %17 = vector.shape_cast %14 : vector<32x128xbf16> to vector<1x32x128xbf16>
    tpu.vector_store %arg7[%c0_11, %c0_12, %c0_13], %17 {strides = array<i32>} : memref<1x32x128xbf16, #tpu.memory_space<vmem>>, vector<1x32x128xbf16>,
    return
  }
  func.func @transform_0(%arg0: i32, %arg1: i32) -> (i32, i32, i32) {
    %c0_i32 = arith.constant 0 : i32
    %c0_i32_0 = arith.constant 0 : i32
    %c0_i32_1 = arith.constant 0 : i32
    return %arg0, %c0_i32, %c0_i32_0 : i32, i32, i32
  }
  func.func @transform_1(%arg0: i32, %arg1: i32) -> (i32, i32, i32) {
    %c0_i32 = arith.constant 0 : i32
    %c0_i32_0 = arith.constant 0 : i32
    %c0_i32_1 = arith.constant 0 : i32
    return %c0_i32, %c0_i32_0, %arg1 : i32, i32, i32
  }
  func.func @transform_2(%arg0: i32, %arg1: i32) -> (i32, i32) {
    %c0_i32 = arith.constant 0 : i32
    %c0_i32_0 = arith.constant 0 : i32
    return %c0_i32, %arg1 : i32, i32
  }
  func.func @transform_3(%arg0: i32, %arg1: i32) -> (i32, i32) {
    %c0_i32 = arith.constant 0 : i32
    %c0_i32_0 = arith.constant 0 : i32
    return %c0_i32, %arg1 : i32, i32
  }
  func.func @transform_4(%arg0: i32, %arg1: i32) -> (i32, i32) {
    %c0_i32 = arith.constant 0 : i32
    %c0_i32_0 = arith.constant 0 : i32
    return %c0_i32, %arg1 : i32, i32
  }
  func.func @transform_5(%arg0: i32, %arg1: i32) -> (i32, i32, i32) {
    %c0_i32 = arith.constant 0 : i32
    %c0_i32_0 = arith.constant 0 : i32
    return %arg0, %c0_i32, %arg1 : i32, i32, i32
  }
}

module attributes {stable_mosaic.version = 11 : i64} {
  func.func @kernel(%arg0: i32, %arg1: i32, %arg2: memref<1x32x128xbf16, #tpu.memory_space<vmem>>, %arg3: memref<3x128x128xbf16, #tpu.memory_space<vmem>>, %arg4: memref<1x128xf32, #tpu.memory_space<vmem>>, %arg5: memref<1x128xf32, #tpu.memory_space<vmem>>, %arg6: memref<1x128xf32, #tpu.memory_space<vmem>>, %arg7: memref<1x32x128xbf16, #tpu.memory_space<vmem>>, %arg8: memref<36x128xf32, #tpu.memory_space<vmem>>) attributes {dimension_semantics = [#tpu.dimension_semantics<parallel>, #tpu.dimension_semantics<parallel>], iteration_bounds = array<i64: 2, 1>, scalar_prefetch = 0 : i64, scratch_operands = 1 : i64, tpu.core_type = #tpu.core_type<tc>, window_params = [{transform_indices = @transform_0, window_bounds = array<i64: 1, 32, 128>}, {transform_indices = @transform_1, window_bounds = array<i64: 3, 128, 128>}, {transform_indices = @transform_2, window_bounds = array<i64: 1, 128>}, {transform_indices = @transform_3, window_bounds = array<i64: 1, 128>}, {transform_indices = @transform_4, window_bounds = array<i64: 1, 128>}, {transform_indices = @transform_5, window_bounds = array<i64: 1, 32, 128>}]} {
    %c0 = arith.constant 0 : index
    %c0_0 = arith.constant 0 : index
    %c0_1 = arith.constant 0 : index
    %0 = vector.load %arg2[%c0, %c0_0, %c0_1] : memref<1x32x128xbf16, #tpu.memory_space<vmem>>, vector<1x32x128xbf16>
    %1 = vector.shape_cast %0 : vector<1x32x128xbf16> to vector<32x128xbf16>
    %cst = arith.constant 0.000000e+00 : f32
    %2 = vector.broadcast %cst : f32 to vector<36x128xf32>
    %c0_2 = arith.constant 0 : index
    %c0_3 = arith.constant 0 : index
    %3 = vector.load %arg8[%c0_2, %c0_3] : memref<36x128xf32, #tpu.memory_space<vmem>>, vector<36x128xf32>
    tpu.vector_store %arg8[%c0_2, %c0_3], %2 {strides = array<i32>} : memref<36x128xf32, #tpu.memory_space<vmem>>, vector<36x128xf32>,
    %4 = arith.extf %1 : vector<32x128xbf16> to vector<32x128xf32>
    %c2 = arith.constant 2 : index
    %c0_4 = arith.constant 0 : index
    %5 = vector.load %arg8[%c2, %c0_4] : memref<36x128xf32, #tpu.memory_space<vmem>>, vector<32x128xf32>
    tpu.vector_store %arg8[%c2, %c0_4], %4 {strides = array<i32>} : memref<36x128xf32, #tpu.memory_space<vmem>>, vector<32x128xf32>,
    %c0_5 = arith.constant 0 : index
    %c0_6 = arith.constant 0 : index
    %6 = vector.load %arg8[%c0_5, %c0_6] : memref<36x128xf32, #tpu.memory_space<vmem>>, vector<32x128xf32>
    %7 = arith.truncf %6 : vector<32x128xf32> to vector<32x128xbf16>
    %c2_7 = arith.constant 2 : index
    %c0_8 = arith.constant 0 : index
    %8 = vector.load %arg8[%c2_7, %c0_8] : memref<36x128xf32, #tpu.memory_space<vmem>>, vector<32x128xf32>
    %9 = arith.truncf %8 : vector<32x128xf32> to vector<32x128xbf16>
    %c4 = arith.constant 4 : index
    %c0_9 = arith.constant 0 : index
    %10 = vector.load %arg8[%c4, %c0_9] : memref<36x128xf32, #tpu.memory_space<vmem>>, vector<32x128xf32>
    %11 = arith.truncf %10 : vector<32x128xf32> to vector<32x128xbf16>
    %c0_10 = arith.constant 0 : index
    %c0_11 = arith.constant 0 : index
    %c0_12 = arith.constant 0 : index
    %12 = vector.load %arg3[%c0_10, %c0_11, %c0_12] : memref<3x128x128xbf16, #tpu.memory_space<vmem>>, vector<1x128x128xbf16>
    %13 = vector.shape_cast %12 : vector<1x128x128xbf16> to vector<128x128xbf16>
    %cst_13 = arith.constant dense<0.000000e+00> : vector<32x128xf32>
    %14 = tpu.matmul %7, %13, %cst_13 {dimension_numbers = #tpu.dot_dimension_numbers<[1], [0], [0], [1], [0, 0, 1, 1], [], []>} : vector<32x128xbf16>, vector<128x128xbf16>, vector<32x128xf32> -> vector<32x128xf32>
    %c1 = arith.constant 1 : index
    %c0_14 = arith.constant 0 : index
    %c0_15 = arith.constant 0 : index
    %15 = vector.load %arg3[%c1, %c0_14, %c0_15] : memref<3x128x128xbf16, #tpu.memory_space<vmem>>, vector<1x128x128xbf16>
    %16 = vector.shape_cast %15 : vector<1x128x128xbf16> to vector<128x128xbf16>
    %cst_16 = arith.constant dense<0.000000e+00> : vector<32x128xf32>
    %17 = tpu.matmul %9, %16, %cst_16 {dimension_numbers = #tpu.dot_dimension_numbers<[1], [0], [0], [1], [0, 0, 1, 1], [], []>} : vector<32x128xbf16>, vector<128x128xbf16>, vector<32x128xf32> -> vector<32x128xf32>
    %18 = arith.addf %14, %17 : vector<32x128xf32>
    %c2_17 = arith.constant 2 : index
    %c0_18 = arith.constant 0 : index
    %c0_19 = arith.constant 0 : index
    %19 = vector.load %arg3[%c2_17, %c0_18, %c0_19] : memref<3x128x128xbf16, #tpu.memory_space<vmem>>, vector<1x128x128xbf16>
    %20 = vector.shape_cast %19 : vector<1x128x128xbf16> to vector<128x128xbf16>
    %cst_20 = arith.constant dense<0.000000e+00> : vector<32x128xf32>
    %21 = tpu.matmul %11, %20, %cst_20 {dimension_numbers = #tpu.dot_dimension_numbers<[1], [0], [0], [1], [0, 0, 1, 1], [], []>} : vector<32x128xbf16>, vector<128x128xbf16>, vector<32x128xf32> -> vector<32x128xf32>
    %22 = arith.addf %18, %21 : vector<32x128xf32>
    %c0_21 = arith.constant 0 : index
    %c0_22 = arith.constant 0 : index
    %23 = vector.load %arg4[%c0_21, %c0_22] : memref<1x128xf32, #tpu.memory_space<vmem>>, vector<1x128xf32>
    %24 = vector.broadcast %23 : vector<1x128xf32> to vector<32x128xf32>
    %25 = arith.addf %22, %24 : vector<32x128xf32>
    %cst_23 = arith.constant 0.000000e+00 : f32
    %26 = vector.broadcast %cst_23 : f32 to vector<32x128xf32>
    %27 = arith.maximumf %25, %26 : vector<32x128xf32>
    %c0_24 = arith.constant 0 : index
    %c0_25 = arith.constant 0 : index
    %28 = vector.load %arg5[%c0_24, %c0_25] : memref<1x128xf32, #tpu.memory_space<vmem>>, vector<1x128xf32>
    %29 = vector.broadcast %28 : vector<1x128xf32> to vector<32x128xf32>
    %30 = arith.mulf %27, %29 : vector<32x128xf32>
    %c0_26 = arith.constant 0 : index
    %c0_27 = arith.constant 0 : index
    %31 = vector.load %arg6[%c0_26, %c0_27] : memref<1x128xf32, #tpu.memory_space<vmem>>, vector<1x128xf32>
    %32 = vector.broadcast %31 : vector<1x128xf32> to vector<32x128xf32>
    %33 = arith.addf %30, %32 : vector<32x128xf32>
    %34 = arith.truncf %33 : vector<32x128xf32> to vector<32x128xbf16>
    %c0_28 = arith.constant 0 : index
    %c0_29 = arith.constant 0 : index
    %c0_30 = arith.constant 0 : index
    %35 = vector.load %arg7[%c0_28, %c0_29, %c0_30] : memref<1x32x128xbf16, #tpu.memory_space<vmem>>, vector<1x32x128xbf16>
    %36 = vector.shape_cast %35 : vector<1x32x128xbf16> to vector<32x128xbf16>
    %37 = vector.shape_cast %34 : vector<32x128xbf16> to vector<1x32x128xbf16>
    tpu.vector_store %arg7[%c0_28, %c0_29, %c0_30], %37 {strides = array<i32>} : memref<1x32x128xbf16, #tpu.memory_space<vmem>>, vector<1x32x128xbf16>,
    return
  }
  func.func @transform_0(%arg0: i32, %arg1: i32) -> (i32, i32, i32) {
    %c0_i32 = arith.constant 0 : i32
    %c0_i32_0 = arith.constant 0 : i32
    %c0_i32_1 = arith.constant 0 : i32
    return %arg0, %c0_i32, %c0_i32_0 : i32, i32, i32
  }
  func.func @transform_1(%arg0: i32, %arg1: i32) -> (i32, i32, i32) {
    %c0_i32 = arith.constant 0 : i32
    %c0_i32_0 = arith.constant 0 : i32
    %c0_i32_1 = arith.constant 0 : i32
    return %c0_i32, %c0_i32_0, %arg1 : i32, i32, i32
  }
  func.func @transform_2(%arg0: i32, %arg1: i32) -> (i32, i32) {
    %c0_i32 = arith.constant 0 : i32
    %c0_i32_0 = arith.constant 0 : i32
    return %c0_i32, %arg1 : i32, i32
  }
  func.func @transform_3(%arg0: i32, %arg1: i32) -> (i32, i32) {
    %c0_i32 = arith.constant 0 : i32
    %c0_i32_0 = arith.constant 0 : i32
    return %c0_i32, %arg1 : i32, i32
  }
  func.func @transform_4(%arg0: i32, %arg1: i32) -> (i32, i32) {
    %c0_i32 = arith.constant 0 : i32
    %c0_i32_0 = arith.constant 0 : i32
    return %c0_i32, %arg1 : i32, i32
  }
  func.func @transform_5(%arg0: i32, %arg1: i32) -> (i32, i32, i32) {
    %c0_i32 = arith.constant 0 : i32
    %c0_i32_0 = arith.constant 0 : i32
    return %arg0, %c0_i32, %arg1 : i32, i32, i32
  }
}

module attributes {stable_mosaic.version = 11 : i64} {
  func.func @kernel(%arg0: i32, %arg1: i32, %arg2: memref<1x32x128xbf16, #tpu.memory_space<vmem>>, %arg3: memref<1x32x128xbf16, #tpu.memory_space<vmem>>, %arg4: memref<1x128x128xbf16, #tpu.memory_space<vmem>>, %arg5: memref<1x128xf32, #tpu.memory_space<vmem>>, %arg6: memref<1x128xf32, #tpu.memory_space<vmem>>, %arg7: memref<1x128xf32, #tpu.memory_space<vmem>>, %arg8: memref<1x32x128xbf16, #tpu.memory_space<vmem>>) attributes {dimension_semantics = [#tpu.dimension_semantics<parallel>, #tpu.dimension_semantics<parallel>], iteration_bounds = array<i64: 2, 1>, scalar_prefetch = 0 : i64, scratch_operands = 0 : i64, tpu.core_type = #tpu.core_type<tc>, window_params = [{transform_indices = @transform_0, window_bounds = array<i64: 1, 32, 128>}, {transform_indices = @transform_1, window_bounds = array<i64: 1, 32, 128>}, {transform_indices = @transform_2, window_bounds = array<i64: 1, 128, 128>}, {transform_indices = @transform_3, window_bounds = array<i64: 1, 128>}, {transform_indices = @transform_4, window_bounds = array<i64: 1, 128>}, {transform_indices = @transform_5, window_bounds = array<i64: 1, 128>}, {transform_indices = @transform_6, window_bounds = array<i64: 1, 32, 128>}]} {
    %c0 = arith.constant 0 : index
    %c0_0 = arith.constant 0 : index
    %c0_1 = arith.constant 0 : index
    %0 = vector.load %arg2[%c0, %c0_0, %c0_1] : memref<1x32x128xbf16, #tpu.memory_space<vmem>>, vector<1x32x128xbf16>
    %1 = vector.shape_cast %0 : vector<1x32x128xbf16> to vector<32x128xbf16>
    %2 = arith.extf %1 : vector<32x128xbf16> to vector<32x128xf32>
    %c0_2 = arith.constant 0 : index
    %c0_3 = arith.constant 0 : index
    %c0_4 = arith.constant 0 : index
    %3 = vector.load %arg3[%c0_2, %c0_3, %c0_4] : memref<1x32x128xbf16, #tpu.memory_space<vmem>>, vector<1x32x128xbf16>
    %4 = vector.shape_cast %3 : vector<1x32x128xbf16> to vector<32x128xbf16>
    %5 = arith.extf %4 : vector<32x128xbf16> to vector<32x128xf32>
    %6 = arith.addf %2, %5 : vector<32x128xf32>
    %7 = arith.truncf %6 : vector<32x128xf32> to vector<32x128xbf16>
    %c0_5 = arith.constant 0 : index
    %c0_6 = arith.constant 0 : index
    %c0_7 = arith.constant 0 : index
    %8 = vector.load %arg4[%c0_5, %c0_6, %c0_7] : memref<1x128x128xbf16, #tpu.memory_space<vmem>>, vector<1x128x128xbf16>
    %9 = vector.shape_cast %8 : vector<1x128x128xbf16> to vector<128x128xbf16>
    %cst = arith.constant dense<0.000000e+00> : vector<32x128xf32>
    %10 = tpu.matmul %7, %9, %cst {dimension_numbers = #tpu.dot_dimension_numbers<[1], [0], [0], [1], [0, 0, 1, 1], [], []>} : vector<32x128xbf16>, vector<128x128xbf16>, vector<32x128xf32> -> vector<32x128xf32>
    %c0_8 = arith.constant 0 : index
    %c0_9 = arith.constant 0 : index
    %11 = vector.load %arg5[%c0_8, %c0_9] : memref<1x128xf32, #tpu.memory_space<vmem>>, vector<1x128xf32>
    %12 = vector.broadcast %11 : vector<1x128xf32> to vector<32x128xf32>
    %13 = arith.addf %10, %12 : vector<32x128xf32>
    %cst_10 = arith.constant 0.000000e+00 : f32
    %14 = vector.broadcast %cst_10 : f32 to vector<32x128xf32>
    %15 = arith.maximumf %13, %14 : vector<32x128xf32>
    %c0_11 = arith.constant 0 : index
    %c0_12 = arith.constant 0 : index
    %16 = vector.load %arg6[%c0_11, %c0_12] : memref<1x128xf32, #tpu.memory_space<vmem>>, vector<1x128xf32>
    %17 = vector.broadcast %16 : vector<1x128xf32> to vector<32x128xf32>
    %18 = arith.mulf %15, %17 : vector<32x128xf32>
    %c0_13 = arith.constant 0 : index
    %c0_14 = arith.constant 0 : index
    %19 = vector.load %arg7[%c0_13, %c0_14] : memref<1x128xf32, #tpu.memory_space<vmem>>, vector<1x128xf32>
    %20 = vector.broadcast %19 : vector<1x128xf32> to vector<32x128xf32>
    %21 = arith.addf %18, %20 : vector<32x128xf32>
    %22 = arith.truncf %21 : vector<32x128xf32> to vector<32x128xbf16>
    %c0_15 = arith.constant 0 : index
    %c0_16 = arith.constant 0 : index
    %c0_17 = arith.constant 0 : index
    %23 = vector.load %arg8[%c0_15, %c0_16, %c0_17] : memref<1x32x128xbf16, #tpu.memory_space<vmem>>, vector<1x32x128xbf16>
    %24 = vector.shape_cast %23 : vector<1x32x128xbf16> to vector<32x128xbf16>
    %25 = vector.shape_cast %22 : vector<32x128xbf16> to vector<1x32x128xbf16>
    tpu.vector_store %arg8[%c0_15, %c0_16, %c0_17], %25 {strides = array<i32>} : memref<1x32x128xbf16, #tpu.memory_space<vmem>>, vector<1x32x128xbf16>,
    return
  }
  func.func @transform_0(%arg0: i32, %arg1: i32) -> (i32, i32, i32) {
    %c0_i32 = arith.constant 0 : i32
    %c0_i32_0 = arith.constant 0 : i32
    %c0_i32_1 = arith.constant 0 : i32
    return %arg0, %c0_i32, %c0_i32_0 : i32, i32, i32
  }
  func.func @transform_1(%arg0: i32, %arg1: i32) -> (i32, i32, i32) {
    %c0_i32 = arith.constant 0 : i32
    %c0_i32_0 = arith.constant 0 : i32
    %c0_i32_1 = arith.constant 0 : i32
    return %arg0, %c0_i32, %c0_i32_0 : i32, i32, i32
  }
  func.func @transform_2(%arg0: i32, %arg1: i32) -> (i32, i32, i32) {
    %c0_i32 = arith.constant 0 : i32
    %c0_i32_0 = arith.constant 0 : i32
    %c0_i32_1 = arith.constant 0 : i32
    return %c0_i32, %c0_i32_0, %arg1 : i32, i32, i32
  }
  func.func @transform_3(%arg0: i32, %arg1: i32) -> (i32, i32) {
    %c0_i32 = arith.constant 0 : i32
    %c0_i32_0 = arith.constant 0 : i32
    return %c0_i32, %arg1 : i32, i32
  }
  func.func @transform_4(%arg0: i32, %arg1: i32) -> (i32, i32) {
    %c0_i32 = arith.constant 0 : i32
    %c0_i32_0 = arith.constant 0 : i32
    return %c0_i32, %arg1 : i32, i32
  }
  func.func @transform_5(%arg0: i32, %arg1: i32) -> (i32, i32) {
    %c0_i32 = arith.constant 0 : i32
    %c0_i32_0 = arith.constant 0 : i32
    return %c0_i32, %arg1 : i32, i32
  }
  func.func @transform_6(%arg0: i32, %arg1: i32) -> (i32, i32, i32) {
    %c0_i32 = arith.constant 0 : i32
    %c0_i32_0 = arith.constant 0 : i32
    return %arg0, %c0_i32, %arg1 : i32, i32, i32
  }
}

module attributes {stable_mosaic.version = 11 : i64} {
  func.func @kernel(%arg0: i32, %arg1: memref<1x32x128xbf16, #tpu.memory_space<vmem>>, %arg2: memref<1x32x128xbf16, #tpu.memory_space<vmem>>, %arg3: memref<128x32xbf16, #tpu.memory_space<vmem>>, %arg4: memref<1x32xf32, #tpu.memory_space<vmem>>, %arg5: memref<32x128xbf16, #tpu.memory_space<vmem>>, %arg6: memref<1x128xf32, #tpu.memory_space<vmem>>, %arg7: memref<1x32x128xbf16, #tpu.memory_space<vmem>>) attributes {dimension_semantics = [#tpu.dimension_semantics<parallel>], iteration_bounds = array<i64: 2>, scalar_prefetch = 0 : i64, scratch_operands = 0 : i64, tpu.core_type = #tpu.core_type<tc>, window_params = [{transform_indices = @transform_0, window_bounds = array<i64: 1, 32, 128>}, {transform_indices = @transform_1, window_bounds = array<i64: 1, 32, 128>}, {pipeline_mode = #tpu.pipeline_mode<synchronous>, transform_indices = @transform_2, window_bounds = array<i64: 128, 32>}, {pipeline_mode = #tpu.pipeline_mode<synchronous>, transform_indices = @transform_3, window_bounds = array<i64: 1, 32>}, {pipeline_mode = #tpu.pipeline_mode<synchronous>, transform_indices = @transform_4, window_bounds = array<i64: 32, 128>}, {pipeline_mode = #tpu.pipeline_mode<synchronous>, transform_indices = @transform_5, window_bounds = array<i64: 1, 128>}, {transform_indices = @transform_6, window_bounds = array<i64: 1, 32, 128>}]} {
    %c0 = arith.constant 0 : index
    %c0_0 = arith.constant 0 : index
    %c0_1 = arith.constant 0 : index
    %0 = vector.load %arg1[%c0, %c0_0, %c0_1] : memref<1x32x128xbf16, #tpu.memory_space<vmem>>, vector<1x32x128xbf16>
    %1 = vector.shape_cast %0 : vector<1x32x128xbf16> to vector<32x128xbf16>
    %2 = arith.extf %1 : vector<32x128xbf16> to vector<32x128xf32>
    %c0_2 = arith.constant 0 : index
    %c0_3 = arith.constant 0 : index
    %c0_4 = arith.constant 0 : index
    %3 = vector.load %arg2[%c0_2, %c0_3, %c0_4] : memref<1x32x128xbf16, #tpu.memory_space<vmem>>, vector<1x32x128xbf16>
    %4 = vector.shape_cast %3 : vector<1x32x128xbf16> to vector<32x128xbf16>
    %5 = arith.extf %4 : vector<32x128xbf16> to vector<32x128xf32>
    %6 = arith.addf %2, %5 : vector<32x128xf32>
    %cst = arith.constant dense<0.000000e+00> : vector<128xf32>
    %7 = vector.multi_reduction <add>, %6, %cst [0] : vector<32x128xf32> to vector<128xf32>
    %8 = vector.shape_cast %7 : vector<128xf32> to vector<1x128xf32>
    %cst_5 = arith.constant 3.125000e-02 : f32
    %9 = vector.broadcast %cst_5 : f32 to vector<1x128xf32>
    %10 = arith.mulf %8, %9 : vector<1x128xf32>
    %11 = arith.truncf %10 : vector<1x128xf32> to vector<1x128xbf16>
    %c0_6 = arith.constant 0 : index
    %c0_7 = arith.constant 0 : index
    %12 = vector.load %arg3[%c0_6, %c0_7] : memref<128x32xbf16, #tpu.memory_space<vmem>>, vector<128x32xbf16>
    %cst_8 = arith.constant dense<0.000000e+00> : vector<1x32xf32>
    %13 = tpu.matmul %11, %12, %cst_8 {dimension_numbers = #tpu.dot_dimension_numbers<[1], [0], [0], [1], [0, 0, 1, 1], [], []>} : vector<1x128xbf16>, vector<128x32xbf16>, vector<1x32xf32> -> vector<1x32xf32>
    %c0_9 = arith.constant 0 : index
    %c0_10 = arith.constant 0 : index
    %14 = vector.load %arg4[%c0_9, %c0_10] : memref<1x32xf32, #tpu.memory_space<vmem>>, vector<1x32xf32>
    %15 = arith.addf %13, %14 : vector<1x32xf32>
    %cst_11 = arith.constant 0.000000e+00 : f32
    %16 = vector.broadcast %cst_11 : f32 to vector<1x32xf32>
    %17 = arith.maximumf %15, %16 : vector<1x32xf32>
    %18 = arith.truncf %17 : vector<1x32xf32> to vector<1x32xbf16>
    %c0_12 = arith.constant 0 : index
    %c0_13 = arith.constant 0 : index
    %19 = vector.load %arg5[%c0_12, %c0_13] : memref<32x128xbf16, #tpu.memory_space<vmem>>, vector<32x128xbf16>
    %cst_14 = arith.constant dense<0.000000e+00> : vector<1x128xf32>
    %20 = tpu.matmul %18, %19, %cst_14 {dimension_numbers = #tpu.dot_dimension_numbers<[1], [0], [0], [1], [0, 0, 1, 1], [], []>} : vector<1x32xbf16>, vector<32x128xbf16>, vector<1x128xf32> -> vector<1x128xf32>
    %c0_15 = arith.constant 0 : index
    %c0_16 = arith.constant 0 : index
    %21 = vector.load %arg6[%c0_15, %c0_16] : memref<1x128xf32, #tpu.memory_space<vmem>>, vector<1x128xf32>
    %22 = arith.addf %20, %21 : vector<1x128xf32>
    %23 = arith.negf %22 : vector<1x128xf32>
    %24 = math.exp %23 : vector<1x128xf32>
    %cst_17 = arith.constant 1.000000e+00 : f32
    %25 = vector.broadcast %cst_17 : f32 to vector<1x128xf32>
    %26 = arith.addf %25, %24 : vector<1x128xf32>
    %27 = arith.divf %25, %26 : vector<1x128xf32>
    %28 = vector.broadcast %27 : vector<1x128xf32> to vector<32x128xf32>
    %29 = arith.mulf %6, %28 : vector<32x128xf32>
    %30 = arith.truncf %29 : vector<32x128xf32> to vector<32x128xbf16>
    %c0_18 = arith.constant 0 : index
    %c0_19 = arith.constant 0 : index
    %c0_20 = arith.constant 0 : index
    %31 = vector.load %arg7[%c0_18, %c0_19, %c0_20] : memref<1x32x128xbf16, #tpu.memory_space<vmem>>, vector<1x32x128xbf16>
    %32 = vector.shape_cast %31 : vector<1x32x128xbf16> to vector<32x128xbf16>
    %33 = vector.shape_cast %30 : vector<32x128xbf16> to vector<1x32x128xbf16>
    tpu.vector_store %arg7[%c0_18, %c0_19, %c0_20], %33 {strides = array<i32>} : memref<1x32x128xbf16, #tpu.memory_space<vmem>>, vector<1x32x128xbf16>,
    return
  }
  func.func @transform_0(%arg0: i32) -> (i32, i32, i32) {
    %c0_i32 = arith.constant 0 : i32
    %c0_i32_0 = arith.constant 0 : i32
    %c0_i32_1 = arith.constant 0 : i32
    return %arg0, %c0_i32, %c0_i32_0 : i32, i32, i32
  }
  func.func @transform_1(%arg0: i32) -> (i32, i32, i32) {
    %c0_i32 = arith.constant 0 : i32
    %c0_i32_0 = arith.constant 0 : i32
    %c0_i32_1 = arith.constant 0 : i32
    return %arg0, %c0_i32, %c0_i32_0 : i32, i32, i32
  }
  func.func @transform_2(%arg0: i32) -> (i32, i32) {
    %c0_i32 = arith.constant 0 : i32
    %c0_i32_0 = arith.constant 0 : i32
    %c0_i32_1 = arith.constant 0 : i32
    return %c0_i32, %c0_i32_0 : i32, i32
  }
  func.func @transform_3(%arg0: i32) -> (i32, i32) {
    %c0_i32 = arith.constant 0 : i32
    %c0_i32_0 = arith.constant 0 : i32
    %c0_i32_1 = arith.constant 0 : i32
    return %c0_i32, %c0_i32_0 : i32, i32
  }
  func.func @transform_4(%arg0: i32) -> (i32, i32) {
    %c0_i32 = arith.constant 0 : i32
    %c0_i32_0 = arith.constant 0 : i32
    %c0_i32_1 = arith.constant 0 : i32
    return %c0_i32, %c0_i32_0 : i32, i32
  }
  func.func @transform_5(%arg0: i32) -> (i32, i32) {
    %c0_i32 = arith.constant 0 : i32
    %c0_i32_0 = arith.constant 0 : i32
    %c0_i32_1 = arith.constant 0 : i32
    return %c0_i32, %c0_i32_0 : i32, i32
  }
  func.func @transform_6(%arg0: i32) -> (i32, i32, i32) {
    %c0_i32 = arith.constant 0 : i32
    %c0_i32_0 = arith.constant 0 : i32
    %c0_i32_1 = arith.constant 0 : i32
    return %arg0, %c0_i32, %c0_i32_0 : i32, i32, i32
  }
}

module attributes {stable_mosaic.version = 11 : i64} {
  func.func @kernel(%arg0: i32, %arg1: i32, %arg2: memref<1x32x128xbf16, #tpu.memory_space<vmem>>, %arg3: memref<3x128x128xbf16, #tpu.memory_space<vmem>>, %arg4: memref<1x128xf32, #tpu.memory_space<vmem>>, %arg5: memref<1x128xf32, #tpu.memory_space<vmem>>, %arg6: memref<1x128xf32, #tpu.memory_space<vmem>>, %arg7: memref<1x32x128xbf16, #tpu.memory_space<vmem>>, %arg8: memref<38x128xf32, #tpu.memory_space<vmem>>) attributes {dimension_semantics = [#tpu.dimension_semantics<parallel>, #tpu.dimension_semantics<parallel>], iteration_bounds = array<i64: 2, 1>, scalar_prefetch = 0 : i64, scratch_operands = 1 : i64, tpu.core_type = #tpu.core_type<tc>, window_params = [{transform_indices = @transform_0, window_bounds = array<i64: 1, 32, 128>}, {transform_indices = @transform_1, window_bounds = array<i64: 3, 128, 128>}, {transform_indices = @transform_2, window_bounds = array<i64: 1, 128>}, {transform_indices = @transform_3, window_bounds = array<i64: 1, 128>}, {transform_indices = @transform_4, window_bounds = array<i64: 1, 128>}, {transform_indices = @transform_5, window_bounds = array<i64: 1, 32, 128>}]} {
    %c0 = arith.constant 0 : index
    %c0_0 = arith.constant 0 : index
    %c0_1 = arith.constant 0 : index
    %0 = vector.load %arg2[%c0, %c0_0, %c0_1] : memref<1x32x128xbf16, #tpu.memory_space<vmem>>, vector<1x32x128xbf16>
    %1 = vector.shape_cast %0 : vector<1x32x128xbf16> to vector<32x128xbf16>
    %cst = arith.constant 0.000000e+00 : f32
    %2 = vector.broadcast %cst : f32 to vector<38x128xf32>
    %c0_2 = arith.constant 0 : index
    %c0_3 = arith.constant 0 : index
    %3 = vector.load %arg8[%c0_2, %c0_3] : memref<38x128xf32, #tpu.memory_space<vmem>>, vector<38x128xf32>
    tpu.vector_store %arg8[%c0_2, %c0_3], %2 {strides = array<i32>} : memref<38x128xf32, #tpu.memory_space<vmem>>, vector<38x128xf32>,
    %4 = arith.extf %1 : vector<32x128xbf16> to vector<32x128xf32>
    %c3 = arith.constant 3 : index
    %c0_4 = arith.constant 0 : index
    %5 = vector.load %arg8[%c3, %c0_4] : memref<38x128xf32, #tpu.memory_space<vmem>>, vector<32x128xf32>
    tpu.vector_store %arg8[%c3, %c0_4], %4 {strides = array<i32>} : memref<38x128xf32, #tpu.memory_space<vmem>>, vector<32x128xf32>,
    %c0_5 = arith.constant 0 : index
    %c0_6 = arith.constant 0 : index
    %6 = vector.load %arg8[%c0_5, %c0_6] : memref<38x128xf32, #tpu.memory_space<vmem>>, vector<32x128xf32>
    %7 = arith.truncf %6 : vector<32x128xf32> to vector<32x128xbf16>
    %c3_7 = arith.constant 3 : index
    %c0_8 = arith.constant 0 : index
    %8 = vector.load %arg8[%c3_7, %c0_8] : memref<38x128xf32, #tpu.memory_space<vmem>>, vector<32x128xf32>
    %9 = arith.truncf %8 : vector<32x128xf32> to vector<32x128xbf16>
    %c6 = arith.constant 6 : index
    %c0_9 = arith.constant 0 : index
    %10 = vector.load %arg8[%c6, %c0_9] : memref<38x128xf32, #tpu.memory_space<vmem>>, vector<32x128xf32>
    %11 = arith.truncf %10 : vector<32x128xf32> to vector<32x128xbf16>
    %c0_10 = arith.constant 0 : index
    %c0_11 = arith.constant 0 : index
    %c0_12 = arith.constant 0 : index
    %12 = vector.load %arg3[%c0_10, %c0_11, %c0_12] : memref<3x128x128xbf16, #tpu.memory_space<vmem>>, vector<1x128x128xbf16>
    %13 = vector.shape_cast %12 : vector<1x128x128xbf16> to vector<128x128xbf16>
    %cst_13 = arith.constant dense<0.000000e+00> : vector<32x128xf32>
    %14 = tpu.matmul %7, %13, %cst_13 {dimension_numbers = #tpu.dot_dimension_numbers<[1], [0], [0], [1], [0, 0, 1, 1], [], []>} : vector<32x128xbf16>, vector<128x128xbf16>, vector<32x128xf32> -> vector<32x128xf32>
    %c1 = arith.constant 1 : index
    %c0_14 = arith.constant 0 : index
    %c0_15 = arith.constant 0 : index
    %15 = vector.load %arg3[%c1, %c0_14, %c0_15] : memref<3x128x128xbf16, #tpu.memory_space<vmem>>, vector<1x128x128xbf16>
    %16 = vector.shape_cast %15 : vector<1x128x128xbf16> to vector<128x128xbf16>
    %cst_16 = arith.constant dense<0.000000e+00> : vector<32x128xf32>
    %17 = tpu.matmul %9, %16, %cst_16 {dimension_numbers = #tpu.dot_dimension_numbers<[1], [0], [0], [1], [0, 0, 1, 1], [], []>} : vector<32x128xbf16>, vector<128x128xbf16>, vector<32x128xf32> -> vector<32x128xf32>
    %18 = arith.addf %14, %17 : vector<32x128xf32>
    %c2 = arith.constant 2 : index
    %c0_17 = arith.constant 0 : index
    %c0_18 = arith.constant 0 : index
    %19 = vector.load %arg3[%c2, %c0_17, %c0_18] : memref<3x128x128xbf16, #tpu.memory_space<vmem>>, vector<1x128x128xbf16>
    %20 = vector.shape_cast %19 : vector<1x128x128xbf16> to vector<128x128xbf16>
    %cst_19 = arith.constant dense<0.000000e+00> : vector<32x128xf32>
    %21 = tpu.matmul %11, %20, %cst_19 {dimension_numbers = #tpu.dot_dimension_numbers<[1], [0], [0], [1], [0, 0, 1, 1], [], []>} : vector<32x128xbf16>, vector<128x128xbf16>, vector<32x128xf32> -> vector<32x128xf32>
    %22 = arith.addf %18, %21 : vector<32x128xf32>
    %c0_20 = arith.constant 0 : index
    %c0_21 = arith.constant 0 : index
    %23 = vector.load %arg4[%c0_20, %c0_21] : memref<1x128xf32, #tpu.memory_space<vmem>>, vector<1x128xf32>
    %24 = vector.broadcast %23 : vector<1x128xf32> to vector<32x128xf32>
    %25 = arith.addf %22, %24 : vector<32x128xf32>
    %cst_22 = arith.constant 0.000000e+00 : f32
    %26 = vector.broadcast %cst_22 : f32 to vector<32x128xf32>
    %27 = arith.maximumf %25, %26 : vector<32x128xf32>
    %c0_23 = arith.constant 0 : index
    %c0_24 = arith.constant 0 : index
    %28 = vector.load %arg5[%c0_23, %c0_24] : memref<1x128xf32, #tpu.memory_space<vmem>>, vector<1x128xf32>
    %29 = vector.broadcast %28 : vector<1x128xf32> to vector<32x128xf32>
    %30 = arith.mulf %27, %29 : vector<32x128xf32>
    %c0_25 = arith.constant 0 : index
    %c0_26 = arith.constant 0 : index
    %31 = vector.load %arg6[%c0_25, %c0_26] : memref<1x128xf32, #tpu.memory_space<vmem>>, vector<1x128xf32>
    %32 = vector.broadcast %31 : vector<1x128xf32> to vector<32x128xf32>
    %33 = arith.addf %30, %32 : vector<32x128xf32>
    %34 = arith.truncf %33 : vector<32x128xf32> to vector<32x128xbf16>
    %c0_27 = arith.constant 0 : index
    %c0_28 = arith.constant 0 : index
    %c0_29 = arith.constant 0 : index
    %35 = vector.load %arg7[%c0_27, %c0_28, %c0_29] : memref<1x32x128xbf16, #tpu.memory_space<vmem>>, vector<1x32x128xbf16>
    %36 = vector.shape_cast %35 : vector<1x32x128xbf16> to vector<32x128xbf16>
    %37 = vector.shape_cast %34 : vector<32x128xbf16> to vector<1x32x128xbf16>
    tpu.vector_store %arg7[%c0_27, %c0_28, %c0_29], %37 {strides = array<i32>} : memref<1x32x128xbf16, #tpu.memory_space<vmem>>, vector<1x32x128xbf16>,
    return
  }
  func.func @transform_0(%arg0: i32, %arg1: i32) -> (i32, i32, i32) {
    %c0_i32 = arith.constant 0 : i32
    %c0_i32_0 = arith.constant 0 : i32
    %c0_i32_1 = arith.constant 0 : i32
    return %arg0, %c0_i32, %c0_i32_0 : i32, i32, i32
  }
  func.func @transform_1(%arg0: i32, %arg1: i32) -> (i32, i32, i32) {
    %c0_i32 = arith.constant 0 : i32
    %c0_i32_0 = arith.constant 0 : i32
    %c0_i32_1 = arith.constant 0 : i32
    return %c0_i32, %c0_i32_0, %arg1 : i32, i32, i32
  }
  func.func @transform_2(%arg0: i32, %arg1: i32) -> (i32, i32) {
    %c0_i32 = arith.constant 0 : i32
    %c0_i32_0 = arith.constant 0 : i32
    return %c0_i32, %arg1 : i32, i32
  }
  func.func @transform_3(%arg0: i32, %arg1: i32) -> (i32, i32) {
    %c0_i32 = arith.constant 0 : i32
    %c0_i32_0 = arith.constant 0 : i32
    return %c0_i32, %arg1 : i32, i32
  }
  func.func @transform_4(%arg0: i32, %arg1: i32) -> (i32, i32) {
    %c0_i32 = arith.constant 0 : i32
    %c0_i32_0 = arith.constant 0 : i32
    return %c0_i32, %arg1 : i32, i32
  }
  func.func @transform_5(%arg0: i32, %arg1: i32) -> (i32, i32, i32) {
    %c0_i32 = arith.constant 0 : i32
    %c0_i32_0 = arith.constant 0 : i32
    return %arg0, %c0_i32, %arg1 : i32, i32, i32
  }
}

module attributes {stable_mosaic.version = 11 : i64} {
  func.func @kernel(%arg0: i32, %arg1: memref<1x32x128xbf16, #tpu.memory_space<vmem>>, %arg2: memref<1x32x128xbf16, #tpu.memory_space<vmem>>, %arg3: memref<1x32x128xbf16, #tpu.memory_space<vmem>>, %arg4: memref<128x32xbf16, #tpu.memory_space<vmem>>, %arg5: memref<1x32xf32, #tpu.memory_space<vmem>>, %arg6: memref<32x128xbf16, #tpu.memory_space<vmem>>, %arg7: memref<1x128xf32, #tpu.memory_space<vmem>>, %arg8: memref<1x32x128xbf16, #tpu.memory_space<vmem>>) attributes {dimension_semantics = [#tpu.dimension_semantics<parallel>], iteration_bounds = array<i64: 2>, scalar_prefetch = 0 : i64, scratch_operands = 0 : i64, tpu.core_type = #tpu.core_type<tc>, window_params = [{transform_indices = @transform_0, window_bounds = array<i64: 1, 32, 128>}, {transform_indices = @transform_1, window_bounds = array<i64: 1, 32, 128>}, {transform_indices = @transform_2, window_bounds = array<i64: 1, 32, 128>}, {pipeline_mode = #tpu.pipeline_mode<synchronous>, transform_indices = @transform_3, window_bounds = array<i64: 128, 32>}, {pipeline_mode = #tpu.pipeline_mode<synchronous>, transform_indices = @transform_4, window_bounds = array<i64: 1, 32>}, {pipeline_mode = #tpu.pipeline_mode<synchronous>, transform_indices = @transform_5, window_bounds = array<i64: 32, 128>}, {pipeline_mode = #tpu.pipeline_mode<synchronous>, transform_indices = @transform_6, window_bounds = array<i64: 1, 128>}, {transform_indices = @transform_7, window_bounds = array<i64: 1, 32, 128>}]} {
    %c0 = arith.constant 0 : index
    %c0_0 = arith.constant 0 : index
    %c0_1 = arith.constant 0 : index
    %0 = vector.load %arg1[%c0, %c0_0, %c0_1] : memref<1x32x128xbf16, #tpu.memory_space<vmem>>, vector<1x32x128xbf16>
    %1 = vector.shape_cast %0 : vector<1x32x128xbf16> to vector<32x128xbf16>
    %2 = arith.extf %1 : vector<32x128xbf16> to vector<32x128xf32>
    %c0_2 = arith.constant 0 : index
    %c0_3 = arith.constant 0 : index
    %c0_4 = arith.constant 0 : index
    %3 = vector.load %arg2[%c0_2, %c0_3, %c0_4] : memref<1x32x128xbf16, #tpu.memory_space<vmem>>, vector<1x32x128xbf16>
    %4 = vector.shape_cast %3 : vector<1x32x128xbf16> to vector<32x128xbf16>
    %5 = arith.extf %4 : vector<32x128xbf16> to vector<32x128xf32>
    %6 = arith.addf %2, %5 : vector<32x128xf32>
    %c0_5 = arith.constant 0 : index
    %c0_6 = arith.constant 0 : index
    %c0_7 = arith.constant 0 : index
    %7 = vector.load %arg3[%c0_5, %c0_6, %c0_7] : memref<1x32x128xbf16, #tpu.memory_space<vmem>>, vector<1x32x128xbf16>
    %8 = vector.shape_cast %7 : vector<1x32x128xbf16> to vector<32x128xbf16>
    %9 = arith.extf %8 : vector<32x128xbf16> to vector<32x128xf32>
    %10 = arith.addf %6, %9 : vector<32x128xf32>
    %cst = arith.constant dense<0.000000e+00> : vector<128xf32>
    %11 = vector.multi_reduction <add>, %10, %cst [0] : vector<32x128xf32> to vector<128xf32>
    %12 = vector.shape_cast %11 : vector<128xf32> to vector<1x128xf32>
    %cst_8 = arith.constant 3.125000e-02 : f32
    %13 = vector.broadcast %cst_8 : f32 to vector<1x128xf32>
    %14 = arith.mulf %12, %13 : vector<1x128xf32>
    %15 = arith.truncf %14 : vector<1x128xf32> to vector<1x128xbf16>
    %c0_9 = arith.constant 0 : index
    %c0_10 = arith.constant 0 : index
    %16 = vector.load %arg4[%c0_9, %c0_10] : memref<128x32xbf16, #tpu.memory_space<vmem>>, vector<128x32xbf16>
    %cst_11 = arith.constant dense<0.000000e+00> : vector<1x32xf32>
    %17 = tpu.matmul %15, %16, %cst_11 {dimension_numbers = #tpu.dot_dimension_numbers<[1], [0], [0], [1], [0, 0, 1, 1], [], []>} : vector<1x128xbf16>, vector<128x32xbf16>, vector<1x32xf32> -> vector<1x32xf32>
    %c0_12 = arith.constant 0 : index
    %c0_13 = arith.constant 0 : index
    %18 = vector.load %arg5[%c0_12, %c0_13] : memref<1x32xf32, #tpu.memory_space<vmem>>, vector<1x32xf32>
    %19 = arith.addf %17, %18 : vector<1x32xf32>
    %cst_14 = arith.constant 0.000000e+00 : f32
    %20 = vector.broadcast %cst_14 : f32 to vector<1x32xf32>
    %21 = arith.maximumf %19, %20 : vector<1x32xf32>
    %22 = arith.truncf %21 : vector<1x32xf32> to vector<1x32xbf16>
    %c0_15 = arith.constant 0 : index
    %c0_16 = arith.constant 0 : index
    %23 = vector.load %arg6[%c0_15, %c0_16] : memref<32x128xbf16, #tpu.memory_space<vmem>>, vector<32x128xbf16>
    %cst_17 = arith.constant dense<0.000000e+00> : vector<1x128xf32>
    %24 = tpu.matmul %22, %23, %cst_17 {dimension_numbers = #tpu.dot_dimension_numbers<[1], [0], [0], [1], [0, 0, 1, 1], [], []>} : vector<1x32xbf16>, vector<32x128xbf16>, vector<1x128xf32> -> vector<1x128xf32>
    %c0_18 = arith.constant 0 : index
    %c0_19 = arith.constant 0 : index
    %25 = vector.load %arg7[%c0_18, %c0_19] : memref<1x128xf32, #tpu.memory_space<vmem>>, vector<1x128xf32>
    %26 = arith.addf %24, %25 : vector<1x128xf32>
    %27 = arith.negf %26 : vector<1x128xf32>
    %28 = math.exp %27 : vector<1x128xf32>
    %cst_20 = arith.constant 1.000000e+00 : f32
    %29 = vector.broadcast %cst_20 : f32 to vector<1x128xf32>
    %30 = arith.addf %29, %28 : vector<1x128xf32>
    %31 = arith.divf %29, %30 : vector<1x128xf32>
    %32 = vector.broadcast %31 : vector<1x128xf32> to vector<32x128xf32>
    %33 = arith.mulf %10, %32 : vector<32x128xf32>
    %34 = arith.truncf %33 : vector<32x128xf32> to vector<32x128xbf16>
    %c0_21 = arith.constant 0 : index
    %c0_22 = arith.constant 0 : index
    %c0_23 = arith.constant 0 : index
    %35 = vector.load %arg8[%c0_21, %c0_22, %c0_23] : memref<1x32x128xbf16, #tpu.memory_space<vmem>>, vector<1x32x128xbf16>
    %36 = vector.shape_cast %35 : vector<1x32x128xbf16> to vector<32x128xbf16>
    %37 = vector.shape_cast %34 : vector<32x128xbf16> to vector<1x32x128xbf16>
    tpu.vector_store %arg8[%c0_21, %c0_22, %c0_23], %37 {strides = array<i32>} : memref<1x32x128xbf16, #tpu.memory_space<vmem>>, vector<1x32x128xbf16>,
    return
  }
  func.func @transform_0(%arg0: i32) -> (i32, i32, i32) {
    %c0_i32 = arith.constant 0 : i32
    %c0_i32_0 = arith.constant 0 : i32
    %c0_i32_1 = arith.constant 0 : i32
    return %arg0, %c0_i32, %c0_i32_0 : i32, i32, i32
  }
  func.func @transform_1(%arg0: i32) -> (i32, i32, i32) {
    %c0_i32 = arith.constant 0 : i32
    %c0_i32_0 = arith.constant 0 : i32
    %c0_i32_1 = arith.constant 0 : i32
    return %arg0, %c0_i32, %c0_i32_0 : i32, i32, i32
  }
  func.func @transform_2(%arg0: i32) -> (i32, i32, i32) {
    %c0_i32 = arith.constant 0 : i32
    %c0_i32_0 = arith.constant 0 : i32
    %c0_i32_1 = arith.constant 0 : i32
    return %arg0, %c0_i32, %c0_i32_0 : i32, i32, i32
  }
  func.func @transform_3(%arg0: i32) -> (i32, i32) {
    %c0_i32 = arith.constant 0 : i32
    %c0_i32_0 = arith.constant 0 : i32
    %c0_i32_1 = arith.constant 0 : i32
    return %c0_i32, %c0_i32_0 : i32, i32
  }
  func.func @transform_4(%arg0: i32) -> (i32, i32) {
    %c0_i32 = arith.constant 0 : i32
    %c0_i32_0 = arith.constant 0 : i32
    %c0_i32_1 = arith.constant 0 : i32
    return %c0_i32, %c0_i32_0 : i32, i32
  }
  func.func @transform_5(%arg0: i32) -> (i32, i32) {
    %c0_i32 = arith.constant 0 : i32
    %c0_i32_0 = arith.constant 0 : i32
    %c0_i32_1 = arith.constant 0 : i32
    return %c0_i32, %c0_i32_0 : i32, i32
  }
  func.func @transform_6(%arg0: i32) -> (i32, i32) {
    %c0_i32 = arith.constant 0 : i32
    %c0_i32_0 = arith.constant 0 : i32
    %c0_i32_1 = arith.constant 0 : i32
    return %c0_i32, %c0_i32_0 : i32, i32
  }
  func.func @transform_7(%arg0: i32) -> (i32, i32, i32) {
    %c0_i32 = arith.constant 0 : i32
    %c0_i32_0 = arith.constant 0 : i32
    %c0_i32_1 = arith.constant 0 : i32
    return %arg0, %c0_i32, %c0_i32_0 : i32, i32, i32
  }
}

module attributes {stable_mosaic.version = 11 : i64} {
  func.func @kernel(%arg0: i32, %arg1: i32, %arg2: memref<1x32x128xbf16, #tpu.memory_space<vmem>>, %arg3: memref<1x32x128xbf16, #tpu.memory_space<vmem>>, %arg4: memref<1x32x128xbf16, #tpu.memory_space<vmem>>, %arg5: memref<1x128x128xbf16, #tpu.memory_space<vmem>>, %arg6: memref<1x128xf32, #tpu.memory_space<vmem>>, %arg7: memref<1x128xf32, #tpu.memory_space<vmem>>, %arg8: memref<1x128xf32, #tpu.memory_space<vmem>>, %arg9: memref<1x32x128xbf16, #tpu.memory_space<vmem>>) attributes {dimension_semantics = [#tpu.dimension_semantics<parallel>, #tpu.dimension_semantics<parallel>], iteration_bounds = array<i64: 2, 1>, scalar_prefetch = 0 : i64, scratch_operands = 0 : i64, tpu.core_type = #tpu.core_type<tc>, window_params = [{transform_indices = @transform_0, window_bounds = array<i64: 1, 32, 128>}, {transform_indices = @transform_1, window_bounds = array<i64: 1, 32, 128>}, {transform_indices = @transform_2, window_bounds = array<i64: 1, 32, 128>}, {transform_indices = @transform_3, window_bounds = array<i64: 1, 128, 128>}, {transform_indices = @transform_4, window_bounds = array<i64: 1, 128>}, {transform_indices = @transform_5, window_bounds = array<i64: 1, 128>}, {transform_indices = @transform_6, window_bounds = array<i64: 1, 128>}, {transform_indices = @transform_7, window_bounds = array<i64: 1, 32, 128>}]} {
    %c0 = arith.constant 0 : index
    %c0_0 = arith.constant 0 : index
    %c0_1 = arith.constant 0 : index
    %0 = vector.load %arg2[%c0, %c0_0, %c0_1] : memref<1x32x128xbf16, #tpu.memory_space<vmem>>, vector<1x32x128xbf16>
    %1 = vector.shape_cast %0 : vector<1x32x128xbf16> to vector<32x128xbf16>
    %2 = arith.extf %1 : vector<32x128xbf16> to vector<32x128xf32>
    %c0_2 = arith.constant 0 : index
    %c0_3 = arith.constant 0 : index
    %c0_4 = arith.constant 0 : index
    %3 = vector.load %arg3[%c0_2, %c0_3, %c0_4] : memref<1x32x128xbf16, #tpu.memory_space<vmem>>, vector<1x32x128xbf16>
    %4 = vector.shape_cast %3 : vector<1x32x128xbf16> to vector<32x128xbf16>
    %5 = arith.extf %4 : vector<32x128xbf16> to vector<32x128xf32>
    %6 = arith.addf %2, %5 : vector<32x128xf32>
    %c0_5 = arith.constant 0 : index
    %c0_6 = arith.constant 0 : index
    %c0_7 = arith.constant 0 : index
    %7 = vector.load %arg4[%c0_5, %c0_6, %c0_7] : memref<1x32x128xbf16, #tpu.memory_space<vmem>>, vector<1x32x128xbf16>
    %8 = vector.shape_cast %7 : vector<1x32x128xbf16> to vector<32x128xbf16>
    %9 = arith.extf %8 : vector<32x128xbf16> to vector<32x128xf32>
    %10 = arith.addf %6, %9 : vector<32x128xf32>
    %11 = arith.truncf %10 : vector<32x128xf32> to vector<32x128xbf16>
    %c0_8 = arith.constant 0 : index
    %c0_9 = arith.constant 0 : index
    %c0_10 = arith.constant 0 : index
    %12 = vector.load %arg5[%c0_8, %c0_9, %c0_10] : memref<1x128x128xbf16, #tpu.memory_space<vmem>>, vector<1x128x128xbf16>
    %13 = vector.shape_cast %12 : vector<1x128x128xbf16> to vector<128x128xbf16>
    %cst = arith.constant dense<0.000000e+00> : vector<32x128xf32>
    %14 = tpu.matmul %11, %13, %cst {dimension_numbers = #tpu.dot_dimension_numbers<[1], [0], [0], [1], [0, 0, 1, 1], [], []>} : vector<32x128xbf16>, vector<128x128xbf16>, vector<32x128xf32> -> vector<32x128xf32>
    %c0_11 = arith.constant 0 : index
    %c0_12 = arith.constant 0 : index
    %15 = vector.load %arg6[%c0_11, %c0_12] : memref<1x128xf32, #tpu.memory_space<vmem>>, vector<1x128xf32>
    %16 = vector.broadcast %15 : vector<1x128xf32> to vector<32x128xf32>
    %17 = arith.addf %14, %16 : vector<32x128xf32>
    %cst_13 = arith.constant 0.000000e+00 : f32
    %18 = vector.broadcast %cst_13 : f32 to vector<32x128xf32>
    %19 = arith.maximumf %17, %18 : vector<32x128xf32>
    %c0_14 = arith.constant 0 : index
    %c0_15 = arith.constant 0 : index
    %20 = vector.load %arg7[%c0_14, %c0_15] : memref<1x128xf32, #tpu.memory_space<vmem>>, vector<1x128xf32>
    %21 = vector.broadcast %20 : vector<1x128xf32> to vector<32x128xf32>
    %22 = arith.mulf %19, %21 : vector<32x128xf32>
    %c0_16 = arith.constant 0 : index
    %c0_17 = arith.constant 0 : index
    %23 = vector.load %arg8[%c0_16, %c0_17] : memref<1x128xf32, #tpu.memory_space<vmem>>, vector<1x128xf32>
    %24 = vector.broadcast %23 : vector<1x128xf32> to vector<32x128xf32>
    %25 = arith.addf %22, %24 : vector<32x128xf32>
    %26 = arith.truncf %25 : vector<32x128xf32> to vector<32x128xbf16>
    %c0_18 = arith.constant 0 : index
    %c0_19 = arith.constant 0 : index
    %c0_20 = arith.constant 0 : index
    %27 = vector.load %arg9[%c0_18, %c0_19, %c0_20] : memref<1x32x128xbf16, #tpu.memory_space<vmem>>, vector<1x32x128xbf16>
    %28 = vector.shape_cast %27 : vector<1x32x128xbf16> to vector<32x128xbf16>
    %29 = vector.shape_cast %26 : vector<32x128xbf16> to vector<1x32x128xbf16>
    tpu.vector_store %arg9[%c0_18, %c0_19, %c0_20], %29 {strides = array<i32>} : memref<1x32x128xbf16, #tpu.memory_space<vmem>>, vector<1x32x128xbf16>,
    return
  }
  func.func @transform_0(%arg0: i32, %arg1: i32) -> (i32, i32, i32) {
    %c0_i32 = arith.constant 0 : i32
    %c0_i32_0 = arith.constant 0 : i32
    %c0_i32_1 = arith.constant 0 : i32
    return %arg0, %c0_i32, %c0_i32_0 : i32, i32, i32
  }
  func.func @transform_1(%arg0: i32, %arg1: i32) -> (i32, i32, i32) {
    %c0_i32 = arith.constant 0 : i32
    %c0_i32_0 = arith.constant 0 : i32
    %c0_i32_1 = arith.constant 0 : i32
    return %arg0, %c0_i32, %c0_i32_0 : i32, i32, i32
  }
  func.func @transform_2(%arg0: i32, %arg1: i32) -> (i32, i32, i32) {
    %c0_i32 = arith.constant 0 : i32
    %c0_i32_0 = arith.constant 0 : i32
    %c0_i32_1 = arith.constant 0 : i32
    return %arg0, %c0_i32, %c0_i32_0 : i32, i32, i32
  }
  func.func @transform_3(%arg0: i32, %arg1: i32) -> (i32, i32, i32) {
    %c0_i32 = arith.constant 0 : i32
    %c0_i32_0 = arith.constant 0 : i32
    %c0_i32_1 = arith.constant 0 : i32
    return %c0_i32, %c0_i32_0, %arg1 : i32, i32, i32
  }
  func.func @transform_4(%arg0: i32, %arg1: i32) -> (i32, i32) {
    %c0_i32 = arith.constant 0 : i32
    %c0_i32_0 = arith.constant 0 : i32
    return %c0_i32, %arg1 : i32, i32
  }
  func.func @transform_5(%arg0: i32, %arg1: i32) -> (i32, i32) {
    %c0_i32 = arith.constant 0 : i32
    %c0_i32_0 = arith.constant 0 : i32
    return %c0_i32, %arg1 : i32, i32
  }
  func.func @transform_6(%arg0: i32, %arg1: i32) -> (i32, i32) {
    %c0_i32 = arith.constant 0 : i32
    %c0_i32_0 = arith.constant 0 : i32
    return %c0_i32, %arg1 : i32, i32
  }
  func.func @transform_7(%arg0: i32, %arg1: i32) -> (i32, i32, i32) {
    %c0_i32 = arith.constant 0 : i32
    %c0_i32_0 = arith.constant 0 : i32
    return %arg0, %c0_i32, %arg1 : i32, i32, i32
  }
}

module attributes {stable_mosaic.version = 11 : i64} {
  func.func @kernel(%arg0: i32, %arg1: i32, %arg2: memref<1x32x128xbf16, #tpu.memory_space<vmem>>, %arg3: memref<3x128x128xbf16, #tpu.memory_space<vmem>>, %arg4: memref<1x128xf32, #tpu.memory_space<vmem>>, %arg5: memref<1x128xf32, #tpu.memory_space<vmem>>, %arg6: memref<1x128xf32, #tpu.memory_space<vmem>>, %arg7: memref<1x32x128xbf16, #tpu.memory_space<vmem>>, %arg8: memref<40x128xf32, #tpu.memory_space<vmem>>) attributes {dimension_semantics = [#tpu.dimension_semantics<parallel>, #tpu.dimension_semantics<parallel>], iteration_bounds = array<i64: 2, 1>, scalar_prefetch = 0 : i64, scratch_operands = 1 : i64, tpu.core_type = #tpu.core_type<tc>, window_params = [{transform_indices = @transform_0, window_bounds = array<i64: 1, 32, 128>}, {transform_indices = @transform_1, window_bounds = array<i64: 3, 128, 128>}, {transform_indices = @transform_2, window_bounds = array<i64: 1, 128>}, {transform_indices = @transform_3, window_bounds = array<i64: 1, 128>}, {transform_indices = @transform_4, window_bounds = array<i64: 1, 128>}, {transform_indices = @transform_5, window_bounds = array<i64: 1, 32, 128>}]} {
    %c0 = arith.constant 0 : index
    %c0_0 = arith.constant 0 : index
    %c0_1 = arith.constant 0 : index
    %0 = vector.load %arg2[%c0, %c0_0, %c0_1] : memref<1x32x128xbf16, #tpu.memory_space<vmem>>, vector<1x32x128xbf16>
    %1 = vector.shape_cast %0 : vector<1x32x128xbf16> to vector<32x128xbf16>
    %cst = arith.constant 0.000000e+00 : f32
    %2 = vector.broadcast %cst : f32 to vector<40x128xf32>
    %c0_2 = arith.constant 0 : index
    %c0_3 = arith.constant 0 : index
    %3 = vector.load %arg8[%c0_2, %c0_3] : memref<40x128xf32, #tpu.memory_space<vmem>>, vector<40x128xf32>
    tpu.vector_store %arg8[%c0_2, %c0_3], %2 {strides = array<i32>} : memref<40x128xf32, #tpu.memory_space<vmem>>, vector<40x128xf32>,
    %4 = arith.extf %1 : vector<32x128xbf16> to vector<32x128xf32>
    %c4 = arith.constant 4 : index
    %c0_4 = arith.constant 0 : index
    %5 = vector.load %arg8[%c4, %c0_4] : memref<40x128xf32, #tpu.memory_space<vmem>>, vector<32x128xf32>
    tpu.vector_store %arg8[%c4, %c0_4], %4 {strides = array<i32>} : memref<40x128xf32, #tpu.memory_space<vmem>>, vector<32x128xf32>,
    %c0_5 = arith.constant 0 : index
    %c0_6 = arith.constant 0 : index
    %6 = vector.load %arg8[%c0_5, %c0_6] : memref<40x128xf32, #tpu.memory_space<vmem>>, vector<32x128xf32>
    %7 = arith.truncf %6 : vector<32x128xf32> to vector<32x128xbf16>
    %c4_7 = arith.constant 4 : index
    %c0_8 = arith.constant 0 : index
    %8 = vector.load %arg8[%c4_7, %c0_8] : memref<40x128xf32, #tpu.memory_space<vmem>>, vector<32x128xf32>
    %9 = arith.truncf %8 : vector<32x128xf32> to vector<32x128xbf16>
    %c8 = arith.constant 8 : index
    %c0_9 = arith.constant 0 : index
    %10 = vector.load %arg8[%c8, %c0_9] : memref<40x128xf32, #tpu.memory_space<vmem>>, vector<32x128xf32>
    %11 = arith.truncf %10 : vector<32x128xf32> to vector<32x128xbf16>
    %c0_10 = arith.constant 0 : index
    %c0_11 = arith.constant 0 : index
    %c0_12 = arith.constant 0 : index
    %12 = vector.load %arg3[%c0_10, %c0_11, %c0_12] : memref<3x128x128xbf16, #tpu.memory_space<vmem>>, vector<1x128x128xbf16>
    %13 = vector.shape_cast %12 : vector<1x128x128xbf16> to vector<128x128xbf16>
    %cst_13 = arith.constant dense<0.000000e+00> : vector<32x128xf32>
    %14 = tpu.matmul %7, %13, %cst_13 {dimension_numbers = #tpu.dot_dimension_numbers<[1], [0], [0], [1], [0, 0, 1, 1], [], []>} : vector<32x128xbf16>, vector<128x128xbf16>, vector<32x128xf32> -> vector<32x128xf32>
    %c1 = arith.constant 1 : index
    %c0_14 = arith.constant 0 : index
    %c0_15 = arith.constant 0 : index
    %15 = vector.load %arg3[%c1, %c0_14, %c0_15] : memref<3x128x128xbf16, #tpu.memory_space<vmem>>, vector<1x128x128xbf16>
    %16 = vector.shape_cast %15 : vector<1x128x128xbf16> to vector<128x128xbf16>
    %cst_16 = arith.constant dense<0.000000e+00> : vector<32x128xf32>
    %17 = tpu.matmul %9, %16, %cst_16 {dimension_numbers = #tpu.dot_dimension_numbers<[1], [0], [0], [1], [0, 0, 1, 1], [], []>} : vector<32x128xbf16>, vector<128x128xbf16>, vector<32x128xf32> -> vector<32x128xf32>
    %18 = arith.addf %14, %17 : vector<32x128xf32>
    %c2 = arith.constant 2 : index
    %c0_17 = arith.constant 0 : index
    %c0_18 = arith.constant 0 : index
    %19 = vector.load %arg3[%c2, %c0_17, %c0_18] : memref<3x128x128xbf16, #tpu.memory_space<vmem>>, vector<1x128x128xbf16>
    %20 = vector.shape_cast %19 : vector<1x128x128xbf16> to vector<128x128xbf16>
    %cst_19 = arith.constant dense<0.000000e+00> : vector<32x128xf32>
    %21 = tpu.matmul %11, %20, %cst_19 {dimension_numbers = #tpu.dot_dimension_numbers<[1], [0], [0], [1], [0, 0, 1, 1], [], []>} : vector<32x128xbf16>, vector<128x128xbf16>, vector<32x128xf32> -> vector<32x128xf32>
    %22 = arith.addf %18, %21 : vector<32x128xf32>
    %c0_20 = arith.constant 0 : index
    %c0_21 = arith.constant 0 : index
    %23 = vector.load %arg4[%c0_20, %c0_21] : memref<1x128xf32, #tpu.memory_space<vmem>>, vector<1x128xf32>
    %24 = vector.broadcast %23 : vector<1x128xf32> to vector<32x128xf32>
    %25 = arith.addf %22, %24 : vector<32x128xf32>
    %cst_22 = arith.constant 0.000000e+00 : f32
    %26 = vector.broadcast %cst_22 : f32 to vector<32x128xf32>
    %27 = arith.maximumf %25, %26 : vector<32x128xf32>
    %c0_23 = arith.constant 0 : index
    %c0_24 = arith.constant 0 : index
    %28 = vector.load %arg5[%c0_23, %c0_24] : memref<1x128xf32, #tpu.memory_space<vmem>>, vector<1x128xf32>
    %29 = vector.broadcast %28 : vector<1x128xf32> to vector<32x128xf32>
    %30 = arith.mulf %27, %29 : vector<32x128xf32>
    %c0_25 = arith.constant 0 : index
    %c0_26 = arith.constant 0 : index
    %31 = vector.load %arg6[%c0_25, %c0_26] : memref<1x128xf32, #tpu.memory_space<vmem>>, vector<1x128xf32>
    %32 = vector.broadcast %31 : vector<1x128xf32> to vector<32x128xf32>
    %33 = arith.addf %30, %32 : vector<32x128xf32>
    %34 = arith.truncf %33 : vector<32x128xf32> to vector<32x128xbf16>
    %c0_27 = arith.constant 0 : index
    %c0_28 = arith.constant 0 : index
    %c0_29 = arith.constant 0 : index
    %35 = vector.load %arg7[%c0_27, %c0_28, %c0_29] : memref<1x32x128xbf16, #tpu.memory_space<vmem>>, vector<1x32x128xbf16>
    %36 = vector.shape_cast %35 : vector<1x32x128xbf16> to vector<32x128xbf16>
    %37 = vector.shape_cast %34 : vector<32x128xbf16> to vector<1x32x128xbf16>
    tpu.vector_store %arg7[%c0_27, %c0_28, %c0_29], %37 {strides = array<i32>} : memref<1x32x128xbf16, #tpu.memory_space<vmem>>, vector<1x32x128xbf16>,
    return
  }
  func.func @transform_0(%arg0: i32, %arg1: i32) -> (i32, i32, i32) {
    %c0_i32 = arith.constant 0 : i32
    %c0_i32_0 = arith.constant 0 : i32
    %c0_i32_1 = arith.constant 0 : i32
    return %arg0, %c0_i32, %c0_i32_0 : i32, i32, i32
  }
  func.func @transform_1(%arg0: i32, %arg1: i32) -> (i32, i32, i32) {
    %c0_i32 = arith.constant 0 : i32
    %c0_i32_0 = arith.constant 0 : i32
    %c0_i32_1 = arith.constant 0 : i32
    return %c0_i32, %c0_i32_0, %arg1 : i32, i32, i32
  }
  func.func @transform_2(%arg0: i32, %arg1: i32) -> (i32, i32) {
    %c0_i32 = arith.constant 0 : i32
    %c0_i32_0 = arith.constant 0 : i32
    return %c0_i32, %arg1 : i32, i32
  }
  func.func @transform_3(%arg0: i32, %arg1: i32) -> (i32, i32) {
    %c0_i32 = arith.constant 0 : i32
    %c0_i32_0 = arith.constant 0 : i32
    return %c0_i32, %arg1 : i32, i32
  }
  func.func @transform_4(%arg0: i32, %arg1: i32) -> (i32, i32) {
    %c0_i32 = arith.constant 0 : i32
    %c0_i32_0 = arith.constant 0 : i32
    return %c0_i32, %arg1 : i32, i32
  }
  func.func @transform_5(%arg0: i32, %arg1: i32) -> (i32, i32, i32) {
    %c0_i32 = arith.constant 0 : i32
    %c0_i32_0 = arith.constant 0 : i32
    return %arg0, %c0_i32, %arg1 : i32, i32, i32
  }
}

module attributes {stable_mosaic.version = 11 : i64} {
  func.func @kernel(%arg0: i32, %arg1: memref<1x32x128xbf16, #tpu.memory_space<vmem>>, %arg2: memref<1x32x128xbf16, #tpu.memory_space<vmem>>, %arg3: memref<1x32x128xbf16, #tpu.memory_space<vmem>>, %arg4: memref<1x32x128xbf16, #tpu.memory_space<vmem>>, %arg5: memref<128x32xbf16, #tpu.memory_space<vmem>>, %arg6: memref<1x32xf32, #tpu.memory_space<vmem>>, %arg7: memref<32x128xbf16, #tpu.memory_space<vmem>>, %arg8: memref<1x128xf32, #tpu.memory_space<vmem>>, %arg9: memref<1x32x128xbf16, #tpu.memory_space<vmem>>) attributes {dimension_semantics = [#tpu.dimension_semantics<parallel>], iteration_bounds = array<i64: 2>, scalar_prefetch = 0 : i64, scratch_operands = 0 : i64, tpu.core_type = #tpu.core_type<tc>, window_params = [{transform_indices = @transform_0, window_bounds = array<i64: 1, 32, 128>}, {transform_indices = @transform_1, window_bounds = array<i64: 1, 32, 128>}, {transform_indices = @transform_2, window_bounds = array<i64: 1, 32, 128>}, {transform_indices = @transform_3, window_bounds = array<i64: 1, 32, 128>}, {pipeline_mode = #tpu.pipeline_mode<synchronous>, transform_indices = @transform_4, window_bounds = array<i64: 128, 32>}, {pipeline_mode = #tpu.pipeline_mode<synchronous>, transform_indices = @transform_5, window_bounds = array<i64: 1, 32>}, {pipeline_mode = #tpu.pipeline_mode<synchronous>, transform_indices = @transform_6, window_bounds = array<i64: 32, 128>}, {pipeline_mode = #tpu.pipeline_mode<synchronous>, transform_indices = @transform_7, window_bounds = array<i64: 1, 128>}, {transform_indices = @transform_8, window_bounds = array<i64: 1, 32, 128>}]} {
    %c0 = arith.constant 0 : index
    %c0_0 = arith.constant 0 : index
    %c0_1 = arith.constant 0 : index
    %0 = vector.load %arg1[%c0, %c0_0, %c0_1] : memref<1x32x128xbf16, #tpu.memory_space<vmem>>, vector<1x32x128xbf16>
    %1 = vector.shape_cast %0 : vector<1x32x128xbf16> to vector<32x128xbf16>
    %2 = arith.extf %1 : vector<32x128xbf16> to vector<32x128xf32>
    %c0_2 = arith.constant 0 : index
    %c0_3 = arith.constant 0 : index
    %c0_4 = arith.constant 0 : index
    %3 = vector.load %arg2[%c0_2, %c0_3, %c0_4] : memref<1x32x128xbf16, #tpu.memory_space<vmem>>, vector<1x32x128xbf16>
    %4 = vector.shape_cast %3 : vector<1x32x128xbf16> to vector<32x128xbf16>
    %5 = arith.extf %4 : vector<32x128xbf16> to vector<32x128xf32>
    %6 = arith.addf %2, %5 : vector<32x128xf32>
    %c0_5 = arith.constant 0 : index
    %c0_6 = arith.constant 0 : index
    %c0_7 = arith.constant 0 : index
    %7 = vector.load %arg3[%c0_5, %c0_6, %c0_7] : memref<1x32x128xbf16, #tpu.memory_space<vmem>>, vector<1x32x128xbf16>
    %8 = vector.shape_cast %7 : vector<1x32x128xbf16> to vector<32x128xbf16>
    %9 = arith.extf %8 : vector<32x128xbf16> to vector<32x128xf32>
    %10 = arith.addf %6, %9 : vector<32x128xf32>
    %c0_8 = arith.constant 0 : index
    %c0_9 = arith.constant 0 : index
    %c0_10 = arith.constant 0 : index
    %11 = vector.load %arg4[%c0_8, %c0_9, %c0_10] : memref<1x32x128xbf16, #tpu.memory_space<vmem>>, vector<1x32x128xbf16>
    %12 = vector.shape_cast %11 : vector<1x32x128xbf16> to vector<32x128xbf16>
    %13 = arith.extf %12 : vector<32x128xbf16> to vector<32x128xf32>
    %14 = arith.addf %10, %13 : vector<32x128xf32>
    %cst = arith.constant dense<0.000000e+00> : vector<128xf32>
    %15 = vector.multi_reduction <add>, %14, %cst [0] : vector<32x128xf32> to vector<128xf32>
    %16 = vector.shape_cast %15 : vector<128xf32> to vector<1x128xf32>
    %cst_11 = arith.constant 3.125000e-02 : f32
    %17 = vector.broadcast %cst_11 : f32 to vector<1x128xf32>
    %18 = arith.mulf %16, %17 : vector<1x128xf32>
    %19 = arith.truncf %18 : vector<1x128xf32> to vector<1x128xbf16>
    %c0_12 = arith.constant 0 : index
    %c0_13 = arith.constant 0 : index
    %20 = vector.load %arg5[%c0_12, %c0_13] : memref<128x32xbf16, #tpu.memory_space<vmem>>, vector<128x32xbf16>
    %cst_14 = arith.constant dense<0.000000e+00> : vector<1x32xf32>
    %21 = tpu.matmul %19, %20, %cst_14 {dimension_numbers = #tpu.dot_dimension_numbers<[1], [0], [0], [1], [0, 0, 1, 1], [], []>} : vector<1x128xbf16>, vector<128x32xbf16>, vector<1x32xf32> -> vector<1x32xf32>
    %c0_15 = arith.constant 0 : index
    %c0_16 = arith.constant 0 : index
    %22 = vector.load %arg6[%c0_15, %c0_16] : memref<1x32xf32, #tpu.memory_space<vmem>>, vector<1x32xf32>
    %23 = arith.addf %21, %22 : vector<1x32xf32>
    %cst_17 = arith.constant 0.000000e+00 : f32
    %24 = vector.broadcast %cst_17 : f32 to vector<1x32xf32>
    %25 = arith.maximumf %23, %24 : vector<1x32xf32>
    %26 = arith.truncf %25 : vector<1x32xf32> to vector<1x32xbf16>
    %c0_18 = arith.constant 0 : index
    %c0_19 = arith.constant 0 : index
    %27 = vector.load %arg7[%c0_18, %c0_19] : memref<32x128xbf16, #tpu.memory_space<vmem>>, vector<32x128xbf16>
    %cst_20 = arith.constant dense<0.000000e+00> : vector<1x128xf32>
    %28 = tpu.matmul %26, %27, %cst_20 {dimension_numbers = #tpu.dot_dimension_numbers<[1], [0], [0], [1], [0, 0, 1, 1], [], []>} : vector<1x32xbf16>, vector<32x128xbf16>, vector<1x128xf32> -> vector<1x128xf32>
    %c0_21 = arith.constant 0 : index
    %c0_22 = arith.constant 0 : index
    %29 = vector.load %arg8[%c0_21, %c0_22] : memref<1x128xf32, #tpu.memory_space<vmem>>, vector<1x128xf32>
    %30 = arith.addf %28, %29 : vector<1x128xf32>
    %31 = arith.negf %30 : vector<1x128xf32>
    %32 = math.exp %31 : vector<1x128xf32>
    %cst_23 = arith.constant 1.000000e+00 : f32
    %33 = vector.broadcast %cst_23 : f32 to vector<1x128xf32>
    %34 = arith.addf %33, %32 : vector<1x128xf32>
    %35 = arith.divf %33, %34 : vector<1x128xf32>
    %36 = vector.broadcast %35 : vector<1x128xf32> to vector<32x128xf32>
    %37 = arith.mulf %14, %36 : vector<32x128xf32>
    %38 = arith.truncf %37 : vector<32x128xf32> to vector<32x128xbf16>
    %c0_24 = arith.constant 0 : index
    %c0_25 = arith.constant 0 : index
    %c0_26 = arith.constant 0 : index
    %39 = vector.load %arg9[%c0_24, %c0_25, %c0_26] : memref<1x32x128xbf16, #tpu.memory_space<vmem>>, vector<1x32x128xbf16>
    %40 = vector.shape_cast %39 : vector<1x32x128xbf16> to vector<32x128xbf16>
    %41 = vector.shape_cast %38 : vector<32x128xbf16> to vector<1x32x128xbf16>
    tpu.vector_store %arg9[%c0_24, %c0_25, %c0_26], %41 {strides = array<i32>} : memref<1x32x128xbf16, #tpu.memory_space<vmem>>, vector<1x32x128xbf16>,
    return
  }
  func.func @transform_0(%arg0: i32) -> (i32, i32, i32) {
    %c0_i32 = arith.constant 0 : i32
    %c0_i32_0 = arith.constant 0 : i32
    %c0_i32_1 = arith.constant 0 : i32
    return %arg0, %c0_i32, %c0_i32_0 : i32, i32, i32
  }
  func.func @transform_1(%arg0: i32) -> (i32, i32, i32) {
    %c0_i32 = arith.constant 0 : i32
    %c0_i32_0 = arith.constant 0 : i32
    %c0_i32_1 = arith.constant 0 : i32
    return %arg0, %c0_i32, %c0_i32_0 : i32, i32, i32
  }
  func.func @transform_2(%arg0: i32) -> (i32, i32, i32) {
    %c0_i32 = arith.constant 0 : i32
    %c0_i32_0 = arith.constant 0 : i32
    %c0_i32_1 = arith.constant 0 : i32
    return %arg0, %c0_i32, %c0_i32_0 : i32, i32, i32
  }
  func.func @transform_3(%arg0: i32) -> (i32, i32, i32) {
    %c0_i32 = arith.constant 0 : i32
    %c0_i32_0 = arith.constant 0 : i32
    %c0_i32_1 = arith.constant 0 : i32
    return %arg0, %c0_i32, %c0_i32_0 : i32, i32, i32
  }
  func.func @transform_4(%arg0: i32) -> (i32, i32) {
    %c0_i32 = arith.constant 0 : i32
    %c0_i32_0 = arith.constant 0 : i32
    %c0_i32_1 = arith.constant 0 : i32
    return %c0_i32, %c0_i32_0 : i32, i32
  }
  func.func @transform_5(%arg0: i32) -> (i32, i32) {
    %c0_i32 = arith.constant 0 : i32
    %c0_i32_0 = arith.constant 0 : i32
    %c0_i32_1 = arith.constant 0 : i32
    return %c0_i32, %c0_i32_0 : i32, i32
  }
  func.func @transform_6(%arg0: i32) -> (i32, i32) {
    %c0_i32 = arith.constant 0 : i32
    %c0_i32_0 = arith.constant 0 : i32
    %c0_i32_1 = arith.constant 0 : i32
    return %c0_i32, %c0_i32_0 : i32, i32
  }
  func.func @transform_7(%arg0: i32) -> (i32, i32) {
    %c0_i32 = arith.constant 0 : i32
    %c0_i32_0 = arith.constant 0 : i32
    %c0_i32_1 = arith.constant 0 : i32
    return %c0_i32, %c0_i32_0 : i32, i32
  }
  func.func @transform_8(%arg0: i32) -> (i32, i32, i32) {
    %c0_i32 = arith.constant 0 : i32
    %c0_i32_0 = arith.constant 0 : i32
    %c0_i32_1 = arith.constant 0 : i32
    return %arg0, %c0_i32, %c0_i32_0 : i32, i32, i32
  }
}

module attributes {stable_mosaic.version = 11 : i64} {
  func.func @kernel(%arg0: i32, %arg1: i32, %arg2: memref<1x32x128xbf16, #tpu.memory_space<vmem>>, %arg3: memref<1x32x128xbf16, #tpu.memory_space<vmem>>, %arg4: memref<1x32x128xbf16, #tpu.memory_space<vmem>>, %arg5: memref<3x128x128xbf16, #tpu.memory_space<vmem>>, %arg6: memref<1x128xf32, #tpu.memory_space<vmem>>, %arg7: memref<1x32x128xbf16, #tpu.memory_space<vmem>>) attributes {dimension_semantics = [#tpu.dimension_semantics<parallel>, #tpu.dimension_semantics<parallel>], iteration_bounds = array<i64: 2, 1>, scalar_prefetch = 0 : i64, scratch_operands = 0 : i64, tpu.core_type = #tpu.core_type<tc>, window_params = [{transform_indices = @transform_0, window_bounds = array<i64: 1, 32, 128>}, {transform_indices = @transform_1, window_bounds = array<i64: 1, 32, 128>}, {transform_indices = @transform_2, window_bounds = array<i64: 1, 32, 128>}, {transform_indices = @transform_3, window_bounds = array<i64: 3, 128, 128>}, {transform_indices = @transform_4, window_bounds = array<i64: 1, 128>}, {transform_indices = @transform_5, window_bounds = array<i64: 1, 32, 128>}]} {
    %c0 = arith.constant 0 : index
    %c0_0 = arith.constant 0 : index
    %c0_1 = arith.constant 0 : index
    %0 = vector.load %arg2[%c0, %c0_0, %c0_1] : memref<1x32x128xbf16, #tpu.memory_space<vmem>>, vector<1x32x128xbf16>
    %1 = vector.shape_cast %0 : vector<1x32x128xbf16> to vector<32x128xbf16>
    %c0_2 = arith.constant 0 : index
    %c0_3 = arith.constant 0 : index
    %c0_4 = arith.constant 0 : index
    %2 = vector.load %arg5[%c0_2, %c0_3, %c0_4] : memref<3x128x128xbf16, #tpu.memory_space<vmem>>, vector<1x128x128xbf16>
    %3 = vector.shape_cast %2 : vector<1x128x128xbf16> to vector<128x128xbf16>
    %cst = arith.constant dense<0.000000e+00> : vector<32x128xf32>
    %4 = tpu.matmul %1, %3, %cst {dimension_numbers = #tpu.dot_dimension_numbers<[1], [0], [0], [1], [0, 0, 1, 1], [], []>} : vector<32x128xbf16>, vector<128x128xbf16>, vector<32x128xf32> -> vector<32x128xf32>
    %c0_5 = arith.constant 0 : index
    %c0_6 = arith.constant 0 : index
    %c0_7 = arith.constant 0 : index
    %5 = vector.load %arg3[%c0_5, %c0_6, %c0_7] : memref<1x32x128xbf16, #tpu.memory_space<vmem>>, vector<1x32x128xbf16>
    %6 = vector.shape_cast %5 : vector<1x32x128xbf16> to vector<32x128xbf16>
    %c1 = arith.constant 1 : index
    %c0_8 = arith.constant 0 : index
    %c0_9 = arith.constant 0 : index
    %7 = vector.load %arg5[%c1, %c0_8, %c0_9] : memref<3x128x128xbf16, #tpu.memory_space<vmem>>, vector<1x128x128xbf16>
    %8 = vector.shape_cast %7 : vector<1x128x128xbf16> to vector<128x128xbf16>
    %cst_10 = arith.constant dense<0.000000e+00> : vector<32x128xf32>
    %9 = tpu.matmul %6, %8, %cst_10 {dimension_numbers = #tpu.dot_dimension_numbers<[1], [0], [0], [1], [0, 0, 1, 1], [], []>} : vector<32x128xbf16>, vector<128x128xbf16>, vector<32x128xf32> -> vector<32x128xf32>
    %10 = arith.addf %4, %9 : vector<32x128xf32>
    %c0_11 = arith.constant 0 : index
    %c0_12 = arith.constant 0 : index
    %c0_13 = arith.constant 0 : index
    %11 = vector.load %arg4[%c0_11, %c0_12, %c0_13] : memref<1x32x128xbf16, #tpu.memory_space<vmem>>, vector<1x32x128xbf16>
    %12 = vector.shape_cast %11 : vector<1x32x128xbf16> to vector<32x128xbf16>
    %c2 = arith.constant 2 : index
    %c0_14 = arith.constant 0 : index
    %c0_15 = arith.constant 0 : index
    %13 = vector.load %arg5[%c2, %c0_14, %c0_15] : memref<3x128x128xbf16, #tpu.memory_space<vmem>>, vector<1x128x128xbf16>
    %14 = vector.shape_cast %13 : vector<1x128x128xbf16> to vector<128x128xbf16>
    %cst_16 = arith.constant dense<0.000000e+00> : vector<32x128xf32>
    %15 = tpu.matmul %12, %14, %cst_16 {dimension_numbers = #tpu.dot_dimension_numbers<[1], [0], [0], [1], [0, 0, 1, 1], [], []>} : vector<32x128xbf16>, vector<128x128xbf16>, vector<32x128xf32> -> vector<32x128xf32>
    %16 = arith.addf %10, %15 : vector<32x128xf32>
    %c0_17 = arith.constant 0 : index
    %c0_18 = arith.constant 0 : index
    %17 = vector.load %arg6[%c0_17, %c0_18] : memref<1x128xf32, #tpu.memory_space<vmem>>, vector<1x128xf32>
    %18 = vector.broadcast %17 : vector<1x128xf32> to vector<32x128xf32>
    %19 = arith.addf %16, %18 : vector<32x128xf32>
    %cst_19 = arith.constant 0.000000e+00 : f32
    %20 = vector.broadcast %cst_19 : f32 to vector<32x128xf32>
    %21 = arith.maximumf %19, %20 : vector<32x128xf32>
    %22 = arith.truncf %21 : vector<32x128xf32> to vector<32x128xbf16>
    %c0_20 = arith.constant 0 : index
    %c0_21 = arith.constant 0 : index
    %c0_22 = arith.constant 0 : index
    %23 = vector.load %arg7[%c0_20, %c0_21, %c0_22] : memref<1x32x128xbf16, #tpu.memory_space<vmem>>, vector<1x32x128xbf16>
    %24 = vector.shape_cast %23 : vector<1x32x128xbf16> to vector<32x128xbf16>
    %25 = vector.shape_cast %22 : vector<32x128xbf16> to vector<1x32x128xbf16>
    tpu.vector_store %arg7[%c0_20, %c0_21, %c0_22], %25 {strides = array<i32>} : memref<1x32x128xbf16, #tpu.memory_space<vmem>>, vector<1x32x128xbf16>,
    return
  }
  func.func @transform_0(%arg0: i32, %arg1: i32) -> (i32, i32, i32) {
    %c0_i32 = arith.constant 0 : i32
    %c0_i32_0 = arith.constant 0 : i32
    %c0_i32_1 = arith.constant 0 : i32
    return %arg0, %c0_i32, %c0_i32_0 : i32, i32, i32
  }
  func.func @transform_1(%arg0: i32, %arg1: i32) -> (i32, i32, i32) {
    %c0_i32 = arith.constant 0 : i32
    %c0_i32_0 = arith.constant 0 : i32
    %c0_i32_1 = arith.constant 0 : i32
    return %arg0, %c0_i32, %c0_i32_0 : i32, i32, i32
  }
  func.func @transform_2(%arg0: i32, %arg1: i32) -> (i32, i32, i32) {
    %c0_i32 = arith.constant 0 : i32
    %c0_i32_0 = arith.constant 0 : i32
    %c0_i32_1 = arith.constant 0 : i32
    return %arg0, %c0_i32, %c0_i32_0 : i32, i32, i32
  }
  func.func @transform_3(%arg0: i32, %arg1: i32) -> (i32, i32, i32) {
    %c0_i32 = arith.constant 0 : i32
    %c0_i32_0 = arith.constant 0 : i32
    %c0_i32_1 = arith.constant 0 : i32
    return %c0_i32, %c0_i32_0, %arg1 : i32, i32, i32
  }
  func.func @transform_4(%arg0: i32, %arg1: i32) -> (i32, i32) {
    %c0_i32 = arith.constant 0 : i32
    %c0_i32_0 = arith.constant 0 : i32
    return %c0_i32, %arg1 : i32, i32
  }
  func.func @transform_5(%arg0: i32, %arg1: i32) -> (i32, i32, i32) {
    %c0_i32 = arith.constant 0 : i32
    %c0_i32_0 = arith.constant 0 : i32
    return %arg0, %c0_i32, %arg1 : i32, i32, i32
  }
}

module attributes {stable_mosaic.version = 11 : i64} {
  func.func @_attn_pool_kernel(%arg0: i32, %arg1: memref<1x32x128xbf16, #tpu.memory_space<vmem>>, %arg2: memref<128x32xbf16, #tpu.memory_space<vmem>>, %arg3: memref<1x32xf32, #tpu.memory_space<vmem>>, %arg4: memref<1x32xf32, #tpu.memory_space<vmem>>, %arg5: memref<1x32xf32, #tpu.memory_space<vmem>>, %arg6: memref<32x128xbf16, #tpu.memory_space<vmem>>, %arg7: memref<1x128xf32, #tpu.memory_space<vmem>>, %arg8: memref<1x1x128xf32, #tpu.memory_space<vmem>>, %arg9: memref<1x1x128xf32, #tpu.memory_space<vmem>>) attributes {dimension_semantics = [#tpu.dimension_semantics<parallel>], iteration_bounds = array<i64: 2>, scalar_prefetch = 0 : i64, scratch_operands = 0 : i64, tpu.core_type = #tpu.core_type<tc>, window_params = [{transform_indices = @transform_0, window_bounds = array<i64: 1, 32, 128>}, {pipeline_mode = #tpu.pipeline_mode<synchronous>, transform_indices = @transform_1, window_bounds = array<i64: 128, 32>}, {pipeline_mode = #tpu.pipeline_mode<synchronous>, transform_indices = @transform_2, window_bounds = array<i64: 1, 32>}, {pipeline_mode = #tpu.pipeline_mode<synchronous>, transform_indices = @transform_3, window_bounds = array<i64: 1, 32>}, {pipeline_mode = #tpu.pipeline_mode<synchronous>, transform_indices = @transform_4, window_bounds = array<i64: 1, 32>}, {pipeline_mode = #tpu.pipeline_mode<synchronous>, transform_indices = @transform_5, window_bounds = array<i64: 32, 128>}, {pipeline_mode = #tpu.pipeline_mode<synchronous>, transform_indices = @transform_6, window_bounds = array<i64: 1, 128>}, {transform_indices = @transform_7, window_bounds = array<i64: 1, 1, 128>}, {transform_indices = @transform_8, window_bounds = array<i64: 1, 1, 128>}]} {
    %c0 = arith.constant 0 : index
    %c0_0 = arith.constant 0 : index
    %c0_1 = arith.constant 0 : index
    %0 = vector.load %arg1[%c0, %c0_0, %c0_1] : memref<1x32x128xbf16, #tpu.memory_space<vmem>>, vector<1x32x128xbf16>
    %1 = vector.shape_cast %0 : vector<1x32x128xbf16> to vector<32x128xbf16>
    %c0_2 = arith.constant 0 : index
    %c0_3 = arith.constant 0 : index
    %2 = vector.load %arg2[%c0_2, %c0_3] : memref<128x32xbf16, #tpu.memory_space<vmem>>, vector<128x32xbf16>
    %cst = arith.constant dense<0.000000e+00> : vector<32x32xf32>
    %3 = tpu.matmul %1, %2, %cst {dimension_numbers = #tpu.dot_dimension_numbers<[1], [0], [0], [1], [0, 0, 1, 1], [], []>} : vector<32x128xbf16>, vector<128x32xbf16>, vector<32x32xf32> -> vector<32x32xf32>
    %c0_4 = arith.constant 0 : index
    %c0_5 = arith.constant 0 : index
    %4 = vector.load %arg3[%c0_4, %c0_5] : memref<1x32xf32, #tpu.memory_space<vmem>>, vector<1x32xf32>
    %5 = vector.broadcast %4 : vector<1x32xf32> to vector<32x32xf32>
    %6 = arith.addf %3, %5 : vector<32x32xf32>
    %cst_6 = arith.constant 0.000000e+00 : f32
    %7 = vector.broadcast %cst_6 : f32 to vector<32x32xf32>
    %8 = arith.maximumf %6, %7 : vector<32x32xf32>
    %c0_7 = arith.constant 0 : index
    %c0_8 = arith.constant 0 : index
    %9 = vector.load %arg4[%c0_7, %c0_8] : memref<1x32xf32, #tpu.memory_space<vmem>>, vector<1x32xf32>
    %10 = vector.broadcast %9 : vector<1x32xf32> to vector<32x32xf32>
    %11 = arith.mulf %8, %10 : vector<32x32xf32>
    %c0_9 = arith.constant 0 : index
    %c0_10 = arith.constant 0 : index
    %12 = vector.load %arg5[%c0_9, %c0_10] : memref<1x32xf32, #tpu.memory_space<vmem>>, vector<1x32xf32>
    %13 = vector.broadcast %12 : vector<1x32xf32> to vector<32x32xf32>
    %14 = arith.addf %11, %13 : vector<32x32xf32>
    %15 = math.tanh %14 : vector<32x32xf32>
    %16 = arith.truncf %15 : vector<32x32xf32> to vector<32x32xbf16>
    %c0_11 = arith.constant 0 : index
    %c0_12 = arith.constant 0 : index
    %17 = vector.load %arg6[%c0_11, %c0_12] : memref<32x128xbf16, #tpu.memory_space<vmem>>, vector<32x128xbf16>
    %cst_13 = arith.constant dense<0.000000e+00> : vector<32x128xf32>
    %18 = tpu.matmul %16, %17, %cst_13 {dimension_numbers = #tpu.dot_dimension_numbers<[1], [0], [0], [1], [0, 0, 1, 1], [], []>} : vector<32x32xbf16>, vector<32x128xbf16>, vector<32x128xf32> -> vector<32x128xf32>
    %c0_14 = arith.constant 0 : index
    %c0_15 = arith.constant 0 : index
    %19 = vector.load %arg7[%c0_14, %c0_15] : memref<1x128xf32, #tpu.memory_space<vmem>>, vector<1x128xf32>
    %20 = vector.broadcast %19 : vector<1x128xf32> to vector<32x128xf32>
    %21 = arith.addf %18, %20 : vector<32x128xf32>
    %cst_16 = arith.constant dense<0xFF800000> : vector<128xf32>
    %22 = vector.multi_reduction <maximumf>, %21, %cst_16 [0] : vector<32x128xf32> to vector<128xf32>
    %23 = vector.shape_cast %22 : vector<128xf32> to vector<1x128xf32>
    %24 = vector.broadcast %23 : vector<1x128xf32> to vector<32x128xf32>
    %25 = arith.subf %21, %24 : vector<32x128xf32>
    %26 = math.exp %25 : vector<32x128xf32>
    %cst_17 = arith.constant dense<0.000000e+00> : vector<128xf32>
    %27 = vector.multi_reduction <add>, %26, %cst_17 [0] : vector<32x128xf32> to vector<128xf32>
    %28 = vector.shape_cast %27 : vector<128xf32> to vector<1x128xf32>
    %29 = tpu.reciprocal %28 {approx = true} : vector<1x128xf32> -> vector<1x128xf32>
    %30 = vector.broadcast %29 : vector<1x128xf32> to vector<32x128xf32>
    %31 = arith.mulf %26, %30 : vector<32x128xf32>
    %32 = arith.extf %1 : vector<32x128xbf16> to vector<32x128xf32>
    %33 = arith.mulf %32, %31 : vector<32x128xf32>
    %cst_18 = arith.constant dense<0.000000e+00> : vector<128xf32>
    %34 = vector.multi_reduction <add>, %33, %cst_18 [0] : vector<32x128xf32> to vector<128xf32>
    %35 = vector.shape_cast %34 : vector<128xf32> to vector<1x128xf32>
    %36 = arith.mulf %32, %32 : vector<32x128xf32>
    %37 = arith.mulf %36, %31 : vector<32x128xf32>
    %cst_19 = arith.constant dense<0.000000e+00> : vector<128xf32>
    %38 = vector.multi_reduction <add>, %37, %cst_19 [0] : vector<32x128xf32> to vector<128xf32>
    %39 = vector.shape_cast %38 : vector<128xf32> to vector<1x128xf32>
    %c0_20 = arith.constant 0 : index
    %c0_21 = arith.constant 0 : index
    %c0_22 = arith.constant 0 : index
    %40 = vector.load %arg8[%c0_20, %c0_21, %c0_22] : memref<1x1x128xf32, #tpu.memory_space<vmem>>, vector<1x1x128xf32>
    %41 = vector.shape_cast %40 : vector<1x1x128xf32> to vector<1x128xf32>
    %42 = vector.shape_cast %35 : vector<1x128xf32> to vector<1x1x128xf32>
    tpu.vector_store %arg8[%c0_20, %c0_21, %c0_22], %42 {strides = array<i32>} : memref<1x1x128xf32, #tpu.memory_space<vmem>>, vector<1x1x128xf32>,
    %43 = arith.mulf %35, %35 : vector<1x128xf32>
    %44 = arith.subf %39, %43 : vector<1x128xf32>
    %cst_23 = arith.constant 9.99999971E-10 : f32
    %45 = vector.broadcast %cst_23 : f32 to vector<1x128xf32>
    %46 = arith.maximumf %44, %45 : vector<1x128xf32>
    %47 = math.sqrt %46 : vector<1x128xf32>
    %c0_24 = arith.constant 0 : index
    %c0_25 = arith.constant 0 : index
    %c0_26 = arith.constant 0 : index
    %48 = vector.load %arg9[%c0_24, %c0_25, %c0_26] : memref<1x1x128xf32, #tpu.memory_space<vmem>>, vector<1x1x128xf32>
    %49 = vector.shape_cast %48 : vector<1x1x128xf32> to vector<1x128xf32>
    %50 = vector.shape_cast %47 : vector<1x128xf32> to vector<1x1x128xf32>
    tpu.vector_store %arg9[%c0_24, %c0_25, %c0_26], %50 {strides = array<i32>} : memref<1x1x128xf32, #tpu.memory_space<vmem>>, vector<1x1x128xf32>,
    return
  }
  func.func @transform_0(%arg0: i32) -> (i32, i32, i32) {
    %c0_i32 = arith.constant 0 : i32
    %c0_i32_0 = arith.constant 0 : i32
    %c0_i32_1 = arith.constant 0 : i32
    return %arg0, %c0_i32, %c0_i32_0 : i32, i32, i32
  }
  func.func @transform_1(%arg0: i32) -> (i32, i32) {
    %c0_i32 = arith.constant 0 : i32
    %c0_i32_0 = arith.constant 0 : i32
    %c0_i32_1 = arith.constant 0 : i32
    return %c0_i32, %c0_i32_0 : i32, i32
  }
  func.func @transform_2(%arg0: i32) -> (i32, i32) {
    %c0_i32 = arith.constant 0 : i32
    %c0_i32_0 = arith.constant 0 : i32
    %c0_i32_1 = arith.constant 0 : i32
    return %c0_i32, %c0_i32_0 : i32, i32
  }
  func.func @transform_3(%arg0: i32) -> (i32, i32) {
    %c0_i32 = arith.constant 0 : i32
    %c0_i32_0 = arith.constant 0 : i32
    %c0_i32_1 = arith.constant 0 : i32
    return %c0_i32, %c0_i32_0 : i32, i32
  }
  func.func @transform_4(%arg0: i32) -> (i32, i32) {
    %c0_i32 = arith.constant 0 : i32
    %c0_i32_0 = arith.constant 0 : i32
    %c0_i32_1 = arith.constant 0 : i32
    return %c0_i32, %c0_i32_0 : i32, i32
  }
  func.func @transform_5(%arg0: i32) -> (i32, i32) {
    %c0_i32 = arith.constant 0 : i32
    %c0_i32_0 = arith.constant 0 : i32
    %c0_i32_1 = arith.constant 0 : i32
    return %c0_i32, %c0_i32_0 : i32, i32
  }
  func.func @transform_6(%arg0: i32) -> (i32, i32) {
    %c0_i32 = arith.constant 0 : i32
    %c0_i32_0 = arith.constant 0 : i32
    %c0_i32_1 = arith.constant 0 : i32
    return %c0_i32, %c0_i32_0 : i32, i32
  }
  func.func @transform_7(%arg0: i32) -> (i32, i32, i32) {
    %c0_i32 = arith.constant 0 : i32
    %c0_i32_0 = arith.constant 0 : i32
    %c0_i32_1 = arith.constant 0 : i32
    return %arg0, %c0_i32, %c0_i32_0 : i32, i32, i32
  }
  func.func @transform_8(%arg0: i32) -> (i32, i32, i32) {
    %c0_i32 = arith.constant 0 : i32
    %c0_i32_0 = arith.constant 0 : i32
    %c0_i32_1 = arith.constant 0 : i32
    return %arg0, %c0_i32, %c0_i32_0 : i32, i32, i32
  }
}

module attributes {stable_mosaic.version = 11 : i64} {
  func.func @_head_kernel(%arg0: memref<2x256xf32, #tpu.memory_space<vmem>>, %arg1: memref<1x256xf32, #tpu.memory_space<vmem>>, %arg2: memref<1x256xf32, #tpu.memory_space<vmem>>, %arg3: memref<256x32xbf16, #tpu.memory_space<vmem>>, %arg4: memref<1x32xf32, #tpu.memory_space<vmem>>, %arg5: memref<1x32xf32, #tpu.memory_space<vmem>>, %arg6: memref<1x32xf32, #tpu.memory_space<vmem>>, %arg7: memref<2x32xf32, #tpu.memory_space<vmem>>) attributes {dimension_semantics = [], scalar_prefetch = 0 : i64, scratch_operands = 0 : i64, tpu.core_type = #tpu.core_type<tc>} {
    %c0 = arith.constant 0 : index
    %c0_0 = arith.constant 0 : index
    %0 = vector.load %arg0[%c0, %c0_0] : memref<2x256xf32, #tpu.memory_space<vmem>>, vector<2x256xf32>
    %c0_1 = arith.constant 0 : index
    %c0_2 = arith.constant 0 : index
    %1 = vector.load %arg1[%c0_1, %c0_2] : memref<1x256xf32, #tpu.memory_space<vmem>>, vector<1x256xf32>
    %2 = vector.broadcast %1 : vector<1x256xf32> to vector<2x256xf32>
    %3 = arith.mulf %0, %2 : vector<2x256xf32>
    %c0_3 = arith.constant 0 : index
    %c0_4 = arith.constant 0 : index
    %4 = vector.load %arg2[%c0_3, %c0_4] : memref<1x256xf32, #tpu.memory_space<vmem>>, vector<1x256xf32>
    %5 = vector.broadcast %4 : vector<1x256xf32> to vector<2x256xf32>
    %6 = arith.addf %3, %5 : vector<2x256xf32>
    %7 = arith.truncf %6 : vector<2x256xf32> to vector<2x256xbf16>
    %c0_5 = arith.constant 0 : index
    %c0_6 = arith.constant 0 : index
    %8 = vector.load %arg3[%c0_5, %c0_6] : memref<256x32xbf16, #tpu.memory_space<vmem>>, vector<256x32xbf16>
    %cst = arith.constant dense<0.000000e+00> : vector<2x32xf32>
    %9 = tpu.matmul %7, %8, %cst {dimension_numbers = #tpu.dot_dimension_numbers<[1], [0], [0], [1], [0, 0, 1, 1], [], []>} : vector<2x256xbf16>, vector<256x32xbf16>, vector<2x32xf32> -> vector<2x32xf32>
    %c0_7 = arith.constant 0 : index
    %c0_8 = arith.constant 0 : index
    %10 = vector.load %arg4[%c0_7, %c0_8] : memref<1x32xf32, #tpu.memory_space<vmem>>, vector<1x32xf32>
    %11 = vector.broadcast %10 : vector<1x32xf32> to vector<2x32xf32>
    %12 = arith.addf %9, %11 : vector<2x32xf32>
    %c0_9 = arith.constant 0 : index
    %c0_10 = arith.constant 0 : index
    %13 = vector.load %arg5[%c0_9, %c0_10] : memref<1x32xf32, #tpu.memory_space<vmem>>, vector<1x32xf32>
    %14 = vector.broadcast %13 : vector<1x32xf32> to vector<2x32xf32>
    %15 = arith.mulf %12, %14 : vector<2x32xf32>
    %c0_11 = arith.constant 0 : index
    %c0_12 = arith.constant 0 : index
    %16 = vector.load %arg6[%c0_11, %c0_12] : memref<1x32xf32, #tpu.memory_space<vmem>>, vector<1x32xf32>
    %17 = vector.broadcast %16 : vector<1x32xf32> to vector<2x32xf32>
    %18 = arith.addf %15, %17 : vector<2x32xf32>
    %c0_13 = arith.constant 0 : index
    %c0_14 = arith.constant 0 : index
    %19 = vector.load %arg7[%c0_13, %c0_14] : memref<2x32xf32, #tpu.memory_space<vmem>>, vector<2x32xf32>
    tpu.vector_store %arg7[%c0_13, %c0_14], %18 {strides = array<i32>} : memref<2x32xf32, #tpu.memory_space<vmem>>, vector<2x32xf32>,
    return
  }
}

</mosaic_0001>

<llo_original>
// kernel: ecapa_forward.16
$region0: #{ecapa_forward.16}
  #allocation0 [shape = 'u32[]', space=smem, size = 0x4, offset = 0x4, fixed_abs, tag = 'smem constant byte address 0x4 - core index']
  #allocation1 [shape = 'u32[144,128]{1,0:T(1,128)}', space=vmem, size = 0x12000, scoped, tag = 'internal scratch']
  #allocation2 [shape = 'f32[36,16]{1,0:T(8,128)}', space=vmem, size = 0x5000, scoped, tag = 'scratch operand']
  %s0 = inlined_call_operand.vmem [shape: bf16[2,32,16], index: 0, kind: input, shape index: {}]
  %s1 = inlined_call_operand.vmem [shape: bf16[5,16,128], index: 1, kind: input, shape index: {}]
  %s2 = inlined_call_operand.vmem [shape: f32[1,128], index: 2, kind: input, shape index: {}]
  %s3 = inlined_call_operand.vmem [shape: f32[1,128], index: 3, kind: input, shape index: {}]
  %s4 = inlined_call_operand.vmem [shape: f32[1,128], index: 4, kind: input, shape index: {}]
  %s5 = inlined_call_operand.vmem [shape: bf16[2,32,128], index: 5, kind: output, shape index: {}]
  %s6 = sld [smem:[#allocation0]]
  $region53: #{ecapa_forward.16} parent=0
    _
  %s8 = ssub.s32 1, %s6
  %s9 = scalar_select 0, %s8, %s6
  loop: start=0, step=1, limit=4
  $region2: #{ecapa_forward.16} parent=0 // loop_pre_header
    _
  $region3: #{ecapa_forward.16} parent=0 // loop_header
    %s11 = sphi 0, %s15
    %p12 = scmp.ge.s32.totalorder %s11, 4
    %s18 = sphi 0, %s30
    %s19 = sphi 0, %s26
    %s20 = sphi 0, %s18
    %s21 = sphi 0, %s19
    %s22 = sphi 0, %s20
    %s23 = sphi 0, %s21
    %s33 = sphi 0, %s35
    %s36 = sphi 0, %s33
    %s37 = sphi 0, %s36
    %s53 = sphi 0, %s37
    %s59 = sphi 0, %s61
    %s62 = sphi 0, %s59
    %s63 = sphi 0, %s62
    %s79 = sphi 0, %s63
    %s85 = sphi 0, %s87
    %s88 = sphi 0, %s85
    %s89 = sphi 0, %s88
    %s105 = sphi 0, %s89
    %s111 = sphi 0, %s113
    %s114 = sphi 0, %s111
    %s115 = sphi 0, %s114
    %s131 = sphi 0, %s115
    %s137 = sphi 0, %s139
    %s140 = sphi 0, %s137
    %s141 = sphi 0, %s140
    %s157 = sphi 0, %s141
    %s165 = sphi 0, %s167
    %s168 = sphi 0, %s165
    %s169 = sphi 0, %s168
    %s185 = sphi 0, %s169
  $region4: #{ecapa_forward.16} parent=0 // loop_header_branch
    %14 = sbr.rel (%p12) target = $region8
  $region5: #{ecapa_forward.16} parent=0 // loop_body
    %s16 = ssub.s32 %s11, 1
    %s17 = ssub.s32 %s11, 2
    %s24 = sadd.s32 1, %s19
    %p25 = scmp.ge.s32.totalorder %s24, 1
    %s26 = scalar_select %p25, 0, %s24
    %s27 = sadd.s32 1, %s18
    %s28 = scalar_select %p25, %s27, %s18
    %p29 = scmp.ge.s32.totalorder %s28, 2
    %s30 = scalar_select %p29, 0, %s28
    %s31 = ssub.s32 %s18, %s30
    %p32 = scmp.eq.s32.totalorder %s31, 0
    %s34 = sadd.s32 %s33, 1
    %s35 = scalar_select %p32, %s33, %s34
    %p38 = pneg %p32
    %p39 = scmp.eq.s32.totalorder %s11, 1
    %p40 = por %p38, %p39
    %p41 = scmp.ne.s32.totalorder %s33, %s36
    %p42 = scmp.eq.s32.totalorder %s11, 0
    %p43 = por %p41, %p42
    %p44 = scmp.ne.s32.totalorder %s33, %s36
    %p45 = scmp.eq.s32.totalorder %s16, 1
    %p46 = por %p44, %p45
    %p47 = scmp.ne.s32.totalorder %s36, %s37
    %p48 = scmp.eq.s32.totalorder %s16, 0
    %p49 = por %p47, %p48
    %p50 = scmp.ne.s32.totalorder %s36, %s37
    %p51 = scmp.eq.s32.totalorder %s17, 1
    %p52 = por %p50, %p51
    %p54 = scmp.ne.s32.totalorder %s37, %s53
    %p55 = scmp.eq.s32.totalorder %s17, 0
    %p56 = por %p54, %p55
    %s57 = ssub.s32 %s19, %s26
    %p58 = scmp.eq.s32.totalorder %s57, 0
    %s60 = sadd.s32 %s59, 1
    %s61 = scalar_select %p58, %s59, %s60
    %p64 = pneg %p58
    %p65 = scmp.eq.s32.totalorder %s11, 1
    %p66 = por %p64, %p65
    %p67 = scmp.ne.s32.totalorder %s59, %s62
    %p68 = scmp.eq.s32.totalorder %s11, 0
    %p69 = por %p67, %p68
    %p70 = scmp.ne.s32.totalorder %s59, %s62
    %p71 = scmp.eq.s32.totalorder %s16, 1
    %p72 = por %p70, %p71
    %p73 = scmp.ne.s32.totalorder %s62, %s63
    %p74 = scmp.eq.s32.totalorder %s16, 0
    %p75 = por %p73, %p74
    %p76 = scmp.ne.s32.totalorder %s62, %s63
    %p77 = scmp.eq.s32.totalorder %s17, 1
    %p78 = por %p76, %p77
    %p80 = scmp.ne.s32.totalorder %s63, %s79
    %p81 = scmp.eq.s32.totalorder %s17, 0
    %p82 = por %p80, %p81
    %s83 = ssub.s32 %s19, %s26
    %p84 = scmp.eq.s32.totalorder %s83, 0
    %s86 = sadd.s32 %s85, 1
    %s87 = scalar_select %p84, %s85, %s86
    %p90 = pneg %p84
    %p91 = scmp.eq.s32.totalorder %s11, 1
    %p92 = por %p90, %p91
    %p93 = scmp.ne.s32.totalorder %s85, %s88
    %p94 = scmp.eq.s32.totalorder %s11, 0
    %p95 = por %p93, %p94
    %p96 = scmp.ne.s32.totalorder %s85, %s88
    %p97 = scmp.eq.s32.totalorder %s16, 1
    %p98 = por %p96, %p97
    %p99 = scmp.ne.s32.totalorder %s88, %s89
    %p100 = scmp.eq.s32.totalorder %s16, 0
    %p101 = por %p99, %p100
    %p102 = scmp.ne.s32.totalorder %s88, %s89
    %p103 = scmp.eq.s32.totalorder %s17, 1
    %p104 = por %p102, %p103
    %p106 = scmp.ne.s32.totalorder %s89, %s105
    %p107 = scmp.eq.s32.totalorder %s17, 0
    %p108 = por %p106, %p107
    %s109 = ssub.s32 %s19, %s26
    %p110 = scmp.eq.s32.totalorder %s109, 0
    %s112 = sadd.s32 %s111, 1
    %s113 = scalar_select %p110, %s111, %s112
    %p116 = pneg %p110
    %p117 = scmp.eq.s32.totalorder %s11, 1
    %p118 = por %p116, %p117
    %p119 = scmp.ne.s32.totalorder %s111, %s114
    %p120 = scmp.eq.s32.totalorder %s11, 0
    %p121 = por %p119, %p120
    %p122 = scmp.ne.s32.totalorder %s111, %s114
    %p123 = scmp.eq.s32.totalorder %s16, 1
    %p124 = por %p122, %p123
    %p125 = scmp.ne.s32.totalorder %s114, %s115
    %p126 = scmp.eq.s32.totalorder %s16, 0
    %p127 = por %p125, %p126
    %p128 = scmp.ne.s32.totalorder %s114, %s115
    %p129 = scmp.eq.s32.totalorder %s17, 1
    %p130 = por %p128, %p129
    %p132 = scmp.ne.s32.totalorder %s115, %s131
    %p133 = scmp.eq.s32.totalorder %s17, 0
    %p134 = por %p132, %p133
    %s135 = ssub.s32 %s19, %s26
    %p136 = scmp.eq.s32.totalorder %s135, 0
    %s138 = sadd.s32 %s137, 1
    %s139 = scalar_select %p136, %s137, %s138
    %p142 = pneg %p136
    %p143 = scmp.eq.s32.totalorder %s11, 1
    %p144 = por %p142, %p143
    %p145 = scmp.ne.s32.totalorder %s137, %s140
    %p146 = scmp.eq.s32.totalorder %s11, 0
    %p147 = por %p145, %p146
    %p148 = scmp.ne.s32.totalorder %s137, %s140
    %p149 = scmp.eq.s32.totalorder %s16, 1
    %p150 = por %p148, %p149
    %p151 = scmp.ne.s32.totalorder %s140, %s141
    %p152 = scmp.eq.s32.totalorder %s16, 0
    %p153 = por %p151, %p152
    %p154 = scmp.ne.s32.totalorder %s140, %s141
    %p155 = scmp.eq.s32.totalorder %s17, 1
    %p156 = por %p154, %p155
    %p158 = scmp.ne.s32.totalorder %s141, %s157
    %p159 = scmp.eq.s32.totalorder %s17, 0
    %p160 = por %p158, %p159
    %s161 = ssub.s32 %s18, %s30
    %s162 = ssub.s32 %s19, %s26
    %s163 = sor.u32 %s161, %s162
    %p164 = scmp.eq.s32.totalorder %s163, 0
    %s166 = sadd.s32 %s165, 1
    %s167 = scalar_select %p164, %s165, %s166
    %p170 = pneg %p164
    %p171 = scmp.eq.s32.totalorder %s11, 1
    %p172 = por %p170, %p171
    %p173 = scmp.ne.s32.totalorder %s165, %s168
    %p174 = scmp.eq.s32.totalorder %s11, 0
    %p175 = por %p173, %p174
    %p176 = scmp.ne.s32.totalorder %s165, %s168
    %p177 = scmp.eq.s32.totalorder %s16, 1
    %p178 = por %p176, %p177
    %p179 = scmp.ne.s32.totalorder %s168, %s169
    %p180 = scmp.eq.s32.totalorder %s16, 0
    %p181 = por %p179, %p180
    %p182 = scmp.ne.s32.totalorder %s168, %s169
    %p183 = scmp.eq.s32.totalorder %s17, 1
    %p184 = por %p182, %p183
    %p186 = scmp.ne.s32.totalorder %s169, %s185
    %p187 = scmp.eq.s32.totalorder %s17, 0
    %p188 = por %p186, %p187
    %p189 = scmp.le.s32.totalorder 1, %s11
    %p190 = scmp.lt.s32.totalorder %s11, 3
    %p191 = pnand %p189, %p190
    %p192 = pneg %p191
    // Predicated region
    $region9: #{ecapa_forward.16} parent=5 // pred_check
      _
    $region10: #{ecapa_forward.16} parent=5 // pred_check_branch
      %194 = sbr.rel (%p191) target = $region12
    $region11: #{ecapa_forward.16} parent=5 // pred_region
      %s195 = ssub.s32 %s11, 1
      // Predicated region
      $region13: #{ecapa_forward.16} parent=11 // pred_check
        %p196 = pneg %p75
      $region14: #{ecapa_forward.16} parent=11 // pred_check_branch
        %198 = sbr.rel (%p196) target = $region16
      $region15: #{ecapa_forward.16} parent=11 // pred_region
        %p199 = scmp.lt.s32.totalorder %s21, 0
        %s200 = scalar_select %p199, %s21, 0
        %s201 = smul.addr %s200, 4
        %s202 = scalar_lea.vmem %s1, %s201
      $region16: #{ecapa_forward.16} parent=11 // pred_fallthru
        _
      // Predicated region
      $region17: #{ecapa_forward.16} parent=11 // pred_check
        %p203 = pneg %p101
      $region18: #{ecapa_forward.16} parent=11 // pred_check_branch
        %205 = sbr.rel (%p203) target = $region20
      $region19: #{ecapa_forward.16} parent=11 // pred_region
        %p206 = scmp.lt.s32.totalorder %s21, 0
        %s207 = scalar_select %p206, %s21, 0
        %s208 = scalar_lea.vmem %s2, %s207
      $region20: #{ecapa_forward.16} parent=11 // pred_fallthru
        _
      // Predicated region
      $region21: #{ecapa_forward.16} parent=11 // pred_check
        %p209 = pneg %p127
      $region22: #{ecapa_forward.16} parent=11 // pred_check_branch
        %211 = sbr.rel (%p209) target = $region24
      $region23: #{ecapa_forward.16} parent=11 // pred_region
        %p212 = scmp.lt.s32.totalorder %s21, 0
        %s213 = scalar_select %p212, %s21, 0
        %s214 = scalar_lea.vmem %s3, %s213
      $region24: #{ecapa_forward.16} parent=11 // pred_fallthru
        _
      // Predicated region
      $region25: #{ecapa_forward.16} parent=11 // pred_check
        %p215 = pneg %p153
      $region26: #{ecapa_forward.16} parent=11 // pred_check_branch
        %217 = sbr.rel (%p215) target = $region28
      $region27: #{ecapa_forward.16} parent=11 // pred_region
        %p218 = scmp.lt.s32.totalorder %s21, 0
        %s219 = scalar_select %p218, %s21, 0
        %s220 = scalar_lea.vmem %s4, %s219
      $region28: #{ecapa_forward.16} parent=11 // pred_fallthru
        _
    $region12: #{ecapa_forward.16} parent=5 // pred_fallthru
      _
    %p221 = scmp.lt.s32.totalorder %s11, 2
    // Predicated region
    $region29: #{ecapa_forward.16} parent=5 // pred_check
      %p222 = pneg %p221
    $region30: #{ecapa_forward.16} parent=5 // pred_check_branch
      %224 = sbr.rel (%p222) target = $region32
    $region31: #{ecapa_forward.16} parent=5 // pred_region
      // Predicated region
      $region33: #{ecapa_forward.16} parent=31 // pred_check
        %p225 = pneg %p43
      $region34: #{ecapa_forward.16} parent=31 // pred_check_branch
        %227 = sbr.rel (%p225) target = $region36
      $region35: #{ecapa_forward.16} parent=31 // pred_region
        %p228 = scmp.lt.s32.totalorder %s18, 1
        %s229 = scalar_select %p228, %s18, 1
        %s230 = smul.addr %s229, 4
        %s231 = smul.addr %s230, 4
        %s232 = scalar_lea.vmem %s0, %s231
      $region36: #{ecapa_forward.16} parent=31 // pred_fallthru
        _
    $region32: #{ecapa_forward.16} parent=5 // pred_fallthru
      _
    %p233 = scmp.le.s32.totalorder 1, %s11
    %p234 = scmp.lt.s32.totalorder %s11, 3
    %p235 = pnand %p233, %p234
    %p236 = pneg %p235
    // Predicated region
    $region37: #{ecapa_forward.16} parent=5 // pred_check
      _
    $region38: #{ecapa_forward.16} parent=5 // pred_check_branch
      %238 = sbr.rel (%p235) target = $region40
    $region39: #{ecapa_forward.16} parent=5 // pred_region
      %s239 = ssub.s32 %s11, 1
      %p240 = scmp.lt.s32.totalorder %s20, 1
      %s241 = scalar_select %p240, %s20, 1
      %s242 = smul.addr %s241, 4
      %s243 = smul.addr %s242, 4
      %s244 = scalar_lea.vmem %s0, %s243
      %p245 = pneg %p49
      %p246 = pneg %p46
      %p247 = scmp.lt.s32.totalorder %s21, 0
      %s248 = scalar_select %p247, %s21, 0
      %s249 = smul.addr %s248, 4
      %s250 = scalar_lea.vmem %s1, %s249
      %p251 = pneg %p75
      %p252 = pneg %p72
      %p253 = scmp.lt.s32.totalorder %s21, 0
      %s254 = scalar_select %p253, %s21, 0
      %s255 = scalar_lea.vmem %s2, %s254
      %p256 = pneg %p101
      %p257 = pneg %p98
      %p258 = scmp.lt.s32.totalorder %s21, 0
      %s259 = scalar_select %p258, %s21, 0
      %s260 = scalar_lea.vmem %s3, %s259
      %p261 = pneg %p127
      %p262 = pneg %p124
      %p263 = scmp.lt.s32.totalorder %s21, 0
      %s264 = scalar_select %p263, %s21, 0
      %s265 = scalar_lea.vmem %s4, %s264
      %p266 = pneg %p153
      %p267 = pneg %p150
      %p268 = pneg %p181
      %p269 = pneg %p178
      %p270 = scmp.lt.s32.totalorder %s20, 1
      %s271 = scalar_select %p270, %s20, 1
      %p272 = scmp.lt.s32.totalorder %s21, 0
      %s273 = scalar_select %p272, %s21, 0
      %s274 = smul.addr %s271, 4
      %s275 = sadd.s32 %s273, %s274
      %s276 = smul.addr %s275, 4
      %s277 = scalar_lea.vmem %s5, %s276
      %p278 = scmp.lt.s32.totalorder %s20, 1
      %s279 = scalar_select %p278, %s20, 1
      %s280 = smul.addr %s279, 4
      %s281 = smul.addr %s280, 4
      %s282 = scalar_lea.vmem %s0, %s281
      %p283 = scmp.lt.s32.totalorder %s21, 0
      %s284 = scalar_select %p283, %s21, 0
      %s285 = smul.addr %s284, 4
      %s286 = scalar_lea.vmem %s1, %s285
      %p287 = scmp.lt.s32.totalorder %s21, 0
      %s288 = scalar_select %p287, %s21, 0
      %s289 = scalar_lea.vmem %s2, %s288
      %p290 = scmp.lt.s32.totalorder %s21, 0
      %s291 = scalar_select %p290, %s21, 0
      %s292 = scalar_lea.vmem %s3, %s291
      %p293 = scmp.lt.s32.totalorder %s21, 0
      %s294 = scalar_select %p293, %s21, 0
      %s295 = scalar_lea.vmem %s4, %s294
      %p296 = scmp.lt.s32.totalorder %s20, 1
      %s297 = scalar_select %p296, %s20, 1
      %p298 = scmp.lt.s32.totalorder %s21, 0
      %s299 = scalar_select %p298, %s21, 0
      %s300 = smul.addr %s297, 4
      %s301 = sadd.s32 %s299, %s300
      %s302 = smul.addr %s301, 4
      %s303 = scalar_lea.vmem %s5, %s302
      %v305 = vld [vmem:[%s282] sm:$0xf]
      %v306 = vld [vmem:[%s282 + $0x4] sm:$0xf]
      %v307 = vld [vmem:[%s282 + $0x8] sm:$0xf]
      %v308 = vld [vmem:[%s282 + $0xc] sm:$0xf]
      %vm309 = vcmask 130048
      %310 = vst.msk [vmem:[#allocation2] sm:$0xff] %vm309, 0.0
      %311 = vst.msk [vmem:[#allocation2 + $0x8] sm:$0xff] %vm309, 0.0
      %312 = vst.msk [vmem:[#allocation2 + $0x10] sm:$0xff] %vm309, 0.0
      %313 = vst.msk [vmem:[#allocation2 + $0x18] sm:$0xff] %vm309, 0.0
      %vm314 = vcmask 125952
      %315 = vst.msk [vmem:[#allocation2 + $0x20] sm:$0xf] %vm314, 0.0
      %v316 = vunpack.c.l.bf16 %v305
      %v317 = vunpack.c.l.bf16 %v306
      %v318 = vunpack.c.l.bf16 %v307
      %v319 = vunpack.c.l.bf16 %v308
      %320 = vst.msk [vmem:[#allocation2 + $0x2] sm:$0xff] %vm309, %v316
      %321 = vst.msk [vmem:[#allocation2 + $0xa] sm:$0xff] %vm309, %v317
      %322 = vst.msk [vmem:[#allocation2 + $0x12] sm:$0xff] %vm309, %v318
      %323 = vst.msk [vmem:[#allocation2 + $0x1a] sm:$0xff] %vm309, %v319
      %v324 = vld [vmem:[#allocation2] sm:$0xff]
      %v325 = vld [vmem:[#allocation2 + $0x8] sm:$0xff]
      %v326 = vld [vmem:[#allocation2 + $0x10] sm:$0xff]
      %v327 = vld [vmem:[#allocation2 + $0x18] sm:$0xff]
      %v328 = vpack.c.bf16 %v325, %v324
      %v329 = vpack.c.bf16 %v327, %v326
      %v330 = vld [vmem:[#allocation2 + $0x1] sm:$0xff]
      %v331 = vld [vmem:[#allocation2 + $0x9] sm:$0xff]
      %v332 = vld [vmem:[#allocation2 + $0x11] sm:$0xff]
      %v333 = vld [vmem:[#allocation2 + $0x19] sm:$0xff]
      %v334 = vpack.c.bf16 %v331, %v330
      %v335 = vpack.c.bf16 %v333, %v332
      %v336 = vld [vmem:[#allocation2 + $0x2] sm:$0xff]
      %v337 = vld [vmem:[#allocation2 + $0xa] sm:$0xff]
      %v338 = vld [vmem:[#allocation2 + $0x12] sm:$0xff]
      %v339 = vld [vmem:[#allocation2 + $0x1a] sm:$0xff]
      %v340 = vpack.c.bf16 %v337, %v336
      %v341 = vpack.c.bf16 %v339, %v338
      %v342 = vld [vmem:[#allocation2 + $0x3] sm:$0xff]
      %v343 = vld [vmem:[#allocation2 + $0xb] sm:$0xff]
      %v344 = vld [vmem:[#allocation2 + $0x13] sm:$0xff]
      %v345 = vld [vmem:[#allocation2 + $0x1b] sm:$0xff]
      %v346 = vpack.c.bf16 %v343, %v342
      %v347 = vpack.c.bf16 %v345, %v344
      %v348 = vld [vmem:[#allocation2 + $0x4] sm:$0xff]
      %v349 = vld [vmem:[#allocation2 + $0xc] sm:$0xff]
      %v350 = vld [vmem:[#allocation2 + $0x14] sm:$0xff]
      %v351 = vld [vmem:[#allocation2 + $0x1c] sm:$0xff]
      %v352 = vpack.c.bf16 %v349, %v348
      %v353 = vpack.c.bf16 %v351, %v350
      %v354 = vld [vmem:[%s286] sm:$0xf]
      %v355 = vld [vmem:[%s286 + $0x4] sm:$0xf]
      %s356 = scalar_lea.vmem %s286, 8
      %v357 = vld [vmem:[%s356] sm:$0xf]
      %v358 = vld [vmem:[%s356 + $0x4] sm:$0xf]
      %v361 = vunpack.c.l.b16 %v357
      %v362 = vunpack.c.l.b16 %v358
      %v363 = vpack.c.b16 %v362, %v361
      %v366 = vsel %vm309, %v334, 0
      %v369 = vsel %vm309, %v335, 0
      %371 = vmatprep.subr.bf16.mxu0 0
      %372 = vmatpush1.bf16.msra.mxu0 0
      %373 = vmatprep.subr.bf16.mxu0 0
      %374 = vmatpush1.bf16.msra.mxu0 0
      %375 = vmatprep.subr.bf16.mxu0 0
      %376 = vmatpush1.bf16.msra.mxu0 0
      %377 = vmatprep.subr.bf16.mxu0 0
      %378 = vmatpush1.bf16.msra.mxu0 0
      %379 = vmatprep.subr.bf16.mxu0 0
      %380 = vmatpush1.bf16.msra.mxu0 0
      %381 = vmatprep.subr.bf16.mxu0 0
      %382 = vmatpush1.bf16.msra.mxu0 0
      %383 = vmatprep.subr.bf16.mxu0 0
      %384 = vmatpush1.bf16.msra.mxu0 0
      %385 = vmatprep.subr.bf16.mxu0 0
      %386 = vmatpush1.bf16.msra.mxu0 %v363
      %387 = vmatprep.subr.bf16.mxu0 0
      %388 = vmatpush2.bf16.msra.mxu0 0
      %389 = vmatprep.subr.bf16.mxu0 0
      %390 = vmatpush2.bf16.msra.mxu0 0
      %391 = vmatprep.subr.bf16.mxu0 0
      %392 = vmatpush2.bf16.msra.mxu0 0
      %393 = vmatprep.subr.bf16.mxu0 0
      %394 = vmatpush2.bf16.msra.mxu0 0
      %395 = vmatprep.subr.bf16.mxu0 0
      %396 = vmatpush2.bf16.msra.mxu0 0
      %397 = vmatprep.subr.bf16.mxu0 0
      %398 = vmatpush2.bf16.msra.mxu0 0
      %399 = vmatprep.subr.bf16.mxu0 0
      %400 = vmatpush2.bf16.msra.mxu0 0
      %401 = vmatprep.subr.bf16.mxu0 0
      %402 = vmatpush2.bf16.msra.mxu0 0
      %403 = vmatprep.mubr.bf16.mxu0 0
      %404 = vmatmul.mubr.bf16.gmra.mxu0 %v366
      %v405 = vpop.f32.mrf.mxu0
      %v406 = vadd.f32 0.0, %v405
      %v407 = vpop.f32.mrf.mxu0
      %v408 = vpop.f32.mrf.mxu0
      %v409 = vadd.f32 0.0, %v408
      %v410 = vpop.f32.mrf.mxu0
      %411 = vmatprep.mubr.bf16.mxu0 0
      %412 = vmatmul.mubr.bf16.gmra.mxu0 %v369
      %v413 = vpop.f32.mrf.mxu0
      %v414 = vadd.f32 0.0, %v413
      %v415 = vpop.f32.mrf.mxu0
      %v416 = vpop.f32.mrf.mxu0
      %v417 = vadd.f32 0.0, %v416
      %v418 = vpop.f32.mrf.mxu0
      %419 = vdwg.mxu0
      %v422 = vunpack.c.l.b16 %v354
      %v423 = vunpack.c.l.b16 %v355
      %v424 = vpack.c.b16 %v423, %v422
      %v427 = vsel %vm309, %v328, 0
      %v430 = vsel %vm309, %v329, 0
      %432 = vmatprep.subr.bf16.mxu0 0
      %433 = vmatpush1.bf16.msra.mxu0 0
      %434 = vmatprep.subr.bf16.mxu0 0
      %435 = vmatpush1.bf16.msra.mxu0 0
      %436 = vmatprep.subr.bf16.mxu0 0
      %437 = vmatpush1.bf16.msra.mxu0 0
      %438 = vmatprep.subr.bf16.mxu0 0
      %439 = vmatpush1.bf16.msra.mxu0 0
      %440 = vmatprep.subr.bf16.mxu0 0
      %441 = vmatpush1.bf16.msra.mxu0 0
      %442 = vmatprep.subr.bf16.mxu0 0
      %443 = vmatpush1.bf16.msra.mxu0 0
      %444 = vmatprep.subr.bf16.mxu0 0
      %445 = vmatpush1.bf16.msra.mxu0 0
      %446 = vmatprep.subr.bf16.mxu0 0
      %447 = vmatpush1.bf16.msra.mxu0 %v424
      %448 = vmatprep.subr.bf16.mxu0 0
      %449 = vmatpush2.bf16.msra.mxu0 0
      %450 = vmatprep.subr.bf16.mxu0 0
      %451 = vmatpush2.bf16.msra.mxu0 0
      %452 = vmatprep.subr.bf16.mxu0 0
      %453 = vmatpush2.bf16.msra.mxu0 0
      %454 = vmatprep.subr.bf16.mxu0 0
      %455 = vmatpush2.bf16.msra.mxu0 0
      %456 = vmatprep.subr.bf16.mxu0 0
      %457 = vmatpush2.bf16.msra.mxu0 0
      %458 = vmatprep.subr.bf16.mxu0 0
      %459 = vmatpush2.bf16.msra.mxu0 0
      %460 = vmatprep.subr.bf16.mxu0 0
      %461 = vmatpush2.bf16.msra.mxu0 0
      %462 = vmatprep.subr.bf16.mxu0 0
      %463 = vmatpush2.bf16.msra.mxu0 0
      %464 = vmatprep.mubr.bf16.mxu0 0
      %465 = vmatmul.mubr.bf16.gmra.mxu0 %v427
      %v466 = vpop.f32.mrf.mxu0
      %v467 = vadd.f32 %v406, %v466
      %v468 = vpop.f32.mrf.mxu0
      %v469 = vpop.f32.mrf.mxu0
      %v470 = vadd.f32 %v409, %v469
      %v471 = vpop.f32.mrf.mxu0
      %472 = vmatprep.mubr.bf16.mxu0 0
      %473 = vmatmul.mubr.bf16.gmra.mxu0 %v430
      %v474 = vpop.f32.mrf.mxu0
      %v475 = vadd.f32 %v414, %v474
      %v476 = vpop.f32.mrf.mxu0
      %v477 = vpop.f32.mrf.mxu0
      %v478 = vadd.f32 %v417, %v477
      %v479 = vpop.f32.mrf.mxu0
      %480 = vdwg.mxu0
      %s481 = scalar_lea.vmem %s286, 16
      %v482 = vld [vmem:[%s481] sm:$0xf]
      %v483 = vld [vmem:[%s481 + $0x4] sm:$0xf]
      %v486 = vunpack.c.l.b16 %v482
      %v487 = vunpack.c.l.b16 %v483
      %v488 = vpack.c.b16 %v487, %v486
      %v491 = vsel %vm309, %v340, 0
      %v494 = vsel %vm309, %v341, 0
      %496 = vmatprep.subr.bf16.mxu0 0
      %497 = vmatpush1.bf16.msra.mxu0 0
      %498 = vmatprep.subr.bf16.mxu0 0
      %499 = vmatpush1.bf16.msra.mxu0 0
      %500 = vmatprep.subr.bf16.mxu0 0
      %501 = vmatpush1.bf16.msra.mxu0 0
      %502 = vmatprep.subr.bf16.mxu0 0
      %503 = vmatpush1.bf16.msra.mxu0 0
      %504 = vmatprep.subr.bf16.mxu0 0
      %505 = vmatpush1.bf16.msra.mxu0 0
      %506 = vmatprep.subr.bf16.mxu0 0
      %507 = vmatpush1.bf16.msra.mxu0 0
      %508 = vmatprep.subr.bf16.mxu0 0
      %509 = vmatpush1.bf16.msra.mxu0 0
      %510 = vmatprep.subr.bf16.mxu0 0
      %511 = vmatpush1.bf16.msra.mxu0 %v488
      %512 = vmatprep.subr.bf16.mxu0 0
      %513 = vmatpush2.bf16.msra.mxu0 0
      %514 = vmatprep.subr.bf16.mxu0 0
      %515 = vmatpush2.bf16.msra.mxu0 0
      %516 = vmatprep.subr.bf16.mxu0 0
      %517 = vmatpush2.bf16.msra.mxu0 0
      %518 = vmatprep.subr.bf16.mxu0 0
      %519 = vmatpush2.bf16.msra.mxu0 0
      %520 = vmatprep.subr.bf16.mxu0 0
      %521 = vmatpush2.bf16.msra.mxu0 0
      %522 = vmatprep.subr.bf16.mxu0 0
      %523 = vmatpush2.bf16.msra.mxu0 0
      %524 = vmatprep.subr.bf16.mxu0 0
      %525 = vmatpush2.bf16.msra.mxu0 0
      %526 = vmatprep.subr.bf16.mxu0 0
      %527 = vmatpush2.bf16.msra.mxu0 0
      %528 = vmatprep.mubr.bf16.mxu0 0
      %529 = vmatmul.mubr.bf16.gmra.mxu0 %v491
      %v530 = vpop.f32.mrf.mxu0
      %v531 = vadd.f32 0.0, %v530
      %v532 = vpop.f32.mrf.mxu0
      %v533 = vpop.f32.mrf.mxu0
      %v534 = vadd.f32 0.0, %v533
      %v535 = vpop.f32.mrf.mxu0
      %536 = vmatprep.mubr.bf16.mxu0 0
      %537 = vmatmul.mubr.bf16.gmra.mxu0 %v494
      %v538 = vpop.f32.mrf.mxu0
      %v539 = vadd.f32 0.0, %v538
      %v540 = vpop.f32.mrf.mxu0
      %v541 = vpop.f32.mrf.mxu0
      %v542 = vadd.f32 0.0, %v541
      %v543 = vpop.f32.mrf.mxu0
      %544 = vdwg.mxu0
      %v545 = vadd.f32 %v467, %v531
      %v546 = vadd.f32 %v470, %v534
      %v547 = vadd.f32 %v475, %v539
      %v548 = vadd.f32 %v478, %v542
      %s549 = scalar_lea.vmem %s286, 24
      %v550 = vld [vmem:[%s549] sm:$0xf]
      %v551 = vld [vmem:[%s549 + $0x4] sm:$0xf]
      %v554 = vunpack.c.l.b16 %v550
      %v555 = vunpack.c.l.b16 %v551
      %v556 = vpack.c.b16 %v555, %v554
      %v559 = vsel %vm309, %v346, 0
      %v562 = vsel %vm309, %v347, 0
      %564 = vmatprep.subr.bf16.mxu0 0
      %565 = vmatpush1.bf16.msra.mxu0 0
      %566 = vmatprep.subr.bf16.mxu0 0
      %567 = vmatpush1.bf16.msra.mxu0 0
      %568 = vmatprep.subr.bf16.mxu0 0
      %569 = vmatpush1.bf16.msra.mxu0 0
      %570 = vmatprep.subr.bf16.mxu0 0
      %571 = vmatpush1.bf16.msra.mxu0 0
      %572 = vmatprep.subr.bf16.mxu0 0
      %573 = vmatpush1.bf16.msra.mxu0 0
      %574 = vmatprep.subr.bf16.mxu0 0
      %575 = vmatpush1.bf16.msra.mxu0 0
      %576 = vmatprep.subr.bf16.mxu0 0
      %577 = vmatpush1.bf16.msra.mxu0 0
      %578 = vmatprep.subr.bf16.mxu0 0
      %579 = vmatpush1.bf16.msra.mxu0 %v556
      %580 = vmatprep.subr.bf16.mxu0 0
      %581 = vmatpush2.bf16.msra.mxu0 0
      %582 = vmatprep.subr.bf16.mxu0 0
      %583 = vmatpush2.bf16.msra.mxu0 0
      %584 = vmatprep.subr.bf16.mxu0 0
      %585 = vmatpush2.bf16.msra.mxu0 0
      %586 = vmatprep.subr.bf16.mxu0 0
      %587 = vmatpush2.bf16.msra.mxu0 0
      %588 = vmatprep.subr.bf16.mxu0 0
      %589 = vmatpush2.bf16.msra.mxu0 0
      %590 = vmatprep.subr.bf16.mxu0 0
      %591 = vmatpush2.bf16.msra.mxu0 0
      %592 = vmatprep.subr.bf16.mxu0 0
      %593 = vmatpush2.bf16.msra.mxu0 0
      %594 = vmatprep.subr.bf16.mxu0 0
      %595 = vmatpush2.bf16.msra.mxu0 0
      %596 = vmatprep.mubr.bf16.mxu0 0
      %597 = vmatmul.mubr.bf16.gmra.mxu0 %v559
      %v598 = vpop.f32.mrf.mxu0
      %v599 = vadd.f32 0.0, %v598
      %v600 = vpop.f32.mrf.mxu0
      %v601 = vpop.f32.mrf.mxu0
      %v602 = vadd.f32 0.0, %v601
      %v603 = vpop.f32.mrf.mxu0
      %604 = vmatprep.mubr.bf16.mxu0 0
      %605 = vmatmul.mubr.bf16.gmra.mxu0 %v562
      %v606 = vpop.f32.mrf.mxu0
      %v607 = vadd.f32 0.0, %v606
      %v608 = vpop.f32.mrf.mxu0
      %v609 = vpop.f32.mrf.mxu0
      %v610 = vadd.f32 0.0, %v609
      %v611 = vpop.f32.mrf.mxu0
      %612 = vdwg.mxu0
      %v613 = vadd.f32 %v545, %v599
      %v614 = vadd.f32 %v546, %v602
      %v615 = vadd.f32 %v547, %v607
      %v616 = vadd.f32 %v548, %v610
      %s617 = scalar_lea.vmem %s286, 32
      %v618 = vld [vmem:[%s617] sm:$0xf]
      %v619 = vld [vmem:[%s617 + $0x4] sm:$0xf]
      %v622 = vunpack.c.l.b16 %v618
      %v623 = vunpack.c.l.b16 %v619
      %v624 = vpack.c.b16 %v623, %v622
      %v627 = vsel %vm309, %v352, 0
      %v630 = vsel %vm309, %v353, 0
      %632 = vmatprep.subr.bf16.mxu0 0
      %633 = vmatpush1.bf16.msra.mxu0 0
      %634 = vmatprep.subr.bf16.mxu0 0
      %635 = vmatpush1.bf16.msra.mxu0 0
      %636 = vmatprep.subr.bf16.mxu0 0
      %637 = vmatpush1.bf16.msra.mxu0 0
      %638 = vmatprep.subr.bf16.mxu0 0
      %639 = vmatpush1.bf16.msra.mxu0 0
      %640 = vmatprep.subr.bf16.mxu0 0
      %641 = vmatpush1.bf16.msra.mxu0 0
      %642 = vmatprep.subr.bf16.mxu0 0
      %643 = vmatpush1.bf16.msra.mxu0 0
      %644 = vmatprep.subr.bf16.mxu0 0
      %645 = vmatpush1.bf16.msra.mxu0 0
      %646 = vmatprep.subr.bf16.mxu0 0
      %647 = vmatpush1.bf16.msra.mxu0 %v624
      %648 = vmatprep.subr.bf16.mxu0 0
      %649 = vmatpush2.bf16.msra.mxu0 0
      %650 = vmatprep.subr.bf16.mxu0 0
      %651 = vmatpush2.bf16.msra.mxu0 0
      %652 = vmatprep.subr.bf16.mxu0 0
      %653 = vmatpush2.bf16.msra.mxu0 0
      %654 = vmatprep.subr.bf16.mxu0 0
      %655 = vmatpush2.bf16.msra.mxu0 0
      %656 = vmatprep.subr.bf16.mxu0 0
      %657 = vmatpush2.bf16.msra.mxu0 0
      %658 = vmatprep.subr.bf16.mxu0 0
      %659 = vmatpush2.bf16.msra.mxu0 0
      %660 = vmatprep.subr.bf16.mxu0 0
      %661 = vmatpush2.bf16.msra.mxu0 0
      %662 = vmatprep.subr.bf16.mxu0 0
      %663 = vmatpush2.bf16.msra.mxu0 0
      %664 = vmatprep.mubr.bf16.mxu0 0
      %665 = vmatmul.mubr.bf16.gmra.mxu0 %v627
      %v666 = vpop.f32.mrf.mxu0
      %v667 = vadd.f32 0.0, %v666
      %v668 = vpop.f32.mrf.mxu0
      %v669 = vpop.f32.mrf.mxu0
      %v670 = vadd.f32 0.0, %v669
      %v671 = vpop.f32.mrf.mxu0
      %672 = vmatprep.mubr.bf16.mxu0 0
      %673 = vmatmul.mubr.bf16.gmra.mxu0 %v630
      %v674 = vpop.f32.mrf.mxu0
      %v675 = vadd.f32 0.0, %v674
      %v676 = vpop.f32.mrf.mxu0
      %v677 = vpop.f32.mrf.mxu0
      %v678 = vadd.f32 0.0, %v677
      %v679 = vpop.f32.mrf.mxu0
      %680 = vdwg.mxu0
      %v681 = vadd.f32 %v613, %v667
      %v682 = vadd.f32 %v614, %v670
      %v683 = vadd.f32 %v615, %v675
      %v684 = vadd.f32 %v616, %v678
      %v685 = vld [vmem:[%s289] sm:$0x1]
      %v687 = vlaneseq
      %v688 = vshrl.u32 %v687, 7
      %v689 = vsub.s32 0, %v688
      %v690 = vrot.slane %v685, %v689
      %v692 = vadd.f32 %v681, %v690
      %v693 = vadd.f32 %v682, %v690
      %v694 = vadd.f32 %v683, %v690
      %v695 = vadd.f32 %v684, %v690
      %v696 = vmax.f32 %v692, 0.0
      %v697 = vmax.f32 %v693, 0.0
      %v698 = vmax.f32 %v694, 0.0
      %v699 = vmax.f32 %v695, 0.0
      %v700 = vld [vmem:[%s292] sm:$0x1]
      %v702 = vlaneseq
      %v703 = vshrl.u32 %v702, 7
      %v704 = vsub.s32 0, %v703
      %v705 = vrot.slane %v700, %v704
      %v707 = vmul.f32 %v696, %v705
      %v708 = vmul.f32 %v697, %v705
      %v709 = vmul.f32 %v698, %v705
      %v710 = vmul.f32 %v699, %v705
      %v711 = vld [vmem:[%s295] sm:$0x1]
      %v713 = vlaneseq
      %v714 = vshrl.u32 %v713, 7
      %v715 = vsub.s32 0, %v714
      %v716 = vrot.slane %v711, %v715
      %v718 = vadd.f32 %v707, %v716
      %v719 = vadd.f32 %v708, %v716
      %v720 = vadd.f32 %v709, %v716
      %v721 = vadd.f32 %v710, %v716
      %v722 = vpack.c.bf16 %v719, %v718
      %v723 = vpack.c.bf16 %v721, %v720
      %v726 = vunpack.c.l.b16 %v722
      %v727 = vunpack.c.h.b16 %v722
      %v728 = vunpack.c.l.b16 %v723
      %v729 = vunpack.c.h.b16 %v723
      %v730 = vpack.c.b16 %v726, %v726
      %v731 = vpack.c.b16 %v727, %v727
      %v732 = vpack.c.b16 %v728, %v728
      %v733 = vpack.c.b16 %v729, %v729
      %738 = vst [vmem:[%s303] sm:$0xf] %v730
      %739 = vst [vmem:[%s303 + $0x4] sm:$0xf] %v731
      %740 = vst [vmem:[%s303 + $0x8] sm:$0xf] %v732
      %741 = vst [vmem:[%s303 + $0xc] sm:$0xf] %v733
      %p742 = scmp.lt.s32.totalorder %s20, 1
      %s743 = scalar_select %p742, %s20, 1
      %p744 = scmp.lt.s32.totalorder %s21, 0
      %s745 = scalar_select %p744, %s21, 0
      %s746 = smul.addr %s743, 4
      %s747 = sadd.s32 %s745, %s746
      %s748 = smul.addr %s747, 4
      %s749 = scalar_lea.vmem %s5, %s748
      // Predicated region
      $region41: #{ecapa_forward.16} parent=39 // pred_check
        %p750 = pneg %p178
      $region42: #{ecapa_forward.16} parent=39 // pred_check_branch
        %752 = sbr.rel (%p750) target = $region44
      $region43: #{ecapa_forward.16} parent=39 // pred_region
        _
      $region44: #{ecapa_forward.16} parent=39 // pred_fallthru
        _
    $region40: #{ecapa_forward.16} parent=5 // pred_fallthru
      _
    %p753 = scmp.le.s32.totalorder 2, %s11
    // Predicated region
    $region45: #{ecapa_forward.16} parent=5 // pred_check
      %p754 = pneg %p753
    $region46: #{ecapa_forward.16} parent=5 // pred_check_branch
      %756 = sbr.rel (%p754) target = $region48
    $region47: #{ecapa_forward.16} parent=5 // pred_region
      %s757 = ssub.s32 %s11, 2
      // Predicated region
      $region49: #{ecapa_forward.16} parent=47 // pred_check
        %p758 = pneg %p184
      $region50: #{ecapa_forward.16} parent=47 // pred_check_branch
        %760 = sbr.rel (%p758) target = $region52
      $region51: #{ecapa_forward.16} parent=47 // pred_region
        %p761 = scmp.lt.s32.totalorder %s22, 1
        %s762 = scalar_select %p761, %s22, 1
        %p763 = scmp.lt.s32.totalorder %s23, 0
        %s764 = scalar_select %p763, %s23, 0
        %s765 = smul.addr %s762, 4
        %s766 = sadd.s32 %s764, %s765
        %s767 = smul.addr %s766, 4
        %s768 = scalar_lea.vmem %s5, %s767
      $region52: #{ecapa_forward.16} parent=47 // pred_fallthru
        _
    $region48: #{ecapa_forward.16} parent=5 // pred_fallthru
      _
  $region6: #{ecapa_forward.16} parent=0 // loop_footer
    %s15 = sadd.s32 1, %s11
  $region7: #{ecapa_forward.16} parent=0 // loop_footer_branch
    %10 = sbr.rel target = $region3
  $region8: #{ecapa_forward.16} parent=0 // loop_exit
    _

// kernel: ecapa_forward.17
$region0: #{ecapa_forward.17}
  #allocation0 [shape = 'u32[]', space=smem, size = 0x4, offset = 0x4, fixed_abs, tag = 'smem constant byte address 0x4 - core index']
  #allocation1 [shape = 'u32[144,128]{1,0:T(1,128)}', space=vmem, size = 0x12000, scoped, tag = 'internal scratch']
  %s0 = inlined_call_operand.vmem [shape: bf16[2,32,128], index: 0, kind: input, shape index: {}]
  %s1 = inlined_call_operand.vmem [shape: bf16[1,128,128], index: 1, kind: input, shape index: {}]
  %s2 = inlined_call_operand.vmem [shape: f32[1,128], index: 2, kind: input, shape index: {}]
  %s3 = inlined_call_operand.vmem [shape: f32[1,128], index: 3, kind: input, shape index: {}]
  %s4 = inlined_call_operand.vmem [shape: f32[1,128], index: 4, kind: input, shape index: {}]
  %s5 = inlined_call_operand.vmem [shape: bf16[2,32,128], index: 5, kind: output, shape index: {}]
  %s6 = sld [smem:[#allocation0]]
  $region53: #{ecapa_forward.17} parent=0
    _
  %s8 = ssub.s32 1, %s6
  %s9 = scalar_select 0, %s8, %s6
  loop: start=0, step=1, limit=4
  $region2: #{ecapa_forward.17} parent=0 // loop_pre_header
    _
  $region3: #{ecapa_forward.17} parent=0 // loop_header
    %s11 = sphi 0, %s15
    %p12 = scmp.ge.s32.totalorder %s11, 4
    %s18 = sphi 0, %s30
    %s19 = sphi 0, %s26
    %s20 = sphi 0, %s18
    %s21 = sphi 0, %s19
    %s22 = sphi 0, %s20
    %s23 = sphi 0, %s21
    %s33 = sphi 0, %s35
    %s36 = sphi 0, %s33
    %s37 = sphi 0, %s36
    %s53 = sphi 0, %s37
    %s59 = sphi 0, %s61
    %s62 = sphi 0, %s59
    %s63 = sphi 0, %s62
    %s79 = sphi 0, %s63
    %s85 = sphi 0, %s87
    %s88 = sphi 0, %s85
    %s89 = sphi 0, %s88
    %s105 = sphi 0, %s89
    %s111 = sphi 0, %s113
    %s114 = sphi 0, %s111
    %s115 = sphi 0, %s114
    %s131 = sphi 0, %s115
    %s137 = sphi 0, %s139
    %s140 = sphi 0, %s137
    %s141 = sphi 0, %s140
    %s157 = sphi 0, %s141
    %s165 = sphi 0, %s167
    %s168 = sphi 0, %s165
    %s169 = sphi 0, %s168
    %s185 = sphi 0, %s169
  $region4: #{ecapa_forward.17} parent=0 // loop_header_branch
    %14 = sbr.rel (%p12) target = $region8
  $region5: #{ecapa_forward.17} parent=0 // loop_body
    %s16 = ssub.s32 %s11, 1
    %s17 = ssub.s32 %s11, 2
    %s24 = sadd.s32 1, %s19
    %p25 = scmp.ge.s32.totalorder %s24, 1
    %s26 = scalar_select %p25, 0, %s24
    %s27 = sadd.s32 1, %s18
    %s28 = scalar_select %p25, %s27, %s18
    %p29 = scmp.ge.s32.totalorder %s28, 2
    %s30 = scalar_select %p29, 0, %s28
    %s31 = ssub.s32 %s18, %s30
    %p32 = scmp.eq.s32.totalorder %s31, 0
    %s34 = sadd.s32 %s33, 1
    %s35 = scalar_select %p32, %s33, %s34
    %p38 = pneg %p32
    %p39 = scmp.eq.s32.totalorder %s11, 1
    %p40 = por %p38, %p39
    %p41 = scmp.ne.s32.totalorder %s33, %s36
    %p42 = scmp.eq.s32.totalorder %s11, 0
    %p43 = por %p41, %p42
    %p44 = scmp.ne.s32.totalorder %s33, %s36
    %p45 = scmp.eq.s32.totalorder %s16, 1
    %p46 = por %p44, %p45
    %p47 = scmp.ne.s32.totalorder %s36, %s37
    %p48 = scmp.eq.s32.totalorder %s16, 0
    %p49 = por %p47, %p48
    %p50 = scmp.ne.s32.totalorder %s36, %s37
    %p51 = scmp.eq.s32.totalorder %s17, 1
    %p52 = por %p50, %p51
    %p54 = scmp.ne.s32.totalorder %s37, %s53
    %p55 = scmp.eq.s32.totalorder %s17, 0
    %p56 = por %p54, %p55
    %s57 = ssub.s32 %s19, %s26
    %p58 = scmp.eq.s32.totalorder %s57, 0
    %s60 = sadd.s32 %s59, 1
    %s61 = scalar_select %p58, %s59, %s60
    %p64 = pneg %p58
    %p65 = scmp.eq.s32.totalorder %s11, 1
    %p66 = por %p64, %p65
    %p67 = scmp.ne.s32.totalorder %s59, %s62
    %p68 = scmp.eq.s32.totalorder %s11, 0
    %p69 = por %p67, %p68
    %p70 = scmp.ne.s32.totalorder %s59, %s62
    %p71 = scmp.eq.s32.totalorder %s16, 1
    %p72 = por %p70, %p71
    %p73 = scmp.ne.s32.totalorder %s62, %s63
    %p74 = scmp.eq.s32.totalorder %s16, 0
    %p75 = por %p73, %p74
    %p76 = scmp.ne.s32.totalorder %s62, %s63
    %p77 = scmp.eq.s32.totalorder %s17, 1
    %p78 = por %p76, %p77
    %p80 = scmp.ne.s32.totalorder %s63, %s79
    %p81 = scmp.eq.s32.totalorder %s17, 0
    %p82 = por %p80, %p81
    %s83 = ssub.s32 %s19, %s26
    %p84 = scmp.eq.s32.totalorder %s83, 0
    %s86 = sadd.s32 %s85, 1
    %s87 = scalar_select %p84, %s85, %s86
    %p90 = pneg %p84
    %p91 = scmp.eq.s32.totalorder %s11, 1
    %p92 = por %p90, %p91
    %p93 = scmp.ne.s32.totalorder %s85, %s88
    %p94 = scmp.eq.s32.totalorder %s11, 0
    %p95 = por %p93, %p94
    %p96 = scmp.ne.s32.totalorder %s85, %s88
    %p97 = scmp.eq.s32.totalorder %s16, 1
    %p98 = por %p96, %p97
    %p99 = scmp.ne.s32.totalorder %s88, %s89
    %p100 = scmp.eq.s32.totalorder %s16, 0
    %p101 = por %p99, %p100
    %p102 = scmp.ne.s32.totalorder %s88, %s89
    %p103 = scmp.eq.s32.totalorder %s17, 1
    %p104 = por %p102, %p103
    %p106 = scmp.ne.s32.totalorder %s89, %s105
    %p107 = scmp.eq.s32.totalorder %s17, 0
    %p108 = por %p106, %p107
    %s109 = ssub.s32 %s19, %s26
    %p110 = scmp.eq.s32.totalorder %s109, 0
    %s112 = sadd.s32 %s111, 1
    %s113 = scalar_select %p110, %s111, %s112
    %p116 = pneg %p110
    %p117 = scmp.eq.s32.totalorder %s11, 1
    %p118 = por %p116, %p117
    %p119 = scmp.ne.s32.totalorder %s111, %s114
    %p120 = scmp.eq.s32.totalorder %s11, 0
    %p121 = por %p119, %p120
    %p122 = scmp.ne.s32.totalorder %s111, %s114
    %p123 = scmp.eq.s32.totalorder %s16, 1
    %p124 = por %p122, %p123
    %p125 = scmp.ne.s32.totalorder %s114, %s115
    %p126 = scmp.eq.s32.totalorder %s16, 0
    %p127 = por %p125, %p126
    %p128 = scmp.ne.s32.totalorder %s114, %s115
    %p129 = scmp.eq.s32.totalorder %s17, 1
    %p130 = por %p128, %p129
    %p132 = scmp.ne.s32.totalorder %s115, %s131
    %p133 = scmp.eq.s32.totalorder %s17, 0
    %p134 = por %p132, %p133
    %s135 = ssub.s32 %s19, %s26
    %p136 = scmp.eq.s32.totalorder %s135, 0
    %s138 = sadd.s32 %s137, 1
    %s139 = scalar_select %p136, %s137, %s138
    %p142 = pneg %p136
    %p143 = scmp.eq.s32.totalorder %s11, 1
    %p144 = por %p142, %p143
    %p145 = scmp.ne.s32.totalorder %s137, %s140
    %p146 = scmp.eq.s32.totalorder %s11, 0
    %p147 = por %p145, %p146
    %p148 = scmp.ne.s32.totalorder %s137, %s140
    %p149 = scmp.eq.s32.totalorder %s16, 1
    %p150 = por %p148, %p149
    %p151 = scmp.ne.s32.totalorder %s140, %s141
    %p152 = scmp.eq.s32.totalorder %s16, 0
    %p153 = por %p151, %p152
    %p154 = scmp.ne.s32.totalorder %s140, %s141
    %p155 = scmp.eq.s32.totalorder %s17, 1
    %p156 = por %p154, %p155
    %p158 = scmp.ne.s32.totalorder %s141, %s157
    %p159 = scmp.eq.s32.totalorder %s17, 0
    %p160 = por %p158, %p159
    %s161 = ssub.s32 %s18, %s30
    %s162 = ssub.s32 %s19, %s26
    %s163 = sor.u32 %s161, %s162
    %p164 = scmp.eq.s32.totalorder %s163, 0
    %s166 = sadd.s32 %s165, 1
    %s167 = scalar_select %p164, %s165, %s166
    %p170 = pneg %p164
    %p171 = scmp.eq.s32.totalorder %s11, 1
    %p172 = por %p170, %p171
    %p173 = scmp.ne.s32.totalorder %s165, %s168
    %p174 = scmp.eq.s32.totalorder %s11, 0
    %p175 = por %p173, %p174
    %p176 = scmp.ne.s32.totalorder %s165, %s168
    %p177 = scmp.eq.s32.totalorder %s16, 1
    %p178 = por %p176, %p177
    %p179 = scmp.ne.s32.totalorder %s168, %s169
    %p180 = scmp.eq.s32.totalorder %s16, 0
    %p181 = por %p179, %p180
    %p182 = scmp.ne.s32.totalorder %s168, %s169
    %p183 = scmp.eq.s32.totalorder %s17, 1
    %p184 = por %p182, %p183
    %p186 = scmp.ne.s32.totalorder %s169, %s185
    %p187 = scmp.eq.s32.totalorder %s17, 0
    %p188 = por %p186, %p187
    %p189 = scmp.le.s32.totalorder 1, %s11
    %p190 = scmp.lt.s32.totalorder %s11, 3
    %p191 = pnand %p189, %p190
    %p192 = pneg %p191
    // Predicated region
    $region9: #{ecapa_forward.17} parent=5 // pred_check
      _
    $region10: #{ecapa_forward.17} parent=5 // pred_check_branch
      %194 = sbr.rel (%p191) target = $region12
    $region11: #{ecapa_forward.17} parent=5 // pred_region
      %s195 = ssub.s32 %s11, 1
      // Predicated region
      $region13: #{ecapa_forward.17} parent=11 // pred_check
        %p196 = pneg %p75
      $region14: #{ecapa_forward.17} parent=11 // pred_check_branch
        %198 = sbr.rel (%p196) target = $region16
      $region15: #{ecapa_forward.17} parent=11 // pred_region
        %p199 = scmp.lt.s32.totalorder %s21, 0
        %s200 = scalar_select %p199, %s21, 0
        %s201 = smul.addr %s200, 4
        %s202 = scalar_lea.vmem %s1, %s201
      $region16: #{ecapa_forward.17} parent=11 // pred_fallthru
        _
      // Predicated region
      $region17: #{ecapa_forward.17} parent=11 // pred_check
        %p203 = pneg %p101
      $region18: #{ecapa_forward.17} parent=11 // pred_check_branch
        %205 = sbr.rel (%p203) target = $region20
      $region19: #{ecapa_forward.17} parent=11 // pred_region
        %p206 = scmp.lt.s32.totalorder %s21, 0
        %s207 = scalar_select %p206, %s21, 0
        %s208 = scalar_lea.vmem %s2, %s207
      $region20: #{ecapa_forward.17} parent=11 // pred_fallthru
        _
      // Predicated region
      $region21: #{ecapa_forward.17} parent=11 // pred_check
        %p209 = pneg %p127
      $region22: #{ecapa_forward.17} parent=11 // pred_check_branch
        %211 = sbr.rel (%p209) target = $region24
      $region23: #{ecapa_forward.17} parent=11 // pred_region
        %p212 = scmp.lt.s32.totalorder %s21, 0
        %s213 = scalar_select %p212, %s21, 0
        %s214 = scalar_lea.vmem %s3, %s213
      $region24: #{ecapa_forward.17} parent=11 // pred_fallthru
        _
      // Predicated region
      $region25: #{ecapa_forward.17} parent=11 // pred_check
        %p215 = pneg %p153
      $region26: #{ecapa_forward.17} parent=11 // pred_check_branch
        %217 = sbr.rel (%p215) target = $region28
      $region27: #{ecapa_forward.17} parent=11 // pred_region
        %p218 = scmp.lt.s32.totalorder %s21, 0
        %s219 = scalar_select %p218, %s21, 0
        %s220 = scalar_lea.vmem %s4, %s219
      $region28: #{ecapa_forward.17} parent=11 // pred_fallthru
        _
    $region12: #{ecapa_forward.17} parent=5 // pred_fallthru
      _
    %p221 = scmp.lt.s32.totalorder %s11, 2
    // Predicated region
    $region29: #{ecapa_forward.17} parent=5 // pred_check
      %p222 = pneg %p221
    $region30: #{ecapa_forward.17} parent=5 // pred_check_branch
      %224 = sbr.rel (%p222) target = $region32
    $region31: #{ecapa_forward.17} parent=5 // pred_region
      // Predicated region
      $region33: #{ecapa_forward.17} parent=31 // pred_check
        %p225 = pneg %p43
      $region34: #{ecapa_forward.17} parent=31 // pred_check_branch
        %227 = sbr.rel (%p225) target = $region36
      $region35: #{ecapa_forward.17} parent=31 // pred_region
        %p228 = scmp.lt.s32.totalorder %s18, 1
        %s229 = scalar_select %p228, %s18, 1
        %s230 = smul.addr %s229, 4
        %s231 = smul.addr %s230, 4
        %s232 = scalar_lea.vmem %s0, %s231
      $region36: #{ecapa_forward.17} parent=31 // pred_fallthru
        _
    $region32: #{ecapa_forward.17} parent=5 // pred_fallthru
      _
    %p233 = scmp.le.s32.totalorder 1, %s11
    %p234 = scmp.lt.s32.totalorder %s11, 3
    %p235 = pnand %p233, %p234
    %p236 = pneg %p235
    // Predicated region
    $region37: #{ecapa_forward.17} parent=5 // pred_check
      _
    $region38: #{ecapa_forward.17} parent=5 // pred_check_branch
      %238 = sbr.rel (%p235) target = $region40
    $region39: #{ecapa_forward.17} parent=5 // pred_region
      %s239 = ssub.s32 %s11, 1
      %p240 = scmp.lt.s32.totalorder %s20, 1
      %s241 = scalar_select %p240, %s20, 1
      %s242 = smul.addr %s241, 4
      %s243 = smul.addr %s242, 4
      %s244 = scalar_lea.vmem %s0, %s243
      %p245 = pneg %p49
      %p246 = pneg %p46
      %p247 = scmp.lt.s32.totalorder %s21, 0
      %s248 = scalar_select %p247, %s21, 0
      %s249 = smul.addr %s248, 4
      %s250 = scalar_lea.vmem %s1, %s249
      %p251 = pneg %p75
      %p252 = pneg %p72
      %p253 = scmp.lt.s32.totalorder %s21, 0
      %s254 = scalar_select %p253, %s21, 0
      %s255 = scalar_lea.vmem %s2, %s254
      %p256 = pneg %p101
      %p257 = pneg %p98
      %p258 = scmp.lt.s32.totalorder %s21, 0
      %s259 = scalar_select %p258, %s21, 0
      %s260 = scalar_lea.vmem %s3, %s259
      %p261 = pneg %p127
      %p262 = pneg %p124
      %p263 = scmp.lt.s32.totalorder %s21, 0
      %s264 = scalar_select %p263, %s21, 0
      %s265 = scalar_lea.vmem %s4, %s264
      %p266 = pneg %p153
      %p267 = pneg %p150
      %p268 = pneg %p181
      %p269 = pneg %p178
      %p270 = scmp.lt.s32.totalorder %s20, 1
      %s271 = scalar_select %p270, %s20, 1
      %p272 = scmp.lt.s32.totalorder %s21, 0
      %s273 = scalar_select %p272, %s21, 0
      %s274 = smul.addr %s271, 4
      %s275 = sadd.s32 %s273, %s274
      %s276 = smul.addr %s275, 4
      %s277 = scalar_lea.vmem %s5, %s276
      %p278 = scmp.lt.s32.totalorder %s20, 1
      %s279 = scalar_select %p278, %s20, 1
      %s280 = smul.addr %s279, 4
      %s281 = smul.addr %s280, 4
      %s282 = scalar_lea.vmem %s0, %s281
      %p283 = scmp.lt.s32.totalorder %s21, 0
      %s284 = scalar_select %p283, %s21, 0
      %s285 = smul.addr %s284, 4
      %s286 = scalar_lea.vmem %s1, %s285
      %p287 = scmp.lt.s32.totalorder %s21, 0
      %s288 = scalar_select %p287, %s21, 0
      %s289 = scalar_lea.vmem %s2, %s288
      %p290 = scmp.lt.s32.totalorder %s21, 0
      %s291 = scalar_select %p290, %s21, 0
      %s292 = scalar_lea.vmem %s3, %s291
      %p293 = scmp.lt.s32.totalorder %s21, 0
      %s294 = scalar_select %p293, %s21, 0
      %s295 = scalar_lea.vmem %s4, %s294
      %p296 = scmp.lt.s32.totalorder %s20, 1
      %s297 = scalar_select %p296, %s20, 1
      %p298 = scmp.lt.s32.totalorder %s21, 0
      %s299 = scalar_select %p298, %s21, 0
      %s300 = smul.addr %s297, 4
      %s301 = sadd.s32 %s299, %s300
      %s302 = smul.addr %s301, 4
      %s303 = scalar_lea.vmem %s5, %s302
      %v305 = vld [vmem:[%s282] sm:$0xf]
      %v306 = vld [vmem:[%s282 + $0x4] sm:$0xf]
      %v307 = vld [vmem:[%s282 + $0x8] sm:$0xf]
      %v308 = vld [vmem:[%s282 + $0xc] sm:$0xf]
      %v309 = vld [vmem:[%s286] sm:$0xf]
      %v310 = vld [vmem:[%s286 + $0x4] sm:$0xf]
      %v311 = vld [vmem:[%s286 + $0x8] sm:$0xf]
      %v312 = vld [vmem:[%s286 + $0xc] sm:$0xf]
      %v313 = vld [vmem:[%s286 + $0x10] sm:$0xf]
      %v314 = vld [vmem:[%s286 + $0x14] sm:$0xf]
      %v315 = vld [vmem:[%s286 + $0x18] sm:$0xf]
      %v316 = vld [vmem:[%s286 + $0x1c] sm:$0xf]
      %v317 = vld [vmem:[%s286 + $0x20] sm:$0xf]
      %v318 = vld [vmem:[%s286 + $0x24] sm:$0xf]
      %v319 = vld [vmem:[%s286 + $0x28] sm:$0xf]
      %v320 = vld [vmem:[%s286 + $0x2c] sm:$0xf]
      %v321 = vld [vmem:[%s286 + $0x30] sm:$0xf]
      %v322 = vld [vmem:[%s286 + $0x34] sm:$0xf]
      %v323 = vld [vmem:[%s286 + $0x38] sm:$0xf]
      %v324 = vld [vmem:[%s286 + $0x3c] sm:$0xf]
      %v325 = vld [vmem:[%s289] sm:$0x1]
      %v327 = vlaneseq
      %v328 = vshrl.u32 %v327, 7
      %v329 = vsub.s32 0, %v328
      %v330 = vrot.slane %v325, %v329
      %v336 = vunpack.c.l.b16 %v305
      %v337 = vunpack.c.l.b16 %v306
      %v338 = vunpack.c.l.b16 %v307
      %v339 = vunpack.c.l.b16 %v308
      %v340 = vpack.c.b16 %v337, %v336
      %v341 = vpack.c.b16 %v339, %v338
      %v360 = vunpack.c.l.b16 %v309
      %v361 = vunpack.c.l.b16 %v310
      %v362 = vunpack.c.l.b16 %v311
      %v363 = vunpack.c.l.b16 %v312
      %v364 = vunpack.c.l.b16 %v313
      %v365 = vunpack.c.l.b16 %v314
      %v366 = vunpack.c.l.b16 %v315
      %v367 = vunpack.c.l.b16 %v316
      %v368 = vunpack.c.l.b16 %v317
      %v369 = vunpack.c.l.b16 %v318
      %v370 = vunpack.c.l.b16 %v319
      %v371 = vunpack.c.l.b16 %v320
      %v372 = vunpack.c.l.b16 %v321
      %v373 = vunpack.c.l.b16 %v322
      %v374 = vunpack.c.l.b16 %v323
      %v375 = vunpack.c.l.b16 %v324
      %v376 = vpack.c.b16 %v361, %v360
      %v377 = vpack.c.b16 %v363, %v362
      %v378 = vpack.c.b16 %v365, %v364
      %v379 = vpack.c.b16 %v367, %v366
      %v380 = vpack.c.b16 %v369, %v368
      %v381 = vpack.c.b16 %v371, %v370
      %v382 = vpack.c.b16 %v373, %v372
      %v383 = vpack.c.b16 %v375, %v374
      %392 = vmatprep.subr.bf16.mxu0 0
      %393 = vmatpush1.bf16.msra.mxu0 %v383
      %394 = vmatprep.subr.bf16.mxu0 0
      %395 = vmatpush1.bf16.msra.mxu0 %v382
      %396 = vmatprep.subr.bf16.mxu0 0
      %397 = vmatpush1.bf16.msra.mxu0 %v381
      %398 = vmatprep.subr.bf16.mxu0 0
      %399 = vmatpush1.bf16.msra.mxu0 %v380
      %400 = vmatprep.subr.bf16.mxu0 0
      %401 = vmatpush1.bf16.msra.mxu0 %v379
      %402 = vmatprep.subr.bf16.mxu0 0
      %403 = vmatpush1.bf16.msra.mxu0 %v378
      %404 = vmatprep.subr.bf16.mxu0 0
      %405 = vmatpush1.bf16.msra.mxu0 %v377
      %406 = vmatprep.subr.bf16.mxu0 0
      %407 = vmatpush1.bf16.msra.mxu0 %v376
      %408 = vmatprep.subr.bf16.mxu0 0
      %409 = vmatpush2.bf16.msra.mxu0 0
      %410 = vmatprep.subr.bf16.mxu0 0
      %411 = vmatpush2.bf16.msra.mxu0 0
      %412 = vmatprep.subr.bf16.mxu0 0
      %413 = vmatpush2.bf16.msra.mxu0 0
      %414 = vmatprep.subr.bf16.mxu0 0
      %415 = vmatpush2.bf16.msra.mxu0 0
      %416 = vmatprep.subr.bf16.mxu0 0
      %417 = vmatpush2.bf16.msra.mxu0 0
      %418 = vmatprep.subr.bf16.mxu0 0
      %419 = vmatpush2.bf16.msra.mxu0 0
      %420 = vmatprep.subr.bf16.mxu0 0
      %421 = vmatpush2.bf16.msra.mxu0 0
      %422 = vmatprep.subr.bf16.mxu0 0
      %423 = vmatpush2.bf16.msra.mxu0 0
      %424 = vmatprep.mubr.bf16.mxu0 0
      %425 = vmatmul.mubr.bf16.gmra.mxu0 %v340
      %v426 = vpop.f32.mrf.mxu0
      %v427 = vadd.f32 %v330, %v426
      %v428 = vpop.f32.mrf.mxu0
      %v429 = vpop.f32.mrf.mxu0
      %v430 = vadd.f32 %v330, %v429
      %v431 = vpop.f32.mrf.mxu0
      %432 = vmatprep.mubr.bf16.mxu0 0
      %433 = vmatmul.mubr.bf16.gmra.mxu0 %v341
      %v434 = vpop.f32.mrf.mxu0
      %v435 = vadd.f32 %v330, %v434
      %v436 = vpop.f32.mrf.mxu0
      %v437 = vpop.f32.mrf.mxu0
      %v438 = vadd.f32 %v330, %v437
      %v439 = vpop.f32.mrf.mxu0
      %440 = vdwg.mxu0
      %v441 = vmax.f32 %v427, 0.0
      %v442 = vmax.f32 %v430, 0.0
      %v443 = vmax.f32 %v435, 0.0
      %v444 = vmax.f32 %v438, 0.0
      %v445 = vld [vmem:[%s292] sm:$0x1]
      %v447 = vlaneseq
      %v448 = vshrl.u32 %v447, 7
      %v449 = vsub.s32 0, %v448
      %v450 = vrot.slane %v445, %v449
      %v452 = vmul.f32 %v441, %v450
      %v453 = vmul.f32 %v442, %v450
      %v454 = vmul.f32 %v443, %v450
      %v455 = vmul.f32 %v444, %v450
      %v456 = vld [vmem:[%s295] sm:$0x1]
      %v458 = vlaneseq
      %v459 = vshrl.u32 %v458, 7
      %v460 = vsub.s32 0, %v459
      %v461 = vrot.slane %v456, %v460
      %v463 = vadd.f32 %v452, %v461
      %v464 = vadd.f32 %v453, %v461
      %v465 = vadd.f32 %v454, %v461
      %v466 = vadd.f32 %v455, %v461
      %v467 = vpack.c.bf16 %v464, %v463
      %v468 = vpack.c.bf16 %v466, %v465
      %v471 = vunpack.c.l.b16 %v467
      %v472 = vunpack.c.h.b16 %v467
      %v473 = vunpack.c.l.b16 %v468
      %v474 = vunpack.c.h.b16 %v468
      %v475 = vpack.c.b16 %v471, %v471
      %v476 = vpack.c.b16 %v472, %v472
      %v477 = vpack.c.b16 %v473, %v473
      %v478 = vpack.c.b16 %v474, %v474
      %483 = vst [vmem:[%s303] sm:$0xf] %v475
      %484 = vst [vmem:[%s303 + $0x4] sm:$0xf] %v476
      %485 = vst [vmem:[%s303 + $0x8] sm:$0xf] %v477
      %486 = vst [vmem:[%s303 + $0xc] sm:$0xf] %v478
      %p487 = scmp.lt.s32.totalorder %s20, 1
      %s488 = scalar_select %p487, %s20, 1
      %p489 = scmp.lt.s32.totalorder %s21, 0
      %s490 = scalar_select %p489, %s21, 0
      %s491 = smul.addr %s488, 4
      %s492 = sadd.s32 %s490, %s491
      %s493 = smul.addr %s492, 4
      %s494 = scalar_lea.vmem %s5, %s493
      // Predicated region
      $region41: #{ecapa_forward.17} parent=39 // pred_check
        %p495 = pneg %p178
      $region42: #{ecapa_forward.17} parent=39 // pred_check_branch
        %497 = sbr.rel (%p495) target = $region44
      $region43: #{ecapa_forward.17} parent=39 // pred_region
        _
      $region44: #{ecapa_forward.17} parent=39 // pred_fallthru
        _
    $region40: #{ecapa_forward.17} parent=5 // pred_fallthru
      _
    %p498 = scmp.le.s32.totalorder 2, %s11
    // Predicated region
    $region45: #{ecapa_forward.17} parent=5 // pred_check
      %p499 = pneg %p498
    $region46: #{ecapa_forward.17} parent=5 // pred_check_branch
      %501 = sbr.rel (%p499) target = $region48
    $region47: #{ecapa_forward.17} parent=5 // pred_region
      %s502 = ssub.s32 %s11, 2
      // Predicated region
      $region49: #{ecapa_forward.17} parent=47 // pred_check
        %p503 = pneg %p184
      $region50: #{ecapa_forward.17} parent=47 // pred_check_branch
        %505 = sbr.rel (%p503) target = $region52
      $region51: #{ecapa_forward.17} parent=47 // pred_region
        %p506 = scmp.lt.s32.totalorder %s22, 1
        %s507 = scalar_select %p506, %s22, 1
        %p508 = scmp.lt.s32.totalorder %s23, 0
        %s509 = scalar_select %p508, %s23, 0
        %s510 = smul.addr %s507, 4
        %s511 = sadd.s32 %s509, %s510
        %s512 = smul.addr %s511, 4
        %s513 = scalar_lea.vmem %s5, %s512
      $region52: #{ecapa_forward.17} parent=47 // pred_fallthru
        _
    $region48: #{ecapa_forward.17} parent=5 // pred_fallthru
      _
  $region6: #{ecapa_forward.17} parent=0 // loop_footer
    %s15 = sadd.s32 1, %s11
  $region7: #{ecapa_forward.17} parent=0 // loop_footer_branch
    %10 = sbr.rel target = $region3
  $region8: #{ecapa_forward.17} parent=0 // loop_exit
    _

// kernel: ecapa_forward.19
$region0: #{ecapa_forward.19}
  #allocation0 [shape = 'u32[]', space=smem, size = 0x4, offset = 0x4, fixed_abs, tag = 'smem constant byte address 0x4 - core index']
  #allocation1 [shape = 'u32[144,128]{1,0:T(1,128)}', space=vmem, size = 0x12000, scoped, tag = 'internal scratch']
  %s0 = inlined_call_operand.vmem [shape: bf16[2,32,128], index: 0, kind: input, shape index: {}]
  %s1 = inlined_call_operand.vmem [shape: bf16[1,128,128], index: 1, kind: input, shape index: {}]
  %s2 = inlined_call_operand.vmem [shape: f32[1,128], index: 2, kind: input, shape index: {}]
  %s3 = inlined_call_operand.vmem [shape: f32[1,128], index: 3, kind: input, shape index: {}]
  %s4 = inlined_call_operand.vmem [shape: f32[1,128], index: 4, kind: input, shape index: {}]
  %s5 = inlined_call_operand.vmem [shape: bf16[2,32,128], index: 5, kind: output, shape index: {}]
  %s6 = sld [smem:[#allocation0]]
  $region53: #{ecapa_forward.19} parent=0
    _
  %s8 = ssub.s32 1, %s6
  %s9 = scalar_select 0, %s8, %s6
  loop: start=0, step=1, limit=4
  $region2: #{ecapa_forward.19} parent=0 // loop_pre_header
    _
  $region3: #{ecapa_forward.19} parent=0 // loop_header
    %s11 = sphi 0, %s15
    %p12 = scmp.ge.s32.totalorder %s11, 4
    %s18 = sphi 0, %s30
    %s19 = sphi 0, %s26
    %s20 = sphi 0, %s18
    %s21 = sphi 0, %s19
    %s22 = sphi 0, %s20
    %s23 = sphi 0, %s21
    %s33 = sphi 0, %s35
    %s36 = sphi 0, %s33
    %s37 = sphi 0, %s36
    %s53 = sphi 0, %s37
    %s59 = sphi 0, %s61
    %s62 = sphi 0, %s59
    %s63 = sphi 0, %s62
    %s79 = sphi 0, %s63
    %s85 = sphi 0, %s87
    %s88 = sphi 0, %s85
    %s89 = sphi 0, %s88
    %s105 = sphi 0, %s89
    %s111 = sphi 0, %s113
    %s114 = sphi 0, %s111
    %s115 = sphi 0, %s114
    %s131 = sphi 0, %s115
    %s137 = sphi 0, %s139
    %s140 = sphi 0, %s137
    %s141 = sphi 0, %s140
    %s157 = sphi 0, %s141
    %s165 = sphi 0, %s167
    %s168 = sphi 0, %s165
    %s169 = sphi 0, %s168
    %s185 = sphi 0, %s169
  $region4: #{ecapa_forward.19} parent=0 // loop_header_branch
    %14 = sbr.rel (%p12) target = $region8
  $region5: #{ecapa_forward.19} parent=0 // loop_body
    %s16 = ssub.s32 %s11, 1
    %s17 = ssub.s32 %s11, 2
    %s24 = sadd.s32 1, %s19
    %p25 = scmp.ge.s32.totalorder %s24, 1
    %s26 = scalar_select %p25, 0, %s24
    %s27 = sadd.s32 1, %s18
    %s28 = scalar_select %p25, %s27, %s18
    %p29 = scmp.ge.s32.totalorder %s28, 2
    %s30 = scalar_select %p29, 0, %s28
    %s31 = ssub.s32 %s18, %s30
    %p32 = scmp.eq.s32.totalorder %s31, 0
    %s34 = sadd.s32 %s33, 1
    %s35 = scalar_select %p32, %s33, %s34
    %p38 = pneg %p32
    %p39 = scmp.eq.s32.totalorder %s11, 1
    %p40 = por %p38, %p39
    %p41 = scmp.ne.s32.totalorder %s33, %s36
    %p42 = scmp.eq.s32.totalorder %s11, 0
    %p43 = por %p41, %p42
    %p44 = scmp.ne.s32.totalorder %s33, %s36
    %p45 = scmp.eq.s32.totalorder %s16, 1
    %p46 = por %p44, %p45
    %p47 = scmp.ne.s32.totalorder %s36, %s37
    %p48 = scmp.eq.s32.totalorder %s16, 0
    %p49 = por %p47, %p48
    %p50 = scmp.ne.s32.totalorder %s36, %s37
    %p51 = scmp.eq.s32.totalorder %s17, 1
    %p52 = por %p50, %p51
    %p54 = scmp.ne.s32.totalorder %s37, %s53
    %p55 = scmp.eq.s32.totalorder %s17, 0
    %p56 = por %p54, %p55
    %s57 = ssub.s32 %s19, %s26
    %p58 = scmp.eq.s32.totalorder %s57, 0
    %s60 = sadd.s32 %s59, 1
    %s61 = scalar_select %p58, %s59, %s60
    %p64 = pneg %p58
    %p65 = scmp.eq.s32.totalorder %s11, 1
    %p66 = por %p64, %p65
    %p67 = scmp.ne.s32.totalorder %s59, %s62
    %p68 = scmp.eq.s32.totalorder %s11, 0
    %p69 = por %p67, %p68
    %p70 = scmp.ne.s32.totalorder %s59, %s62
    %p71 = scmp.eq.s32.totalorder %s16, 1
    %p72 = por %p70, %p71
    %p73 = scmp.ne.s32.totalorder %s62, %s63
    %p74 = scmp.eq.s32.totalorder %s16, 0
    %p75 = por %p73, %p74
    %p76 = scmp.ne.s32.totalorder %s62, %s63
    %p77 = scmp.eq.s32.totalorder %s17, 1
    %p78 = por %p76, %p77
    %p80 = scmp.ne.s32.totalorder %s63, %s79
    %p81 = scmp.eq.s32.totalorder %s17, 0
    %p82 = por %p80, %p81
    %s83 = ssub.s32 %s19, %s26
    %p84 = scmp.eq.s32.totalorder %s83, 0
    %s86 = sadd.s32 %s85, 1
    %s87 = scalar_select %p84, %s85, %s86
    %p90 = pneg %p84
    %p91 = scmp.eq.s32.totalorder %s11, 1
    %p92 = por %p90, %p91
    %p93 = scmp.ne.s32.totalorder %s85, %s88
    %p94 = scmp.eq.s32.totalorder %s11, 0
    %p95 = por %p93, %p94
    %p96 = scmp.ne.s32.totalorder %s85, %s88
    %p97 = scmp.eq.s32.totalorder %s16, 1
    %p98 = por %p96, %p97
    %p99 = scmp.ne.s32.totalorder %s88, %s89
    %p100 = scmp.eq.s32.totalorder %s16, 0
    %p101 = por %p99, %p100
    %p102 = scmp.ne.s32.totalorder %s88, %s89
    %p103 = scmp.eq.s32.totalorder %s17, 1
    %p104 = por %p102, %p103
    %p106 = scmp.ne.s32.totalorder %s89, %s105
    %p107 = scmp.eq.s32.totalorder %s17, 0
    %p108 = por %p106, %p107
    %s109 = ssub.s32 %s19, %s26
    %p110 = scmp.eq.s32.totalorder %s109, 0
    %s112 = sadd.s32 %s111, 1
    %s113 = scalar_select %p110, %s111, %s112
    %p116 = pneg %p110
    %p117 = scmp.eq.s32.totalorder %s11, 1
    %p118 = por %p116, %p117
    %p119 = scmp.ne.s32.totalorder %s111, %s114
    %p120 = scmp.eq.s32.totalorder %s11, 0
    %p121 = por %p119, %p120
    %p122 = scmp.ne.s32.totalorder %s111, %s114
    %p123 = scmp.eq.s32.totalorder %s16, 1
    %p124 = por %p122, %p123
    %p125 = scmp.ne.s32.totalorder %s114, %s115
    %p126 = scmp.eq.s32.totalorder %s16, 0
    %p127 = por %p125, %p126
    %p128 = scmp.ne.s32.totalorder %s114, %s115
    %p129 = scmp.eq.s32.totalorder %s17, 1
    %p130 = por %p128, %p129
    %p132 = scmp.ne.s32.totalorder %s115, %s131
    %p133 = scmp.eq.s32.totalorder %s17, 0
    %p134 = por %p132, %p133
    %s135 = ssub.s32 %s19, %s26
    %p136 = scmp.eq.s32.totalorder %s135, 0
    %s138 = sadd.s32 %s137, 1
    %s139 = scalar_select %p136, %s137, %s138
    %p142 = pneg %p136
    %p143 = scmp.eq.s32.totalorder %s11, 1
    %p144 = por %p142, %p143
    %p145 = scmp.ne.s32.totalorder %s137, %s140
    %p146 = scmp.eq.s32.totalorder %s11, 0
    %p147 = por %p145, %p146
    %p148 = scmp.ne.s32.totalorder %s137, %s140
    %p149 = scmp.eq.s32.totalorder %s16, 1
    %p150 = por %p148, %p149
    %p151 = scmp.ne.s32.totalorder %s140, %s141
    %p152 = scmp.eq.s32.totalorder %s16, 0
    %p153 = por %p151, %p152
    %p154 = scmp.ne.s32.totalorder %s140, %s141
    %p155 = scmp.eq.s32.totalorder %s17, 1
    %p156 = por %p154, %p155
    %p158 = scmp.ne.s32.totalorder %s141, %s157
    %p159 = scmp.eq.s32.totalorder %s17, 0
    %p160 = por %p158, %p159
    %s161 = ssub.s32 %s18, %s30
    %s162 = ssub.s32 %s19, %s26
    %s163 = sor.u32 %s161, %s162
    %p164 = scmp.eq.s32.totalorder %s163, 0
    %s166 = sadd.s32 %s165, 1
    %s167 = scalar_select %p164, %s165, %s166
    %p170 = pneg %p164
    %p171 = scmp.eq.s32.totalorder %s11, 1
    %p172 = por %p170, %p171
    %p173 = scmp.ne.s32.totalorder %s165, %s168
    %p174 = scmp.eq.s32.totalorder %s11, 0
    %p175 = por %p173, %p174
    %p176 = scmp.ne.s32.totalorder %s165, %s168
    %p177 = scmp.eq.s32.totalorder %s16, 1
    %p178 = por %p176, %p177
    %p179 = scmp.ne.s32.totalorder %s168, %s169
    %p180 = scmp.eq.s32.totalorder %s16, 0
    %p181 = por %p179, %p180
    %p182 = scmp.ne.s32.totalorder %s168, %s169
    %p183 = scmp.eq.s32.totalorder %s17, 1
    %p184 = por %p182, %p183
    %p186 = scmp.ne.s32.totalorder %s169, %s185
    %p187 = scmp.eq.s32.totalorder %s17, 0
    %p188 = por %p186, %p187
    %p189 = scmp.le.s32.totalorder 1, %s11
    %p190 = scmp.lt.s32.totalorder %s11, 3
    %p191 = pnand %p189, %p190
    %p192 = pneg %p191
    // Predicated region
    $region9: #{ecapa_forward.19} parent=5 // pred_check
      _
    $region10: #{ecapa_forward.19} parent=5 // pred_check_branch
      %194 = sbr.rel (%p191) target = $region12
    $region11: #{ecapa_forward.19} parent=5 // pred_region
      %s195 = ssub.s32 %s11, 1
      // Predicated region
      $region13: #{ecapa_forward.19} parent=11 // pred_check
        %p196 = pneg %p75
      $region14: #{ecapa_forward.19} parent=11 // pred_check_branch
        %198 = sbr.rel (%p196) target = $region16
      $region15: #{ecapa_forward.19} parent=11 // pred_region
        %p199 = scmp.lt.s32.totalorder %s21, 0
        %s200 = scalar_select %p199, %s21, 0
        %s201 = smul.addr %s200, 4
        %s202 = scalar_lea.vmem %s1, %s201
      $region16: #{ecapa_forward.19} parent=11 // pred_fallthru
        _
      // Predicated region
      $region17: #{ecapa_forward.19} parent=11 // pred_check
        %p203 = pneg %p101
      $region18: #{ecapa_forward.19} parent=11 // pred_check_branch
        %205 = sbr.rel (%p203) target = $region20
      $region19: #{ecapa_forward.19} parent=11 // pred_region
        %p206 = scmp.lt.s32.totalorder %s21, 0
        %s207 = scalar_select %p206, %s21, 0
        %s208 = scalar_lea.vmem %s2, %s207
      $region20: #{ecapa_forward.19} parent=11 // pred_fallthru
        _
      // Predicated region
      $region21: #{ecapa_forward.19} parent=11 // pred_check
        %p209 = pneg %p127
      $region22: #{ecapa_forward.19} parent=11 // pred_check_branch
        %211 = sbr.rel (%p209) target = $region24
      $region23: #{ecapa_forward.19} parent=11 // pred_region
        %p212 = scmp.lt.s32.totalorder %s21, 0
        %s213 = scalar_select %p212, %s21, 0
        %s214 = scalar_lea.vmem %s3, %s213
      $region24: #{ecapa_forward.19} parent=11 // pred_fallthru
        _
      // Predicated region
      $region25: #{ecapa_forward.19} parent=11 // pred_check
        %p215 = pneg %p153
      $region26: #{ecapa_forward.19} parent=11 // pred_check_branch
        %217 = sbr.rel (%p215) target = $region28
      $region27: #{ecapa_forward.19} parent=11 // pred_region
        %p218 = scmp.lt.s32.totalorder %s21, 0
        %s219 = scalar_select %p218, %s21, 0
        %s220 = scalar_lea.vmem %s4, %s219
      $region28: #{ecapa_forward.19} parent=11 // pred_fallthru
        _
    $region12: #{ecapa_forward.19} parent=5 // pred_fallthru
      _
    %p221 = scmp.lt.s32.totalorder %s11, 2
    // Predicated region
    $region29: #{ecapa_forward.19} parent=5 // pred_check
      %p222 = pneg %p221
    $region30: #{ecapa_forward.19} parent=5 // pred_check_branch
      %224 = sbr.rel (%p222) target = $region32
    $region31: #{ecapa_forward.19} parent=5 // pred_region
      // Predicated region
      $region33: #{ecapa_forward.19} parent=31 // pred_check
        %p225 = pneg %p43
      $region34: #{ecapa_forward.19} parent=31 // pred_check_branch
        %227 = sbr.rel (%p225) target = $region36
      $region35: #{ecapa_forward.19} parent=31 // pred_region
        %p228 = scmp.lt.s32.totalorder %s18, 1
        %s229 = scalar_select %p228, %s18, 1
        %s230 = smul.addr %s229, 4
        %s231 = smul.addr %s230, 4
        %s232 = scalar_lea.vmem %s0, %s231
      $region36: #{ecapa_forward.19} parent=31 // pred_fallthru
        _
    $region32: #{ecapa_forward.19} parent=5 // pred_fallthru
      _
    %p233 = scmp.le.s32.totalorder 1, %s11
    %p234 = scmp.lt.s32.totalorder %s11, 3
    %p235 = pnand %p233, %p234
    %p236 = pneg %p235
    // Predicated region
    $region37: #{ecapa_forward.19} parent=5 // pred_check
      _
    $region38: #{ecapa_forward.19} parent=5 // pred_check_branch
      %238 = sbr.rel (%p235) target = $region40
    $region39: #{ecapa_forward.19} parent=5 // pred_region
      %s239 = ssub.s32 %s11, 1
      %p240 = scmp.lt.s32.totalorder %s20, 1
      %s241 = scalar_select %p240, %s20, 1
      %s242 = smul.addr %s241, 4
      %s243 = smul.addr %s242, 4
      %s244 = scalar_lea.vmem %s0, %s243
      %p245 = pneg %p49
      %p246 = pneg %p46
      %p247 = scmp.lt.s32.totalorder %s21, 0
      %s248 = scalar_select %p247, %s21, 0
      %s249 = smul.addr %s248, 4
      %s250 = scalar_lea.vmem %s1, %s249
      %p251 = pneg %p75
      %p252 = pneg %p72
      %p253 = scmp.lt.s32.totalorder %s21, 0
      %s254 = scalar_select %p253, %s21, 0
      %s255 = scalar_lea.vmem %s2, %s254
      %p256 = pneg %p101
      %p257 = pneg %p98
      %p258 = scmp.lt.s32.totalorder %s21, 0
      %s259 = scalar_select %p258, %s21, 0
      %s260 = scalar_lea.vmem %s3, %s259
      %p261 = pneg %p127
      %p262 = pneg %p124
      %p263 = scmp.lt.s32.totalorder %s21, 0
      %s264 = scalar_select %p263, %s21, 0
      %s265 = scalar_lea.vmem %s4, %s264
      %p266 = pneg %p153
      %p267 = pneg %p150
      %p268 = pneg %p181
      %p269 = pneg %p178
      %p270 = scmp.lt.s32.totalorder %s20, 1
      %s271 = scalar_select %p270, %s20, 1
      %p272 = scmp.lt.s32.totalorder %s21, 0
      %s273 = scalar_select %p272, %s21, 0
      %s274 = smul.addr %s271, 4
      %s275 = sadd.s32 %s273, %s274
      %s276 = smul.addr %s275, 4
      %s277 = scalar_lea.vmem %s5, %s276
      %p278 = scmp.lt.s32.totalorder %s20, 1
      %s279 = scalar_select %p278, %s20, 1
      %s280 = smul.addr %s279, 4
      %s281 = smul.addr %s280, 4
      %s282 = scalar_lea.vmem %s0, %s281
      %p283 = scmp.lt.s32.totalorder %s21, 0
      %s284 = scalar_select %p283, %s21, 0
      %s285 = smul.addr %s284, 4
      %s286 = scalar_lea.vmem %s1, %s285
      %p287 = scmp.lt.s32.totalorder %s21, 0
      %s288 = scalar_select %p287, %s21, 0
      %s289 = scalar_lea.vmem %s2, %s288
      %p290 = scmp.lt.s32.totalorder %s21, 0
      %s291 = scalar_select %p290, %s21, 0
      %s292 = scalar_lea.vmem %s3, %s291
      %p293 = scmp.lt.s32.totalorder %s21, 0
      %s294 = scalar_select %p293, %s21, 0
      %s295 = scalar_lea.vmem %s4, %s294
      %p296 = scmp.lt.s32.totalorder %s20, 1
      %s297 = scalar_select %p296, %s20, 1
      %p298 = scmp.lt.s32.totalorder %s21, 0
      %s299 = scalar_select %p298, %s21, 0
      %s300 = smul.addr %s297, 4
      %s301 = sadd.s32 %s299, %s300
      %s302 = smul.addr %s301, 4
      %s303 = scalar_lea.vmem %s5, %s302
      %v305 = vld [vmem:[%s282] sm:$0xf]
      %v306 = vld [vmem:[%s282 + $0x4] sm:$0xf]
      %v307 = vld [vmem:[%s282 + $0x8] sm:$0xf]
      %v308 = vld [vmem:[%s282 + $0xc] sm:$0xf]
      %v309 = vld [vmem:[%s286] sm:$0xf]
      %v310 = vld [vmem:[%s286 + $0x4] sm:$0xf]
      %v311 = vld [vmem:[%s286 + $0x8] sm:$0xf]
      %v312 = vld [vmem:[%s286 + $0xc] sm:$0xf]
      %v313 = vld [vmem:[%s286 + $0x10] sm:$0xf]
      %v314 = vld [vmem:[%s286 + $0x14] sm:$0xf]
      %v315 = vld [vmem:[%s286 + $0x18] sm:$0xf]
      %v316 = vld [vmem:[%s286 + $0x1c] sm:$0xf]
      %v317 = vld [vmem:[%s286 + $0x20] sm:$0xf]
      %v318 = vld [vmem:[%s286 + $0x24] sm:$0xf]
      %v319 = vld [vmem:[%s286 + $0x28] sm:$0xf]
      %v320 = vld [vmem:[%s286 + $0x2c] sm:$0xf]
      %v321 = vld [vmem:[%s286 + $0x30] sm:$0xf]
      %v322 = vld [vmem:[%s286 + $0x34] sm:$0xf]
      %v323 = vld [vmem:[%s286 + $0x38] sm:$0xf]
      %v324 = vld [vmem:[%s286 + $0x3c] sm:$0xf]
      %v325 = vld [vmem:[%s289] sm:$0x1]
      %v327 = vlaneseq
      %v328 = vshrl.u32 %v327, 7
      %v329 = vsub.s32 0, %v328
      %v330 = vrot.slane %v325, %v329
      %v336 = vunpack.c.l.b16 %v305
      %v337 = vunpack.c.l.b16 %v306
      %v338 = vunpack.c.l.b16 %v307
      %v339 = vunpack.c.l.b16 %v308
      %v340 = vpack.c.b16 %v337, %v336
      %v341 = vpack.c.b16 %v339, %v338
      %v360 = vunpack.c.l.b16 %v309
      %v361 = vunpack.c.l.b16 %v310
      %v362 = vunpack.c.l.b16 %v311
      %v363 = vunpack.c.l.b16 %v312
      %v364 = vunpack.c.l.b16 %v313
      %v365 = vunpack.c.l.b16 %v314
      %v366 = vunpack.c.l.b16 %v315
      %v367 = vunpack.c.l.b16 %v316
      %v368 = vunpack.c.l.b16 %v317
      %v369 = vunpack.c.l.b16 %v318
      %v370 = vunpack.c.l.b16 %v319
      %v371 = vunpack.c.l.b16 %v320
      %v372 = vunpack.c.l.b16 %v321
      %v373 = vunpack.c.l.b16 %v322
      %v374 = vunpack.c.l.b16 %v323
      %v375 = vunpack.c.l.b16 %v324
      %v376 = vpack.c.b16 %v361, %v360
      %v377 = vpack.c.b16 %v363, %v362
      %v378 = vpack.c.b16 %v365, %v364
      %v379 = vpack.c.b16 %v367, %v366
      %v380 = vpack.c.b16 %v369, %v368
      %v381 = vpack.c.b16 %v371, %v370
      %v382 = vpack.c.b16 %v373, %v372
      %v383 = vpack.c.b16 %v375, %v374
      %392 = vmatprep.subr.bf16.mxu0 0
      %393 = vmatpush1.bf16.msra.mxu0 %v383
      %394 = vmatprep.subr.bf16.mxu0 0
      %395 = vmatpush1.bf16.msra.mxu0 %v382
      %396 = vmatprep.subr.bf16.mxu0 0
      %397 = vmatpush1.bf16.msra.mxu0 %v381
      %398 = vmatprep.subr.bf16.mxu0 0
      %399 = vmatpush1.bf16.msra.mxu0 %v380
      %400 = vmatprep.subr.bf16.mxu0 0
      %401 = vmatpush1.bf16.msra.mxu0 %v379
      %402 = vmatprep.subr.bf16.mxu0 0
      %403 = vmatpush1.bf16.msra.mxu0 %v378
      %404 = vmatprep.subr.bf16.mxu0 0
      %405 = vmatpush1.bf16.msra.mxu0 %v377
      %406 = vmatprep.subr.bf16.mxu0 0
      %407 = vmatpush1.bf16.msra.mxu0 %v376
      %408 = vmatprep.subr.bf16.mxu0 0
      %409 = vmatpush2.bf16.msra.mxu0 0
      %410 = vmatprep.subr.bf16.mxu0 0
      %411 = vmatpush2.bf16.msra.mxu0 0
      %412 = vmatprep.subr.bf16.mxu0 0
      %413 = vmatpush2.bf16.msra.mxu0 0
      %414 = vmatprep.subr.bf16.mxu0 0
      %415 = vmatpush2.bf16.msra.mxu0 0
      %416 = vmatprep.subr.bf16.mxu0 0
      %417 = vmatpush2.bf16.msra.mxu0 0
      %418 = vmatprep.subr.bf16.mxu0 0
      %419 = vmatpush2.bf16.msra.mxu0 0
      %420 = vmatprep.subr.bf16.mxu0 0
      %421 = vmatpush2.bf16.msra.mxu0 0
      %422 = vmatprep.subr.bf16.mxu0 0
      %423 = vmatpush2.bf16.msra.mxu0 0
      %424 = vmatprep.mubr.bf16.mxu0 0
      %425 = vmatmul.mubr.bf16.gmra.mxu0 %v340
      %v426 = vpop.f32.mrf.mxu0
      %v427 = vadd.f32 %v330, %v426
      %v428 = vpop.f32.mrf.mxu0
      %v429 = vpop.f32.mrf.mxu0
      %v430 = vadd.f32 %v330, %v429
      %v431 = vpop.f32.mrf.mxu0
      %432 = vmatprep.mubr.bf16.mxu0 0
      %433 = vmatmul.mubr.bf16.gmra.mxu0 %v341
      %v434 = vpop.f32.mrf.mxu0
      %v435 = vadd.f32 %v330, %v434
      %v436 = vpop.f32.mrf.mxu0
      %v437 = vpop.f32.mrf.mxu0
      %v438 = vadd.f32 %v330, %v437
      %v439 = vpop.f32.mrf.mxu0
      %440 = vdwg.mxu0
      %v441 = vld [vmem:[%s292] sm:$0x1]
      %v443 = vlaneseq
      %v444 = vshrl.u32 %v443, 7
      %v445 = vsub.s32 0, %v444
      %v446 = vrot.slane %v441, %v445
      %v448 = vmul.f32 %v427, %v446
      %v449 = vmul.f32 %v430, %v446
      %v450 = vmul.f32 %v435, %v446
      %v451 = vmul.f32 %v438, %v446
      %v452 = vld [vmem:[%s295] sm:$0x1]
      %v454 = vlaneseq
      %v455 = vshrl.u32 %v454, 7
      %v456 = vsub.s32 0, %v455
      %v457 = vrot.slane %v452, %v456
      %v459 = vadd.f32 %v448, %v457
      %v460 = vadd.f32 %v449, %v457
      %v461 = vadd.f32 %v450, %v457
      %v462 = vadd.f32 %v451, %v457
      %v463 = vpack.c.bf16 %v460, %v459
      %v464 = vpack.c.bf16 %v462, %v461
      %v467 = vunpack.c.l.b16 %v463
      %v468 = vunpack.c.h.b16 %v463
      %v469 = vunpack.c.l.b16 %v464
      %v470 = vunpack.c.h.b16 %v464
      %v471 = vpack.c.b16 %v467, %v467
      %v472 = vpack.c.b16 %v468, %v468
      %v473 = vpack.c.b16 %v469, %v469
      %v474 = vpack.c.b16 %v470, %v470
      %479 = vst [vmem:[%s303] sm:$0xf] %v471
      %480 = vst [vmem:[%s303 + $0x4] sm:$0xf] %v472
      %481 = vst [vmem:[%s303 + $0x8] sm:$0xf] %v473
      %482 = vst [vmem:[%s303 + $0xc] sm:$0xf] %v474
      %p483 = scmp.lt.s32.totalorder %s20, 1
      %s484 = scalar_select %p483, %s20, 1
      %p485 = scmp.lt.s32.totalorder %s21, 0
      %s486 = scalar_select %p485, %s21, 0
      %s487 = smul.addr %s484, 4
      %s488 = sadd.s32 %s486, %s487
      %s489 = smul.addr %s488, 4
      %s490 = scalar_lea.vmem %s5, %s489
      // Predicated region
      $region41: #{ecapa_forward.19} parent=39 // pred_check
        %p491 = pneg %p178
      $region42: #{ecapa_forward.19} parent=39 // pred_check_branch
        %493 = sbr.rel (%p491) target = $region44
      $region43: #{ecapa_forward.19} parent=39 // pred_region
        _
      $region44: #{ecapa_forward.19} parent=39 // pred_fallthru
        _
    $region40: #{ecapa_forward.19} parent=5 // pred_fallthru
      _
    %p494 = scmp.le.s32.totalorder 2, %s11
    // Predicated region
    $region45: #{ecapa_forward.19} parent=5 // pred_check
      %p495 = pneg %p494
    $region46: #{ecapa_forward.19} parent=5 // pred_check_branch
      %497 = sbr.rel (%p495) target = $region48
    $region47: #{ecapa_forward.19} parent=5 // pred_region
      %s498 = ssub.s32 %s11, 2
      // Predicated region
      $region49: #{ecapa_forward.19} parent=47 // pred_check
        %p499 = pneg %p184
      $region50: #{ecapa_forward.19} parent=47 // pred_check_branch
        %501 = sbr.rel (%p499) target = $region52
      $region51: #{ecapa_forward.19} parent=47 // pred_region
        %p502 = scmp.lt.s32.totalorder %s22, 1
        %s503 = scalar_select %p502, %s22, 1
        %p504 = scmp.lt.s32.totalorder %s23, 0
        %s505 = scalar_select %p504, %s23, 0
        %s506 = smul.addr %s503, 4
        %s507 = sadd.s32 %s505, %s506
        %s508 = smul.addr %s507, 4
        %s509 = scalar_lea.vmem %s5, %s508
      $region52: #{ecapa_forward.19} parent=47 // pred_fallthru
        _
    $region48: #{ecapa_forward.19} parent=5 // pred_fallthru
      _
  $region6: #{ecapa_forward.19} parent=0 // loop_footer
    %s15 = sadd.s32 1, %s11
  $region7: #{ecapa_forward.19} parent=0 // loop_footer_branch
    %10 = sbr.rel target = $region3
  $region8: #{ecapa_forward.19} parent=0 // loop_exit
    _

// kernel: ecapa_forward.18
$region0: #{ecapa_forward.18}
  #allocation0 [shape = 'u32[]', space=smem, size = 0x4, offset = 0x4, fixed_abs, tag = 'smem constant byte address 0x4 - core index']
  #allocation1 [shape = 'u32[144,128]{1,0:T(1,128)}', space=vmem, size = 0x12000, scoped, tag = 'internal scratch']
  #allocation2 [shape = 'f32[36,128]{1,0:T(8,128)}', space=vmem, size = 0x5000, scoped, tag = 'scratch operand']
  %s0 = inlined_call_operand.vmem [shape: bf16[2,32,128], index: 0, kind: input, shape index: {}]
  %s1 = inlined_call_operand.vmem [shape: bf16[3,128,128], index: 1, kind: input, shape index: {}]
  %s2 = inlined_call_operand.vmem [shape: f32[1,128], index: 2, kind: input, shape index: {}]
  %s3 = inlined_call_operand.vmem [shape: f32[1,128], index: 3, kind: input, shape index: {}]
  %s4 = inlined_call_operand.vmem [shape: f32[1,128], index: 4, kind: input, shape index: {}]
  %s5 = inlined_call_operand.vmem [shape: bf16[2,32,128], index: 5, kind: output, shape index: {}]
  %s6 = sld [smem:[#allocation0]]
  $region53: #{ecapa_forward.18} parent=0
    _
  %s8 = ssub.s32 1, %s6
  %s9 = scalar_select 0, %s8, %s6
  loop: start=0, step=1, limit=4
  $region2: #{ecapa_forward.18} parent=0 // loop_pre_header
    _
  $region3: #{ecapa_forward.18} parent=0 // loop_header
    %s11 = sphi 0, %s15
    %p12 = scmp.ge.s32.totalorder %s11, 4
    %s18 = sphi 0, %s30
    %s19 = sphi 0, %s26
    %s20 = sphi 0, %s18
    %s21 = sphi 0, %s19
    %s22 = sphi 0, %s20
    %s23 = sphi 0, %s21
    %s33 = sphi 0, %s35
    %s36 = sphi 0, %s33
    %s37 = sphi 0, %s36
    %s53 = sphi 0, %s37
    %s59 = sphi 0, %s61
    %s62 = sphi 0, %s59
    %s63 = sphi 0, %s62
    %s79 = sphi 0, %s63
    %s85 = sphi 0, %s87
    %s88 = sphi 0, %s85
    %s89 = sphi 0, %s88
    %s105 = sphi 0, %s89
    %s111 = sphi 0, %s113
    %s114 = sphi 0, %s111
    %s115 = sphi 0, %s114
    %s131 = sphi 0, %s115
    %s137 = sphi 0, %s139
    %s140 = sphi 0, %s137
    %s141 = sphi 0, %s140
    %s157 = sphi 0, %s141
    %s165 = sphi 0, %s167
    %s168 = sphi 0, %s165
    %s169 = sphi 0, %s168
    %s185 = sphi 0, %s169
  $region4: #{ecapa_forward.18} parent=0 // loop_header_branch
    %14 = sbr.rel (%p12) target = $region8
  $region5: #{ecapa_forward.18} parent=0 // loop_body
    %s16 = ssub.s32 %s11, 1
    %s17 = ssub.s32 %s11, 2
    %s24 = sadd.s32 1, %s19
    %p25 = scmp.ge.s32.totalorder %s24, 1
    %s26 = scalar_select %p25, 0, %s24
    %s27 = sadd.s32 1, %s18
    %s28 = scalar_select %p25, %s27, %s18
    %p29 = scmp.ge.s32.totalorder %s28, 2
    %s30 = scalar_select %p29, 0, %s28
    %s31 = ssub.s32 %s18, %s30
    %p32 = scmp.eq.s32.totalorder %s31, 0
    %s34 = sadd.s32 %s33, 1
    %s35 = scalar_select %p32, %s33, %s34
    %p38 = pneg %p32
    %p39 = scmp.eq.s32.totalorder %s11, 1
    %p40 = por %p38, %p39
    %p41 = scmp.ne.s32.totalorder %s33, %s36
    %p42 = scmp.eq.s32.totalorder %s11, 0
    %p43 = por %p41, %p42
    %p44 = scmp.ne.s32.totalorder %s33, %s36
    %p45 = scmp.eq.s32.totalorder %s16, 1
    %p46 = por %p44, %p45
    %p47 = scmp.ne.s32.totalorder %s36, %s37
    %p48 = scmp.eq.s32.totalorder %s16, 0
    %p49 = por %p47, %p48
    %p50 = scmp.ne.s32.totalorder %s36, %s37
    %p51 = scmp.eq.s32.totalorder %s17, 1
    %p52 = por %p50, %p51
    %p54 = scmp.ne.s32.totalorder %s37, %s53
    %p55 = scmp.eq.s32.totalorder %s17, 0
    %p56 = por %p54, %p55
    %s57 = ssub.s32 %s19, %s26
    %p58 = scmp.eq.s32.totalorder %s57, 0
    %s60 = sadd.s32 %s59, 1
    %s61 = scalar_select %p58, %s59, %s60
    %p64 = pneg %p58
    %p65 = scmp.eq.s32.totalorder %s11, 1
    %p66 = por %p64, %p65
    %p67 = scmp.ne.s32.totalorder %s59, %s62
    %p68 = scmp.eq.s32.totalorder %s11, 0
    %p69 = por %p67, %p68
    %p70 = scmp.ne.s32.totalorder %s59, %s62
    %p71 = scmp.eq.s32.totalorder %s16, 1
    %p72 = por %p70, %p71
    %p73 = scmp.ne.s32.totalorder %s62, %s63
    %p74 = scmp.eq.s32.totalorder %s16, 0
    %p75 = por %p73, %p74
    %p76 = scmp.ne.s32.totalorder %s62, %s63
    %p77 = scmp.eq.s32.totalorder %s17, 1
    %p78 = por %p76, %p77
    %p80 = scmp.ne.s32.totalorder %s63, %s79
    %p81 = scmp.eq.s32.totalorder %s17, 0
    %p82 = por %p80, %p81
    %s83 = ssub.s32 %s19, %s26
    %p84 = scmp.eq.s32.totalorder %s83, 0
    %s86 = sadd.s32 %s85, 1
    %s87 = scalar_select %p84, %s85, %s86
    %p90 = pneg %p84
    %p91 = scmp.eq.s32.totalorder %s11, 1
    %p92 = por %p90, %p91
    %p93 = scmp.ne.s32.totalorder %s85, %s88
    %p94 = scmp.eq.s32.totalorder %s11, 0
    %p95 = por %p93, %p94
    %p96 = scmp.ne.s32.totalorder %s85, %s88
    %p97 = scmp.eq.s32.totalorder %s16, 1
    %p98 = por %p96, %p97
    %p99 = scmp.ne.s32.totalorder %s88, %s89
    %p100 = scmp.eq.s32.totalorder %s16, 0
    %p101 = por %p99, %p100
    %p102 = scmp.ne.s32.totalorder %s88, %s89
    %p103 = scmp.eq.s32.totalorder %s17, 1
    %p104 = por %p102, %p103
    %p106 = scmp.ne.s32.totalorder %s89, %s105
    %p107 = scmp.eq.s32.totalorder %s17, 0
    %p108 = por %p106, %p107
    %s109 = ssub.s32 %s19, %s26
    %p110 = scmp.eq.s32.totalorder %s109, 0
    %s112 = sadd.s32 %s111, 1
    %s113 = scalar_select %p110, %s111, %s112
    %p116 = pneg %p110
    %p117 = scmp.eq.s32.totalorder %s11, 1
    %p118 = por %p116, %p117
    %p119 = scmp.ne.s32.totalorder %s111, %s114
    %p120 = scmp.eq.s32.totalorder %s11, 0
    %p121 = por %p119, %p120
    %p122 = scmp.ne.s32.totalorder %s111, %s114
    %p123 = scmp.eq.s32.totalorder %s16, 1
    %p124 = por %p122, %p123
    %p125 = scmp.ne.s32.totalorder %s114, %s115
    %p126 = scmp.eq.s32.totalorder %s16, 0
    %p127 = por %p125, %p126
    %p128 = scmp.ne.s32.totalorder %s114, %s115
    %p129 = scmp.eq.s32.totalorder %s17, 1
    %p130 = por %p128, %p129
    %p132 = scmp.ne.s32.totalorder %s115, %s131
    %p133 = scmp.eq.s32.totalorder %s17, 0
    %p134 = por %p132, %p133
    %s135 = ssub.s32 %s19, %s26
    %p136 = scmp.eq.s32.totalorder %s135, 0
    %s138 = sadd.s32 %s137, 1
    %s139 = scalar_select %p136, %s137, %s138
    %p142 = pneg %p136
    %p143 = scmp.eq.s32.totalorder %s11, 1
    %p144 = por %p142, %p143
    %p145 = scmp.ne.s32.totalorder %s137, %s140
    %p146 = scmp.eq.s32.totalorder %s11, 0
    %p147 = por %p145, %p146
    %p148 = scmp.ne.s32.totalorder %s137, %s140
    %p149 = scmp.eq.s32.totalorder %s16, 1
    %p150 = por %p148, %p149
    %p151 = scmp.ne.s32.totalorder %s140, %s141
    %p152 = scmp.eq.s32.totalorder %s16, 0
    %p153 = por %p151, %p152
    %p154 = scmp.ne.s32.totalorder %s140, %s141
    %p155 = scmp.eq.s32.totalorder %s17, 1
    %p156 = por %p154, %p155
    %p158 = scmp.ne.s32.totalorder %s141, %s157
    %p159 = scmp.eq.s32.totalorder %s17, 0
    %p160 = por %p158, %p159
    %s161 = ssub.s32 %s18, %s30
    %s162 = ssub.s32 %s19, %s26
    %s163 = sor.u32 %s161, %s162
    %p164 = scmp.eq.s32.totalorder %s163, 0
    %s166 = sadd.s32 %s165, 1
    %s167 = scalar_select %p164, %s165, %s166
    %p170 = pneg %p164
    %p171 = scmp.eq.s32.totalorder %s11, 1
    %p172 = por %p170, %p171
    %p173 = scmp.ne.s32.totalorder %s165, %s168
    %p174 = scmp.eq.s32.totalorder %s11, 0
    %p175 = por %p173, %p174
    %p176 = scmp.ne.s32.totalorder %s165, %s168
    %p177 = scmp.eq.s32.totalorder %s16, 1
    %p178 = por %p176, %p177
    %p179 = scmp.ne.s32.totalorder %s168, %s169
    %p180 = scmp.eq.s32.totalorder %s16, 0
    %p181 = por %p179, %p180
    %p182 = scmp.ne.s32.totalorder %s168, %s169
    %p183 = scmp.eq.s32.totalorder %s17, 1
    %p184 = por %p182, %p183
    %p186 = scmp.ne.s32.totalorder %s169, %s185
    %p187 = scmp.eq.s32.totalorder %s17, 0
    %p188 = por %p186, %p187
    %p189 = scmp.le.s32.totalorder 1, %s11
    %p190 = scmp.lt.s32.totalorder %s11, 3
    %p191 = pnand %p189, %p190
    %p192 = pneg %p191
    // Predicated region
    $region9: #{ecapa_forward.18} parent=5 // pred_check
      _
    $region10: #{ecapa_forward.18} parent=5 // pred_check_branch
      %194 = sbr.rel (%p191) target = $region12
    $region11: #{ecapa_forward.18} parent=5 // pred_region
      %s195 = ssub.s32 %s11, 1
      // Predicated region
      $region13: #{ecapa_forward.18} parent=11 // pred_check
        %p196 = pneg %p75
      $region14: #{ecapa_forward.18} parent=11 // pred_check_branch
        %198 = sbr.rel (%p196) target = $region16
      $region15: #{ecapa_forward.18} parent=11 // pred_region
        %p199 = scmp.lt.s32.totalorder %s21, 0
        %s200 = scalar_select %p199, %s21, 0
        %s201 = smul.addr %s200, 4
        %s202 = scalar_lea.vmem %s1, %s201
      $region16: #{ecapa_forward.18} parent=11 // pred_fallthru
        _
      // Predicated region
      $region17: #{ecapa_forward.18} parent=11 // pred_check
        %p203 = pneg %p101
      $region18: #{ecapa_forward.18} parent=11 // pred_check_branch
        %205 = sbr.rel (%p203) target = $region20
      $region19: #{ecapa_forward.18} parent=11 // pred_region
        %p206 = scmp.lt.s32.totalorder %s21, 0
        %s207 = scalar_select %p206, %s21, 0
        %s208 = scalar_lea.vmem %s2, %s207
      $region20: #{ecapa_forward.18} parent=11 // pred_fallthru
        _
      // Predicated region
      $region21: #{ecapa_forward.18} parent=11 // pred_check
        %p209 = pneg %p127
      $region22: #{ecapa_forward.18} parent=11 // pred_check_branch
        %211 = sbr.rel (%p209) target = $region24
      $region23: #{ecapa_forward.18} parent=11 // pred_region
        %p212 = scmp.lt.s32.totalorder %s21, 0
        %s213 = scalar_select %p212, %s21, 0
        %s214 = scalar_lea.vmem %s3, %s213
      $region24: #{ecapa_forward.18} parent=11 // pred_fallthru
        _
      // Predicated region
      $region25: #{ecapa_forward.18} parent=11 // pred_check
        %p215 = pneg %p153
      $region26: #{ecapa_forward.18} parent=11 // pred_check_branch
        %217 = sbr.rel (%p215) target = $region28
      $region27: #{ecapa_forward.18} parent=11 // pred_region
        %p218 = scmp.lt.s32.totalorder %s21, 0
        %s219 = scalar_select %p218, %s21, 0
        %s220 = scalar_lea.vmem %s4, %s219
      $region28: #{ecapa_forward.18} parent=11 // pred_fallthru
        _
    $region12: #{ecapa_forward.18} parent=5 // pred_fallthru
      _
    %p221 = scmp.lt.s32.totalorder %s11, 2
    // Predicated region
    $region29: #{ecapa_forward.18} parent=5 // pred_check
      %p222 = pneg %p221
    $region30: #{ecapa_forward.18} parent=5 // pred_check_branch
      %224 = sbr.rel (%p222) target = $region32
    $region31: #{ecapa_forward.18} parent=5 // pred_region
      // Predicated region
      $region33: #{ecapa_forward.18} parent=31 // pred_check
        %p225 = pneg %p43
      $region34: #{ecapa_forward.18} parent=31 // pred_check_branch
        %227 = sbr.rel (%p225) target = $region36
      $region35: #{ecapa_forward.18} parent=31 // pred_region
        %p228 = scmp.lt.s32.totalorder %s18, 1
        %s229 = scalar_select %p228, %s18, 1
        %s230 = smul.addr %s229, 4
        %s231 = smul.addr %s230, 4
        %s232 = scalar_lea.vmem %s0, %s231
      $region36: #{ecapa_forward.18} parent=31 // pred_fallthru
        _
    $region32: #{ecapa_forward.18} parent=5 // pred_fallthru
      _
    %p233 = scmp.le.s32.totalorder 1, %s11
    %p234 = scmp.lt.s32.totalorder %s11, 3
    %p235 = pnand %p233, %p234
    %p236 = pneg %p235
    // Predicated region
    $region37: #{ecapa_forward.18} parent=5 // pred_check
      _
    $region38: #{ecapa_forward.18} parent=5 // pred_check_branch
      %238 = sbr.rel (%p235) target = $region40
    $region39: #{ecapa_forward.18} parent=5 // pred_region
      %s239 = ssub.s32 %s11, 1
      %p240 = scmp.lt.s32.totalorder %s20, 1
      %s241 = scalar_select %p240, %s20, 1
      %s242 = smul.addr %s241, 4
      %s243 = smul.addr %s242, 4
      %s244 = scalar_lea.vmem %s0, %s243
      %p245 = pneg %p49
      %p246 = pneg %p46
      %p247 = scmp.lt.s32.totalorder %s21, 0
      %s248 = scalar_select %p247, %s21, 0
      %s249 = smul.addr %s248, 4
      %s250 = scalar_lea.vmem %s1, %s249
      %p251 = pneg %p75
      %p252 = pneg %p72
      %p253 = scmp.lt.s32.totalorder %s21, 0
      %s254 = scalar_select %p253, %s21, 0
      %s255 = scalar_lea.vmem %s2, %s254
      %p256 = pneg %p101
      %p257 = pneg %p98
      %p258 = scmp.lt.s32.totalorder %s21, 0
      %s259 = scalar_select %p258, %s21, 0
      %s260 = scalar_lea.vmem %s3, %s259
      %p261 = pneg %p127
      %p262 = pneg %p124
      %p263 = scmp.lt.s32.totalorder %s21, 0
      %s264 = scalar_select %p263, %s21, 0
      %s265 = scalar_lea.vmem %s4, %s264
      %p266 = pneg %p153
      %p267 = pneg %p150
      %p268 = pneg %p181
      %p269 = pneg %p178
      %p270 = scmp.lt.s32.totalorder %s20, 1
      %s271 = scalar_select %p270, %s20, 1
      %p272 = scmp.lt.s32.totalorder %s21, 0
      %s273 = scalar_select %p272, %s21, 0
      %s274 = smul.addr %s271, 4
      %s275 = sadd.s32 %s273, %s274
      %s276 = smul.addr %s275, 4
      %s277 = scalar_lea.vmem %s5, %s276
      %p278 = scmp.lt.s32.totalorder %s20, 1
      %s279 = scalar_select %p278, %s20, 1
      %s280 = smul.addr %s279, 4
      %s281 = smul.addr %s280, 4
      %s282 = scalar_lea.vmem %s0, %s281
      %p283 = scmp.lt.s32.totalorder %s21, 0
      %s284 = scalar_select %p283, %s21, 0
      %s285 = smul.addr %s284, 4
      %s286 = scalar_lea.vmem %s1, %s285
      %p287 = scmp.lt.s32.totalorder %s21, 0
      %s288 = scalar_select %p287, %s21, 0
      %s289 = scalar_lea.vmem %s2, %s288
      %p290 = scmp.lt.s32.totalorder %s21, 0
      %s291 = scalar_select %p290, %s21, 0
      %s292 = scalar_lea.vmem %s3, %s291
      %p293 = scmp.lt.s32.totalorder %s21, 0
      %s294 = scalar_select %p293, %s21, 0
      %s295 = scalar_lea.vmem %s4, %s294
      %p296 = scmp.lt.s32.totalorder %s20, 1
      %s297 = scalar_select %p296, %s20, 1
      %p298 = scmp.lt.s32.totalorder %s21, 0
      %s299 = scalar_select %p298, %s21, 0
      %s300 = smul.addr %s297, 4
      %s301 = sadd.s32 %s299, %s300
      %s302 = smul.addr %s301, 4
      %s303 = scalar_lea.vmem %s5, %s302
      %v305 = vld [vmem:[%s282] sm:$0xf]
      %v306 = vld [vmem:[%s282 + $0x4] sm:$0xf]
      %v307 = vld [vmem:[%s282 + $0x8] sm:$0xf]
      %v308 = vld [vmem:[%s282 + $0xc] sm:$0xf]
      %309 = vst [vmem:[#allocation2] sm:$0xff] 0.0
      %310 = vst [vmem:[#allocation2 + $0x8] sm:$0xff] 0.0
      %311 = vst [vmem:[#allocation2 + $0x10] sm:$0xff] 0.0
      %312 = vst [vmem:[#allocation2 + $0x18] sm:$0xff] 0.0
      %313 = vst [vmem:[#allocation2 + $0x20] sm:$0xf] 0.0
      %v314 = vunpack.c.l.bf16 %v305
      %v315 = vunpack.c.l.bf16 %v306
      %v316 = vunpack.c.l.bf16 %v307
      %v317 = vunpack.c.l.bf16 %v308
      %318 = vst [vmem:[#allocation2 + $0x2] sm:$0xff] %v314
      %319 = vst [vmem:[#allocation2 + $0xa] sm:$0xff] %v315
      %320 = vst [vmem:[#allocation2 + $0x12] sm:$0xff] %v316
      %321 = vst [vmem:[#allocation2 + $0x1a] sm:$0xff] %v317
      %v322 = vld [vmem:[#allocation2] sm:$0xff]
      %v323 = vld [vmem:[#allocation2 + $0x8] sm:$0xff]
      %v324 = vld [vmem:[#allocation2 + $0x10] sm:$0xff]
      %v325 = vld [vmem:[#allocation2 + $0x18] sm:$0xff]
      %v326 = vpack.c.bf16 %v323, %v322
      %v327 = vpack.c.bf16 %v325, %v324
      %v328 = vld [vmem:[#allocation2 + $0x2] sm:$0xff]
      %v329 = vld [vmem:[#allocation2 + $0xa] sm:$0xff]
      %v330 = vld [vmem:[#allocation2 + $0x12] sm:$0xff]
      %v331 = vld [vmem:[#allocation2 + $0x1a] sm:$0xff]
      %v332 = vpack.c.bf16 %v329, %v328
      %v333 = vpack.c.bf16 %v331, %v330
      %v334 = vld [vmem:[#allocation2 + $0x4] sm:$0xff]
      %v335 = vld [vmem:[#allocation2 + $0xc] sm:$0xff]
      %v336 = vld [vmem:[#allocation2 + $0x14] sm:$0xff]
      %v337 = vld [vmem:[#allocation2 + $0x1c] sm:$0xff]
      %v338 = vpack.c.bf16 %v335, %v334
      %v339 = vpack.c.bf16 %v337, %v336
      %v340 = vld [vmem:[%s286] sm:$0xf]
      %v341 = vld [vmem:[%s286 + $0x4] sm:$0xf]
      %v342 = vld [vmem:[%s286 + $0x8] sm:$0xf]
      %v343 = vld [vmem:[%s286 + $0xc] sm:$0xf]
      %v344 = vld [vmem:[%s286 + $0x10] sm:$0xf]
      %v345 = vld [vmem:[%s286 + $0x14] sm:$0xf]
      %v346 = vld [vmem:[%s286 + $0x18] sm:$0xf]
      %v347 = vld [vmem:[%s286 + $0x1c] sm:$0xf]
      %v348 = vld [vmem:[%s286 + $0x20] sm:$0xf]
      %v349 = vld [vmem:[%s286 + $0x24] sm:$0xf]
      %v350 = vld [vmem:[%s286 + $0x28] sm:$0xf]
      %v351 = vld [vmem:[%s286 + $0x2c] sm:$0xf]
      %v352 = vld [vmem:[%s286 + $0x30] sm:$0xf]
      %v353 = vld [vmem:[%s286 + $0x34] sm:$0xf]
      %v354 = vld [vmem:[%s286 + $0x38] sm:$0xf]
      %v355 = vld [vmem:[%s286 + $0x3c] sm:$0xf]
      %s356 = scalar_lea.vmem %s286, 64
      %v357 = vld [vmem:[%s356] sm:$0xf]
      %v358 = vld [vmem:[%s356 + $0x4] sm:$0xf]
      %v359 = vld [vmem:[%s356 + $0x8] sm:$0xf]
      %v360 = vld [vmem:[%s356 + $0xc] sm:$0xf]
      %v361 = vld [vmem:[%s356 + $0x10] sm:$0xf]
      %v362 = vld [vmem:[%s356 + $0x14] sm:$0xf]
      %v363 = vld [vmem:[%s356 + $0x18] sm:$0xf]
      %v364 = vld [vmem:[%s356 + $0x1c] sm:$0xf]
      %v365 = vld [vmem:[%s356 + $0x20] sm:$0xf]
      %v366 = vld [vmem:[%s356 + $0x24] sm:$0xf]
      %v367 = vld [vmem:[%s356 + $0x28] sm:$0xf]
      %v368 = vld [vmem:[%s356 + $0x2c] sm:$0xf]
      %v369 = vld [vmem:[%s356 + $0x30] sm:$0xf]
      %v370 = vld [vmem:[%s356 + $0x34] sm:$0xf]
      %v371 = vld [vmem:[%s356 + $0x38] sm:$0xf]
      %v372 = vld [vmem:[%s356 + $0x3c] sm:$0xf]
      %v389 = vunpack.c.l.b16 %v357
      %v390 = vunpack.c.l.b16 %v358
      %v391 = vunpack.c.l.b16 %v359
      %v392 = vunpack.c.l.b16 %v360
      %v393 = vunpack.c.l.b16 %v361
      %v394 = vunpack.c.l.b16 %v362
      %v395 = vunpack.c.l.b16 %v363
      %v396 = vunpack.c.l.b16 %v364
      %v397 = vunpack.c.l.b16 %v365
      %v398 = vunpack.c.l.b16 %v366
      %v399 = vunpack.c.l.b16 %v367
      %v400 = vunpack.c.l.b16 %v368
      %v401 = vunpack.c.l.b16 %v369
      %v402 = vunpack.c.l.b16 %v370
      %v403 = vunpack.c.l.b16 %v371
      %v404 = vunpack.c.l.b16 %v372
      %v405 = vpack.c.b16 %v390, %v389
      %v406 = vpack.c.b16 %v392, %v391
      %v407 = vpack.c.b16 %v394, %v393
      %v408 = vpack.c.b16 %v396, %v395
      %v409 = vpack.c.b16 %v398, %v397
      %v410 = vpack.c.b16 %v400, %v399
      %v411 = vpack.c.b16 %v402, %v401
      %v412 = vpack.c.b16 %v404, %v403
      %421 = vmatprep.subr.bf16.mxu0 0
      %422 = vmatpush1.bf16.msra.mxu0 %v412
      %423 = vmatprep.subr.bf16.mxu0 0
      %424 = vmatpush1.bf16.msra.mxu0 %v411
      %425 = vmatprep.subr.bf16.mxu0 0
      %426 = vmatpush1.bf16.msra.mxu0 %v410
      %427 = vmatprep.subr.bf16.mxu0 0
      %428 = vmatpush1.bf16.msra.mxu0 %v409
      %429 = vmatprep.subr.bf16.mxu0 0
      %430 = vmatpush1.bf16.msra.mxu0 %v408
      %431 = vmatprep.subr.bf16.mxu0 0
      %432 = vmatpush1.bf16.msra.mxu0 %v407
      %433 = vmatprep.subr.bf16.mxu0 0
      %434 = vmatpush1.bf16.msra.mxu0 %v406
      %435 = vmatprep.subr.bf16.mxu0 0
      %436 = vmatpush1.bf16.msra.mxu0 %v405
      %437 = vmatprep.subr.bf16.mxu0 0
      %438 = vmatpush2.bf16.msra.mxu0 0
      %439 = vmatprep.subr.bf16.mxu0 0
      %440 = vmatpush2.bf16.msra.mxu0 0
      %441 = vmatprep.subr.bf16.mxu0 0
      %442 = vmatpush2.bf16.msra.mxu0 0
      %443 = vmatprep.subr.bf16.mxu0 0
      %444 = vmatpush2.bf16.msra.mxu0 0
      %445 = vmatprep.subr.bf16.mxu0 0
      %446 = vmatpush2.bf16.msra.mxu0 0
      %447 = vmatprep.subr.bf16.mxu0 0
      %448 = vmatpush2.bf16.msra.mxu0 0
      %449 = vmatprep.subr.bf16.mxu0 0
      %450 = vmatpush2.bf16.msra.mxu0 0
      %451 = vmatprep.subr.bf16.mxu0 0
      %452 = vmatpush2.bf16.msra.mxu0 0
      %453 = vmatprep.mubr.bf16.mxu0 0
      %454 = vmatmul.mubr.bf16.gmra.mxu0 %v332
      %v455 = vpop.f32.mrf.mxu0
      %v456 = vadd.f32 0.0, %v455
      %v457 = vpop.f32.mrf.mxu0
      %v458 = vpop.f32.mrf.mxu0
      %v459 = vadd.f32 0.0, %v458
      %v460 = vpop.f32.mrf.mxu0
      %461 = vmatprep.mubr.bf16.mxu0 0
      %462 = vmatmul.mubr.bf16.gmra.mxu0 %v333
      %v463 = vpop.f32.mrf.mxu0
      %v464 = vadd.f32 0.0, %v463
      %v465 = vpop.f32.mrf.mxu0
      %v466 = vpop.f32.mrf.mxu0
      %v467 = vadd.f32 0.0, %v466
      %v468 = vpop.f32.mrf.mxu0
      %469 = vdwg.mxu0
      %v486 = vunpack.c.l.b16 %v340
      %v487 = vunpack.c.l.b16 %v341
      %v488 = vunpack.c.l.b16 %v342
      %v489 = vunpack.c.l.b16 %v343
      %v490 = vunpack.c.l.b16 %v344
      %v491 = vunpack.c.l.b16 %v345
      %v492 = vunpack.c.l.b16 %v346
      %v493 = vunpack.c.l.b16 %v347
      %v494 = vunpack.c.l.b16 %v348
      %v495 = vunpack.c.l.b16 %v349
      %v496 = vunpack.c.l.b16 %v350
      %v497 = vunpack.c.l.b16 %v351
      %v498 = vunpack.c.l.b16 %v352
      %v499 = vunpack.c.l.b16 %v353
      %v500 = vunpack.c.l.b16 %v354
      %v501 = vunpack.c.l.b16 %v355
      %v502 = vpack.c.b16 %v487, %v486
      %v503 = vpack.c.b16 %v489, %v488
      %v504 = vpack.c.b16 %v491, %v490
      %v505 = vpack.c.b16 %v493, %v492
      %v506 = vpack.c.b16 %v495, %v494
      %v507 = vpack.c.b16 %v497, %v496
      %v508 = vpack.c.b16 %v499, %v498
      %v509 = vpack.c.b16 %v501, %v500
      %518 = vmatprep.subr.bf16.mxu0 0
      %519 = vmatpush1.bf16.msra.mxu0 %v509
      %520 = vmatprep.subr.bf16.mxu0 0
      %521 = vmatpush1.bf16.msra.mxu0 %v508
      %522 = vmatprep.subr.bf16.mxu0 0
      %523 = vmatpush1.bf16.msra.mxu0 %v507
      %524 = vmatprep.subr.bf16.mxu0 0
      %525 = vmatpush1.bf16.msra.mxu0 %v506
      %526 = vmatprep.subr.bf16.mxu0 0
      %527 = vmatpush1.bf16.msra.mxu0 %v505
      %528 = vmatprep.subr.bf16.mxu0 0
      %529 = vmatpush1.bf16.msra.mxu0 %v504
      %530 = vmatprep.subr.bf16.mxu0 0
      %531 = vmatpush1.bf16.msra.mxu0 %v503
      %532 = vmatprep.subr.bf16.mxu0 0
      %533 = vmatpush1.bf16.msra.mxu0 %v502
      %534 = vmatprep.subr.bf16.mxu0 0
      %535 = vmatpush2.bf16.msra.mxu0 0
      %536 = vmatprep.subr.bf16.mxu0 0
      %537 = vmatpush2.bf16.msra.mxu0 0
      %538 = vmatprep.subr.bf16.mxu0 0
      %539 = vmatpush2.bf16.msra.mxu0 0
      %540 = vmatprep.subr.bf16.mxu0 0
      %541 = vmatpush2.bf16.msra.mxu0 0
      %542 = vmatprep.subr.bf16.mxu0 0
      %543 = vmatpush2.bf16.msra.mxu0 0
      %544 = vmatprep.subr.bf16.mxu0 0
      %545 = vmatpush2.bf16.msra.mxu0 0
      %546 = vmatprep.subr.bf16.mxu0 0
      %547 = vmatpush2.bf16.msra.mxu0 0
      %548 = vmatprep.subr.bf16.mxu0 0
      %549 = vmatpush2.bf16.msra.mxu0 0
      %550 = vmatprep.mubr.bf16.mxu0 0
      %551 = vmatmul.mubr.bf16.gmra.mxu0 %v326
      %v552 = vpop.f32.mrf.mxu0
      %v553 = vadd.f32 %v456, %v552
      %v554 = vpop.f32.mrf.mxu0
      %v555 = vpop.f32.mrf.mxu0
      %v556 = vadd.f32 %v459, %v555
      %v557 = vpop.f32.mrf.mxu0
      %558 = vmatprep.mubr.bf16.mxu0 0
      %559 = vmatmul.mubr.bf16.gmra.mxu0 %v327
      %v560 = vpop.f32.mrf.mxu0
      %v561 = vadd.f32 %v464, %v560
      %v562 = vpop.f32.mrf.mxu0
      %v563 = vpop.f32.mrf.mxu0
      %v564 = vadd.f32 %v467, %v563
      %v565 = vpop.f32.mrf.mxu0
      %566 = vdwg.mxu0
      %s567 = scalar_lea.vmem %s286, 128
      %v568 = vld [vmem:[%s567] sm:$0xf]
      %v569 = vld [vmem:[%s567 + $0x4] sm:$0xf]
      %v570 = vld [vmem:[%s567 + $0x8] sm:$0xf]
      %v571 = vld [vmem:[%s567 + $0xc] sm:$0xf]
      %v572 = vld [vmem:[%s567 + $0x10] sm:$0xf]
      %v573 = vld [vmem:[%s567 + $0x14] sm:$0xf]
      %v574 = vld [vmem:[%s567 + $0x18] sm:$0xf]
      %v575 = vld [vmem:[%s567 + $0x1c] sm:$0xf]
      %v576 = vld [vmem:[%s567 + $0x20] sm:$0xf]
      %v577 = vld [vmem:[%s567 + $0x24] sm:$0xf]
      %v578 = vld [vmem:[%s567 + $0x28] sm:$0xf]
      %v579 = vld [vmem:[%s567 + $0x2c] sm:$0xf]
      %v580 = vld [vmem:[%s567 + $0x30] sm:$0xf]
      %v581 = vld [vmem:[%s567 + $0x34] sm:$0xf]
      %v582 = vld [vmem:[%s567 + $0x38] sm:$0xf]
      %v583 = vld [vmem:[%s567 + $0x3c] sm:$0xf]
      %v600 = vunpack.c.l.b16 %v568
      %v601 = vunpack.c.l.b16 %v569
      %v602 = vunpack.c.l.b16 %v570
      %v603 = vunpack.c.l.b16 %v571
      %v604 = vunpack.c.l.b16 %v572
      %v605 = vunpack.c.l.b16 %v573
      %v606 = vunpack.c.l.b16 %v574
      %v607 = vunpack.c.l.b16 %v575
      %v608 = vunpack.c.l.b16 %v576
      %v609 = vunpack.c.l.b16 %v577
      %v610 = vunpack.c.l.b16 %v578
      %v611 = vunpack.c.l.b16 %v579
      %v612 = vunpack.c.l.b16 %v580
      %v613 = vunpack.c.l.b16 %v581
      %v614 = vunpack.c.l.b16 %v582
      %v615 = vunpack.c.l.b16 %v583
      %v616 = vpack.c.b16 %v601, %v600
      %v617 = vpack.c.b16 %v603, %v602
      %v618 = vpack.c.b16 %v605, %v604
      %v619 = vpack.c.b16 %v607, %v606
      %v620 = vpack.c.b16 %v609, %v608
      %v621 = vpack.c.b16 %v611, %v610
      %v622 = vpack.c.b16 %v613, %v612
      %v623 = vpack.c.b16 %v615, %v614
      %632 = vmatprep.subr.bf16.mxu0 0
      %633 = vmatpush1.bf16.msra.mxu0 %v623
      %634 = vmatprep.subr.bf16.mxu0 0
      %635 = vmatpush1.bf16.msra.mxu0 %v622
      %636 = vmatprep.subr.bf16.mxu0 0
      %637 = vmatpush1.bf16.msra.mxu0 %v621
      %638 = vmatprep.subr.bf16.mxu0 0
      %639 = vmatpush1.bf16.msra.mxu0 %v620
      %640 = vmatprep.subr.bf16.mxu0 0
      %641 = vmatpush1.bf16.msra.mxu0 %v619
      %642 = vmatprep.subr.bf16.mxu0 0
      %643 = vmatpush1.bf16.msra.mxu0 %v618
      %644 = vmatprep.subr.bf16.mxu0 0
      %645 = vmatpush1.bf16.msra.mxu0 %v617
      %646 = vmatprep.subr.bf16.mxu0 0
      %647 = vmatpush1.bf16.msra.mxu0 %v616
      %648 = vmatprep.subr.bf16.mxu0 0
      %649 = vmatpush2.bf16.msra.mxu0 0
      %650 = vmatprep.subr.bf16.mxu0 0
      %651 = vmatpush2.bf16.msra.mxu0 0
      %652 = vmatprep.subr.bf16.mxu0 0
      %653 = vmatpush2.bf16.msra.mxu0 0
      %654 = vmatprep.subr.bf16.mxu0 0
      %655 = vmatpush2.bf16.msra.mxu0 0
      %656 = vmatprep.subr.bf16.mxu0 0
      %657 = vmatpush2.bf16.msra.mxu0 0
      %658 = vmatprep.subr.bf16.mxu0 0
      %659 = vmatpush2.bf16.msra.mxu0 0
      %660 = vmatprep.subr.bf16.mxu0 0
      %661 = vmatpush2.bf16.msra.mxu0 0
      %662 = vmatprep.subr.bf16.mxu0 0
      %663 = vmatpush2.bf16.msra.mxu0 0
      %664 = vmatprep.mubr.bf16.mxu0 0
      %665 = vmatmul.mubr.bf16.gmra.mxu0 %v338
      %v666 = vpop.f32.mrf.mxu0
      %v667 = vadd.f32 0.0, %v666
      %v668 = vpop.f32.mrf.mxu0
      %v669 = vpop.f32.mrf.mxu0
      %v670 = vadd.f32 0.0, %v669
      %v671 = vpop.f32.mrf.mxu0
      %672 = vmatprep.mubr.bf16.mxu0 0
      %673 = vmatmul.mubr.bf16.gmra.mxu0 %v339
      %v674 = vpop.f32.mrf.mxu0
      %v675 = vadd.f32 0.0, %v674
      %v676 = vpop.f32.mrf.mxu0
      %v677 = vpop.f32.mrf.mxu0
      %v678 = vadd.f32 0.0, %v677
      %v679 = vpop.f32.mrf.mxu0
      %680 = vdwg.mxu0
      %v681 = vadd.f32 %v553, %v667
      %v682 = vadd.f32 %v556, %v670
      %v683 = vadd.f32 %v561, %v675
      %v684 = vadd.f32 %v564, %v678
      %v685 = vld [vmem:[%s289] sm:$0x1]
      %v687 = vlaneseq
      %v688 = vshrl.u32 %v687, 7
      %v689 = vsub.s32 0, %v688
      %v690 = vrot.slane %v685, %v689
      %v692 = vadd.f32 %v681, %v690
      %v693 = vadd.f32 %v682, %v690
      %v694 = vadd.f32 %v683, %v690
      %v695 = vadd.f32 %v684, %v690
      %v696 = vmax.f32 %v692, 0.0
      %v697 = vmax.f32 %v693, 0.0
      %v698 = vmax.f32 %v694, 0.0
      %v699 = vmax.f32 %v695, 0.0
      %v700 = vld [vmem:[%s292] sm:$0x1]
      %v702 = vlaneseq
      %v703 = vshrl.u32 %v702, 7
      %v704 = vsub.s32 0, %v703
      %v705 = vrot.slane %v700, %v704
      %v707 = vmul.f32 %v696, %v705
      %v708 = vmul.f32 %v697, %v705
      %v709 = vmul.f32 %v698, %v705
      %v710 = vmul.f32 %v699, %v705
      %v711 = vld [vmem:[%s295] sm:$0x1]
      %v713 = vlaneseq
      %v714 = vshrl.u32 %v713, 7
      %v715 = vsub.s32 0, %v714
      %v716 = vrot.slane %v711, %v715
      %v718 = vadd.f32 %v707, %v716
      %v719 = vadd.f32 %v708, %v716
      %v720 = vadd.f32 %v709, %v716
      %v721 = vadd.f32 %v710, %v716
      %v722 = vpack.c.bf16 %v719, %v718
      %v723 = vpack.c.bf16 %v721, %v720
      %v726 = vunpack.c.l.b16 %v722
      %v727 = vunpack.c.h.b16 %v722
      %v728 = vunpack.c.l.b16 %v723
      %v729 = vunpack.c.h.b16 %v723
      %v730 = vpack.c.b16 %v726, %v726
      %v731 = vpack.c.b16 %v727, %v727
      %v732 = vpack.c.b16 %v728, %v728
      %v733 = vpack.c.b16 %v729, %v729
      %738 = vst [vmem:[%s303] sm:$0xf] %v730
      %739 = vst [vmem:[%s303 + $0x4] sm:$0xf] %v731
      %740 = vst [vmem:[%s303 + $0x8] sm:$0xf] %v732
      %741 = vst [vmem:[%s303 + $0xc] sm:$0xf] %v733
      %p742 = scmp.lt.s32.totalorder %s20, 1
      %s743 = scalar_select %p742, %s20, 1
      %p744 = scmp.lt.s32.totalorder %s21, 0
      %s745 = scalar_select %p744, %s21, 0
      %s746 = smul.addr %s743, 4
      %s747 = sadd.s32 %s745, %s746
      %s748 = smul.addr %s747, 4
      %s749 = scalar_lea.vmem %s5, %s748
      // Predicated region
      $region41: #{ecapa_forward.18} parent=39 // pred_check
        %p750 = pneg %p178
      $region42: #{ecapa_forward.18} parent=39 // pred_check_branch
        %752 = sbr.rel (%p750) target = $region44
      $region43: #{ecapa_forward.18} parent=39 // pred_region
        _
      $region44: #{ecapa_forward.18} parent=39 // pred_fallthru
        _
    $region40: #{ecapa_forward.18} parent=5 // pred_fallthru
      _
    %p753 = scmp.le.s32.totalorder 2, %s11
    // Predicated region
    $region45: #{ecapa_forward.18} parent=5 // pred_check
      %p754 = pneg %p753
    $region46: #{ecapa_forward.18} parent=5 // pred_check_branch
      %756 = sbr.rel (%p754) target = $region48
    $region47: #{ecapa_forward.18} parent=5 // pred_region
      %s757 = ssub.s32 %s11, 2
      // Predicated region
      $region49: #{ecapa_forward.18} parent=47 // pred_check
        %p758 = pneg %p184
      $region50: #{ecapa_forward.18} parent=47 // pred_check_branch
        %760 = sbr.rel (%p758) target = $region52
      $region51: #{ecapa_forward.18} parent=47 // pred_region
        %p761 = scmp.lt.s32.totalorder %s22, 1
        %s762 = scalar_select %p761, %s22, 1
        %p763 = scmp.lt.s32.totalorder %s23, 0
        %s764 = scalar_select %p763, %s23, 0
        %s765 = smul.addr %s762, 4
        %s766 = sadd.s32 %s764, %s765
        %s767 = smul.addr %s766, 4
        %s768 = scalar_lea.vmem %s5, %s767
      $region52: #{ecapa_forward.18} parent=47 // pred_fallthru
        _
    $region48: #{ecapa_forward.18} parent=5 // pred_fallthru
      _
  $region6: #{ecapa_forward.18} parent=0 // loop_footer
    %s15 = sadd.s32 1, %s11
  $region7: #{ecapa_forward.18} parent=0 // loop_footer_branch
    %10 = sbr.rel target = $region3
  $region8: #{ecapa_forward.18} parent=0 // loop_exit
    _

// kernel: ecapa_forward.21
$region0: #{ecapa_forward.21}
  #allocation0 [shape = 'u32[]', space=smem, size = 0x4, offset = 0x4, fixed_abs, tag = 'smem constant byte address 0x4 - core index']
  #allocation1 [shape = 'u32[144,128]{1,0:T(1,128)}', space=vmem, size = 0x12000, scoped, tag = 'internal scratch']
  %s0 = inlined_call_operand.vmem [shape: bf16[2,32,128], index: 0, kind: input, shape index: {}]
  %s1 = inlined_call_operand.vmem [shape: bf16[2,32,128], index: 1, kind: input, shape index: {}]
  %s2 = inlined_call_operand.vmem [shape: bf16[1,128,128], index: 2, kind: input, shape index: {}]
  %s3 = inlined_call_operand.vmem [shape: f32[1,128], index: 3, kind: input, shape index: {}]
  %s4 = inlined_call_operand.vmem [shape: f32[1,128], index: 4, kind: input, shape index: {}]
  %s5 = inlined_call_operand.vmem [shape: f32[1,128], index: 5, kind: input, shape index: {}]
  %s6 = inlined_call_operand.vmem [shape: bf16[2,32,128], index: 6, kind: output, shape index: {}]
  %s7 = sld [smem:[#allocation0]]
  $region57: #{ecapa_forward.21} parent=0
    _
  %s9 = ssub.s32 1, %s7
  %s10 = scalar_select 0, %s9, %s7
  loop: start=0, step=1, limit=4
  $region2: #{ecapa_forward.21} parent=0 // loop_pre_header
    _
  $region3: #{ecapa_forward.21} parent=0 // loop_header
    %s12 = sphi 0, %s16
    %p13 = scmp.ge.s32.totalorder %s12, 4
    %s19 = sphi 0, %s31
    %s20 = sphi 0, %s27
    %s21 = sphi 0, %s19
    %s22 = sphi 0, %s20
    %s23 = sphi 0, %s21
    %s24 = sphi 0, %s22
    %s34 = sphi 0, %s36
    %s37 = sphi 0, %s34
    %s38 = sphi 0, %s37
    %s54 = sphi 0, %s38
    %s60 = sphi 0, %s62
    %s63 = sphi 0, %s60
    %s64 = sphi 0, %s63
    %s80 = sphi 0, %s64
    %s86 = sphi 0, %s88
    %s89 = sphi 0, %s86
    %s90 = sphi 0, %s89
    %s106 = sphi 0, %s90
    %s112 = sphi 0, %s114
    %s115 = sphi 0, %s112
    %s116 = sphi 0, %s115
    %s132 = sphi 0, %s116
    %s138 = sphi 0, %s140
    %s141 = sphi 0, %s138
    %s142 = sphi 0, %s141
    %s158 = sphi 0, %s142
    %s164 = sphi 0, %s166
    %s167 = sphi 0, %s164
    %s168 = sphi 0, %s167
    %s184 = sphi 0, %s168
    %s192 = sphi 0, %s194
    %s195 = sphi 0, %s192
    %s196 = sphi 0, %s195
    %s212 = sphi 0, %s196
  $region4: #{ecapa_forward.21} parent=0 // loop_header_branch
    %15 = sbr.rel (%p13) target = $region8
  $region5: #{ecapa_forward.21} parent=0 // loop_body
    %s17 = ssub.s32 %s12, 1
    %s18 = ssub.s32 %s12, 2
    %s25 = sadd.s32 1, %s20
    %p26 = scmp.ge.s32.totalorder %s25, 1
    %s27 = scalar_select %p26, 0, %s25
    %s28 = sadd.s32 1, %s19
    %s29 = scalar_select %p26, %s28, %s19
    %p30 = scmp.ge.s32.totalorder %s29, 2
    %s31 = scalar_select %p30, 0, %s29
    %s32 = ssub.s32 %s19, %s31
    %p33 = scmp.eq.s32.totalorder %s32, 0
    %s35 = sadd.s32 %s34, 1
    %s36 = scalar_select %p33, %s34, %s35
    %p39 = pneg %p33
    %p40 = scmp.eq.s32.totalorder %s12, 1
    %p41 = por %p39, %p40
    %p42 = scmp.ne.s32.totalorder %s34, %s37
    %p43 = scmp.eq.s32.totalorder %s12, 0
    %p44 = por %p42, %p43
    %p45 = scmp.ne.s32.totalorder %s34, %s37
    %p46 = scmp.eq.s32.totalorder %s17, 1
    %p47 = por %p45, %p46
    %p48 = scmp.ne.s32.totalorder %s37, %s38
    %p49 = scmp.eq.s32.totalorder %s17, 0
    %p50 = por %p48, %p49
    %p51 = scmp.ne.s32.totalorder %s37, %s38
    %p52 = scmp.eq.s32.totalorder %s18, 1
    %p53 = por %p51, %p52
    %p55 = scmp.ne.s32.totalorder %s38, %s54
    %p56 = scmp.eq.s32.totalorder %s18, 0
    %p57 = por %p55, %p56
    %s58 = ssub.s32 %s19, %s31
    %p59 = scmp.eq.s32.totalorder %s58, 0
    %s61 = sadd.s32 %s60, 1
    %s62 = scalar_select %p59, %s60, %s61
    %p65 = pneg %p59
    %p66 = scmp.eq.s32.totalorder %s12, 1
    %p67 = por %p65, %p66
    %p68 = scmp.ne.s32.totalorder %s60, %s63
    %p69 = scmp.eq.s32.totalorder %s12, 0
    %p70 = por %p68, %p69
    %p71 = scmp.ne.s32.totalorder %s60, %s63
    %p72 = scmp.eq.s32.totalorder %s17, 1
    %p73 = por %p71, %p72
    %p74 = scmp.ne.s32.totalorder %s63, %s64
    %p75 = scmp.eq.s32.totalorder %s17, 0
    %p76 = por %p74, %p75
    %p77 = scmp.ne.s32.totalorder %s63, %s64
    %p78 = scmp.eq.s32.totalorder %s18, 1
    %p79 = por %p77, %p78
    %p81 = scmp.ne.s32.totalorder %s64, %s80
    %p82 = scmp.eq.s32.totalorder %s18, 0
    %p83 = por %p81, %p82
    %s84 = ssub.s32 %s20, %s27
    %p85 = scmp.eq.s32.totalorder %s84, 0
    %s87 = sadd.s32 %s86, 1
    %s88 = scalar_select %p85, %s86, %s87
    %p91 = pneg %p85
    %p92 = scmp.eq.s32.totalorder %s12, 1
    %p93 = por %p91, %p92
    %p94 = scmp.ne.s32.totalorder %s86, %s89
    %p95 = scmp.eq.s32.totalorder %s12, 0
    %p96 = por %p94, %p95
    %p97 = scmp.ne.s32.totalorder %s86, %s89
    %p98 = scmp.eq.s32.totalorder %s17, 1
    %p99 = por %p97, %p98
    %p100 = scmp.ne.s32.totalorder %s89, %s90
    %p101 = scmp.eq.s32.totalorder %s17, 0
    %p102 = por %p100, %p101
    %p103 = scmp.ne.s32.totalorder %s89, %s90
    %p104 = scmp.eq.s32.totalorder %s18, 1
    %p105 = por %p103, %p104
    %p107 = scmp.ne.s32.totalorder %s90, %s106
    %p108 = scmp.eq.s32.totalorder %s18, 0
    %p109 = por %p107, %p108
    %s110 = ssub.s32 %s20, %s27
    %p111 = scmp.eq.s32.totalorder %s110, 0
    %s113 = sadd.s32 %s112, 1
    %s114 = scalar_select %p111, %s112, %s113
    %p117 = pneg %p111
    %p118 = scmp.eq.s32.totalorder %s12, 1
    %p119 = por %p117, %p118
    %p120 = scmp.ne.s32.totalorder %s112, %s115
    %p121 = scmp.eq.s32.totalorder %s12, 0
    %p122 = por %p120, %p121
    %p123 = scmp.ne.s32.totalorder %s112, %s115
    %p124 = scmp.eq.s32.totalorder %s17, 1
    %p125 = por %p123, %p124
    %p126 = scmp.ne.s32.totalorder %s115, %s116
    %p127 = scmp.eq.s32.totalorder %s17, 0
    %p128 = por %p126, %p127
    %p129 = scmp.ne.s32.totalorder %s115, %s116
    %p130 = scmp.eq.s32.totalorder %s18, 1
    %p131 = por %p129, %p130
    %p133 = scmp.ne.s32.totalorder %s116, %s132
    %p134 = scmp.eq.s32.totalorder %s18, 0
    %p135 = por %p133, %p134
    %s136 = ssub.s32 %s20, %s27
    %p137 = scmp.eq.s32.totalorder %s136, 0
    %s139 = sadd.s32 %s138, 1
    %s140 = scalar_select %p137, %s138, %s139
    %p143 = pneg %p137
    %p144 = scmp.eq.s32.totalorder %s12, 1
    %p145 = por %p143, %p144
    %p146 = scmp.ne.s32.totalorder %s138, %s141
    %p147 = scmp.eq.s32.totalorder %s12, 0
    %p148 = por %p146, %p147
    %p149 = scmp.ne.s32.totalorder %s138, %s141
    %p150 = scmp.eq.s32.totalorder %s17, 1
    %p151 = por %p149, %p150
    %p152 = scmp.ne.s32.totalorder %s141, %s142
    %p153 = scmp.eq.s32.totalorder %s17, 0
    %p154 = por %p152, %p153
    %p155 = scmp.ne.s32.totalorder %s141, %s142
    %p156 = scmp.eq.s32.totalorder %s18, 1
    %p157 = por %p155, %p156
    %p159 = scmp.ne.s32.totalorder %s142, %s158
    %p160 = scmp.eq.s32.totalorder %s18, 0
    %p161 = por %p159, %p160
    %s162 = ssub.s32 %s20, %s27
    %p163 = scmp.eq.s32.totalorder %s162, 0
    %s165 = sadd.s32 %s164, 1
    %s166 = scalar_select %p163, %s164, %s165
    %p169 = pneg %p163
    %p170 = scmp.eq.s32.totalorder %s12, 1
    %p171 = por %p169, %p170
    %p172 = scmp.ne.s32.totalorder %s164, %s167
    %p173 = scmp.eq.s32.totalorder %s12, 0
    %p174 = por %p172, %p173
    %p175 = scmp.ne.s32.totalorder %s164, %s167
    %p176 = scmp.eq.s32.totalorder %s17, 1
    %p177 = por %p175, %p176
    %p178 = scmp.ne.s32.totalorder %s167, %s168
    %p179 = scmp.eq.s32.totalorder %s17, 0
    %p180 = por %p178, %p179
    %p181 = scmp.ne.s32.totalorder %s167, %s168
    %p182 = scmp.eq.s32.totalorder %s18, 1
    %p183 = por %p181, %p182
    %p185 = scmp.ne.s32.totalorder %s168, %s184
    %p186 = scmp.eq.s32.totalorder %s18, 0
    %p187 = por %p185, %p186
    %s188 = ssub.s32 %s19, %s31
    %s189 = ssub.s32 %s20, %s27
    %s190 = sor.u32 %s188, %s189
    %p191 = scmp.eq.s32.totalorder %s190, 0
    %s193 = sadd.s32 %s192, 1
    %s194 = scalar_select %p191, %s192, %s193
    %p197 = pneg %p191
    %p198 = scmp.eq.s32.totalorder %s12, 1
    %p199 = por %p197, %p198
    %p200 = scmp.ne.s32.totalorder %s192, %s195
    %p201 = scmp.eq.s32.totalorder %s12, 0
    %p202 = por %p200, %p201
    %p203 = scmp.ne.s32.totalorder %s192, %s195
    %p204 = scmp.eq.s32.totalorder %s17, 1
    %p205 = por %p203, %p204
    %p206 = scmp.ne.s32.totalorder %s195, %s196
    %p207 = scmp.eq.s32.totalorder %s17, 0
    %p208 = por %p206, %p207
    %p209 = scmp.ne.s32.totalorder %s195, %s196
    %p210 = scmp.eq.s32.totalorder %s18, 1
    %p211 = por %p209, %p210
    %p213 = scmp.ne.s32.totalorder %s196, %s212
    %p214 = scmp.eq.s32.totalorder %s18, 0
    %p215 = por %p213, %p214
    %p216 = scmp.le.s32.totalorder 1, %s12
    %p217 = scmp.lt.s32.totalorder %s12, 3
    %p218 = pnand %p216, %p217
    %p219 = pneg %p218
    // Predicated region
    $region9: #{ecapa_forward.21} parent=5 // pred_check
      _
    $region10: #{ecapa_forward.21} parent=5 // pred_check_branch
      %221 = sbr.rel (%p218) target = $region12
    $region11: #{ecapa_forward.21} parent=5 // pred_region
      %s222 = ssub.s32 %s12, 1
      // Predicated region
      $region13: #{ecapa_forward.21} parent=11 // pred_check
        %p223 = pneg %p102
      $region14: #{ecapa_forward.21} parent=11 // pred_check_branch
        %225 = sbr.rel (%p223) target = $region16
      $region15: #{ecapa_forward.21} parent=11 // pred_region
        %p226 = scmp.lt.s32.totalorder %s22, 0
        %s227 = scalar_select %p226, %s22, 0
        %s228 = smul.addr %s227, 4
        %s229 = scalar_lea.vmem %s2, %s228
      $region16: #{ecapa_forward.21} parent=11 // pred_fallthru
        _
      // Predicated region
      $region17: #{ecapa_forward.21} parent=11 // pred_check
        %p230 = pneg %p128
      $region18: #{ecapa_forward.21} parent=11 // pred_check_branch
        %232 = sbr.rel (%p230) target = $region20
      $region19: #{ecapa_forward.21} parent=11 // pred_region
        %p233 = scmp.lt.s32.totalorder %s22, 0
        %s234 = scalar_select %p233, %s22, 0
        %s235 = scalar_lea.vmem %s3, %s234
      $region20: #{ecapa_forward.21} parent=11 // pred_fallthru
        _
      // Predicated region
      $region21: #{ecapa_forward.21} parent=11 // pred_check
        %p236 = pneg %p154
      $region22: #{ecapa_forward.21} parent=11 // pred_check_branch
        %238 = sbr.rel (%p236) target = $region24
      $region23: #{ecapa_forward.21} parent=11 // pred_region
        %p239 = scmp.lt.s32.totalorder %s22, 0
        %s240 = scalar_select %p239, %s22, 0
        %s241 = scalar_lea.vmem %s4, %s240
      $region24: #{ecapa_forward.21} parent=11 // pred_fallthru
        _
      // Predicated region
      $region25: #{ecapa_forward.21} parent=11 // pred_check
        %p242 = pneg %p180
      $region26: #{ecapa_forward.21} parent=11 // pred_check_branch
        %244 = sbr.rel (%p242) target = $region28
      $region27: #{ecapa_forward.21} parent=11 // pred_region
        %p245 = scmp.lt.s32.totalorder %s22, 0
        %s246 = scalar_select %p245, %s22, 0
        %s247 = scalar_lea.vmem %s5, %s246
      $region28: #{ecapa_forward.21} parent=11 // pred_fallthru
        _
    $region12: #{ecapa_forward.21} parent=5 // pred_fallthru
      _
    %p248 = scmp.lt.s32.totalorder %s12, 2
    // Predicated region
    $region29: #{ecapa_forward.21} parent=5 // pred_check
      %p249 = pneg %p248
    $region30: #{ecapa_forward.21} parent=5 // pred_check_branch
      %251 = sbr.rel (%p249) target = $region32
    $region31: #{ecapa_forward.21} parent=5 // pred_region
      // Predicated region
      $region33: #{ecapa_forward.21} parent=31 // pred_check
        %p252 = pneg %p44
      $region34: #{ecapa_forward.21} parent=31 // pred_check_branch
        %254 = sbr.rel (%p252) target = $region36
      $region35: #{ecapa_forward.21} parent=31 // pred_region
        %p255 = scmp.lt.s32.totalorder %s19, 1
        %s256 = scalar_select %p255, %s19, 1
        %s257 = smul.addr %s256, 4
        %s258 = smul.addr %s257, 4
        %s259 = scalar_lea.vmem %s0, %s258
      $region36: #{ecapa_forward.21} parent=31 // pred_fallthru
        _
      // Predicated region
      $region37: #{ecapa_forward.21} parent=31 // pred_check
        %p260 = pneg %p70
      $region38: #{ecapa_forward.21} parent=31 // pred_check_branch
        %262 = sbr.rel (%p260) target = $region40
      $region39: #{ecapa_forward.21} parent=31 // pred_region
        %p263 = scmp.lt.s32.totalorder %s19, 1
        %s264 = scalar_select %p263, %s19, 1
        %s265 = smul.addr %s264, 4
        %s266 = smul.addr %s265, 4
        %s267 = scalar_lea.vmem %s1, %s266
      $region40: #{ecapa_forward.21} parent=31 // pred_fallthru
        _
    $region32: #{ecapa_forward.21} parent=5 // pred_fallthru
      _
    %p268 = scmp.le.s32.totalorder 1, %s12
    %p269 = scmp.lt.s32.totalorder %s12, 3
    %p270 = pnand %p268, %p269
    %p271 = pneg %p270
    // Predicated region
    $region41: #{ecapa_forward.21} parent=5 // pred_check
      _
    $region42: #{ecapa_forward.21} parent=5 // pred_check_branch
      %273 = sbr.rel (%p270) target = $region44
    $region43: #{ecapa_forward.21} parent=5 // pred_region
      %s274 = ssub.s32 %s12, 1
      %p275 = scmp.lt.s32.totalorder %s21, 1
      %s276 = scalar_select %p275, %s21, 1
      %s277 = smul.addr %s276, 4
      %s278 = smul.addr %s277, 4
      %s279 = scalar_lea.vmem %s0, %s278
      %p280 = pneg %p50
      %p281 = pneg %p47
      %p282 = scmp.lt.s32.totalorder %s21, 1
      %s283 = scalar_select %p282, %s21, 1
      %s284 = smul.addr %s283, 4
      %s285 = smul.addr %s284, 4
      %s286 = scalar_lea.vmem %s1, %s285
      %p287 = pneg %p76
      %p288 = pneg %p73
      %p289 = scmp.lt.s32.totalorder %s22, 0
      %s290 = scalar_select %p289, %s22, 0
      %s291 = smul.addr %s290, 4
      %s292 = scalar_lea.vmem %s2, %s291
      %p293 = pneg %p102
      %p294 = pneg %p99
      %p295 = scmp.lt.s32.totalorder %s22, 0
      %s296 = scalar_select %p295, %s22, 0
      %s297 = scalar_lea.vmem %s3, %s296
      %p298 = pneg %p128
      %p299 = pneg %p125
      %p300 = scmp.lt.s32.totalorder %s22, 0
      %s301 = scalar_select %p300, %s22, 0
      %s302 = scalar_lea.vmem %s4, %s301
      %p303 = pneg %p154
      %p304 = pneg %p151
      %p305 = scmp.lt.s32.totalorder %s22, 0
      %s306 = scalar_select %p305, %s22, 0
      %s307 = scalar_lea.vmem %s5, %s306
      %p308 = pneg %p180
      %p309 = pneg %p177
      %p310 = pneg %p208
      %p311 = pneg %p205
      %p312 = scmp.lt.s32.totalorder %s21, 1
      %s313 = scalar_select %p312, %s21, 1
      %p314 = scmp.lt.s32.totalorder %s22, 0
      %s315 = scalar_select %p314, %s22, 0
      %s316 = smul.addr %s313, 4
      %s317 = sadd.s32 %s315, %s316
      %s318 = smul.addr %s317, 4
      %s319 = scalar_lea.vmem %s6, %s318
      %p320 = scmp.lt.s32.totalorder %s21, 1
      %s321 = scalar_select %p320, %s21, 1
      %s322 = smul.addr %s321, 4
      %s323 = smul.addr %s322, 4
      %s324 = scalar_lea.vmem %s0, %s323
      %p325 = scmp.lt.s32.totalorder %s21, 1
      %s326 = scalar_select %p325, %s21, 1
      %s327 = smul.addr %s326, 4
      %s328 = smul.addr %s327, 4
      %s329 = scalar_lea.vmem %s1, %s328
      %p330 = scmp.lt.s32.totalorder %s22, 0
      %s331 = scalar_select %p330, %s22, 0
      %s332 = smul.addr %s331, 4
      %s333 = scalar_lea.vmem %s2, %s332
      %p334 = scmp.lt.s32.totalorder %s22, 0
      %s335 = scalar_select %p334, %s22, 0
      %s336 = scalar_lea.vmem %s3, %s335
      %p337 = scmp.lt.s32.totalorder %s22, 0
      %s338 = scalar_select %p337, %s22, 0
      %s339 = scalar_lea.vmem %s4, %s338
      %p340 = scmp.lt.s32.totalorder %s22, 0
      %s341 = scalar_select %p340, %s22, 0
      %s342 = scalar_lea.vmem %s5, %s341
      %p343 = scmp.lt.s32.totalorder %s21, 1
      %s344 = scalar_select %p343, %s21, 1
      %p345 = scmp.lt.s32.totalorder %s22, 0
      %s346 = scalar_select %p345, %s22, 0
      %s347 = smul.addr %s344, 4
      %s348 = sadd.s32 %s346, %s347
      %s349 = smul.addr %s348, 4
      %s350 = scalar_lea.vmem %s6, %s349
      %v352 = vld [vmem:[%s324] sm:$0xf]
      %v353 = vld [vmem:[%s324 + $0x4] sm:$0xf]
      %v354 = vld [vmem:[%s324 + $0x8] sm:$0xf]
      %v355 = vld [vmem:[%s324 + $0xc] sm:$0xf]
      %v356 = vunpack.c.l.bf16 %v352
      %v357 = vunpack.c.l.bf16 %v353
      %v358 = vunpack.c.l.bf16 %v354
      %v359 = vunpack.c.l.bf16 %v355
      %v360 = vld [vmem:[%s329] sm:$0xf]
      %v361 = vld [vmem:[%s329 + $0x4] sm:$0xf]
      %v362 = vld [vmem:[%s329 + $0x8] sm:$0xf]
      %v363 = vld [vmem:[%s329 + $0xc] sm:$0xf]
      %v364 = vunpack.c.l.bf16 %v360
      %v365 = vunpack.c.l.bf16 %v361
      %v366 = vunpack.c.l.bf16 %v362
      %v367 = vunpack.c.l.bf16 %v363
      %v368 = vadd.f32 %v356, %v364
      %v369 = vadd.f32 %v357, %v365
      %v370 = vadd.f32 %v358, %v366
      %v371 = vadd.f32 %v359, %v367
      %v372 = vpack.c.bf16 %v369, %v368
      %v373 = vpack.c.bf16 %v371, %v370
      %v374 = vld [vmem:[%s333] sm:$0xf]
      %v375 = vld [vmem:[%s333 + $0x4] sm:$0xf]
      %v376 = vld [vmem:[%s333 + $0x8] sm:$0xf]
      %v377 = vld [vmem:[%s333 + $0xc] sm:$0xf]
      %v378 = vld [vmem:[%s333 + $0x10] sm:$0xf]
      %v379 = vld [vmem:[%s333 + $0x14] sm:$0xf]
      %v380 = vld [vmem:[%s333 + $0x18] sm:$0xf]
      %v381 = vld [vmem:[%s333 + $0x1c] sm:$0xf]
      %v382 = vld [vmem:[%s333 + $0x20] sm:$0xf]
      %v383 = vld [vmem:[%s333 + $0x24] sm:$0xf]
      %v384 = vld [vmem:[%s333 + $0x28] sm:$0xf]
      %v385 = vld [vmem:[%s333 + $0x2c] sm:$0xf]
      %v386 = vld [vmem:[%s333 + $0x30] sm:$0xf]
      %v387 = vld [vmem:[%s333 + $0x34] sm:$0xf]
      %v388 = vld [vmem:[%s333 + $0x38] sm:$0xf]
      %v389 = vld [vmem:[%s333 + $0x3c] sm:$0xf]
      %v390 = vld [vmem:[%s336] sm:$0x1]
      %v392 = vlaneseq
      %v393 = vshrl.u32 %v392, 7
      %v394 = vsub.s32 0, %v393
      %v395 = vrot.slane %v390, %v394
      %v413 = vunpack.c.l.b16 %v374
      %v414 = vunpack.c.l.b16 %v375
      %v415 = vunpack.c.l.b16 %v376
      %v416 = vunpack.c.l.b16 %v377
      %v417 = vunpack.c.l.b16 %v378
      %v418 = vunpack.c.l.b16 %v379
      %v419 = vunpack.c.l.b16 %v380
      %v420 = vunpack.c.l.b16 %v381
      %v421 = vunpack.c.l.b16 %v382
      %v422 = vunpack.c.l.b16 %v383
      %v423 = vunpack.c.l.b16 %v384
      %v424 = vunpack.c.l.b16 %v385
      %v425 = vunpack.c.l.b16 %v386
      %v426 = vunpack.c.l.b16 %v387
      %v427 = vunpack.c.l.b16 %v388
      %v428 = vunpack.c.l.b16 %v389
      %v429 = vpack.c.b16 %v414, %v413
      %v430 = vpack.c.b16 %v416, %v415
      %v431 = vpack.c.b16 %v418, %v417
      %v432 = vpack.c.b16 %v420, %v419
      %v433 = vpack.c.b16 %v422, %v421
      %v434 = vpack.c.b16 %v424, %v423
      %v435 = vpack.c.b16 %v426, %v425
      %v436 = vpack.c.b16 %v428, %v427
      %445 = vmatprep.subr.bf16.mxu0 0
      %446 = vmatpush1.bf16.msra.mxu0 %v436
      %447 = vmatprep.subr.bf16.mxu0 0
      %448 = vmatpush1.bf16.msra.mxu0 %v435
      %449 = vmatprep.subr.bf16.mxu0 0
      %450 = vmatpush1.bf16.msra.mxu0 %v434
      %451 = vmatprep.subr.bf16.mxu0 0
      %452 = vmatpush1.bf16.msra.mxu0 %v433
      %453 = vmatprep.subr.bf16.mxu0 0
      %454 = vmatpush1.bf16.msra.mxu0 %v432
      %455 = vmatprep.subr.bf16.mxu0 0
      %456 = vmatpush1.bf16.msra.mxu0 %v431
      %457 = vmatprep.subr.bf16.mxu0 0
      %458 = vmatpush1.bf16.msra.mxu0 %v430
      %459 = vmatprep.subr.bf16.mxu0 0
      %460 = vmatpush1.bf16.msra.mxu0 %v429
      %461 = vmatprep.subr.bf16.mxu0 0
      %462 = vmatpush2.bf16.msra.mxu0 0
      %463 = vmatprep.subr.bf16.mxu0 0
      %464 = vmatpush2.bf16.msra.mxu0 0
      %465 = vmatprep.subr.bf16.mxu0 0
      %466 = vmatpush2.bf16.msra.mxu0 0
      %467 = vmatprep.subr.bf16.mxu0 0
      %468 = vmatpush2.bf16.msra.mxu0 0
      %469 = vmatprep.subr.bf16.mxu0 0
      %470 = vmatpush2.bf16.msra.mxu0 0
      %471 = vmatprep.subr.bf16.mxu0 0
      %472 = vmatpush2.bf16.msra.mxu0 0
      %473 = vmatprep.subr.bf16.mxu0 0
      %474 = vmatpush2.bf16.msra.mxu0 0
      %475 = vmatprep.subr.bf16.mxu0 0
      %476 = vmatpush2.bf16.msra.mxu0 0
      %477 = vmatprep.mubr.bf16.mxu0 0
      %478 = vmatmul.mubr.bf16.gmra.mxu0 %v372
      %v479 = vpop.f32.mrf.mxu0
      %v480 = vadd.f32 %v395, %v479
      %v481 = vpop.f32.mrf.mxu0
      %v482 = vpop.f32.mrf.mxu0
      %v483 = vadd.f32 %v395, %v482
      %v484 = vpop.f32.mrf.mxu0
      %485 = vmatprep.mubr.bf16.mxu0 0
      %486 = vmatmul.mubr.bf16.gmra.mxu0 %v373
      %v487 = vpop.f32.mrf.mxu0
      %v488 = vadd.f32 %v395, %v487
      %v489 = vpop.f32.mrf.mxu0
      %v490 = vpop.f32.mrf.mxu0
      %v491 = vadd.f32 %v395, %v490
      %v492 = vpop.f32.mrf.mxu0
      %493 = vdwg.mxu0
      %v494 = vmax.f32 %v480, 0.0
      %v495 = vmax.f32 %v483, 0.0
      %v496 = vmax.f32 %v488, 0.0
      %v497 = vmax.f32 %v491, 0.0
      %v498 = vld [vmem:[%s339] sm:$0x1]
      %v500 = vlaneseq
      %v501 = vshrl.u32 %v500, 7
      %v502 = vsub.s32 0, %v501
      %v503 = vrot.slane %v498, %v502
      %v505 = vmul.f32 %v494, %v503
      %v506 = vmul.f32 %v495, %v503
      %v507 = vmul.f32 %v496, %v503
      %v508 = vmul.f32 %v497, %v503
      %v509 = vld [vmem:[%s342] sm:$0x1]
      %v511 = vlaneseq
      %v512 = vshrl.u32 %v511, 7
      %v513 = vsub.s32 0, %v512
      %v514 = vrot.slane %v509, %v513
      %v516 = vadd.f32 %v505, %v514
      %v517 = vadd.f32 %v506, %v514
      %v518 = vadd.f32 %v507, %v514
      %v519 = vadd.f32 %v508, %v514
      %v520 = vpack.c.bf16 %v517, %v516
      %v521 = vpack.c.bf16 %v519, %v518
      %v524 = vunpack.c.l.b16 %v520
      %v525 = vunpack.c.h.b16 %v520
      %v526 = vunpack.c.l.b16 %v521
      %v527 = vunpack.c.h.b16 %v521
      %v528 = vpack.c.b16 %v524, %v524
      %v529 = vpack.c.b16 %v525, %v525
      %v530 = vpack.c.b16 %v526, %v526
      %v531 = vpack.c.b16 %v527, %v527
      %536 = vst [vmem:[%s350] sm:$0xf] %v528
      %537 = vst [vmem:[%s350 + $0x4] sm:$0xf] %v529
      %538 = vst [vmem:[%s350 + $0x8] sm:$0xf] %v530
      %539 = vst [vmem:[%s350 + $0xc] sm:$0xf] %v531
      %p540 = scmp.lt.s32.totalorder %s21, 1
      %s541 = scalar_select %p540, %s21, 1
      %p542 = scmp.lt.s32.totalorder %s22, 0
      %s543 = scalar_select %p542, %s22, 0
      %s544 = smul.addr %s541, 4
      %s545 = sadd.s32 %s543, %s544
      %s546 = smul.addr %s545, 4
      %s547 = scalar_lea.vmem %s6, %s546
      // Predicated region
      $region45: #{ecapa_forward.21} parent=43 // pred_check
        %p548 = pneg %p205
      $region46: #{ecapa_forward.21} parent=43 // pred_check_branch
        %550 = sbr.rel (%p548) target = $region48
      $region47: #{ecapa_forward.21} parent=43 // pred_region
        _
      $region48: #{ecapa_forward.21} parent=43 // pred_fallthru
        _
    $region44: #{ecapa_forward.21} parent=5 // pred_fallthru
      _
    %p551 = scmp.le.s32.totalorder 2, %s12
    // Predicated region
    $region49: #{ecapa_forward.21} parent=5 // pred_check
      %p552 = pneg %p551
    $region50: #{ecapa_forward.21} parent=5 // pred_check_branch
      %554 = sbr.rel (%p552) target = $region52
    $region51: #{ecapa_forward.21} parent=5 // pred_region
      %s555 = ssub.s32 %s12, 2
      // Predicated region
      $region53: #{ecapa_forward.21} parent=51 // pred_check
        %p556 = pneg %p211
      $region54: #{ecapa_forward.21} parent=51 // pred_check_branch
        %558 = sbr.rel (%p556) target = $region56
      $region55: #{ecapa_forward.21} parent=51 // pred_region
        %p559 = scmp.lt.s32.totalorder %s23, 1
        %s560 = scalar_select %p559, %s23, 1
        %p561 = scmp.lt.s32.totalorder %s24, 0
        %s562 = scalar_select %p561, %s24, 0
        %s563 = smul.addr %s560, 4
        %s564 = sadd.s32 %s562, %s563
        %s565 = smul.addr %s564, 4
        %s566 = scalar_lea.vmem %s6, %s565
      $region56: #{ecapa_forward.21} parent=51 // pred_fallthru
        _
    $region52: #{ecapa_forward.21} parent=5 // pred_fallthru
      _
  $region6: #{ecapa_forward.21} parent=0 // loop_footer
    %s16 = sadd.s32 1, %s12
  $region7: #{ecapa_forward.21} parent=0 // loop_footer_branch
    %11 = sbr.rel target = $region3
  $region8: #{ecapa_forward.21} parent=0 // loop_exit
    _

// kernel: ecapa_forward.20
$region0: #{ecapa_forward.20}
  #allocation0 [shape = 'u32[]', space=smem, size = 0x4, offset = 0x4, fixed_abs, tag = 'smem constant byte address 0x4 - core index']
  #allocation1 [shape = 'u32[144,128]{1,0:T(1,128)}', space=vmem, size = 0x12000, scoped, tag = 'internal scratch']
  %s0 = inlined_call_operand.vmem [shape: bf16[2,32,128], index: 0, kind: input, shape index: {}]
  %s1 = inlined_call_operand.vmem [shape: bf16[2,32,128], index: 1, kind: input, shape index: {}]
  %s2 = inlined_call_operand.vmem [shape: bf16[128,32], index: 2, kind: input, shape index: {}]
  %s3 = inlined_call_operand.vmem [shape: f32[1,32], index: 3, kind: input, shape index: {}]
  %s4 = inlined_call_operand.vmem [shape: bf16[32,128], index: 4, kind: input, shape index: {}]
  %s5 = inlined_call_operand.vmem [shape: f32[1,128], index: 5, kind: input, shape index: {}]
  %s6 = inlined_call_operand.vmem [shape: bf16[2,32,128], index: 6, kind: output, shape index: {}]
  %s7 = sld [smem:[#allocation0]]
  $region57: #{ecapa_forward.20} parent=0
    _
  %s9 = ssub.s32 1, %s7
  %s10 = scalar_select 0, %s9, %s7
  loop: start=0, step=1, limit=4
  $region2: #{ecapa_forward.20} parent=0 // loop_pre_header
    _
  $region3: #{ecapa_forward.20} parent=0 // loop_header
    %s12 = sphi 0, %s16
    %p13 = scmp.ge.s32.totalorder %s12, 4
    %s22 = sphi 0, %s24
    %s25 = sphi 0, %s22
    %s26 = sphi 0, %s25
    %s42 = sphi 0, %s26
    %s48 = sphi 0, %s50
    %s51 = sphi 0, %s48
    %s52 = sphi 0, %s51
    %s68 = sphi 0, %s52
    %s72 = sphi 0, %s72
    %s74 = sphi 0, %s72
    %s75 = sphi 0, %s74
    %s89 = sphi 0, %s75
    %s93 = sphi 0, %s93
    %s95 = sphi 0, %s93
    %s96 = sphi 0, %s95
    %s110 = sphi 0, %s96
    %s114 = sphi 0, %s114
    %s116 = sphi 0, %s114
    %s117 = sphi 0, %s116
    %s131 = sphi 0, %s117
    %s135 = sphi 0, %s135
    %s137 = sphi 0, %s135
    %s138 = sphi 0, %s137
    %s152 = sphi 0, %s138
    %s158 = sphi 0, %s160
    %s161 = sphi 0, %s158
    %s162 = sphi 0, %s161
    %s178 = sphi 0, %s162
  $region4: #{ecapa_forward.20} parent=0 // loop_header_branch
    %15 = sbr.rel (%p13) target = $region8
  $region5: #{ecapa_forward.20} parent=0 // loop_body
    %s17 = ssub.s32 %s12, 1
    %s18 = ssub.s32 %s12, 2
    %s19 = sadd.s32 %s12, 1
    %s20 = ssub.s32 %s12, %s19
    %p21 = scmp.eq.s32.totalorder %s20, 0
    %s23 = sadd.s32 %s22, 1
    %s24 = scalar_select %p21, %s22, %s23
    %p27 = pneg %p21
    %p28 = scmp.eq.s32.totalorder %s12, 1
    %p29 = por %p27, %p28
    %p30 = scmp.ne.s32.totalorder %s22, %s25
    %p31 = scmp.eq.s32.totalorder %s12, 0
    %p32 = por %p30, %p31
    %p33 = scmp.ne.s32.totalorder %s22, %s25
    %p34 = scmp.eq.s32.totalorder %s17, 1
    %p35 = por %p33, %p34
    %p36 = scmp.ne.s32.totalorder %s25, %s26
    %p37 = scmp.eq.s32.totalorder %s17, 0
    %p38 = por %p36, %p37
    %p39 = scmp.ne.s32.totalorder %s25, %s26
    %p40 = scmp.eq.s32.totalorder %s18, 1
    %p41 = por %p39, %p40
    %p43 = scmp.ne.s32.totalorder %s26, %s42
    %p44 = scmp.eq.s32.totalorder %s18, 0
    %p45 = por %p43, %p44
    %s46 = ssub.s32 %s12, %s19
    %p47 = scmp.eq.s32.totalorder %s46, 0
    %s49 = sadd.s32 %s48, 1
    %s50 = scalar_select %p47, %s48, %s49
    %p53 = pneg %p47
    %p54 = scmp.eq.s32.totalorder %s12, 1
    %p55 = por %p53, %p54
    %p56 = scmp.ne.s32.totalorder %s48, %s51
    %p57 = scmp.eq.s32.totalorder %s12, 0
    %p58 = por %p56, %p57
    %p59 = scmp.ne.s32.totalorder %s48, %s51
    %p60 = scmp.eq.s32.totalorder %s17, 1
    %p61 = por %p59, %p60
    %p62 = scmp.ne.s32.totalorder %s51, %s52
    %p63 = scmp.eq.s32.totalorder %s17, 0
    %p64 = por %p62, %p63
    %p65 = scmp.ne.s32.totalorder %s51, %s52
    %p66 = scmp.eq.s32.totalorder %s18, 1
    %p67 = por %p65, %p66
    %p69 = scmp.ne.s32.totalorder %s52, %s68
    %p70 = scmp.eq.s32.totalorder %s18, 0
    %p71 = por %p69, %p70
    %s73 = sadd.s32 %s72, 1
    %p76 = scmp.eq.s32.totalorder %s12, 1
    %p77 = scmp.ne.s32.totalorder %s72, %s74
    %p78 = scmp.eq.s32.totalorder %s12, 0
    %p79 = por %p77, %p78
    %p80 = scmp.ne.s32.totalorder %s72, %s74
    %p81 = scmp.eq.s32.totalorder %s17, 1
    %p82 = por %p80, %p81
    %p83 = scmp.ne.s32.totalorder %s74, %s75
    %p84 = scmp.eq.s32.totalorder %s17, 0
    %p85 = por %p83, %p84
    %p86 = scmp.ne.s32.totalorder %s74, %s75
    %p87 = scmp.eq.s32.totalorder %s18, 1
    %p88 = por %p86, %p87
    %p90 = scmp.ne.s32.totalorder %s75, %s89
    %p91 = scmp.eq.s32.totalorder %s18, 0
    %p92 = por %p90, %p91
    %s94 = sadd.s32 %s93, 1
    %p97 = scmp.eq.s32.totalorder %s12, 1
    %p98 = scmp.ne.s32.totalorder %s93, %s95
    %p99 = scmp.eq.s32.totalorder %s12, 0
    %p100 = por %p98, %p99
    %p101 = scmp.ne.s32.totalorder %s93, %s95
    %p102 = scmp.eq.s32.totalorder %s17, 1
    %p103 = por %p101, %p102
    %p104 = scmp.ne.s32.totalorder %s95, %s96
    %p105 = scmp.eq.s32.totalorder %s17, 0
    %p106 = por %p104, %p105
    %p107 = scmp.ne.s32.totalorder %s95, %s96
    %p108 = scmp.eq.s32.totalorder %s18, 1
    %p109 = por %p107, %p108
    %p111 = scmp.ne.s32.totalorder %s96, %s110
    %p112 = scmp.eq.s32.totalorder %s18, 0
    %p113 = por %p111, %p112
    %s115 = sadd.s32 %s114, 1
    %p118 = scmp.eq.s32.totalorder %s12, 1
    %p119 = scmp.ne.s32.totalorder %s114, %s116
    %p120 = scmp.eq.s32.totalorder %s12, 0
    %p121 = por %p119, %p120
    %p122 = scmp.ne.s32.totalorder %s114, %s116
    %p123 = scmp.eq.s32.totalorder %s17, 1
    %p124 = por %p122, %p123
    %p125 = scmp.ne.s32.totalorder %s116, %s117
    %p126 = scmp.eq.s32.totalorder %s17, 0
    %p127 = por %p125, %p126
    %p128 = scmp.ne.s32.totalorder %s116, %s117
    %p129 = scmp.eq.s32.totalorder %s18, 1
    %p130 = por %p128, %p129
    %p132 = scmp.ne.s32.totalorder %s117, %s131
    %p133 = scmp.eq.s32.totalorder %s18, 0
    %p134 = por %p132, %p133
    %s136 = sadd.s32 %s135, 1
    %p139 = scmp.eq.s32.totalorder %s12, 1
    %p140 = scmp.ne.s32.totalorder %s135, %s137
    %p141 = scmp.eq.s32.totalorder %s12, 0
    %p142 = por %p140, %p141
    %p143 = scmp.ne.s32.totalorder %s135, %s137
    %p144 = scmp.eq.s32.totalorder %s17, 1
    %p145 = por %p143, %p144
    %p146 = scmp.ne.s32.totalorder %s137, %s138
    %p147 = scmp.eq.s32.totalorder %s17, 0
    %p148 = por %p146, %p147
    %p149 = scmp.ne.s32.totalorder %s137, %s138
    %p150 = scmp.eq.s32.totalorder %s18, 1
    %p151 = por %p149, %p150
    %p153 = scmp.ne.s32.totalorder %s138, %s152
    %p154 = scmp.eq.s32.totalorder %s18, 0
    %p155 = por %p153, %p154
    %s156 = ssub.s32 %s12, %s19
    %p157 = scmp.eq.s32.totalorder %s156, 0
    %s159 = sadd.s32 %s158, 1
    %s160 = scalar_select %p157, %s158, %s159
    %p163 = pneg %p157
    %p164 = scmp.eq.s32.totalorder %s12, 1
    %p165 = por %p163, %p164
    %p166 = scmp.ne.s32.totalorder %s158, %s161
    %p167 = scmp.eq.s32.totalorder %s12, 0
    %p168 = por %p166, %p167
    %p169 = scmp.ne.s32.totalorder %s158, %s161
    %p170 = scmp.eq.s32.totalorder %s17, 1
    %p171 = por %p169, %p170
    %p172 = scmp.ne.s32.totalorder %s161, %s162
    %p173 = scmp.eq.s32.totalorder %s17, 0
    %p174 = por %p172, %p173
    %p175 = scmp.ne.s32.totalorder %s161, %s162
    %p176 = scmp.eq.s32.totalorder %s18, 1
    %p177 = por %p175, %p176
    %p179 = scmp.ne.s32.totalorder %s162, %s178
    %p180 = scmp.eq.s32.totalorder %s18, 0
    %p181 = por %p179, %p180
    %p182 = scmp.le.s32.totalorder 1, %s12
    %p183 = scmp.lt.s32.totalorder %s12, 3
    %p184 = pnand %p182, %p183
    %p185 = pneg %p184
    // Predicated region
    $region9: #{ecapa_forward.20} parent=5 // pred_check
      _
    $region10: #{ecapa_forward.20} parent=5 // pred_check_branch
      %187 = sbr.rel (%p184) target = $region12
    $region11: #{ecapa_forward.20} parent=5 // pred_region
      %s188 = ssub.s32 %s12, 1
      // Predicated region
      $region13: #{ecapa_forward.20} parent=11 // pred_check
        %p189 = pneg %p85
      $region14: #{ecapa_forward.20} parent=11 // pred_check_branch
        %191 = sbr.rel (%p189) target = $region16
      $region15: #{ecapa_forward.20} parent=11 // pred_region
        _
      $region16: #{ecapa_forward.20} parent=11 // pred_fallthru
        _
      // Predicated region
      $region17: #{ecapa_forward.20} parent=11 // pred_check
        %p192 = pneg %p106
      $region18: #{ecapa_forward.20} parent=11 // pred_check_branch
        %194 = sbr.rel (%p192) target = $region20
      $region19: #{ecapa_forward.20} parent=11 // pred_region
        _
      $region20: #{ecapa_forward.20} parent=11 // pred_fallthru
        _
      // Predicated region
      $region21: #{ecapa_forward.20} parent=11 // pred_check
        %p195 = pneg %p127
      $region22: #{ecapa_forward.20} parent=11 // pred_check_branch
        %197 = sbr.rel (%p195) target = $region24
      $region23: #{ecapa_forward.20} parent=11 // pred_region
        _
      $region24: #{ecapa_forward.20} parent=11 // pred_fallthru
        _
      // Predicated region
      $region25: #{ecapa_forward.20} parent=11 // pred_check
        %p198 = pneg %p148
      $region26: #{ecapa_forward.20} parent=11 // pred_check_branch
        %200 = sbr.rel (%p198) target = $region28
      $region27: #{ecapa_forward.20} parent=11 // pred_region
        _
      $region28: #{ecapa_forward.20} parent=11 // pred_fallthru
        _
    $region12: #{ecapa_forward.20} parent=5 // pred_fallthru
      _
    %p201 = scmp.lt.s32.totalorder %s12, 2
    // Predicated region
    $region29: #{ecapa_forward.20} parent=5 // pred_check
      %p202 = pneg %p201
    $region30: #{ecapa_forward.20} parent=5 // pred_check_branch
      %204 = sbr.rel (%p202) target = $region32
    $region31: #{ecapa_forward.20} parent=5 // pred_region
      // Predicated region
      $region33: #{ecapa_forward.20} parent=31 // pred_check
        %p205 = pneg %p32
      $region34: #{ecapa_forward.20} parent=31 // pred_check_branch
        %207 = sbr.rel (%p205) target = $region36
      $region35: #{ecapa_forward.20} parent=31 // pred_region
        %p208 = scmp.lt.s32.totalorder %s12, 1
        %s209 = scalar_select %p208, %s12, 1
        %s210 = smul.addr %s209, 4
        %s211 = smul.addr %s210, 4
        %s212 = scalar_lea.vmem %s0, %s211
      $region36: #{ecapa_forward.20} parent=31 // pred_fallthru
        _
      // Predicated region
      $region37: #{ecapa_forward.20} parent=31 // pred_check
        %p213 = pneg %p58
      $region38: #{ecapa_forward.20} parent=31 // pred_check_branch
        %215 = sbr.rel (%p213) target = $region40
      $region39: #{ecapa_forward.20} parent=31 // pred_region
        %p216 = scmp.lt.s32.totalorder %s12, 1
        %s217 = scalar_select %p216, %s12, 1
        %s218 = smul.addr %s217, 4
        %s219 = smul.addr %s218, 4
        %s220 = scalar_lea.vmem %s1, %s219
      $region40: #{ecapa_forward.20} parent=31 // pred_fallthru
        _
    $region32: #{ecapa_forward.20} parent=5 // pred_fallthru
      _
    %p221 = scmp.le.s32.totalorder 1, %s12
    %p222 = scmp.lt.s32.totalorder %s12, 3
    %p223 = pnand %p221, %p222
    %p224 = pneg %p223
    // Predicated region
    $region41: #{ecapa_forward.20} parent=5 // pred_check
      _
    $region42: #{ecapa_forward.20} parent=5 // pred_check_branch
      %226 = sbr.rel (%p223) target = $region44
    $region43: #{ecapa_forward.20} parent=5 // pred_region
      %s227 = ssub.s32 %s12, 1
      %p228 = scmp.lt.s32.totalorder %s17, 1
      %s229 = scalar_select %p228, %s17, 1
      %s230 = smul.addr %s229, 4
      %s231 = smul.addr %s230, 4
      %s232 = scalar_lea.vmem %s0, %s231
      %p233 = pneg %p38
      %p234 = pneg %p35
      %p235 = scmp.lt.s32.totalorder %s17, 1
      %s236 = scalar_select %p235, %s17, 1
      %s237 = smul.addr %s236, 4
      %s238 = smul.addr %s237, 4
      %s239 = scalar_lea.vmem %s1, %s238
      %p240 = pneg %p64
      %p241 = pneg %p61
      %p242 = pneg %p85
      %p243 = pneg %p82
      %p244 = pneg %p106
      %p245 = pneg %p103
      %p246 = pneg %p127
      %p247 = pneg %p124
      %p248 = pneg %p148
      %p249 = pneg %p145
      %p250 = pneg %p174
      %p251 = pneg %p171
      %p252 = scmp.lt.s32.totalorder %s17, 1
      %s253 = scalar_select %p252, %s17, 1
      %s254 = smul.addr %s253, 4
      %s255 = smul.addr %s254, 4
      %s256 = scalar_lea.vmem %s6, %s255
      %p257 = scmp.lt.s32.totalorder %s17, 1
      %s258 = scalar_select %p257, %s17, 1
      %s259 = smul.addr %s258, 4
      %s260 = smul.addr %s259, 4
      %s261 = scalar_lea.vmem %s0, %s260
      %p262 = scmp.lt.s32.totalorder %s17, 1
      %s263 = scalar_select %p262, %s17, 1
      %s264 = smul.addr %s263, 4
      %s265 = smul.addr %s264, 4
      %s266 = scalar_lea.vmem %s1, %s265
      %p267 = scmp.lt.s32.totalorder %s17, 1
      %s268 = scalar_select %p267, %s17, 1
      %s269 = smul.addr %s268, 4
      %s270 = smul.addr %s269, 4
      %s271 = scalar_lea.vmem %s6, %s270
      %v273 = vld [vmem:[%s261] sm:$0xf]
      %v274 = vld [vmem:[%s261 + $0x4] sm:$0xf]
      %v275 = vld [vmem:[%s261 + $0x8] sm:$0xf]
      %v276 = vld [vmem:[%s261 + $0xc] sm:$0xf]
      %v277 = vunpack.c.l.bf16 %v273
      %v278 = vunpack.c.l.bf16 %v274
      %v279 = vunpack.c.l.bf16 %v275
      %v280 = vunpack.c.l.bf16 %v276
      %v281 = vld [vmem:[%s266] sm:$0xf]
      %v282 = vld [vmem:[%s266 + $0x4] sm:$0xf]
      %v283 = vld [vmem:[%s266 + $0x8] sm:$0xf]
      %v284 = vld [vmem:[%s266 + $0xc] sm:$0xf]
      %v285 = vunpack.c.l.bf16 %v281
      %v286 = vunpack.c.l.bf16 %v282
      %v287 = vunpack.c.l.bf16 %v283
      %v288 = vunpack.c.l.bf16 %v284
      %v289 = vadd.f32 %v277, %v285
      %v290 = vadd.f32 %v278, %v286
      %v291 = vadd.f32 %v279, %v287
      %v292 = vadd.f32 %v280, %v288
      %v293 = vadd.f32 %v289, %v290
      %v294 = vadd.f32 %v293, %v291
      %v295 = vadd.f32 %v294, %v292
      %v296 = vrot.slane %v295, 4
      %v297 = vadd.f32 %v295, %v296
      %v298 = vrot.slane %v297, 2
      %v299 = vadd.f32 %v297, %v298
      %v300 = vrot.slane %v299, 1
      %v301 = vadd.f32 %v299, %v300
      %v302 = vmul.f32 %v301, 0.03125
      %v303 = vpack.c.bf16 %v302, %v302
      %v304 = vld [vmem:[%s2] sm:$0xf]
      %v305 = vld [vmem:[%s2 + $0x4] sm:$0xf]
      %v306 = vld [vmem:[%s2 + $0x8] sm:$0xf]
      %v307 = vld [vmem:[%s2 + $0xc] sm:$0xf]
      %v308 = vld [vmem:[%s2 + $0x10] sm:$0xf]
      %v309 = vld [vmem:[%s2 + $0x14] sm:$0xf]
      %v310 = vld [vmem:[%s2 + $0x18] sm:$0xf]
      %v311 = vld [vmem:[%s2 + $0x1c] sm:$0xf]
      %v312 = vld [vmem:[%s2 + $0x20] sm:$0xf]
      %v313 = vld [vmem:[%s2 + $0x24] sm:$0xf]
      %v314 = vld [vmem:[%s2 + $0x28] sm:$0xf]
      %v315 = vld [vmem:[%s2 + $0x2c] sm:$0xf]
      %v316 = vld [vmem:[%s2 + $0x30] sm:$0xf]
      %v317 = vld [vmem:[%s2 + $0x34] sm:$0xf]
      %v318 = vld [vmem:[%s2 + $0x38] sm:$0xf]
      %v319 = vld [vmem:[%s2 + $0x3c] sm:$0xf]
      %v320 = vld [vmem:[%s3] sm:$0x1]
      %v337 = vunpack.c.l.b16 %v304
      %v338 = vunpack.c.l.b16 %v305
      %v339 = vunpack.c.l.b16 %v306
      %v340 = vunpack.c.l.b16 %v307
      %v341 = vunpack.c.l.b16 %v308
      %v342 = vunpack.c.l.b16 %v309
      %v343 = vunpack.c.l.b16 %v310
      %v344 = vunpack.c.l.b16 %v311
      %v345 = vunpack.c.l.b16 %v312
      %v346 = vunpack.c.l.b16 %v313
      %v347 = vunpack.c.l.b16 %v314
      %v348 = vunpack.c.l.b16 %v315
      %v349 = vunpack.c.l.b16 %v316
      %v350 = vunpack.c.l.b16 %v317
      %v351 = vunpack.c.l.b16 %v318
      %v352 = vunpack.c.l.b16 %v319
      %v353 = vpack.c.b16 %v338, %v337
      %v354 = vpack.c.b16 %v340, %v339
      %v355 = vpack.c.b16 %v342, %v341
      %v356 = vpack.c.b16 %v344, %v343
      %v357 = vpack.c.b16 %v346, %v345
      %v358 = vpack.c.b16 %v348, %v347
      %v359 = vpack.c.b16 %v350, %v349
      %v360 = vpack.c.b16 %v352, %v351
      %369 = vmatprep.subr.bf16.mxu0 0
      %370 = vmatpush1.bf16.msra.mxu0 %v360
      %371 = vmatprep.subr.bf16.mxu0 0
      %372 = vmatpush1.bf16.msra.mxu0 %v359
      %373 = vmatprep.subr.bf16.mxu0 0
      %374 = vmatpush1.bf16.msra.mxu0 %v358
      %375 = vmatprep.subr.bf16.mxu0 0
      %376 = vmatpush1.bf16.msra.mxu0 %v357
      %377 = vmatprep.subr.bf16.mxu0 0
      %378 = vmatpush1.bf16.msra.mxu0 %v356
      %379 = vmatprep.subr.bf16.mxu0 0
      %380 = vmatpush1.bf16.msra.mxu0 %v355
      %381 = vmatprep.subr.bf16.mxu0 0
      %382 = vmatpush1.bf16.msra.mxu0 %v354
      %383 = vmatprep.subr.bf16.mxu0 0
      %384 = vmatpush1.bf16.msra.mxu0 %v353
      %385 = vmatprep.subr.bf16.mxu0 0
      %386 = vmatpush2.bf16.msra.mxu0 0
      %387 = vmatprep.subr.bf16.mxu0 0
      %388 = vmatpush2.bf16.msra.mxu0 0
      %389 = vmatprep.subr.bf16.mxu0 0
      %390 = vmatpush2.bf16.msra.mxu0 0
      %391 = vmatprep.subr.bf16.mxu0 0
      %392 = vmatpush2.bf16.msra.mxu0 0
      %393 = vmatprep.subr.bf16.mxu0 0
      %394 = vmatpush2.bf16.msra.mxu0 0
      %395 = vmatprep.subr.bf16.mxu0 0
      %396 = vmatpush2.bf16.msra.mxu0 0
      %397 = vmatprep.subr.bf16.mxu0 0
      %398 = vmatpush2.bf16.msra.mxu0 0
      %399 = vmatprep.subr.bf16.mxu0 0
      %400 = vmatpush2.bf16.msra.mxu0 0
      %401 = vmatprep.mubr.bf16.mxu0 0
      %402 = vmatmul.mubr.bf16.gmra.mxu0 %v303
      %v403 = vpop.f32.mrf.mxu0
      %v404 = vadd.f32 %v320, %v403
      %v405 = vpop.f32.mrf.mxu0
      %v406 = vpop.f32.mrf.mxu0
      %v407 = vpop.f32.mrf.mxu0
      %408 = vdwg.mxu0
      %v409 = vmax.f32 %v404, 0.0
      %v410 = vpack.c.bf16 %v409, %v409
      %v411 = vld [vmem:[%s4] sm:$0xf]
      %v412 = vld [vmem:[%s4 + $0x4] sm:$0xf]
      %v413 = vld [vmem:[%s4 + $0x8] sm:$0xf]
      %v414 = vld [vmem:[%s4 + $0xc] sm:$0xf]
      %v415 = vld [vmem:[%s5] sm:$0x1]
      %v420 = vunpack.c.l.b16 %v411
      %v421 = vunpack.c.l.b16 %v412
      %v422 = vunpack.c.l.b16 %v413
      %v423 = vunpack.c.l.b16 %v414
      %v424 = vpack.c.b16 %v421, %v420
      %v425 = vpack.c.b16 %v423, %v422
      %vm428 = vcmask 261120
      %v430 = vsel %vm428, %v410, 0
      %432 = vmatprep.subr.bf16.mxu0 0
      %433 = vmatpush1.bf16.msra.mxu0 0
      %434 = vmatprep.subr.bf16.mxu0 0
      %435 = vmatpush1.bf16.msra.mxu0 0
      %436 = vmatprep.subr.bf16.mxu0 0
      %437 = vmatpush1.bf16.msra.mxu0 0
      %438 = vmatprep.subr.bf16.mxu0 0
      %439 = vmatpush1.bf16.msra.mxu0 0
      %440 = vmatprep.subr.bf16.mxu0 0
      %441 = vmatpush1.bf16.msra.mxu0 0
      %442 = vmatprep.subr.bf16.mxu0 0
      %443 = vmatpush1.bf16.msra.mxu0 0
      %444 = vmatprep.subr.bf16.mxu0 0
      %445 = vmatpush1.bf16.msra.mxu0 %v425
      %446 = vmatprep.subr.bf16.mxu0 0
      %447 = vmatpush1.bf16.msra.mxu0 %v424
      %448 = vmatprep.subr.bf16.mxu0 0
      %449 = vmatpush2.bf16.msra.mxu0 0
      %450 = vmatprep.subr.bf16.mxu0 0
      %451 = vmatpush2.bf16.msra.mxu0 0
      %452 = vmatprep.subr.bf16.mxu0 0
      %453 = vmatpush2.bf16.msra.mxu0 0
      %454 = vmatprep.subr.bf16.mxu0 0
      %455 = vmatpush2.bf16.msra.mxu0 0
      %456 = vmatprep.subr.bf16.mxu0 0
      %457 = vmatpush2.bf16.msra.mxu0 0
      %458 = vmatprep.subr.bf16.mxu0 0
      %459 = vmatpush2.bf16.msra.mxu0 0
      %460 = vmatprep.subr.bf16.mxu0 0
      %461 = vmatpush2.bf16.msra.mxu0 0
      %462 = vmatprep.subr.bf16.mxu0 0
      %463 = vmatpush2.bf16.msra.mxu0 0
      %464 = vmatprep.mubr.bf16.mxu0 0
      %465 = vmatmul.mubr.bf16.gmra.mxu0 %v430
      %v466 = vpop.f32.mrf.mxu0
      %v467 = vadd.f32 %v415, %v466
      %v468 = vpop.f32.mrf.mxu0
      %v469 = vpop.f32.mrf.mxu0
      %v470 = vpop.f32.mrf.mxu0
      %471 = vdwg.mxu0
      %v472 = vxor.u32 %v467, 2147483648
      %v473 = vmul.f32 %v472, 1.442695
      %v474 = vpow.pop %v473
      %v475 = vadd.f32 %v474, 1.0
      %v476 = vrcp.pop %v475
      %v477 = vmul.f32 1.0, %v476
      %v478 = vlaneseq
      %v479 = vshrl.u32 %v478, 7
      %v480 = vsub.s32 0, %v479
      %v481 = vrot.slane %v477, %v480
      %v482 = vmul.f32 %v289, %v481
      %v483 = vmul.f32 %v290, %v481
      %v484 = vmul.f32 %v291, %v481
      %v485 = vmul.f32 %v292, %v481
      %v486 = vpack.c.bf16 %v483, %v482
      %v487 = vpack.c.bf16 %v485, %v484
      %v490 = vunpack.c.l.b16 %v486
      %v491 = vunpack.c.h.b16 %v486
      %v492 = vunpack.c.l.b16 %v487
      %v493 = vunpack.c.h.b16 %v487
      %v494 = vpack.c.b16 %v490, %v490
      %v495 = vpack.c.b16 %v491, %v491
      %v496 = vpack.c.b16 %v492, %v492
      %v497 = vpack.c.b16 %v493, %v493
      %502 = vst [vmem:[%s271] sm:$0xf] %v494
      %503 = vst [vmem:[%s271 + $0x4] sm:$0xf] %v495
      %504 = vst [vmem:[%s271 + $0x8] sm:$0xf] %v496
      %505 = vst [vmem:[%s271 + $0xc] sm:$0xf] %v497
      %p506 = scmp.lt.s32.totalorder %s17, 1
      %s507 = scalar_select %p506, %s17, 1
      %s508 = smul.addr %s507, 4
      %s509 = smul.addr %s508, 4
      %s510 = scalar_lea.vmem %s6, %s509
      // Predicated region
      $region45: #{ecapa_forward.20} parent=43 // pred_check
        %p511 = pneg %p171
      $region46: #{ecapa_forward.20} parent=43 // pred_check_branch
        %513 = sbr.rel (%p511) target = $region48
      $region47: #{ecapa_forward.20} parent=43 // pred_region
        _
      $region48: #{ecapa_forward.20} parent=43 // pred_fallthru
        _
    $region44: #{ecapa_forward.20} parent=5 // pred_fallthru
      _
    %p514 = scmp.le.s32.totalorder 2, %s12
    // Predicated region
    $region49: #{ecapa_forward.20} parent=5 // pred_check
      %p515 = pneg %p514
    $region50: #{ecapa_forward.20} parent=5 // pred_check_branch
      %517 = sbr.rel (%p515) target = $region52
    $region51: #{ecapa_forward.20} parent=5 // pred_region
      %s518 = ssub.s32 %s12, 2
      // Predicated region
      $region53: #{ecapa_forward.20} parent=51 // pred_check
        %p519 = pneg %p177
      $region54: #{ecapa_forward.20} parent=51 // pred_check_branch
        %521 = sbr.rel (%p519) target = $region56
      $region55: #{ecapa_forward.20} parent=51 // pred_region
        %p522 = scmp.lt.s32.totalorder %s18, 1
        %s523 = scalar_select %p522, %s18, 1
        %s524 = smul.addr %s523, 4
        %s525 = smul.addr %s524, 4
        %s526 = scalar_lea.vmem %s6, %s525
      $region56: #{ecapa_forward.20} parent=51 // pred_fallthru
        _
    $region52: #{ecapa_forward.20} parent=5 // pred_fallthru
      _
  $region6: #{ecapa_forward.20} parent=0 // loop_footer
    %s16 = sadd.s32 1, %s12
  $region7: #{ecapa_forward.20} parent=0 // loop_footer_branch
    %11 = sbr.rel target = $region3
  $region8: #{ecapa_forward.20} parent=0 // loop_exit
    _

// kernel: ecapa_forward.22
$region0: #{ecapa_forward.22}
  #allocation0 [shape = 'u32[]', space=smem, size = 0x4, offset = 0x4, fixed_abs, tag = 'smem constant byte address 0x4 - core index']
  #allocation1 [shape = 'u32[144,128]{1,0:T(1,128)}', space=vmem, size = 0x12000, scoped, tag = 'internal scratch']
  #allocation2 [shape = 'f32[38,128]{1,0:T(8,128)}', space=vmem, size = 0x5000, scoped, tag = 'scratch operand']
  %s0 = inlined_call_operand.vmem [shape: bf16[2,32,128], index: 0, kind: input, shape index: {}]
  %s1 = inlined_call_operand.vmem [shape: bf16[3,128,128], index: 1, kind: input, shape index: {}]
  %s2 = inlined_call_operand.vmem [shape: f32[1,128], index: 2, kind: input, shape index: {}]
  %s3 = inlined_call_operand.vmem [shape: f32[1,128], index: 3, kind: input, shape index: {}]
  %s4 = inlined_call_operand.vmem [shape: f32[1,128], index: 4, kind: input, shape index: {}]
  %s5 = inlined_call_operand.vmem [shape: bf16[2,32,128], index: 5, kind: output, shape index: {}]
  %s6 = sld [smem:[#allocation0]]
  $region53: #{ecapa_forward.22} parent=0
    _
  %s8 = ssub.s32 1, %s6
  %s9 = scalar_select 0, %s8, %s6
  loop: start=0, step=1, limit=4
  $region2: #{ecapa_forward.22} parent=0 // loop_pre_header
    _
  $region3: #{ecapa_forward.22} parent=0 // loop_header
    %s11 = sphi 0, %s15
    %p12 = scmp.ge.s32.totalorder %s11, 4
    %s18 = sphi 0, %s30
    %s19 = sphi 0, %s26
    %s20 = sphi 0, %s18
    %s21 = sphi 0, %s19
    %s22 = sphi 0, %s20
    %s23 = sphi 0, %s21
    %s33 = sphi 0, %s35
    %s36 = sphi 0, %s33
    %s37 = sphi 0, %s36
    %s53 = sphi 0, %s37
    %s59 = sphi 0, %s61
    %s62 = sphi 0, %s59
    %s63 = sphi 0, %s62
    %s79 = sphi 0, %s63
    %s85 = sphi 0, %s87
    %s88 = sphi 0, %s85
    %s89 = sphi 0, %s88
    %s105 = sphi 0, %s89
    %s111 = sphi 0, %s113
    %s114 = sphi 0, %s111
    %s115 = sphi 0, %s114
    %s131 = sphi 0, %s115
    %s137 = sphi 0, %s139
    %s140 = sphi 0, %s137
    %s141 = sphi 0, %s140
    %s157 = sphi 0, %s141
    %s165 = sphi 0, %s167
    %s168 = sphi 0, %s165
    %s169 = sphi 0, %s168
    %s185 = sphi 0, %s169
  $region4: #{ecapa_forward.22} parent=0 // loop_header_branch
    %14 = sbr.rel (%p12) target = $region8
  $region5: #{ecapa_forward.22} parent=0 // loop_body
    %s16 = ssub.s32 %s11, 1
    %s17 = ssub.s32 %s11, 2
    %s24 = sadd.s32 1, %s19
    %p25 = scmp.ge.s32.totalorder %s24, 1
    %s26 = scalar_select %p25, 0, %s24
    %s27 = sadd.s32 1, %s18
    %s28 = scalar_select %p25, %s27, %s18
    %p29 = scmp.ge.s32.totalorder %s28, 2
    %s30 = scalar_select %p29, 0, %s28
    %s31 = ssub.s32 %s18, %s30
    %p32 = scmp.eq.s32.totalorder %s31, 0
    %s34 = sadd.s32 %s33, 1
    %s35 = scalar_select %p32, %s33, %s34
    %p38 = pneg %p32
    %p39 = scmp.eq.s32.totalorder %s11, 1
    %p40 = por %p38, %p39
    %p41 = scmp.ne.s32.totalorder %s33, %s36
    %p42 = scmp.eq.s32.totalorder %s11, 0
    %p43 = por %p41, %p42
    %p44 = scmp.ne.s32.totalorder %s33, %s36
    %p45 = scmp.eq.s32.totalorder %s16, 1
    %p46 = por %p44, %p45
    %p47 = scmp.ne.s32.totalorder %s36, %s37
    %p48 = scmp.eq.s32.totalorder %s16, 0
    %p49 = por %p47, %p48
    %p50 = scmp.ne.s32.totalorder %s36, %s37
    %p51 = scmp.eq.s32.totalorder %s17, 1
    %p52 = por %p50, %p51
    %p54 = scmp.ne.s32.totalorder %s37, %s53
    %p55 = scmp.eq.s32.totalorder %s17, 0
    %p56 = por %p54, %p55
    %s57 = ssub.s32 %s19, %s26
    %p58 = scmp.eq.s32.totalorder %s57, 0
    %s60 = sadd.s32 %s59, 1
    %s61 = scalar_select %p58, %s59, %s60
    %p64 = pneg %p58
    %p65 = scmp.eq.s32.totalorder %s11, 1
    %p66 = por %p64, %p65
    %p67 = scmp.ne.s32.totalorder %s59, %s62
    %p68 = scmp.eq.s32.totalorder %s11, 0
    %p69 = por %p67, %p68
    %p70 = scmp.ne.s32.totalorder %s59, %s62
    %p71 = scmp.eq.s32.totalorder %s16, 1
    %p72 = por %p70, %p71
    %p73 = scmp.ne.s32.totalorder %s62, %s63
    %p74 = scmp.eq.s32.totalorder %s16, 0
    %p75 = por %p73, %p74
    %p76 = scmp.ne.s32.totalorder %s62, %s63
    %p77 = scmp.eq.s32.totalorder %s17, 1
    %p78 = por %p76, %p77
    %p80 = scmp.ne.s32.totalorder %s63, %s79
    %p81 = scmp.eq.s32.totalorder %s17, 0
    %p82 = por %p80, %p81
    %s83 = ssub.s32 %s19, %s26
    %p84 = scmp.eq.s32.totalorder %s83, 0
    %s86 = sadd.s32 %s85, 1
    %s87 = scalar_select %p84, %s85, %s86
    %p90 = pneg %p84
    %p91 = scmp.eq.s32.totalorder %s11, 1
    %p92 = por %p90, %p91
    %p93 = scmp.ne.s32.totalorder %s85, %s88
    %p94 = scmp.eq.s32.totalorder %s11, 0
    %p95 = por %p93, %p94
    %p96 = scmp.ne.s32.totalorder %s85, %s88
    %p97 = scmp.eq.s32.totalorder %s16, 1
    %p98 = por %p96, %p97
    %p99 = scmp.ne.s32.totalorder %s88, %s89
    %p100 = scmp.eq.s32.totalorder %s16, 0
    %p101 = por %p99, %p100
    %p102 = scmp.ne.s32.totalorder %s88, %s89
    %p103 = scmp.eq.s32.totalorder %s17, 1
    %p104 = por %p102, %p103
    %p106 = scmp.ne.s32.totalorder %s89, %s105
    %p107 = scmp.eq.s32.totalorder %s17, 0
    %p108 = por %p106, %p107
    %s109 = ssub.s32 %s19, %s26
    %p110 = scmp.eq.s32.totalorder %s109, 0
    %s112 = sadd.s32 %s111, 1
    %s113 = scalar_select %p110, %s111, %s112
    %p116 = pneg %p110
    %p117 = scmp.eq.s32.totalorder %s11, 1
    %p118 = por %p116, %p117
    %p119 = scmp.ne.s32.totalorder %s111, %s114
    %p120 = scmp.eq.s32.totalorder %s11, 0
    %p121 = por %p119, %p120
    %p122 = scmp.ne.s32.totalorder %s111, %s114
    %p123 = scmp.eq.s32.totalorder %s16, 1
    %p124 = por %p122, %p123
    %p125 = scmp.ne.s32.totalorder %s114, %s115
    %p126 = scmp.eq.s32.totalorder %s16, 0
    %p127 = por %p125, %p126
    %p128 = scmp.ne.s32.totalorder %s114, %s115
    %p129 = scmp.eq.s32.totalorder %s17, 1
    %p130 = por %p128, %p129
    %p132 = scmp.ne.s32.totalorder %s115, %s131
    %p133 = scmp.eq.s32.totalorder %s17, 0
    %p134 = por %p132, %p133
    %s135 = ssub.s32 %s19, %s26
    %p136 = scmp.eq.s32.totalorder %s135, 0
    %s138 = sadd.s32 %s137, 1
    %s139 = scalar_select %p136, %s137, %s138
    %p142 = pneg %p136
    %p143 = scmp.eq.s32.totalorder %s11, 1
    %p144 = por %p142, %p143
    %p145 = scmp.ne.s32.totalorder %s137, %s140
    %p146 = scmp.eq.s32.totalorder %s11, 0
    %p147 = por %p145, %p146
    %p148 = scmp.ne.s32.totalorder %s137, %s140
    %p149 = scmp.eq.s32.totalorder %s16, 1
    %p150 = por %p148, %p149
    %p151 = scmp.ne.s32.totalorder %s140, %s141
    %p152 = scmp.eq.s32.totalorder %s16, 0
    %p153 = por %p151, %p152
    %p154 = scmp.ne.s32.totalorder %s140, %s141
    %p155 = scmp.eq.s32.totalorder %s17, 1
    %p156 = por %p154, %p155
    %p158 = scmp.ne.s32.totalorder %s141, %s157
    %p159 = scmp.eq.s32.totalorder %s17, 0
    %p160 = por %p158, %p159
    %s161 = ssub.s32 %s18, %s30
    %s162 = ssub.s32 %s19, %s26
    %s163 = sor.u32 %s161, %s162
    %p164 = scmp.eq.s32.totalorder %s163, 0
    %s166 = sadd.s32 %s165, 1
    %s167 = scalar_select %p164, %s165, %s166
    %p170 = pneg %p164
    %p171 = scmp.eq.s32.totalorder %s11, 1
    %p172 = por %p170, %p171
    %p173 = scmp.ne.s32.totalorder %s165, %s168
    %p174 = scmp.eq.s32.totalorder %s11, 0
    %p175 = por %p173, %p174
    %p176 = scmp.ne.s32.totalorder %s165, %s168
    %p177 = scmp.eq.s32.totalorder %s16, 1
    %p178 = por %p176, %p177
    %p179 = scmp.ne.s32.totalorder %s168, %s169
    %p180 = scmp.eq.s32.totalorder %s16, 0
    %p181 = por %p179, %p180
    %p182 = scmp.ne.s32.totalorder %s168, %s169
    %p183 = scmp.eq.s32.totalorder %s17, 1
    %p184 = por %p182, %p183
    %p186 = scmp.ne.s32.totalorder %s169, %s185
    %p187 = scmp.eq.s32.totalorder %s17, 0
    %p188 = por %p186, %p187
    %p189 = scmp.le.s32.totalorder 1, %s11
    %p190 = scmp.lt.s32.totalorder %s11, 3
    %p191 = pnand %p189, %p190
    %p192 = pneg %p191
    // Predicated region
    $region9: #{ecapa_forward.22} parent=5 // pred_check
      _
    $region10: #{ecapa_forward.22} parent=5 // pred_check_branch
      %194 = sbr.rel (%p191) target = $region12
    $region11: #{ecapa_forward.22} parent=5 // pred_region
      %s195 = ssub.s32 %s11, 1
      // Predicated region
      $region13: #{ecapa_forward.22} parent=11 // pred_check
        %p196 = pneg %p75
      $region14: #{ecapa_forward.22} parent=11 // pred_check_branch
        %198 = sbr.rel (%p196) target = $region16
      $region15: #{ecapa_forward.22} parent=11 // pred_region
        %p199 = scmp.lt.s32.totalorder %s21, 0
        %s200 = scalar_select %p199, %s21, 0
        %s201 = smul.addr %s200, 4
        %s202 = scalar_lea.vmem %s1, %s201
      $region16: #{ecapa_forward.22} parent=11 // pred_fallthru
        _
      // Predicated region
      $region17: #{ecapa_forward.22} parent=11 // pred_check
        %p203 = pneg %p101
      $region18: #{ecapa_forward.22} parent=11 // pred_check_branch
        %205 = sbr.rel (%p203) target = $region20
      $region19: #{ecapa_forward.22} parent=11 // pred_region
        %p206 = scmp.lt.s32.totalorder %s21, 0
        %s207 = scalar_select %p206, %s21, 0
        %s208 = scalar_lea.vmem %s2, %s207
      $region20: #{ecapa_forward.22} parent=11 // pred_fallthru
        _
      // Predicated region
      $region21: #{ecapa_forward.22} parent=11 // pred_check
        %p209 = pneg %p127
      $region22: #{ecapa_forward.22} parent=11 // pred_check_branch
        %211 = sbr.rel (%p209) target = $region24
      $region23: #{ecapa_forward.22} parent=11 // pred_region
        %p212 = scmp.lt.s32.totalorder %s21, 0
        %s213 = scalar_select %p212, %s21, 0
        %s214 = scalar_lea.vmem %s3, %s213
      $region24: #{ecapa_forward.22} parent=11 // pred_fallthru
        _
      // Predicated region
      $region25: #{ecapa_forward.22} parent=11 // pred_check
        %p215 = pneg %p153
      $region26: #{ecapa_forward.22} parent=11 // pred_check_branch
        %217 = sbr.rel (%p215) target = $region28
      $region27: #{ecapa_forward.22} parent=11 // pred_region
        %p218 = scmp.lt.s32.totalorder %s21, 0
        %s219 = scalar_select %p218, %s21, 0
        %s220 = scalar_lea.vmem %s4, %s219
      $region28: #{ecapa_forward.22} parent=11 // pred_fallthru
        _
    $region12: #{ecapa_forward.22} parent=5 // pred_fallthru
      _
    %p221 = scmp.lt.s32.totalorder %s11, 2
    // Predicated region
    $region29: #{ecapa_forward.22} parent=5 // pred_check
      %p222 = pneg %p221
    $region30: #{ecapa_forward.22} parent=5 // pred_check_branch
      %224 = sbr.rel (%p222) target = $region32
    $region31: #{ecapa_forward.22} parent=5 // pred_region
      // Predicated region
      $region33: #{ecapa_forward.22} parent=31 // pred_check
        %p225 = pneg %p43
      $region34: #{ecapa_forward.22} parent=31 // pred_check_branch
        %227 = sbr.rel (%p225) target = $region36
      $region35: #{ecapa_forward.22} parent=31 // pred_region
        %p228 = scmp.lt.s32.totalorder %s18, 1
        %s229 = scalar_select %p228, %s18, 1
        %s230 = smul.addr %s229, 4
        %s231 = smul.addr %s230, 4
        %s232 = scalar_lea.vmem %s0, %s231
      $region36: #{ecapa_forward.22} parent=31 // pred_fallthru
        _
    $region32: #{ecapa_forward.22} parent=5 // pred_fallthru
      _
    %p233 = scmp.le.s32.totalorder 1, %s11
    %p234 = scmp.lt.s32.totalorder %s11, 3
    %p235 = pnand %p233, %p234
    %p236 = pneg %p235
    // Predicated region
    $region37: #{ecapa_forward.22} parent=5 // pred_check
      _
    $region38: #{ecapa_forward.22} parent=5 // pred_check_branch
      %238 = sbr.rel (%p235) target = $region40
    $region39: #{ecapa_forward.22} parent=5 // pred_region
      %s239 = ssub.s32 %s11, 1
      %p240 = scmp.lt.s32.totalorder %s20, 1
      %s241 = scalar_select %p240, %s20, 1
      %s242 = smul.addr %s241, 4
      %s243 = smul.addr %s242, 4
      %s244 = scalar_lea.vmem %s0, %s243
      %p245 = pneg %p49
      %p246 = pneg %p46
      %p247 = scmp.lt.s32.totalorder %s21, 0
      %s248 = scalar_select %p247, %s21, 0
      %s249 = smul.addr %s248, 4
      %s250 = scalar_lea.vmem %s1, %s249
      %p251 = pneg %p75
      %p252 = pneg %p72
      %p253 = scmp.lt.s32.totalorder %s21, 0
      %s254 = scalar_select %p253, %s21, 0
      %s255 = scalar_lea.vmem %s2, %s254
      %p256 = pneg %p101
      %p257 = pneg %p98
      %p258 = scmp.lt.s32.totalorder %s21, 0
      %s259 = scalar_select %p258, %s21, 0
      %s260 = scalar_lea.vmem %s3, %s259
      %p261 = pneg %p127
      %p262 = pneg %p124
      %p263 = scmp.lt.s32.totalorder %s21, 0
      %s264 = scalar_select %p263, %s21, 0
      %s265 = scalar_lea.vmem %s4, %s264
      %p266 = pneg %p153
      %p267 = pneg %p150
      %p268 = pneg %p181
      %p269 = pneg %p178
      %p270 = scmp.lt.s32.totalorder %s20, 1
      %s271 = scalar_select %p270, %s20, 1
      %p272 = scmp.lt.s32.totalorder %s21, 0
      %s273 = scalar_select %p272, %s21, 0
      %s274 = smul.addr %s271, 4
      %s275 = sadd.s32 %s273, %s274
      %s276 = smul.addr %s275, 4
      %s277 = scalar_lea.vmem %s5, %s276
      %p278 = scmp.lt.s32.totalorder %s20, 1
      %s279 = scalar_select %p278, %s20, 1
      %s280 = smul.addr %s279, 4
      %s281 = smul.addr %s280, 4
      %s282 = scalar_lea.vmem %s0, %s281
      %p283 = scmp.lt.s32.totalorder %s21, 0
      %s284 = scalar_select %p283, %s21, 0
      %s285 = smul.addr %s284, 4
      %s286 = scalar_lea.vmem %s1, %s285
      %p287 = scmp.lt.s32.totalorder %s21, 0
      %s288 = scalar_select %p287, %s21, 0
      %s289 = scalar_lea.vmem %s2, %s288
      %p290 = scmp.lt.s32.totalorder %s21, 0
      %s291 = scalar_select %p290, %s21, 0
      %s292 = scalar_lea.vmem %s3, %s291
      %p293 = scmp.lt.s32.totalorder %s21, 0
      %s294 = scalar_select %p293, %s21, 0
      %s295 = scalar_lea.vmem %s4, %s294
      %p296 = scmp.lt.s32.totalorder %s20, 1
      %s297 = scalar_select %p296, %s20, 1
      %p298 = scmp.lt.s32.totalorder %s21, 0
      %s299 = scalar_select %p298, %s21, 0
      %s300 = smul.addr %s297, 4
      %s301 = sadd.s32 %s299, %s300
      %s302 = smul.addr %s301, 4
      %s303 = scalar_lea.vmem %s5, %s302
      %v305 = vld [vmem:[%s282] sm:$0xf]
      %v306 = vld [vmem:[%s282 + $0x4] sm:$0xf]
      %v307 = vld [vmem:[%s282 + $0x8] sm:$0xf]
      %v308 = vld [vmem:[%s282 + $0xc] sm:$0xf]
      %309 = vst [vmem:[#allocation2] sm:$0xff] 0.0
      %310 = vst [vmem:[#allocation2 + $0x8] sm:$0xff] 0.0
      %311 = vst [vmem:[#allocation2 + $0x10] sm:$0xff] 0.0
      %312 = vst [vmem:[#allocation2 + $0x18] sm:$0xff] 0.0
      %313 = vst [vmem:[#allocation2 + $0x20] sm:$0x3f] 0.0
      %v314 = vunpack.c.l.bf16 %v305
      %v315 = vunpack.c.l.bf16 %v306
      %v316 = vunpack.c.l.bf16 %v307
      %v317 = vunpack.c.l.bf16 %v308
      %318 = vst [vmem:[#allocation2 + $0x3] sm:$0xff] %v314
      %319 = vst [vmem:[#allocation2 + $0xb] sm:$0xff] %v315
      %320 = vst [vmem:[#allocation2 + $0x13] sm:$0xff] %v316
      %321 = vst [vmem:[#allocation2 + $0x1b] sm:$0xff] %v317
      %v322 = vld [vmem:[#allocation2] sm:$0xff]
      %v323 = vld [vmem:[#allocation2 + $0x8] sm:$0xff]
      %v324 = vld [vmem:[#allocation2 + $0x10] sm:$0xff]
      %v325 = vld [vmem:[#allocation2 + $0x18] sm:$0xff]
      %v326 = vpack.c.bf16 %v323, %v322
      %v327 = vpack.c.bf16 %v325, %v324
      %v328 = vld [vmem:[#allocation2 + $0x3] sm:$0xff]
      %v329 = vld [vmem:[#allocation2 + $0xb] sm:$0xff]
      %v330 = vld [vmem:[#allocation2 + $0x13] sm:$0xff]
      %v331 = vld [vmem:[#allocation2 + $0x1b] sm:$0xff]
      %v332 = vpack.c.bf16 %v329, %v328
      %v333 = vpack.c.bf16 %v331, %v330
      %v334 = vld [vmem:[#allocation2 + $0x6] sm:$0xff]
      %v335 = vld [vmem:[#allocation2 + $0xe] sm:$0xff]
      %v336 = vld [vmem:[#allocation2 + $0x16] sm:$0xff]
      %v337 = vld [vmem:[#allocation2 + $0x1e] sm:$0xff]
      %v338 = vpack.c.bf16 %v335, %v334
      %v339 = vpack.c.bf16 %v337, %v336
      %v340 = vld [vmem:[%s286] sm:$0xf]
      %v341 = vld [vmem:[%s286 + $0x4] sm:$0xf]
      %v342 = vld [vmem:[%s286 + $0x8] sm:$0xf]
      %v343 = vld [vmem:[%s286 + $0xc] sm:$0xf]
      %v344 = vld [vmem:[%s286 + $0x10] sm:$0xf]
      %v345 = vld [vmem:[%s286 + $0x14] sm:$0xf]
      %v346 = vld [vmem:[%s286 + $0x18] sm:$0xf]
      %v347 = vld [vmem:[%s286 + $0x1c] sm:$0xf]
      %v348 = vld [vmem:[%s286 + $0x20] sm:$0xf]
      %v349 = vld [vmem:[%s286 + $0x24] sm:$0xf]
      %v350 = vld [vmem:[%s286 + $0x28] sm:$0xf]
      %v351 = vld [vmem:[%s286 + $0x2c] sm:$0xf]
      %v352 = vld [vmem:[%s286 + $0x30] sm:$0xf]
      %v353 = vld [vmem:[%s286 + $0x34] sm:$0xf]
      %v354 = vld [vmem:[%s286 + $0x38] sm:$0xf]
      %v355 = vld [vmem:[%s286 + $0x3c] sm:$0xf]
      %s356 = scalar_lea.vmem %s286, 64
      %v357 = vld [vmem:[%s356] sm:$0xf]
      %v358 = vld [vmem:[%s356 + $0x4] sm:$0xf]
      %v359 = vld [vmem:[%s356 + $0x8] sm:$0xf]
      %v360 = vld [vmem:[%s356 + $0xc] sm:$0xf]
      %v361 = vld [vmem:[%s356 + $0x10] sm:$0xf]
      %v362 = vld [vmem:[%s356 + $0x14] sm:$0xf]
      %v363 = vld [vmem:[%s356 + $0x18] sm:$0xf]
      %v364 = vld [vmem:[%s356 + $0x1c] sm:$0xf]
      %v365 = vld [vmem:[%s356 + $0x20] sm:$0xf]
      %v366 = vld [vmem:[%s356 + $0x24] sm:$0xf]
      %v367 = vld [vmem:[%s356 + $0x28] sm:$0xf]
      %v368 = vld [vmem:[%s356 + $0x2c] sm:$0xf]
      %v369 = vld [vmem:[%s356 + $0x30] sm:$0xf]
      %v370 = vld [vmem:[%s356 + $0x34] sm:$0xf]
      %v371 = vld [vmem:[%s356 + $0x38] sm:$0xf]
      %v372 = vld [vmem:[%s356 + $0x3c] sm:$0xf]
      %v389 = vunpack.c.l.b16 %v357
      %v390 = vunpack.c.l.b16 %v358
      %v391 = vunpack.c.l.b16 %v359
      %v392 = vunpack.c.l.b16 %v360
      %v393 = vunpack.c.l.b16 %v361
      %v394 = vunpack.c.l.b16 %v362
      %v395 = vunpack.c.l.b16 %v363
      %v396 = vunpack.c.l.b16 %v364
      %v397 = vunpack.c.l.b16 %v365
      %v398 = vunpack.c.l.b16 %v366
      %v399 = vunpack.c.l.b16 %v367
      %v400 = vunpack.c.l.b16 %v368
      %v401 = vunpack.c.l.b16 %v369
      %v402 = vunpack.c.l.b16 %v370
      %v403 = vunpack.c.l.b16 %v371
      %v404 = vunpack.c.l.b16 %v372
      %v405 = vpack.c.b16 %v390, %v389
      %v406 = vpack.c.b16 %v392, %v391
      %v407 = vpack.c.b16 %v394, %v393
      %v408 = vpack.c.b16 %v396, %v395
      %v409 = vpack.c.b16 %v398, %v397
      %v410 = vpack.c.b16 %v400, %v399
      %v411 = vpack.c.b16 %v402, %v401
      %v412 = vpack.c.b16 %v404, %v403
      %421 = vmatprep.subr.bf16.mxu0 0
      %422 = vmatpush1.bf16.msra.mxu0 %v412
      %423 = vmatprep.subr.bf16.mxu0 0
      %424 = vmatpush1.bf16.msra.mxu0 %v411
      %425 = vmatprep.subr.bf16.mxu0 0
      %426 = vmatpush1.bf16.msra.mxu0 %v410
      %427 = vmatprep.subr.bf16.mxu0 0
      %428 = vmatpush1.bf16.msra.mxu0 %v409
      %429 = vmatprep.subr.bf16.mxu0 0
      %430 = vmatpush1.bf16.msra.mxu0 %v408
      %431 = vmatprep.subr.bf16.mxu0 0
      %432 = vmatpush1.bf16.msra.mxu0 %v407
      %433 = vmatprep.subr.bf16.mxu0 0
      %434 = vmatpush1.bf16.msra.mxu0 %v406
      %435 = vmatprep.subr.bf16.mxu0 0
      %436 = vmatpush1.bf16.msra.mxu0 %v405
      %437 = vmatprep.subr.bf16.mxu0 0
      %438 = vmatpush2.bf16.msra.mxu0 0
      %439 = vmatprep.subr.bf16.mxu0 0
      %440 = vmatpush2.bf16.msra.mxu0 0
      %441 = vmatprep.subr.bf16.mxu0 0
      %442 = vmatpush2.bf16.msra.mxu0 0
      %443 = vmatprep.subr.bf16.mxu0 0
      %444 = vmatpush2.bf16.msra.mxu0 0
      %445 = vmatprep.subr.bf16.mxu0 0
      %446 = vmatpush2.bf16.msra.mxu0 0
      %447 = vmatprep.subr.bf16.mxu0 0
      %448 = vmatpush2.bf16.msra.mxu0 0
      %449 = vmatprep.subr.bf16.mxu0 0
      %450 = vmatpush2.bf16.msra.mxu0 0
      %451 = vmatprep.subr.bf16.mxu0 0
      %452 = vmatpush2.bf16.msra.mxu0 0
      %453 = vmatprep.mubr.bf16.mxu0 0
      %454 = vmatmul.mubr.bf16.gmra.mxu0 %v332
      %v455 = vpop.f32.mrf.mxu0
      %v456 = vadd.f32 0.0, %v455
      %v457 = vpop.f32.mrf.mxu0
      %v458 = vpop.f32.mrf.mxu0
      %v459 = vadd.f32 0.0, %v458
      %v460 = vpop.f32.mrf.mxu0
      %461 = vmatprep.mubr.bf16.mxu0 0
      %462 = vmatmul.mubr.bf16.gmra.mxu0 %v333
      %v463 = vpop.f32.mrf.mxu0
      %v464 = vadd.f32 0.0, %v463
      %v465 = vpop.f32.mrf.mxu0
      %v466 = vpop.f32.mrf.mxu0
      %v467 = vadd.f32 0.0, %v466
      %v468 = vpop.f32.mrf.mxu0
      %469 = vdwg.mxu0
      %v486 = vunpack.c.l.b16 %v340
      %v487 = vunpack.c.l.b16 %v341
      %v488 = vunpack.c.l.b16 %v342
      %v489 = vunpack.c.l.b16 %v343
      %v490 = vunpack.c.l.b16 %v344
      %v491 = vunpack.c.l.b16 %v345
      %v492 = vunpack.c.l.b16 %v346
      %v493 = vunpack.c.l.b16 %v347
      %v494 = vunpack.c.l.b16 %v348
      %v495 = vunpack.c.l.b16 %v349
      %v496 = vunpack.c.l.b16 %v350
      %v497 = vunpack.c.l.b16 %v351
      %v498 = vunpack.c.l.b16 %v352
      %v499 = vunpack.c.l.b16 %v353
      %v500 = vunpack.c.l.b16 %v354
      %v501 = vunpack.c.l.b16 %v355
      %v502 = vpack.c.b16 %v487, %v486
      %v503 = vpack.c.b16 %v489, %v488
      %v504 = vpack.c.b16 %v491, %v490
      %v505 = vpack.c.b16 %v493, %v492
      %v506 = vpack.c.b16 %v495, %v494
      %v507 = vpack.c.b16 %v497, %v496
      %v508 = vpack.c.b16 %v499, %v498
      %v509 = vpack.c.b16 %v501, %v500
      %518 = vmatprep.subr.bf16.mxu0 0
      %519 = vmatpush1.bf16.msra.mxu0 %v509
      %520 = vmatprep.subr.bf16.mxu0 0
      %521 = vmatpush1.bf16.msra.mxu0 %v508
      %522 = vmatprep.subr.bf16.mxu0 0
      %523 = vmatpush1.bf16.msra.mxu0 %v507
      %524 = vmatprep.subr.bf16.mxu0 0
      %525 = vmatpush1.bf16.msra.mxu0 %v506
      %526 = vmatprep.subr.bf16.mxu0 0
      %527 = vmatpush1.bf16.msra.mxu0 %v505
      %528 = vmatprep.subr.bf16.mxu0 0
      %529 = vmatpush1.bf16.msra.mxu0 %v504
      %530 = vmatprep.subr.bf16.mxu0 0
      %531 = vmatpush1.bf16.msra.mxu0 %v503
      %532 = vmatprep.subr.bf16.mxu0 0
      %533 = vmatpush1.bf16.msra.mxu0 %v502
      %534 = vmatprep.subr.bf16.mxu0 0
      %535 = vmatpush2.bf16.msra.mxu0 0
      %536 = vmatprep.subr.bf16.mxu0 0
      %537 = vmatpush2.bf16.msra.mxu0 0
      %538 = vmatprep.subr.bf16.mxu0 0
      %539 = vmatpush2.bf16.msra.mxu0 0
      %540 = vmatprep.subr.bf16.mxu0 0
      %541 = vmatpush2.bf16.msra.mxu0 0
      %542 = vmatprep.subr.bf16.mxu0 0
      %543 = vmatpush2.bf16.msra.mxu0 0
      %544 = vmatprep.subr.bf16.mxu0 0
      %545 = vmatpush2.bf16.msra.mxu0 0
      %546 = vmatprep.subr.bf16.mxu0 0
      %547 = vmatpush2.bf16.msra.mxu0 0
      %548 = vmatprep.subr.bf16.mxu0 0
      %549 = vmatpush2.bf16.msra.mxu0 0
      %550 = vmatprep.mubr.bf16.mxu0 0
      %551 = vmatmul.mubr.bf16.gmra.mxu0 %v326
      %v552 = vpop.f32.mrf.mxu0
      %v553 = vadd.f32 %v456, %v552
      %v554 = vpop.f32.mrf.mxu0
      %v555 = vpop.f32.mrf.mxu0
      %v556 = vadd.f32 %v459, %v555
      %v557 = vpop.f32.mrf.mxu0
      %558 = vmatprep.mubr.bf16.mxu0 0
      %559 = vmatmul.mubr.bf16.gmra.mxu0 %v327
      %v560 = vpop.f32.mrf.mxu0
      %v561 = vadd.f32 %v464, %v560
      %v562 = vpop.f32.mrf.mxu0
      %v563 = vpop.f32.mrf.mxu0
      %v564 = vadd.f32 %v467, %v563
      %v565 = vpop.f32.mrf.mxu0
      %566 = vdwg.mxu0
      %s567 = scalar_lea.vmem %s286, 128
      %v568 = vld [vmem:[%s567] sm:$0xf]
      %v569 = vld [vmem:[%s567 + $0x4] sm:$0xf]
      %v570 = vld [vmem:[%s567 + $0x8] sm:$0xf]
      %v571 = vld [vmem:[%s567 + $0xc] sm:$0xf]
      %v572 = vld [vmem:[%s567 + $0x10] sm:$0xf]
      %v573 = vld [vmem:[%s567 + $0x14] sm:$0xf]
      %v574 = vld [vmem:[%s567 + $0x18] sm:$0xf]
      %v575 = vld [vmem:[%s567 + $0x1c] sm:$0xf]
      %v576 = vld [vmem:[%s567 + $0x20] sm:$0xf]
      %v577 = vld [vmem:[%s567 + $0x24] sm:$0xf]
      %v578 = vld [vmem:[%s567 + $0x28] sm:$0xf]
      %v579 = vld [vmem:[%s567 + $0x2c] sm:$0xf]
      %v580 = vld [vmem:[%s567 + $0x30] sm:$0xf]
      %v581 = vld [vmem:[%s567 + $0x34] sm:$0xf]
      %v582 = vld [vmem:[%s567 + $0x38] sm:$0xf]
      %v583 = vld [vmem:[%s567 + $0x3c] sm:$0xf]
      %v600 = vunpack.c.l.b16 %v568
      %v601 = vunpack.c.l.b16 %v569
      %v602 = vunpack.c.l.b16 %v570
      %v603 = vunpack.c.l.b16 %v571
      %v604 = vunpack.c.l.b16 %v572
      %v605 = vunpack.c.l.b16 %v573
      %v606 = vunpack.c.l.b16 %v574
      %v607 = vunpack.c.l.b16 %v575
      %v608 = vunpack.c.l.b16 %v576
      %v609 = vunpack.c.l.b16 %v577
      %v610 = vunpack.c.l.b16 %v578
      %v611 = vunpack.c.l.b16 %v579
      %v612 = vunpack.c.l.b16 %v580
      %v613 = vunpack.c.l.b16 %v581
      %v614 = vunpack.c.l.b16 %v582
      %v615 = vunpack.c.l.b16 %v583
      %v616 = vpack.c.b16 %v601, %v600
      %v617 = vpack.c.b16 %v603, %v602
      %v618 = vpack.c.b16 %v605, %v604
      %v619 = vpack.c.b16 %v607, %v606
      %v620 = vpack.c.b16 %v609, %v608
      %v621 = vpack.c.b16 %v611, %v610
      %v622 = vpack.c.b16 %v613, %v612
      %v623 = vpack.c.b16 %v615, %v614
      %632 = vmatprep.subr.bf16.mxu0 0
      %633 = vmatpush1.bf16.msra.mxu0 %v623
      %634 = vmatprep.subr.bf16.mxu0 0
      %635 = vmatpush1.bf16.msra.mxu0 %v622
      %636 = vmatprep.subr.bf16.mxu0 0
      %637 = vmatpush1.bf16.msra.mxu0 %v621
      %638 = vmatprep.subr.bf16.mxu0 0
      %639 = vmatpush1.bf16.msra.mxu0 %v620
      %640 = vmatprep.subr.bf16.mxu0 0
      %641 = vmatpush1.bf16.msra.mxu0 %v619
      %642 = vmatprep.subr.bf16.mxu0 0
      %643 = vmatpush1.bf16.msra.mxu0 %v618
      %644 = vmatprep.subr.bf16.mxu0 0
      %645 = vmatpush1.bf16.msra.mxu0 %v617
      %646 = vmatprep.subr.bf16.mxu0 0
      %647 = vmatpush1.bf16.msra.mxu0 %v616
      %648 = vmatprep.subr.bf16.mxu0 0
      %649 = vmatpush2.bf16.msra.mxu0 0
      %650 = vmatprep.subr.bf16.mxu0 0
      %651 = vmatpush2.bf16.msra.mxu0 0
      %652 = vmatprep.subr.bf16.mxu0 0
      %653 = vmatpush2.bf16.msra.mxu0 0
      %654 = vmatprep.subr.bf16.mxu0 0
      %655 = vmatpush2.bf16.msra.mxu0 0
      %656 = vmatprep.subr.bf16.mxu0 0
      %657 = vmatpush2.bf16.msra.mxu0 0
      %658 = vmatprep.subr.bf16.mxu0 0
      %659 = vmatpush2.bf16.msra.mxu0 0
      %660 = vmatprep.subr.bf16.mxu0 0
      %661 = vmatpush2.bf16.msra.mxu0 0
      %662 = vmatprep.subr.bf16.mxu0 0
      %663 = vmatpush2.bf16.msra.mxu0 0
      %664 = vmatprep.mubr.bf16.mxu0 0
      %665 = vmatmul.mubr.bf16.gmra.mxu0 %v338
      %v666 = vpop.f32.mrf.mxu0
      %v667 = vadd.f32 0.0, %v666
      %v668 = vpop.f32.mrf.mxu0
      %v669 = vpop.f32.mrf.mxu0
      %v670 = vadd.f32 0.0, %v669
      %v671 = vpop.f32.mrf.mxu0
      %672 = vmatprep.mubr.bf16.mxu0 0
      %673 = vmatmul.mubr.bf16.gmra.mxu0 %v339
      %v674 = vpop.f32.mrf.mxu0
      %v675 = vadd.f32 0.0, %v674
      %v676 = vpop.f32.mrf.mxu0
      %v677 = vpop.f32.mrf.mxu0
      %v678 = vadd.f32 0.0, %v677
      %v679 = vpop.f32.mrf.mxu0
      %680 = vdwg.mxu0
      %v681 = vadd.f32 %v553, %v667
      %v682 = vadd.f32 %v556, %v670
      %v683 = vadd.f32 %v561, %v675
      %v684 = vadd.f32 %v564, %v678
      %v685 = vld [vmem:[%s289] sm:$0x1]
      %v687 = vlaneseq
      %v688 = vshrl.u32 %v687, 7
      %v689 = vsub.s32 0, %v688
      %v690 = vrot.slane %v685, %v689
      %v692 = vadd.f32 %v681, %v690
      %v693 = vadd.f32 %v682, %v690
      %v694 = vadd.f32 %v683, %v690
      %v695 = vadd.f32 %v684, %v690
      %v696 = vmax.f32 %v692, 0.0
      %v697 = vmax.f32 %v693, 0.0
      %v698 = vmax.f32 %v694, 0.0
      %v699 = vmax.f32 %v695, 0.0
      %v700 = vld [vmem:[%s292] sm:$0x1]
      %v702 = vlaneseq
      %v703 = vshrl.u32 %v702, 7
      %v704 = vsub.s32 0, %v703
      %v705 = vrot.slane %v700, %v704
      %v707 = vmul.f32 %v696, %v705
      %v708 = vmul.f32 %v697, %v705
      %v709 = vmul.f32 %v698, %v705
      %v710 = vmul.f32 %v699, %v705
      %v711 = vld [vmem:[%s295] sm:$0x1]
      %v713 = vlaneseq
      %v714 = vshrl.u32 %v713, 7
      %v715 = vsub.s32 0, %v714
      %v716 = vrot.slane %v711, %v715
      %v718 = vadd.f32 %v707, %v716
      %v719 = vadd.f32 %v708, %v716
      %v720 = vadd.f32 %v709, %v716
      %v721 = vadd.f32 %v710, %v716
      %v722 = vpack.c.bf16 %v719, %v718
      %v723 = vpack.c.bf16 %v721, %v720
      %v726 = vunpack.c.l.b16 %v722
      %v727 = vunpack.c.h.b16 %v722
      %v728 = vunpack.c.l.b16 %v723
      %v729 = vunpack.c.h.b16 %v723
      %v730 = vpack.c.b16 %v726, %v726
      %v731 = vpack.c.b16 %v727, %v727
      %v732 = vpack.c.b16 %v728, %v728
      %v733 = vpack.c.b16 %v729, %v729
      %738 = vst [vmem:[%s303] sm:$0xf] %v730
      %739 = vst [vmem:[%s303 + $0x4] sm:$0xf] %v731
      %740 = vst [vmem:[%s303 + $0x8] sm:$0xf] %v732
      %741 = vst [vmem:[%s303 + $0xc] sm:$0xf] %v733
      %p742 = scmp.lt.s32.totalorder %s20, 1
      %s743 = scalar_select %p742, %s20, 1
      %p744 = scmp.lt.s32.totalorder %s21, 0
      %s745 = scalar_select %p744, %s21, 0
      %s746 = smul.addr %s743, 4
      %s747 = sadd.s32 %s745, %s746
      %s748 = smul.addr %s747, 4
      %s749 = scalar_lea.vmem %s5, %s748
      // Predicated region
      $region41: #{ecapa_forward.22} parent=39 // pred_check
        %p750 = pneg %p178
      $region42: #{ecapa_forward.22} parent=39 // pred_check_branch
        %752 = sbr.rel (%p750) target = $region44
      $region43: #{ecapa_forward.22} parent=39 // pred_region
        _
      $region44: #{ecapa_forward.22} parent=39 // pred_fallthru
        _
    $region40: #{ecapa_forward.22} parent=5 // pred_fallthru
      _
    %p753 = scmp.le.s32.totalorder 2, %s11
    // Predicated region
    $region45: #{ecapa_forward.22} parent=5 // pred_check
      %p754 = pneg %p753
    $region46: #{ecapa_forward.22} parent=5 // pred_check_branch
      %756 = sbr.rel (%p754) target = $region48
    $region47: #{ecapa_forward.22} parent=5 // pred_region
      %s757 = ssub.s32 %s11, 2
      // Predicated region
      $region49: #{ecapa_forward.22} parent=47 // pred_check
        %p758 = pneg %p184
      $region50: #{ecapa_forward.22} parent=47 // pred_check_branch
        %760 = sbr.rel (%p758) target = $region52
      $region51: #{ecapa_forward.22} parent=47 // pred_region
        %p761 = scmp.lt.s32.totalorder %s22, 1
        %s762 = scalar_select %p761, %s22, 1
        %p763 = scmp.lt.s32.totalorder %s23, 0
        %s764 = scalar_select %p763, %s23, 0
        %s765 = smul.addr %s762, 4
        %s766 = sadd.s32 %s764, %s765
        %s767 = smul.addr %s766, 4
        %s768 = scalar_lea.vmem %s5, %s767
      $region52: #{ecapa_forward.22} parent=47 // pred_fallthru
        _
    $region48: #{ecapa_forward.22} parent=5 // pred_fallthru
      _
  $region6: #{ecapa_forward.22} parent=0 // loop_footer
    %s15 = sadd.s32 1, %s11
  $region7: #{ecapa_forward.22} parent=0 // loop_footer_branch
    %10 = sbr.rel target = $region3
  $region8: #{ecapa_forward.22} parent=0 // loop_exit
    _

// kernel: ecapa_forward.24
$region0: #{ecapa_forward.24}
  #allocation0 [shape = 'u32[]', space=smem, size = 0x4, offset = 0x4, fixed_abs, tag = 'smem constant byte address 0x4 - core index']
  #allocation1 [shape = 'u32[144,128]{1,0:T(1,128)}', space=vmem, size = 0x12000, scoped, tag = 'internal scratch']
  %s0 = inlined_call_operand.vmem [shape: bf16[2,32,128], index: 0, kind: input, shape index: {}]
  %s1 = inlined_call_operand.vmem [shape: bf16[2,32,128], index: 1, kind: input, shape index: {}]
  %s2 = inlined_call_operand.vmem [shape: bf16[2,32,128], index: 2, kind: input, shape index: {}]
  %s3 = inlined_call_operand.vmem [shape: bf16[128,32], index: 3, kind: input, shape index: {}]
  %s4 = inlined_call_operand.vmem [shape: f32[1,32], index: 4, kind: input, shape index: {}]
  %s5 = inlined_call_operand.vmem [shape: bf16[32,128], index: 5, kind: input, shape index: {}]
  %s6 = inlined_call_operand.vmem [shape: f32[1,128], index: 6, kind: input, shape index: {}]
  %s7 = inlined_call_operand.vmem [shape: bf16[2,32,128], index: 7, kind: output, shape index: {}]
  %s8 = sld [smem:[#allocation0]]
  $region61: #{ecapa_forward.24} parent=0
    _
  %s10 = ssub.s32 1, %s8
  %s11 = scalar_select 0, %s10, %s8
  loop: start=0, step=1, limit=4
  $region2: #{ecapa_forward.24} parent=0 // loop_pre_header
    _
  $region3: #{ecapa_forward.24} parent=0 // loop_header
    %s13 = sphi 0, %s17
    %p14 = scmp.ge.s32.totalorder %s13, 4
    %s23 = sphi 0, %s25
    %s26 = sphi 0, %s23
    %s27 = sphi 0, %s26
    %s43 = sphi 0, %s27
    %s49 = sphi 0, %s51
    %s52 = sphi 0, %s49
    %s53 = sphi 0, %s52
    %s69 = sphi 0, %s53
    %s75 = sphi 0, %s77
    %s78 = sphi 0, %s75
    %s79 = sphi 0, %s78
    %s95 = sphi 0, %s79
    %s99 = sphi 0, %s99
    %s101 = sphi 0, %s99
    %s102 = sphi 0, %s101
    %s116 = sphi 0, %s102
    %s120 = sphi 0, %s120
    %s122 = sphi 0, %s120
    %s123 = sphi 0, %s122
    %s137 = sphi 0, %s123
    %s141 = sphi 0, %s141
    %s143 = sphi 0, %s141
    %s144 = sphi 0, %s143
    %s158 = sphi 0, %s144
    %s162 = sphi 0, %s162
    %s164 = sphi 0, %s162
    %s165 = sphi 0, %s164
    %s179 = sphi 0, %s165
    %s185 = sphi 0, %s187
    %s188 = sphi 0, %s185
    %s189 = sphi 0, %s188
    %s205 = sphi 0, %s189
  $region4: #{ecapa_forward.24} parent=0 // loop_header_branch
    %16 = sbr.rel (%p14) target = $region8
  $region5: #{ecapa_forward.24} parent=0 // loop_body
    %s18 = ssub.s32 %s13, 1
    %s19 = ssub.s32 %s13, 2
    %s20 = sadd.s32 %s13, 1
    %s21 = ssub.s32 %s13, %s20
    %p22 = scmp.eq.s32.totalorder %s21, 0
    %s24 = sadd.s32 %s23, 1
    %s25 = scalar_select %p22, %s23, %s24
    %p28 = pneg %p22
    %p29 = scmp.eq.s32.totalorder %s13, 1
    %p30 = por %p28, %p29
    %p31 = scmp.ne.s32.totalorder %s23, %s26
    %p32 = scmp.eq.s32.totalorder %s13, 0
    %p33 = por %p31, %p32
    %p34 = scmp.ne.s32.totalorder %s23, %s26
    %p35 = scmp.eq.s32.totalorder %s18, 1
    %p36 = por %p34, %p35
    %p37 = scmp.ne.s32.totalorder %s26, %s27
    %p38 = scmp.eq.s32.totalorder %s18, 0
    %p39 = por %p37, %p38
    %p40 = scmp.ne.s32.totalorder %s26, %s27
    %p41 = scmp.eq.s32.totalorder %s19, 1
    %p42 = por %p40, %p41
    %p44 = scmp.ne.s32.totalorder %s27, %s43
    %p45 = scmp.eq.s32.totalorder %s19, 0
    %p46 = por %p44, %p45
    %s47 = ssub.s32 %s13, %s20
    %p48 = scmp.eq.s32.totalorder %s47, 0
    %s50 = sadd.s32 %s49, 1
    %s51 = scalar_select %p48, %s49, %s50
    %p54 = pneg %p48
    %p55 = scmp.eq.s32.totalorder %s13, 1
    %p56 = por %p54, %p55
    %p57 = scmp.ne.s32.totalorder %s49, %s52
    %p58 = scmp.eq.s32.totalorder %s13, 0
    %p59 = por %p57, %p58
    %p60 = scmp.ne.s32.totalorder %s49, %s52
    %p61 = scmp.eq.s32.totalorder %s18, 1
    %p62 = por %p60, %p61
    %p63 = scmp.ne.s32.totalorder %s52, %s53
    %p64 = scmp.eq.s32.totalorder %s18, 0
    %p65 = por %p63, %p64
    %p66 = scmp.ne.s32.totalorder %s52, %s53
    %p67 = scmp.eq.s32.totalorder %s19, 1
    %p68 = por %p66, %p67
    %p70 = scmp.ne.s32.totalorder %s53, %s69
    %p71 = scmp.eq.s32.totalorder %s19, 0
    %p72 = por %p70, %p71
    %s73 = ssub.s32 %s13, %s20
    %p74 = scmp.eq.s32.totalorder %s73, 0
    %s76 = sadd.s32 %s75, 1
    %s77 = scalar_select %p74, %s75, %s76
    %p80 = pneg %p74
    %p81 = scmp.eq.s32.totalorder %s13, 1
    %p82 = por %p80, %p81
    %p83 = scmp.ne.s32.totalorder %s75, %s78
    %p84 = scmp.eq.s32.totalorder %s13, 0
    %p85 = por %p83, %p84
    %p86 = scmp.ne.s32.totalorder %s75, %s78
    %p87 = scmp.eq.s32.totalorder %s18, 1
    %p88 = por %p86, %p87
    %p89 = scmp.ne.s32.totalorder %s78, %s79
    %p90 = scmp.eq.s32.totalorder %s18, 0
    %p91 = por %p89, %p90
    %p92 = scmp.ne.s32.totalorder %s78, %s79
    %p93 = scmp.eq.s32.totalorder %s19, 1
    %p94 = por %p92, %p93
    %p96 = scmp.ne.s32.totalorder %s79, %s95
    %p97 = scmp.eq.s32.totalorder %s19, 0
    %p98 = por %p96, %p97
    %s100 = sadd.s32 %s99, 1
    %p103 = scmp.eq.s32.totalorder %s13, 1
    %p104 = scmp.ne.s32.totalorder %s99, %s101
    %p105 = scmp.eq.s32.totalorder %s13, 0
    %p106 = por %p104, %p105
    %p107 = scmp.ne.s32.totalorder %s99, %s101
    %p108 = scmp.eq.s32.totalorder %s18, 1
    %p109 = por %p107, %p108
    %p110 = scmp.ne.s32.totalorder %s101, %s102
    %p111 = scmp.eq.s32.totalorder %s18, 0
    %p112 = por %p110, %p111
    %p113 = scmp.ne.s32.totalorder %s101, %s102
    %p114 = scmp.eq.s32.totalorder %s19, 1
    %p115 = por %p113, %p114
    %p117 = scmp.ne.s32.totalorder %s102, %s116
    %p118 = scmp.eq.s32.totalorder %s19, 0
    %p119 = por %p117, %p118
    %s121 = sadd.s32 %s120, 1
    %p124 = scmp.eq.s32.totalorder %s13, 1
    %p125 = scmp.ne.s32.totalorder %s120, %s122
    %p126 = scmp.eq.s32.totalorder %s13, 0
    %p127 = por %p125, %p126
    %p128 = scmp.ne.s32.totalorder %s120, %s122
    %p129 = scmp.eq.s32.totalorder %s18, 1
    %p130 = por %p128, %p129
    %p131 = scmp.ne.s32.totalorder %s122, %s123
    %p132 = scmp.eq.s32.totalorder %s18, 0
    %p133 = por %p131, %p132
    %p134 = scmp.ne.s32.totalorder %s122, %s123
    %p135 = scmp.eq.s32.totalorder %s19, 1
    %p136 = por %p134, %p135
    %p138 = scmp.ne.s32.totalorder %s123, %s137
    %p139 = scmp.eq.s32.totalorder %s19, 0
    %p140 = por %p138, %p139
    %s142 = sadd.s32 %s141, 1
    %p145 = scmp.eq.s32.totalorder %s13, 1
    %p146 = scmp.ne.s32.totalorder %s141, %s143
    %p147 = scmp.eq.s32.totalorder %s13, 0
    %p148 = por %p146, %p147
    %p149 = scmp.ne.s32.totalorder %s141, %s143
    %p150 = scmp.eq.s32.totalorder %s18, 1
    %p151 = por %p149, %p150
    %p152 = scmp.ne.s32.totalorder %s143, %s144
    %p153 = scmp.eq.s32.totalorder %s18, 0
    %p154 = por %p152, %p153
    %p155 = scmp.ne.s32.totalorder %s143, %s144
    %p156 = scmp.eq.s32.totalorder %s19, 1
    %p157 = por %p155, %p156
    %p159 = scmp.ne.s32.totalorder %s144, %s158
    %p160 = scmp.eq.s32.totalorder %s19, 0
    %p161 = por %p159, %p160
    %s163 = sadd.s32 %s162, 1
    %p166 = scmp.eq.s32.totalorder %s13, 1
    %p167 = scmp.ne.s32.totalorder %s162, %s164
    %p168 = scmp.eq.s32.totalorder %s13, 0
    %p169 = por %p167, %p168
    %p170 = scmp.ne.s32.totalorder %s162, %s164
    %p171 = scmp.eq.s32.totalorder %s18, 1
    %p172 = por %p170, %p171
    %p173 = scmp.ne.s32.totalorder %s164, %s165
    %p174 = scmp.eq.s32.totalorder %s18, 0
    %p175 = por %p173, %p174
    %p176 = scmp.ne.s32.totalorder %s164, %s165
    %p177 = scmp.eq.s32.totalorder %s19, 1
    %p178 = por %p176, %p177
    %p180 = scmp.ne.s32.totalorder %s165, %s179
    %p181 = scmp.eq.s32.totalorder %s19, 0
    %p182 = por %p180, %p181
    %s183 = ssub.s32 %s13, %s20
    %p184 = scmp.eq.s32.totalorder %s183, 0
    %s186 = sadd.s32 %s185, 1
    %s187 = scalar_select %p184, %s185, %s186
    %p190 = pneg %p184
    %p191 = scmp.eq.s32.totalorder %s13, 1
    %p192 = por %p190, %p191
    %p193 = scmp.ne.s32.totalorder %s185, %s188
    %p194 = scmp.eq.s32.totalorder %s13, 0
    %p195 = por %p193, %p194
    %p196 = scmp.ne.s32.totalorder %s185, %s188
    %p197 = scmp.eq.s32.totalorder %s18, 1
    %p198 = por %p196, %p197
    %p199 = scmp.ne.s32.totalorder %s188, %s189
    %p200 = scmp.eq.s32.totalorder %s18, 0
    %p201 = por %p199, %p200
    %p202 = scmp.ne.s32.totalorder %s188, %s189
    %p203 = scmp.eq.s32.totalorder %s19, 1
    %p204 = por %p202, %p203
    %p206 = scmp.ne.s32.totalorder %s189, %s205
    %p207 = scmp.eq.s32.totalorder %s19, 0
    %p208 = por %p206, %p207
    %p209 = scmp.le.s32.totalorder 1, %s13
    %p210 = scmp.lt.s32.totalorder %s13, 3
    %p211 = pnand %p209, %p210
    %p212 = pneg %p211
    // Predicated region
    $region9: #{ecapa_forward.24} parent=5 // pred_check
      _
    $region10: #{ecapa_forward.24} parent=5 // pred_check_branch
      %214 = sbr.rel (%p211) target = $region12
    $region11: #{ecapa_forward.24} parent=5 // pred_region
      %s215 = ssub.s32 %s13, 1
      // Predicated region
      $region13: #{ecapa_forward.24} parent=11 // pred_check
        %p216 = pneg %p112
      $region14: #{ecapa_forward.24} parent=11 // pred_check_branch
        %218 = sbr.rel (%p216) target = $region16
      $region15: #{ecapa_forward.24} parent=11 // pred_region
        _
      $region16: #{ecapa_forward.24} parent=11 // pred_fallthru
        _
      // Predicated region
      $region17: #{ecapa_forward.24} parent=11 // pred_check
        %p219 = pneg %p133
      $region18: #{ecapa_forward.24} parent=11 // pred_check_branch
        %221 = sbr.rel (%p219) target = $region20
      $region19: #{ecapa_forward.24} parent=11 // pred_region
        _
      $region20: #{ecapa_forward.24} parent=11 // pred_fallthru
        _
      // Predicated region
      $region21: #{ecapa_forward.24} parent=11 // pred_check
        %p222 = pneg %p154
      $region22: #{ecapa_forward.24} parent=11 // pred_check_branch
        %224 = sbr.rel (%p222) target = $region24
      $region23: #{ecapa_forward.24} parent=11 // pred_region
        _
      $region24: #{ecapa_forward.24} parent=11 // pred_fallthru
        _
      // Predicated region
      $region25: #{ecapa_forward.24} parent=11 // pred_check
        %p225 = pneg %p175
      $region26: #{ecapa_forward.24} parent=11 // pred_check_branch
        %227 = sbr.rel (%p225) target = $region28
      $region27: #{ecapa_forward.24} parent=11 // pred_region
        _
      $region28: #{ecapa_forward.24} parent=11 // pred_fallthru
        _
    $region12: #{ecapa_forward.24} parent=5 // pred_fallthru
      _
    %p228 = scmp.lt.s32.totalorder %s13, 2
    // Predicated region
    $region29: #{ecapa_forward.24} parent=5 // pred_check
      %p229 = pneg %p228
    $region30: #{ecapa_forward.24} parent=5 // pred_check_branch
      %231 = sbr.rel (%p229) target = $region32
    $region31: #{ecapa_forward.24} parent=5 // pred_region
      // Predicated region
      $region33: #{ecapa_forward.24} parent=31 // pred_check
        %p232 = pneg %p33
      $region34: #{ecapa_forward.24} parent=31 // pred_check_branch
        %234 = sbr.rel (%p232) target = $region36
      $region35: #{ecapa_forward.24} parent=31 // pred_region
        %p235 = scmp.lt.s32.totalorder %s13, 1
        %s236 = scalar_select %p235, %s13, 1
        %s237 = smul.addr %s236, 4
        %s238 = smul.addr %s237, 4
        %s239 = scalar_lea.vmem %s0, %s238
      $region36: #{ecapa_forward.24} parent=31 // pred_fallthru
        _
      // Predicated region
      $region37: #{ecapa_forward.24} parent=31 // pred_check
        %p240 = pneg %p59
      $region38: #{ecapa_forward.24} parent=31 // pred_check_branch
        %242 = sbr.rel (%p240) target = $region40
      $region39: #{ecapa_forward.24} parent=31 // pred_region
        %p243 = scmp.lt.s32.totalorder %s13, 1
        %s244 = scalar_select %p243, %s13, 1
        %s245 = smul.addr %s244, 4
        %s246 = smul.addr %s245, 4
        %s247 = scalar_lea.vmem %s1, %s246
      $region40: #{ecapa_forward.24} parent=31 // pred_fallthru
        _
      // Predicated region
      $region41: #{ecapa_forward.24} parent=31 // pred_check
        %p248 = pneg %p85
      $region42: #{ecapa_forward.24} parent=31 // pred_check_branch
        %250 = sbr.rel (%p248) target = $region44
      $region43: #{ecapa_forward.24} parent=31 // pred_region
        %p251 = scmp.lt.s32.totalorder %s13, 1
        %s252 = scalar_select %p251, %s13, 1
        %s253 = smul.addr %s252, 4
        %s254 = smul.addr %s253, 4
        %s255 = scalar_lea.vmem %s2, %s254
      $region44: #{ecapa_forward.24} parent=31 // pred_fallthru
        _
    $region32: #{ecapa_forward.24} parent=5 // pred_fallthru
      _
    %p256 = scmp.le.s32.totalorder 1, %s13
    %p257 = scmp.lt.s32.totalorder %s13, 3
    %p258 = pnand %p256, %p257
    %p259 = pneg %p258
    // Predicated region
    $region45: #{ecapa_forward.24} parent=5 // pred_check
      _
    $region46: #{ecapa_forward.24} parent=5 // pred_check_branch
      %261 = sbr.rel (%p258) target = $region48
    $region47: #{ecapa_forward.24} parent=5 // pred_region
      %s262 = ssub.s32 %s13, 1
      %p263 = scmp.lt.s32.totalorder %s18, 1
      %s264 = scalar_select %p263, %s18, 1
      %s265 = smul.addr %s264, 4
      %s266 = smul.addr %s265, 4
      %s267 = scalar_lea.vmem %s0, %s266
      %p268 = pneg %p39
      %p269 = pneg %p36
      %p270 = scmp.lt.s32.totalorder %s18, 1
      %s271 = scalar_select %p270, %s18, 1
      %s272 = smul.addr %s271, 4
      %s273 = smul.addr %s272, 4
      %s274 = scalar_lea.vmem %s1, %s273
      %p275 = pneg %p65
      %p276 = pneg %p62
      %p277 = scmp.lt.s32.totalorder %s18, 1
      %s278 = scalar_select %p277, %s18, 1
      %s279 = smul.addr %s278, 4
      %s280 = smul.addr %s279, 4
      %s281 = scalar_lea.vmem %s2, %s280
      %p282 = pneg %p91
      %p283 = pneg %p88
      %p284 = pneg %p112
      %p285 = pneg %p109
      %p286 = pneg %p133
      %p287 = pneg %p130
      %p288 = pneg %p154
      %p289 = pneg %p151
      %p290 = pneg %p175
      %p291 = pneg %p172
      %p292 = pneg %p201
      %p293 = pneg %p198
      %p294 = scmp.lt.s32.totalorder %s18, 1
      %s295 = scalar_select %p294, %s18, 1
      %s296 = smul.addr %s295, 4
      %s297 = smul.addr %s296, 4
      %s298 = scalar_lea.vmem %s7, %s297
      %p299 = scmp.lt.s32.totalorder %s18, 1
      %s300 = scalar_select %p299, %s18, 1
      %s301 = smul.addr %s300, 4
      %s302 = smul.addr %s301, 4
      %s303 = scalar_lea.vmem %s0, %s302
      %p304 = scmp.lt.s32.totalorder %s18, 1
      %s305 = scalar_select %p304, %s18, 1
      %s306 = smul.addr %s305, 4
      %s307 = smul.addr %s306, 4
      %s308 = scalar_lea.vmem %s1, %s307
      %p309 = scmp.lt.s32.totalorder %s18, 1
      %s310 = scalar_select %p309, %s18, 1
      %s311 = smul.addr %s310, 4
      %s312 = smul.addr %s311, 4
      %s313 = scalar_lea.vmem %s2, %s312
      %p314 = scmp.lt.s32.totalorder %s18, 1
      %s315 = scalar_select %p314, %s18, 1
      %s316 = smul.addr %s315, 4
      %s317 = smul.addr %s316, 4
      %s318 = scalar_lea.vmem %s7, %s317
      %v320 = vld [vmem:[%s303] sm:$0xf]
      %v321 = vld [vmem:[%s303 + $0x4] sm:$0xf]
      %v322 = vld [vmem:[%s303 + $0x8] sm:$0xf]
      %v323 = vld [vmem:[%s303 + $0xc] sm:$0xf]
      %v324 = vunpack.c.l.bf16 %v320
      %v325 = vunpack.c.l.bf16 %v321
      %v326 = vunpack.c.l.bf16 %v322
      %v327 = vunpack.c.l.bf16 %v323
      %v328 = vld [vmem:[%s308] sm:$0xf]
      %v329 = vld [vmem:[%s308 + $0x4] sm:$0xf]
      %v330 = vld [vmem:[%s308 + $0x8] sm:$0xf]
      %v331 = vld [vmem:[%s308 + $0xc] sm:$0xf]
      %v332 = vunpack.c.l.bf16 %v328
      %v333 = vunpack.c.l.bf16 %v329
      %v334 = vunpack.c.l.bf16 %v330
      %v335 = vunpack.c.l.bf16 %v331
      %v336 = vadd.f32 %v324, %v332
      %v337 = vadd.f32 %v325, %v333
      %v338 = vadd.f32 %v326, %v334
      %v339 = vadd.f32 %v327, %v335
      %v340 = vld [vmem:[%s313] sm:$0xf]
      %v341 = vld [vmem:[%s313 + $0x4] sm:$0xf]
      %v342 = vld [vmem:[%s313 + $0x8] sm:$0xf]
      %v343 = vld [vmem:[%s313 + $0xc] sm:$0xf]
      %v344 = vunpack.c.l.bf16 %v340
      %v345 = vunpack.c.l.bf16 %v341
      %v346 = vunpack.c.l.bf16 %v342
      %v347 = vunpack.c.l.bf16 %v343
      %v348 = vadd.f32 %v336, %v344
      %v349 = vadd.f32 %v337, %v345
      %v350 = vadd.f32 %v338, %v346
      %v351 = vadd.f32 %v339, %v347
      %v352 = vadd.f32 %v348, %v349
      %v353 = vadd.f32 %v352, %v350
      %v354 = vadd.f32 %v353, %v351
      %v355 = vrot.slane %v354, 4
      %v356 = vadd.f32 %v354, %v355
      %v357 = vrot.slane %v356, 2
      %v358 = vadd.f32 %v356, %v357
      %v359 = vrot.slane %v358, 1
      %v360 = vadd.f32 %v358, %v359
      %v361 = vmul.f32 %v360, 0.03125
      %v362 = vpack.c.bf16 %v361, %v361
      %v363 = vld [vmem:[%s3] sm:$0xf]
      %v364 = vld [vmem:[%s3 + $0x4] sm:$0xf]
      %v365 = vld [vmem:[%s3 + $0x8] sm:$0xf]
      %v366 = vld [vmem:[%s3 + $0xc] sm:$0xf]
      %v367 = vld [vmem:[%s3 + $0x10] sm:$0xf]
      %v368 = vld [vmem:[%s3 + $0x14] sm:$0xf]
      %v369 = vld [vmem:[%s3 + $0x18] sm:$0xf]
      %v370 = vld [vmem:[%s3 + $0x1c] sm:$0xf]
      %v371 = vld [vmem:[%s3 + $0x20] sm:$0xf]
      %v372 = vld [vmem:[%s3 + $0x24] sm:$0xf]
      %v373 = vld [vmem:[%s3 + $0x28] sm:$0xf]
      %v374 = vld [vmem:[%s3 + $0x2c] sm:$0xf]
      %v375 = vld [vmem:[%s3 + $0x30] sm:$0xf]
      %v376 = vld [vmem:[%s3 + $0x34] sm:$0xf]
      %v377 = vld [vmem:[%s3 + $0x38] sm:$0xf]
      %v378 = vld [vmem:[%s3 + $0x3c] sm:$0xf]
      %v379 = vld [vmem:[%s4] sm:$0x1]
      %v396 = vunpack.c.l.b16 %v363
      %v397 = vunpack.c.l.b16 %v364
      %v398 = vunpack.c.l.b16 %v365
      %v399 = vunpack.c.l.b16 %v366
      %v400 = vunpack.c.l.b16 %v367
      %v401 = vunpack.c.l.b16 %v368
      %v402 = vunpack.c.l.b16 %v369
      %v403 = vunpack.c.l.b16 %v370
      %v404 = vunpack.c.l.b16 %v371
      %v405 = vunpack.c.l.b16 %v372
      %v406 = vunpack.c.l.b16 %v373
      %v407 = vunpack.c.l.b16 %v374
      %v408 = vunpack.c.l.b16 %v375
      %v409 = vunpack.c.l.b16 %v376
      %v410 = vunpack.c.l.b16 %v377
      %v411 = vunpack.c.l.b16 %v378
      %v412 = vpack.c.b16 %v397, %v396
      %v413 = vpack.c.b16 %v399, %v398
      %v414 = vpack.c.b16 %v401, %v400
      %v415 = vpack.c.b16 %v403, %v402
      %v416 = vpack.c.b16 %v405, %v404
      %v417 = vpack.c.b16 %v407, %v406
      %v418 = vpack.c.b16 %v409, %v408
      %v419 = vpack.c.b16 %v411, %v410
      %428 = vmatprep.subr.bf16.mxu0 0
      %429 = vmatpush1.bf16.msra.mxu0 %v419
      %430 = vmatprep.subr.bf16.mxu0 0
      %431 = vmatpush1.bf16.msra.mxu0 %v418
      %432 = vmatprep.subr.bf16.mxu0 0
      %433 = vmatpush1.bf16.msra.mxu0 %v417
      %434 = vmatprep.subr.bf16.mxu0 0
      %435 = vmatpush1.bf16.msra.mxu0 %v416
      %436 = vmatprep.subr.bf16.mxu0 0
      %437 = vmatpush1.bf16.msra.mxu0 %v415
      %438 = vmatprep.subr.bf16.mxu0 0
      %439 = vmatpush1.bf16.msra.mxu0 %v414
      %440 = vmatprep.subr.bf16.mxu0 0
      %441 = vmatpush1.bf16.msra.mxu0 %v413
      %442 = vmatprep.subr.bf16.mxu0 0
      %443 = vmatpush1.bf16.msra.mxu0 %v412
      %444 = vmatprep.subr.bf16.mxu0 0
      %445 = vmatpush2.bf16.msra.mxu0 0
      %446 = vmatprep.subr.bf16.mxu0 0
      %447 = vmatpush2.bf16.msra.mxu0 0
      %448 = vmatprep.subr.bf16.mxu0 0
      %449 = vmatpush2.bf16.msra.mxu0 0
      %450 = vmatprep.subr.bf16.mxu0 0
      %451 = vmatpush2.bf16.msra.mxu0 0
      %452 = vmatprep.subr.bf16.mxu0 0
      %453 = vmatpush2.bf16.msra.mxu0 0
      %454 = vmatprep.subr.bf16.mxu0 0
      %455 = vmatpush2.bf16.msra.mxu0 0
      %456 = vmatprep.subr.bf16.mxu0 0
      %457 = vmatpush2.bf16.msra.mxu0 0
      %458 = vmatprep.subr.bf16.mxu0 0
      %459 = vmatpush2.bf16.msra.mxu0 0
      %460 = vmatprep.mubr.bf16.mxu0 0
      %461 = vmatmul.mubr.bf16.gmra.mxu0 %v362
      %v462 = vpop.f32.mrf.mxu0
      %v463 = vadd.f32 %v379, %v462
      %v464 = vpop.f32.mrf.mxu0
      %v465 = vpop.f32.mrf.mxu0
      %v466 = vpop.f32.mrf.mxu0
      %467 = vdwg.mxu0
      %v468 = vmax.f32 %v463, 0.0
      %v469 = vpack.c.bf16 %v468, %v468
      %v470 = vld [vmem:[%s5] sm:$0xf]
      %v471 = vld [vmem:[%s5 + $0x4] sm:$0xf]
      %v472 = vld [vmem:[%s5 + $0x8] sm:$0xf]
      %v473 = vld [vmem:[%s5 + $0xc] sm:$0xf]
      %v474 = vld [vmem:[%s6] sm:$0x1]
      %v479 = vunpack.c.l.b16 %v470
      %v480 = vunpack.c.l.b16 %v471
      %v481 = vunpack.c.l.b16 %v472
      %v482 = vunpack.c.l.b16 %v473
      %v483 = vpack.c.b16 %v480, %v479
      %v484 = vpack.c.b16 %v482, %v481
      %vm487 = vcmask 261120
      %v489 = vsel %vm487, %v469, 0
      %491 = vmatprep.subr.bf16.mxu0 0
      %492 = vmatpush1.bf16.msra.mxu0 0
      %493 = vmatprep.subr.bf16.mxu0 0
      %494 = vmatpush1.bf16.msra.mxu0 0
      %495 = vmatprep.subr.bf16.mxu0 0
      %496 = vmatpush1.bf16.msra.mxu0 0
      %497 = vmatprep.subr.bf16.mxu0 0
      %498 = vmatpush1.bf16.msra.mxu0 0
      %499 = vmatprep.subr.bf16.mxu0 0
      %500 = vmatpush1.bf16.msra.mxu0 0
      %501 = vmatprep.subr.bf16.mxu0 0
      %502 = vmatpush1.bf16.msra.mxu0 0
      %503 = vmatprep.subr.bf16.mxu0 0
      %504 = vmatpush1.bf16.msra.mxu0 %v484
      %505 = vmatprep.subr.bf16.mxu0 0
      %506 = vmatpush1.bf16.msra.mxu0 %v483
      %507 = vmatprep.subr.bf16.mxu0 0
      %508 = vmatpush2.bf16.msra.mxu0 0
      %509 = vmatprep.subr.bf16.mxu0 0
      %510 = vmatpush2.bf16.msra.mxu0 0
      %511 = vmatprep.subr.bf16.mxu0 0
      %512 = vmatpush2.bf16.msra.mxu0 0
      %513 = vmatprep.subr.bf16.mxu0 0
      %514 = vmatpush2.bf16.msra.mxu0 0
      %515 = vmatprep.subr.bf16.mxu0 0
      %516 = vmatpush2.bf16.msra.mxu0 0
      %517 = vmatprep.subr.bf16.mxu0 0
      %518 = vmatpush2.bf16.msra.mxu0 0
      %519 = vmatprep.subr.bf16.mxu0 0
      %520 = vmatpush2.bf16.msra.mxu0 0
      %521 = vmatprep.subr.bf16.mxu0 0
      %522 = vmatpush2.bf16.msra.mxu0 0
      %523 = vmatprep.mubr.bf16.mxu0 0
      %524 = vmatmul.mubr.bf16.gmra.mxu0 %v489
      %v525 = vpop.f32.mrf.mxu0
      %v526 = vadd.f32 %v474, %v525
      %v527 = vpop.f32.mrf.mxu0
      %v528 = vpop.f32.mrf.mxu0
      %v529 = vpop.f32.mrf.mxu0
      %530 = vdwg.mxu0
      %v531 = vxor.u32 %v526, 2147483648
      %v532 = vmul.f32 %v531, 1.442695
      %v533 = vpow.pop %v532
      %v534 = vadd.f32 %v533, 1.0
      %v535 = vrcp.pop %v534
      %v536 = vmul.f32 1.0, %v535
      %v537 = vlaneseq
      %v538 = vshrl.u32 %v537, 7
      %v539 = vsub.s32 0, %v538
      %v540 = vrot.slane %v536, %v539
      %v541 = vmul.f32 %v348, %v540
      %v542 = vmul.f32 %v349, %v540
      %v543 = vmul.f32 %v350, %v540
      %v544 = vmul.f32 %v351, %v540
      %v545 = vpack.c.bf16 %v542, %v541
      %v546 = vpack.c.bf16 %v544, %v543
      %v549 = vunpack.c.l.b16 %v545
      %v550 = vunpack.c.h.b16 %v545
      %v551 = vunpack.c.l.b16 %v546
      %v552 = vunpack.c.h.b16 %v546
      %v553 = vpack.c.b16 %v549, %v549
      %v554 = vpack.c.b16 %v550, %v550
      %v555 = vpack.c.b16 %v551, %v551
      %v556 = vpack.c.b16 %v552, %v552
      %561 = vst [vmem:[%s318] sm:$0xf] %v553
      %562 = vst [vmem:[%s318 + $0x4] sm:$0xf] %v554
      %563 = vst [vmem:[%s318 + $0x8] sm:$0xf] %v555
      %564 = vst [vmem:[%s318 + $0xc] sm:$0xf] %v556
      %p565 = scmp.lt.s32.totalorder %s18, 1
      %s566 = scalar_select %p565, %s18, 1
      %s567 = smul.addr %s566, 4
      %s568 = smul.addr %s567, 4
      %s569 = scalar_lea.vmem %s7, %s568
      // Predicated region
      $region49: #{ecapa_forward.24} parent=47 // pred_check
        %p570 = pneg %p198
      $region50: #{ecapa_forward.24} parent=47 // pred_check_branch
        %572 = sbr.rel (%p570) target = $region52
      $region51: #{ecapa_forward.24} parent=47 // pred_region
        _
      $region52: #{ecapa_forward.24} parent=47 // pred_fallthru
        _
    $region48: #{ecapa_forward.24} parent=5 // pred_fallthru
      _
    %p573 = scmp.le.s32.totalorder 2, %s13
    // Predicated region
    $region53: #{ecapa_forward.24} parent=5 // pred_check
      %p574 = pneg %p573
    $region54: #{ecapa_forward.24} parent=5 // pred_check_branch
      %576 = sbr.rel (%p574) target = $region56
    $region55: #{ecapa_forward.24} parent=5 // pred_region
      %s577 = ssub.s32 %s13, 2
      // Predicated region
      $region57: #{ecapa_forward.24} parent=55 // pred_check
        %p578 = pneg %p204
      $region58: #{ecapa_forward.24} parent=55 // pred_check_branch
        %580 = sbr.rel (%p578) target = $region60
      $region59: #{ecapa_forward.24} parent=55 // pred_region
        %p581 = scmp.lt.s32.totalorder %s19, 1
        %s582 = scalar_select %p581, %s19, 1
        %s583 = smul.addr %s582, 4
        %s584 = smul.addr %s583, 4
        %s585 = scalar_lea.vmem %s7, %s584
      $region60: #{ecapa_forward.24} parent=55 // pred_fallthru
        _
    $region56: #{ecapa_forward.24} parent=5 // pred_fallthru
      _
  $region6: #{ecapa_forward.24} parent=0 // loop_footer
    %s17 = sadd.s32 1, %s13
  $region7: #{ecapa_forward.24} parent=0 // loop_footer_branch
    %12 = sbr.rel target = $region3
  $region8: #{ecapa_forward.24} parent=0 // loop_exit
    _

// kernel: ecapa_forward.25
$region0: #{ecapa_forward.25}
  #allocation0 [shape = 'u32[]', space=smem, size = 0x4, offset = 0x4, fixed_abs, tag = 'smem constant byte address 0x4 - core index']
  #allocation1 [shape = 'u32[144,128]{1,0:T(1,128)}', space=vmem, size = 0x12000, scoped, tag = 'internal scratch']
  %s0 = inlined_call_operand.vmem [shape: bf16[2,32,128], index: 0, kind: input, shape index: {}]
  %s1 = inlined_call_operand.vmem [shape: bf16[2,32,128], index: 1, kind: input, shape index: {}]
  %s2 = inlined_call_operand.vmem [shape: bf16[2,32,128], index: 2, kind: input, shape index: {}]
  %s3 = inlined_call_operand.vmem [shape: bf16[1,128,128], index: 3, kind: input, shape index: {}]
  %s4 = inlined_call_operand.vmem [shape: f32[1,128], index: 4, kind: input, shape index: {}]
  %s5 = inlined_call_operand.vmem [shape: f32[1,128], index: 5, kind: input, shape index: {}]
  %s6 = inlined_call_operand.vmem [shape: f32[1,128], index: 6, kind: input, shape index: {}]
  %s7 = inlined_call_operand.vmem [shape: bf16[2,32,128], index: 7, kind: output, shape index: {}]
  %s8 = sld [smem:[#allocation0]]
  $region61: #{ecapa_forward.25} parent=0
    _
  %s10 = ssub.s32 1, %s8
  %s11 = scalar_select 0, %s10, %s8
  loop: start=0, step=1, limit=4
  $region2: #{ecapa_forward.25} parent=0 // loop_pre_header
    _
  $region3: #{ecapa_forward.25} parent=0 // loop_header
    %s13 = sphi 0, %s17
    %p14 = scmp.ge.s32.totalorder %s13, 4
    %s20 = sphi 0, %s32
    %s21 = sphi 0, %s28
    %s22 = sphi 0, %s20
    %s23 = sphi 0, %s21
    %s24 = sphi 0, %s22
    %s25 = sphi 0, %s23
    %s35 = sphi 0, %s37
    %s38 = sphi 0, %s35
    %s39 = sphi 0, %s38
    %s55 = sphi 0, %s39
    %s61 = sphi 0, %s63
    %s64 = sphi 0, %s61
    %s65 = sphi 0, %s64
    %s81 = sphi 0, %s65
    %s87 = sphi 0, %s89
    %s90 = sphi 0, %s87
    %s91 = sphi 0, %s90
    %s107 = sphi 0, %s91
    %s113 = sphi 0, %s115
    %s116 = sphi 0, %s113
    %s117 = sphi 0, %s116
    %s133 = sphi 0, %s117
    %s139 = sphi 0, %s141
    %s142 = sphi 0, %s139
    %s143 = sphi 0, %s142
    %s159 = sphi 0, %s143
    %s165 = sphi 0, %s167
    %s168 = sphi 0, %s165
    %s169 = sphi 0, %s168
    %s185 = sphi 0, %s169
    %s191 = sphi 0, %s193
    %s194 = sphi 0, %s191
    %s195 = sphi 0, %s194
    %s211 = sphi 0, %s195
    %s219 = sphi 0, %s221
    %s222 = sphi 0, %s219
    %s223 = sphi 0, %s222
    %s239 = sphi 0, %s223
  $region4: #{ecapa_forward.25} parent=0 // loop_header_branch
    %16 = sbr.rel (%p14) target = $region8
  $region5: #{ecapa_forward.25} parent=0 // loop_body
    %s18 = ssub.s32 %s13, 1
    %s19 = ssub.s32 %s13, 2
    %s26 = sadd.s32 1, %s21
    %p27 = scmp.ge.s32.totalorder %s26, 1
    %s28 = scalar_select %p27, 0, %s26
    %s29 = sadd.s32 1, %s20
    %s30 = scalar_select %p27, %s29, %s20
    %p31 = scmp.ge.s32.totalorder %s30, 2
    %s32 = scalar_select %p31, 0, %s30
    %s33 = ssub.s32 %s20, %s32
    %p34 = scmp.eq.s32.totalorder %s33, 0
    %s36 = sadd.s32 %s35, 1
    %s37 = scalar_select %p34, %s35, %s36
    %p40 = pneg %p34
    %p41 = scmp.eq.s32.totalorder %s13, 1
    %p42 = por %p40, %p41
    %p43 = scmp.ne.s32.totalorder %s35, %s38
    %p44 = scmp.eq.s32.totalorder %s13, 0
    %p45 = por %p43, %p44
    %p46 = scmp.ne.s32.totalorder %s35, %s38
    %p47 = scmp.eq.s32.totalorder %s18, 1
    %p48 = por %p46, %p47
    %p49 = scmp.ne.s32.totalorder %s38, %s39
    %p50 = scmp.eq.s32.totalorder %s18, 0
    %p51 = por %p49, %p50
    %p52 = scmp.ne.s32.totalorder %s38, %s39
    %p53 = scmp.eq.s32.totalorder %s19, 1
    %p54 = por %p52, %p53
    %p56 = scmp.ne.s32.totalorder %s39, %s55
    %p57 = scmp.eq.s32.totalorder %s19, 0
    %p58 = por %p56, %p57
    %s59 = ssub.s32 %s20, %s32
    %p60 = scmp.eq.s32.totalorder %s59, 0
    %s62 = sadd.s32 %s61, 1
    %s63 = scalar_select %p60, %s61, %s62
    %p66 = pneg %p60
    %p67 = scmp.eq.s32.totalorder %s13, 1
    %p68 = por %p66, %p67
    %p69 = scmp.ne.s32.totalorder %s61, %s64
    %p70 = scmp.eq.s32.totalorder %s13, 0
    %p71 = por %p69, %p70
    %p72 = scmp.ne.s32.totalorder %s61, %s64
    %p73 = scmp.eq.s32.totalorder %s18, 1
    %p74 = por %p72, %p73
    %p75 = scmp.ne.s32.totalorder %s64, %s65
    %p76 = scmp.eq.s32.totalorder %s18, 0
    %p77 = por %p75, %p76
    %p78 = scmp.ne.s32.totalorder %s64, %s65
    %p79 = scmp.eq.s32.totalorder %s19, 1
    %p80 = por %p78, %p79
    %p82 = scmp.ne.s32.totalorder %s65, %s81
    %p83 = scmp.eq.s32.totalorder %s19, 0
    %p84 = por %p82, %p83
    %s85 = ssub.s32 %s20, %s32
    %p86 = scmp.eq.s32.totalorder %s85, 0
    %s88 = sadd.s32 %s87, 1
    %s89 = scalar_select %p86, %s87, %s88
    %p92 = pneg %p86
    %p93 = scmp.eq.s32.totalorder %s13, 1
    %p94 = por %p92, %p93
    %p95 = scmp.ne.s32.totalorder %s87, %s90
    %p96 = scmp.eq.s32.totalorder %s13, 0
    %p97 = por %p95, %p96
    %p98 = scmp.ne.s32.totalorder %s87, %s90
    %p99 = scmp.eq.s32.totalorder %s18, 1
    %p100 = por %p98, %p99
    %p101 = scmp.ne.s32.totalorder %s90, %s91
    %p102 = scmp.eq.s32.totalorder %s18, 0
    %p103 = por %p101, %p102
    %p104 = scmp.ne.s32.totalorder %s90, %s91
    %p105 = scmp.eq.s32.totalorder %s19, 1
    %p106 = por %p104, %p105
    %p108 = scmp.ne.s32.totalorder %s91, %s107
    %p109 = scmp.eq.s32.totalorder %s19, 0
    %p110 = por %p108, %p109
    %s111 = ssub.s32 %s21, %s28
    %p112 = scmp.eq.s32.totalorder %s111, 0
    %s114 = sadd.s32 %s113, 1
    %s115 = scalar_select %p112, %s113, %s114
    %p118 = pneg %p112
    %p119 = scmp.eq.s32.totalorder %s13, 1
    %p120 = por %p118, %p119
    %p121 = scmp.ne.s32.totalorder %s113, %s116
    %p122 = scmp.eq.s32.totalorder %s13, 0
    %p123 = por %p121, %p122
    %p124 = scmp.ne.s32.totalorder %s113, %s116
    %p125 = scmp.eq.s32.totalorder %s18, 1
    %p126 = por %p124, %p125
    %p127 = scmp.ne.s32.totalorder %s116, %s117
    %p128 = scmp.eq.s32.totalorder %s18, 0
    %p129 = por %p127, %p128
    %p130 = scmp.ne.s32.totalorder %s116, %s117
    %p131 = scmp.eq.s32.totalorder %s19, 1
    %p132 = por %p130, %p131
    %p134 = scmp.ne.s32.totalorder %s117, %s133
    %p135 = scmp.eq.s32.totalorder %s19, 0
    %p136 = por %p134, %p135
    %s137 = ssub.s32 %s21, %s28
    %p138 = scmp.eq.s32.totalorder %s137, 0
    %s140 = sadd.s32 %s139, 1
    %s141 = scalar_select %p138, %s139, %s140
    %p144 = pneg %p138
    %p145 = scmp.eq.s32.totalorder %s13, 1
    %p146 = por %p144, %p145
    %p147 = scmp.ne.s32.totalorder %s139, %s142
    %p148 = scmp.eq.s32.totalorder %s13, 0
    %p149 = por %p147, %p148
    %p150 = scmp.ne.s32.totalorder %s139, %s142
    %p151 = scmp.eq.s32.totalorder %s18, 1
    %p152 = por %p150, %p151
    %p153 = scmp.ne.s32.totalorder %s142, %s143
    %p154 = scmp.eq.s32.totalorder %s18, 0
    %p155 = por %p153, %p154
    %p156 = scmp.ne.s32.totalorder %s142, %s143
    %p157 = scmp.eq.s32.totalorder %s19, 1
    %p158 = por %p156, %p157
    %p160 = scmp.ne.s32.totalorder %s143, %s159
    %p161 = scmp.eq.s32.totalorder %s19, 0
    %p162 = por %p160, %p161
    %s163 = ssub.s32 %s21, %s28
    %p164 = scmp.eq.s32.totalorder %s163, 0
    %s166 = sadd.s32 %s165, 1
    %s167 = scalar_select %p164, %s165, %s166
    %p170 = pneg %p164
    %p171 = scmp.eq.s32.totalorder %s13, 1
    %p172 = por %p170, %p171
    %p173 = scmp.ne.s32.totalorder %s165, %s168
    %p174 = scmp.eq.s32.totalorder %s13, 0
    %p175 = por %p173, %p174
    %p176 = scmp.ne.s32.totalorder %s165, %s168
    %p177 = scmp.eq.s32.totalorder %s18, 1
    %p178 = por %p176, %p177
    %p179 = scmp.ne.s32.totalorder %s168, %s169
    %p180 = scmp.eq.s32.totalorder %s18, 0
    %p181 = por %p179, %p180
    %p182 = scmp.ne.s32.totalorder %s168, %s169
    %p183 = scmp.eq.s32.totalorder %s19, 1
    %p184 = por %p182, %p183
    %p186 = scmp.ne.s32.totalorder %s169, %s185
    %p187 = scmp.eq.s32.totalorder %s19, 0
    %p188 = por %p186, %p187
    %s189 = ssub.s32 %s21, %s28
    %p190 = scmp.eq.s32.totalorder %s189, 0
    %s192 = sadd.s32 %s191, 1
    %s193 = scalar_select %p190, %s191, %s192
    %p196 = pneg %p190
    %p197 = scmp.eq.s32.totalorder %s13, 1
    %p198 = por %p196, %p197
    %p199 = scmp.ne.s32.totalorder %s191, %s194
    %p200 = scmp.eq.s32.totalorder %s13, 0
    %p201 = por %p199, %p200
    %p202 = scmp.ne.s32.totalorder %s191, %s194
    %p203 = scmp.eq.s32.totalorder %s18, 1
    %p204 = por %p202, %p203
    %p205 = scmp.ne.s32.totalorder %s194, %s195
    %p206 = scmp.eq.s32.totalorder %s18, 0
    %p207 = por %p205, %p206
    %p208 = scmp.ne.s32.totalorder %s194, %s195
    %p209 = scmp.eq.s32.totalorder %s19, 1
    %p210 = por %p208, %p209
    %p212 = scmp.ne.s32.totalorder %s195, %s211
    %p213 = scmp.eq.s32.totalorder %s19, 0
    %p214 = por %p212, %p213
    %s215 = ssub.s32 %s20, %s32
    %s216 = ssub.s32 %s21, %s28
    %s217 = sor.u32 %s215, %s216
    %p218 = scmp.eq.s32.totalorder %s217, 0
    %s220 = sadd.s32 %s219, 1
    %s221 = scalar_select %p218, %s219, %s220
    %p224 = pneg %p218
    %p225 = scmp.eq.s32.totalorder %s13, 1
    %p226 = por %p224, %p225
    %p227 = scmp.ne.s32.totalorder %s219, %s222
    %p228 = scmp.eq.s32.totalorder %s13, 0
    %p229 = por %p227, %p228
    %p230 = scmp.ne.s32.totalorder %s219, %s222
    %p231 = scmp.eq.s32.totalorder %s18, 1
    %p232 = por %p230, %p231
    %p233 = scmp.ne.s32.totalorder %s222, %s223
    %p234 = scmp.eq.s32.totalorder %s18, 0
    %p235 = por %p233, %p234
    %p236 = scmp.ne.s32.totalorder %s222, %s223
    %p237 = scmp.eq.s32.totalorder %s19, 1
    %p238 = por %p236, %p237
    %p240 = scmp.ne.s32.totalorder %s223, %s239
    %p241 = scmp.eq.s32.totalorder %s19, 0
    %p242 = por %p240, %p241
    %p243 = scmp.le.s32.totalorder 1, %s13
    %p244 = scmp.lt.s32.totalorder %s13, 3
    %p245 = pnand %p243, %p244
    %p246 = pneg %p245
    // Predicated region
    $region9: #{ecapa_forward.25} parent=5 // pred_check
      _
    $region10: #{ecapa_forward.25} parent=5 // pred_check_branch
      %248 = sbr.rel (%p245) target = $region12
    $region11: #{ecapa_forward.25} parent=5 // pred_region
      %s249 = ssub.s32 %s13, 1
      // Predicated region
      $region13: #{ecapa_forward.25} parent=11 // pred_check
        %p250 = pneg %p129
      $region14: #{ecapa_forward.25} parent=11 // pred_check_branch
        %252 = sbr.rel (%p250) target = $region16
      $region15: #{ecapa_forward.25} parent=11 // pred_region
        %p253 = scmp.lt.s32.totalorder %s23, 0
        %s254 = scalar_select %p253, %s23, 0
        %s255 = smul.addr %s254, 4
        %s256 = scalar_lea.vmem %s3, %s255
      $region16: #{ecapa_forward.25} parent=11 // pred_fallthru
        _
      // Predicated region
      $region17: #{ecapa_forward.25} parent=11 // pred_check
        %p257 = pneg %p155
      $region18: #{ecapa_forward.25} parent=11 // pred_check_branch
        %259 = sbr.rel (%p257) target = $region20
      $region19: #{ecapa_forward.25} parent=11 // pred_region
        %p260 = scmp.lt.s32.totalorder %s23, 0
        %s261 = scalar_select %p260, %s23, 0
        %s262 = scalar_lea.vmem %s4, %s261
      $region20: #{ecapa_forward.25} parent=11 // pred_fallthru
        _
      // Predicated region
      $region21: #{ecapa_forward.25} parent=11 // pred_check
        %p263 = pneg %p181
      $region22: #{ecapa_forward.25} parent=11 // pred_check_branch
        %265 = sbr.rel (%p263) target = $region24
      $region23: #{ecapa_forward.25} parent=11 // pred_region
        %p266 = scmp.lt.s32.totalorder %s23, 0
        %s267 = scalar_select %p266, %s23, 0
        %s268 = scalar_lea.vmem %s5, %s267
      $region24: #{ecapa_forward.25} parent=11 // pred_fallthru
        _
      // Predicated region
      $region25: #{ecapa_forward.25} parent=11 // pred_check
        %p269 = pneg %p207
      $region26: #{ecapa_forward.25} parent=11 // pred_check_branch
        %271 = sbr.rel (%p269) target = $region28
      $region27: #{ecapa_forward.25} parent=11 // pred_region
        %p272 = scmp.lt.s32.totalorder %s23, 0
        %s273 = scalar_select %p272, %s23, 0
        %s274 = scalar_lea.vmem %s6, %s273
      $region28: #{ecapa_forward.25} parent=11 // pred_fallthru
        _
    $region12: #{ecapa_forward.25} parent=5 // pred_fallthru
      _
    %p275 = scmp.lt.s32.totalorder %s13, 2
    // Predicated region
    $region29: #{ecapa_forward.25} parent=5 // pred_check
      %p276 = pneg %p275
    $region30: #{ecapa_forward.25} parent=5 // pred_check_branch
      %278 = sbr.rel (%p276) target = $region32
    $region31: #{ecapa_forward.25} parent=5 // pred_region
      // Predicated region
      $region33: #{ecapa_forward.25} parent=31 // pred_check
        %p279 = pneg %p45
      $region34: #{ecapa_forward.25} parent=31 // pred_check_branch
        %281 = sbr.rel (%p279) target = $region36
      $region35: #{ecapa_forward.25} parent=31 // pred_region
        %p282 = scmp.lt.s32.totalorder %s20, 1
        %s283 = scalar_select %p282, %s20, 1
        %s284 = smul.addr %s283, 4
        %s285 = smul.addr %s284, 4
        %s286 = scalar_lea.vmem %s0, %s285
      $region36: #{ecapa_forward.25} parent=31 // pred_fallthru
        _
      // Predicated region
      $region37: #{ecapa_forward.25} parent=31 // pred_check
        %p287 = pneg %p71
      $region38: #{ecapa_forward.25} parent=31 // pred_check_branch
        %289 = sbr.rel (%p287) target = $region40
      $region39: #{ecapa_forward.25} parent=31 // pred_region
        %p290 = scmp.lt.s32.totalorder %s20, 1
        %s291 = scalar_select %p290, %s20, 1
        %s292 = smul.addr %s291, 4
        %s293 = smul.addr %s292, 4
        %s294 = scalar_lea.vmem %s1, %s293
      $region40: #{ecapa_forward.25} parent=31 // pred_fallthru
        _
      // Predicated region
      $region41: #{ecapa_forward.25} parent=31 // pred_check
        %p295 = pneg %p97
      $region42: #{ecapa_forward.25} parent=31 // pred_check_branch
        %297 = sbr.rel (%p295) target = $region44
      $region43: #{ecapa_forward.25} parent=31 // pred_region
        %p298 = scmp.lt.s32.totalorder %s20, 1
        %s299 = scalar_select %p298, %s20, 1
        %s300 = smul.addr %s299, 4
        %s301 = smul.addr %s300, 4
        %s302 = scalar_lea.vmem %s2, %s301
      $region44: #{ecapa_forward.25} parent=31 // pred_fallthru
        _
    $region32: #{ecapa_forward.25} parent=5 // pred_fallthru
      _
    %p303 = scmp.le.s32.totalorder 1, %s13
    %p304 = scmp.lt.s32.totalorder %s13, 3
    %p305 = pnand %p303, %p304
    %p306 = pneg %p305
    // Predicated region
    $region45: #{ecapa_forward.25} parent=5 // pred_check
      _
    $region46: #{ecapa_forward.25} parent=5 // pred_check_branch
      %308 = sbr.rel (%p305) target = $region48
    $region47: #{ecapa_forward.25} parent=5 // pred_region
      %s309 = ssub.s32 %s13, 1
      %p310 = scmp.lt.s32.totalorder %s22, 1
      %s311 = scalar_select %p310, %s22, 1
      %s312 = smul.addr %s311, 4
      %s313 = smul.addr %s312, 4
      %s314 = scalar_lea.vmem %s0, %s313
      %p315 = pneg %p51
      %p316 = pneg %p48
      %p317 = scmp.lt.s32.totalorder %s22, 1
      %s318 = scalar_select %p317, %s22, 1
      %s319 = smul.addr %s318, 4
      %s320 = smul.addr %s319, 4
      %s321 = scalar_lea.vmem %s1, %s320
      %p322 = pneg %p77
      %p323 = pneg %p74
      %p324 = scmp.lt.s32.totalorder %s22, 1
      %s325 = scalar_select %p324, %s22, 1
      %s326 = smul.addr %s325, 4
      %s327 = smul.addr %s326, 4
      %s328 = scalar_lea.vmem %s2, %s327
      %p329 = pneg %p103
      %p330 = pneg %p100
      %p331 = scmp.lt.s32.totalorder %s23, 0
      %s332 = scalar_select %p331, %s23, 0
      %s333 = smul.addr %s332, 4
      %s334 = scalar_lea.vmem %s3, %s333
      %p335 = pneg %p129
      %p336 = pneg %p126
      %p337 = scmp.lt.s32.totalorder %s23, 0
      %s338 = scalar_select %p337, %s23, 0
      %s339 = scalar_lea.vmem %s4, %s338
      %p340 = pneg %p155
      %p341 = pneg %p152
      %p342 = scmp.lt.s32.totalorder %s23, 0
      %s343 = scalar_select %p342, %s23, 0
      %s344 = scalar_lea.vmem %s5, %s343
      %p345 = pneg %p181
      %p346 = pneg %p178
      %p347 = scmp.lt.s32.totalorder %s23, 0
      %s348 = scalar_select %p347, %s23, 0
      %s349 = scalar_lea.vmem %s6, %s348
      %p350 = pneg %p207
      %p351 = pneg %p204
      %p352 = pneg %p235
      %p353 = pneg %p232
      %p354 = scmp.lt.s32.totalorder %s22, 1
      %s355 = scalar_select %p354, %s22, 1
      %p356 = scmp.lt.s32.totalorder %s23, 0
      %s357 = scalar_select %p356, %s23, 0
      %s358 = smul.addr %s355, 4
      %s359 = sadd.s32 %s357, %s358
      %s360 = smul.addr %s359, 4
      %s361 = scalar_lea.vmem %s7, %s360
      %p362 = scmp.lt.s32.totalorder %s22, 1
      %s363 = scalar_select %p362, %s22, 1
      %s364 = smul.addr %s363, 4
      %s365 = smul.addr %s364, 4
      %s366 = scalar_lea.vmem %s0, %s365
      %p367 = scmp.lt.s32.totalorder %s22, 1
      %s368 = scalar_select %p367, %s22, 1
      %s369 = smul.addr %s368, 4
      %s370 = smul.addr %s369, 4
      %s371 = scalar_lea.vmem %s1, %s370
      %p372 = scmp.lt.s32.totalorder %s22, 1
      %s373 = scalar_select %p372, %s22, 1
      %s374 = smul.addr %s373, 4
      %s375 = smul.addr %s374, 4
      %s376 = scalar_lea.vmem %s2, %s375
      %p377 = scmp.lt.s32.totalorder %s23, 0
      %s378 = scalar_select %p377, %s23, 0
      %s379 = smul.addr %s378, 4
      %s380 = scalar_lea.vmem %s3, %s379
      %p381 = scmp.lt.s32.totalorder %s23, 0
      %s382 = scalar_select %p381, %s23, 0
      %s383 = scalar_lea.vmem %s4, %s382
      %p384 = scmp.lt.s32.totalorder %s23, 0
      %s385 = scalar_select %p384, %s23, 0
      %s386 = scalar_lea.vmem %s5, %s385
      %p387 = scmp.lt.s32.totalorder %s23, 0
      %s388 = scalar_select %p387, %s23, 0
      %s389 = scalar_lea.vmem %s6, %s388
      %p390 = scmp.lt.s32.totalorder %s22, 1
      %s391 = scalar_select %p390, %s22, 1
      %p392 = scmp.lt.s32.totalorder %s23, 0
      %s393 = scalar_select %p392, %s23, 0
      %s394 = smul.addr %s391, 4
      %s395 = sadd.s32 %s393, %s394
      %s396 = smul.addr %s395, 4
      %s397 = scalar_lea.vmem %s7, %s396
      %v399 = vld [vmem:[%s366] sm:$0xf]
      %v400 = vld [vmem:[%s366 + $0x4] sm:$0xf]
      %v401 = vld [vmem:[%s366 + $0x8] sm:$0xf]
      %v402 = vld [vmem:[%s366 + $0xc] sm:$0xf]
      %v403 = vunpack.c.l.bf16 %v399
      %v404 = vunpack.c.l.bf16 %v400
      %v405 = vunpack.c.l.bf16 %v401
      %v406 = vunpack.c.l.bf16 %v402
      %v407 = vld [vmem:[%s371] sm:$0xf]
      %v408 = vld [vmem:[%s371 + $0x4] sm:$0xf]
      %v409 = vld [vmem:[%s371 + $0x8] sm:$0xf]
      %v410 = vld [vmem:[%s371 + $0xc] sm:$0xf]
      %v411 = vunpack.c.l.bf16 %v407
      %v412 = vunpack.c.l.bf16 %v408
      %v413 = vunpack.c.l.bf16 %v409
      %v414 = vunpack.c.l.bf16 %v410
      %v415 = vadd.f32 %v403, %v411
      %v416 = vadd.f32 %v404, %v412
      %v417 = vadd.f32 %v405, %v413
      %v418 = vadd.f32 %v406, %v414
      %v419 = vld [vmem:[%s376] sm:$0xf]
      %v420 = vld [vmem:[%s376 + $0x4] sm:$0xf]
      %v421 = vld [vmem:[%s376 + $0x8] sm:$0xf]
      %v422 = vld [vmem:[%s376 + $0xc] sm:$0xf]
      %v423 = vunpack.c.l.bf16 %v419
      %v424 = vunpack.c.l.bf16 %v420
      %v425 = vunpack.c.l.bf16 %v421
      %v426 = vunpack.c.l.bf16 %v422
      %v427 = vadd.f32 %v415, %v423
      %v428 = vadd.f32 %v416, %v424
      %v429 = vadd.f32 %v417, %v425
      %v430 = vadd.f32 %v418, %v426
      %v431 = vpack.c.bf16 %v428, %v427
      %v432 = vpack.c.bf16 %v430, %v429
      %v433 = vld [vmem:[%s380] sm:$0xf]
      %v434 = vld [vmem:[%s380 + $0x4] sm:$0xf]
      %v435 = vld [vmem:[%s380 + $0x8] sm:$0xf]
      %v436 = vld [vmem:[%s380 + $0xc] sm:$0xf]
      %v437 = vld [vmem:[%s380 + $0x10] sm:$0xf]
      %v438 = vld [vmem:[%s380 + $0x14] sm:$0xf]
      %v439 = vld [vmem:[%s380 + $0x18] sm:$0xf]
      %v440 = vld [vmem:[%s380 + $0x1c] sm:$0xf]
      %v441 = vld [vmem:[%s380 + $0x20] sm:$0xf]
      %v442 = vld [vmem:[%s380 + $0x24] sm:$0xf]
      %v443 = vld [vmem:[%s380 + $0x28] sm:$0xf]
      %v444 = vld [vmem:[%s380 + $0x2c] sm:$0xf]
      %v445 = vld [vmem:[%s380 + $0x30] sm:$0xf]
      %v446 = vld [vmem:[%s380 + $0x34] sm:$0xf]
      %v447 = vld [vmem:[%s380 + $0x38] sm:$0xf]
      %v448 = vld [vmem:[%s380 + $0x3c] sm:$0xf]
      %v449 = vld [vmem:[%s383] sm:$0x1]
      %v451 = vlaneseq
      %v452 = vshrl.u32 %v451, 7
      %v453 = vsub.s32 0, %v452
      %v454 = vrot.slane %v449, %v453
      %v472 = vunpack.c.l.b16 %v433
      %v473 = vunpack.c.l.b16 %v434
      %v474 = vunpack.c.l.b16 %v435
      %v475 = vunpack.c.l.b16 %v436
      %v476 = vunpack.c.l.b16 %v437
      %v477 = vunpack.c.l.b16 %v438
      %v478 = vunpack.c.l.b16 %v439
      %v479 = vunpack.c.l.b16 %v440
      %v480 = vunpack.c.l.b16 %v441
      %v481 = vunpack.c.l.b16 %v442
      %v482 = vunpack.c.l.b16 %v443
      %v483 = vunpack.c.l.b16 %v444
      %v484 = vunpack.c.l.b16 %v445
      %v485 = vunpack.c.l.b16 %v446
      %v486 = vunpack.c.l.b16 %v447
      %v487 = vunpack.c.l.b16 %v448
      %v488 = vpack.c.b16 %v473, %v472
      %v489 = vpack.c.b16 %v475, %v474
      %v490 = vpack.c.b16 %v477, %v476
      %v491 = vpack.c.b16 %v479, %v478
      %v492 = vpack.c.b16 %v481, %v480
      %v493 = vpack.c.b16 %v483, %v482
      %v494 = vpack.c.b16 %v485, %v484
      %v495 = vpack.c.b16 %v487, %v486
      %504 = vmatprep.subr.bf16.mxu0 0
      %505 = vmatpush1.bf16.msra.mxu0 %v495
      %506 = vmatprep.subr.bf16.mxu0 0
      %507 = vmatpush1.bf16.msra.mxu0 %v494
      %508 = vmatprep.subr.bf16.mxu0 0
      %509 = vmatpush1.bf16.msra.mxu0 %v493
      %510 = vmatprep.subr.bf16.mxu0 0
      %511 = vmatpush1.bf16.msra.mxu0 %v492
      %512 = vmatprep.subr.bf16.mxu0 0
      %513 = vmatpush1.bf16.msra.mxu0 %v491
      %514 = vmatprep.subr.bf16.mxu0 0
      %515 = vmatpush1.bf16.msra.mxu0 %v490
      %516 = vmatprep.subr.bf16.mxu0 0
      %517 = vmatpush1.bf16.msra.mxu0 %v489
      %518 = vmatprep.subr.bf16.mxu0 0
      %519 = vmatpush1.bf16.msra.mxu0 %v488
      %520 = vmatprep.subr.bf16.mxu0 0
      %521 = vmatpush2.bf16.msra.mxu0 0
      %522 = vmatprep.subr.bf16.mxu0 0
      %523 = vmatpush2.bf16.msra.mxu0 0
      %524 = vmatprep.subr.bf16.mxu0 0
      %525 = vmatpush2.bf16.msra.mxu0 0
      %526 = vmatprep.subr.bf16.mxu0 0
      %527 = vmatpush2.bf16.msra.mxu0 0
      %528 = vmatprep.subr.bf16.mxu0 0
      %529 = vmatpush2.bf16.msra.mxu0 0
      %530 = vmatprep.subr.bf16.mxu0 0
      %531 = vmatpush2.bf16.msra.mxu0 0
      %532 = vmatprep.subr.bf16.mxu0 0
      %533 = vmatpush2.bf16.msra.mxu0 0
      %534 = vmatprep.subr.bf16.mxu0 0
      %535 = vmatpush2.bf16.msra.mxu0 0
      %536 = vmatprep.mubr.bf16.mxu0 0
      %537 = vmatmul.mubr.bf16.gmra.mxu0 %v431
      %v538 = vpop.f32.mrf.mxu0
      %v539 = vadd.f32 %v454, %v538
      %v540 = vpop.f32.mrf.mxu0
      %v541 = vpop.f32.mrf.mxu0
      %v542 = vadd.f32 %v454, %v541
      %v543 = vpop.f32.mrf.mxu0
      %544 = vmatprep.mubr.bf16.mxu0 0
      %545 = vmatmul.mubr.bf16.gmra.mxu0 %v432
      %v546 = vpop.f32.mrf.mxu0
      %v547 = vadd.f32 %v454, %v546
      %v548 = vpop.f32.mrf.mxu0
      %v549 = vpop.f32.mrf.mxu0
      %v550 = vadd.f32 %v454, %v549
      %v551 = vpop.f32.mrf.mxu0
      %552 = vdwg.mxu0
      %v553 = vmax.f32 %v539, 0.0
      %v554 = vmax.f32 %v542, 0.0
      %v555 = vmax.f32 %v547, 0.0
      %v556 = vmax.f32 %v550, 0.0
      %v557 = vld [vmem:[%s386] sm:$0x1]
      %v559 = vlaneseq
      %v560 = vshrl.u32 %v559, 7
      %v561 = vsub.s32 0, %v560
      %v562 = vrot.slane %v557, %v561
      %v564 = vmul.f32 %v553, %v562
      %v565 = vmul.f32 %v554, %v562
      %v566 = vmul.f32 %v555, %v562
      %v567 = vmul.f32 %v556, %v562
      %v568 = vld [vmem:[%s389] sm:$0x1]
      %v570 = vlaneseq
      %v571 = vshrl.u32 %v570, 7
      %v572 = vsub.s32 0, %v571
      %v573 = vrot.slane %v568, %v572
      %v575 = vadd.f32 %v564, %v573
      %v576 = vadd.f32 %v565, %v573
      %v577 = vadd.f32 %v566, %v573
      %v578 = vadd.f32 %v567, %v573
      %v579 = vpack.c.bf16 %v576, %v575
      %v580 = vpack.c.bf16 %v578, %v577
      %v583 = vunpack.c.l.b16 %v579
      %v584 = vunpack.c.h.b16 %v579
      %v585 = vunpack.c.l.b16 %v580
      %v586 = vunpack.c.h.b16 %v580
      %v587 = vpack.c.b16 %v583, %v583
      %v588 = vpack.c.b16 %v584, %v584
      %v589 = vpack.c.b16 %v585, %v585
      %v590 = vpack.c.b16 %v586, %v586
      %595 = vst [vmem:[%s397] sm:$0xf] %v587
      %596 = vst [vmem:[%s397 + $0x4] sm:$0xf] %v588
      %597 = vst [vmem:[%s397 + $0x8] sm:$0xf] %v589
      %598 = vst [vmem:[%s397 + $0xc] sm:$0xf] %v590
      %p599 = scmp.lt.s32.totalorder %s22, 1
      %s600 = scalar_select %p599, %s22, 1
      %p601 = scmp.lt.s32.totalorder %s23, 0
      %s602 = scalar_select %p601, %s23, 0
      %s603 = smul.addr %s600, 4
      %s604 = sadd.s32 %s602, %s603
      %s605 = smul.addr %s604, 4
      %s606 = scalar_lea.vmem %s7, %s605
      // Predicated region
      $region49: #{ecapa_forward.25} parent=47 // pred_check
        %p607 = pneg %p232
      $region50: #{ecapa_forward.25} parent=47 // pred_check_branch
        %609 = sbr.rel (%p607) target = $region52
      $region51: #{ecapa_forward.25} parent=47 // pred_region
        _
      $region52: #{ecapa_forward.25} parent=47 // pred_fallthru
        _
    $region48: #{ecapa_forward.25} parent=5 // pred_fallthru
      _
    %p610 = scmp.le.s32.totalorder 2, %s13
    // Predicated region
    $region53: #{ecapa_forward.25} parent=5 // pred_check
      %p611 = pneg %p610
    $region54: #{ecapa_forward.25} parent=5 // pred_check_branch
      %613 = sbr.rel (%p611) target = $region56
    $region55: #{ecapa_forward.25} parent=5 // pred_region
      %s614 = ssub.s32 %s13, 2
      // Predicated region
      $region57: #{ecapa_forward.25} parent=55 // pred_check
        %p615 = pneg %p238
      $region58: #{ecapa_forward.25} parent=55 // pred_check_branch
        %617 = sbr.rel (%p615) target = $region60
      $region59: #{ecapa_forward.25} parent=55 // pred_region
        %p618 = scmp.lt.s32.totalorder %s24, 1
        %s619 = scalar_select %p618, %s24, 1
        %p620 = scmp.lt.s32.totalorder %s25, 0
        %s621 = scalar_select %p620, %s25, 0
        %s622 = smul.addr %s619, 4
        %s623 = sadd.s32 %s621, %s622
        %s624 = smul.addr %s623, 4
        %s625 = scalar_lea.vmem %s7, %s624
      $region60: #{ecapa_forward.25} parent=55 // pred_fallthru
        _
    $region56: #{ecapa_forward.25} parent=5 // pred_fallthru
      _
  $region6: #{ecapa_forward.25} parent=0 // loop_footer
    %s17 = sadd.s32 1, %s13
  $region7: #{ecapa_forward.25} parent=0 // loop_footer_branch
    %12 = sbr.rel target = $region3
  $region8: #{ecapa_forward.25} parent=0 // loop_exit
    _

// kernel: ecapa_forward.26
$region0: #{ecapa_forward.26}
  #allocation0 [shape = 'u32[]', space=smem, size = 0x4, offset = 0x4, fixed_abs, tag = 'smem constant byte address 0x4 - core index']
  #allocation1 [shape = 'u32[144,128]{1,0:T(1,128)}', space=vmem, size = 0x12000, scoped, tag = 'internal scratch']
  #allocation2 [shape = 'f32[40,128]{1,0:T(8,128)}', space=vmem, size = 0x5000, scoped, tag = 'scratch operand']
  %s0 = inlined_call_operand.vmem [shape: bf16[2,32,128], index: 0, kind: input, shape index: {}]
  %s1 = inlined_call_operand.vmem [shape: bf16[3,128,128], index: 1, kind: input, shape index: {}]
  %s2 = inlined_call_operand.vmem [shape: f32[1,128], index: 2, kind: input, shape index: {}]
  %s3 = inlined_call_operand.vmem [shape: f32[1,128], index: 3, kind: input, shape index: {}]
  %s4 = inlined_call_operand.vmem [shape: f32[1,128], index: 4, kind: input, shape index: {}]
  %s5 = inlined_call_operand.vmem [shape: bf16[2,32,128], index: 5, kind: output, shape index: {}]
  %s6 = sld [smem:[#allocation0]]
  $region53: #{ecapa_forward.26} parent=0
    _
  %s8 = ssub.s32 1, %s6
  %s9 = scalar_select 0, %s8, %s6
  loop: start=0, step=1, limit=4
  $region2: #{ecapa_forward.26} parent=0 // loop_pre_header
    _
  $region3: #{ecapa_forward.26} parent=0 // loop_header
    %s11 = sphi 0, %s15
    %p12 = scmp.ge.s32.totalorder %s11, 4
    %s18 = sphi 0, %s30
    %s19 = sphi 0, %s26
    %s20 = sphi 0, %s18
    %s21 = sphi 0, %s19
    %s22 = sphi 0, %s20
    %s23 = sphi 0, %s21
    %s33 = sphi 0, %s35
    %s36 = sphi 0, %s33
    %s37 = sphi 0, %s36
    %s53 = sphi 0, %s37
    %s59 = sphi 0, %s61
    %s62 = sphi 0, %s59
    %s63 = sphi 0, %s62
    %s79 = sphi 0, %s63
    %s85 = sphi 0, %s87
    %s88 = sphi 0, %s85
    %s89 = sphi 0, %s88
    %s105 = sphi 0, %s89
    %s111 = sphi 0, %s113
    %s114 = sphi 0, %s111
    %s115 = sphi 0, %s114
    %s131 = sphi 0, %s115
    %s137 = sphi 0, %s139
    %s140 = sphi 0, %s137
    %s141 = sphi 0, %s140
    %s157 = sphi 0, %s141
    %s165 = sphi 0, %s167
    %s168 = sphi 0, %s165
    %s169 = sphi 0, %s168
    %s185 = sphi 0, %s169
  $region4: #{ecapa_forward.26} parent=0 // loop_header_branch
    %14 = sbr.rel (%p12) target = $region8
  $region5: #{ecapa_forward.26} parent=0 // loop_body
    %s16 = ssub.s32 %s11, 1
    %s17 = ssub.s32 %s11, 2
    %s24 = sadd.s32 1, %s19
    %p25 = scmp.ge.s32.totalorder %s24, 1
    %s26 = scalar_select %p25, 0, %s24
    %s27 = sadd.s32 1, %s18
    %s28 = scalar_select %p25, %s27, %s18
    %p29 = scmp.ge.s32.totalorder %s28, 2
    %s30 = scalar_select %p29, 0, %s28
    %s31 = ssub.s32 %s18, %s30
    %p32 = scmp.eq.s32.totalorder %s31, 0
    %s34 = sadd.s32 %s33, 1
    %s35 = scalar_select %p32, %s33, %s34
    %p38 = pneg %p32
    %p39 = scmp.eq.s32.totalorder %s11, 1
    %p40 = por %p38, %p39
    %p41 = scmp.ne.s32.totalorder %s33, %s36
    %p42 = scmp.eq.s32.totalorder %s11, 0
    %p43 = por %p41, %p42
    %p44 = scmp.ne.s32.totalorder %s33, %s36
    %p45 = scmp.eq.s32.totalorder %s16, 1
    %p46 = por %p44, %p45
    %p47 = scmp.ne.s32.totalorder %s36, %s37
    %p48 = scmp.eq.s32.totalorder %s16, 0
    %p49 = por %p47, %p48
    %p50 = scmp.ne.s32.totalorder %s36, %s37
    %p51 = scmp.eq.s32.totalorder %s17, 1
    %p52 = por %p50, %p51
    %p54 = scmp.ne.s32.totalorder %s37, %s53
    %p55 = scmp.eq.s32.totalorder %s17, 0
    %p56 = por %p54, %p55
    %s57 = ssub.s32 %s19, %s26
    %p58 = scmp.eq.s32.totalorder %s57, 0
    %s60 = sadd.s32 %s59, 1
    %s61 = scalar_select %p58, %s59, %s60
    %p64 = pneg %p58
    %p65 = scmp.eq.s32.totalorder %s11, 1
    %p66 = por %p64, %p65
    %p67 = scmp.ne.s32.totalorder %s59, %s62
    %p68 = scmp.eq.s32.totalorder %s11, 0
    %p69 = por %p67, %p68
    %p70 = scmp.ne.s32.totalorder %s59, %s62
    %p71 = scmp.eq.s32.totalorder %s16, 1
    %p72 = por %p70, %p71
    %p73 = scmp.ne.s32.totalorder %s62, %s63
    %p74 = scmp.eq.s32.totalorder %s16, 0
    %p75 = por %p73, %p74
    %p76 = scmp.ne.s32.totalorder %s62, %s63
    %p77 = scmp.eq.s32.totalorder %s17, 1
    %p78 = por %p76, %p77
    %p80 = scmp.ne.s32.totalorder %s63, %s79
    %p81 = scmp.eq.s32.totalorder %s17, 0
    %p82 = por %p80, %p81
    %s83 = ssub.s32 %s19, %s26
    %p84 = scmp.eq.s32.totalorder %s83, 0
    %s86 = sadd.s32 %s85, 1
    %s87 = scalar_select %p84, %s85, %s86
    %p90 = pneg %p84
    %p91 = scmp.eq.s32.totalorder %s11, 1
    %p92 = por %p90, %p91
    %p93 = scmp.ne.s32.totalorder %s85, %s88
    %p94 = scmp.eq.s32.totalorder %s11, 0
    %p95 = por %p93, %p94
    %p96 = scmp.ne.s32.totalorder %s85, %s88
    %p97 = scmp.eq.s32.totalorder %s16, 1
    %p98 = por %p96, %p97
    %p99 = scmp.ne.s32.totalorder %s88, %s89
    %p100 = scmp.eq.s32.totalorder %s16, 0
    %p101 = por %p99, %p100
    %p102 = scmp.ne.s32.totalorder %s88, %s89
    %p103 = scmp.eq.s32.totalorder %s17, 1
    %p104 = por %p102, %p103
    %p106 = scmp.ne.s32.totalorder %s89, %s105
    %p107 = scmp.eq.s32.totalorder %s17, 0
    %p108 = por %p106, %p107
    %s109 = ssub.s32 %s19, %s26
    %p110 = scmp.eq.s32.totalorder %s109, 0
    %s112 = sadd.s32 %s111, 1
    %s113 = scalar_select %p110, %s111, %s112
    %p116 = pneg %p110
    %p117 = scmp.eq.s32.totalorder %s11, 1
    %p118 = por %p116, %p117
    %p119 = scmp.ne.s32.totalorder %s111, %s114
    %p120 = scmp.eq.s32.totalorder %s11, 0
    %p121 = por %p119, %p120
    %p122 = scmp.ne.s32.totalorder %s111, %s114
    %p123 = scmp.eq.s32.totalorder %s16, 1
    %p124 = por %p122, %p123
    %p125 = scmp.ne.s32.totalorder %s114, %s115
    %p126 = scmp.eq.s32.totalorder %s16, 0
    %p127 = por %p125, %p126
    %p128 = scmp.ne.s32.totalorder %s114, %s115
    %p129 = scmp.eq.s32.totalorder %s17, 1
    %p130 = por %p128, %p129
    %p132 = scmp.ne.s32.totalorder %s115, %s131
    %p133 = scmp.eq.s32.totalorder %s17, 0
    %p134 = por %p132, %p133
    %s135 = ssub.s32 %s19, %s26
    %p136 = scmp.eq.s32.totalorder %s135, 0
    %s138 = sadd.s32 %s137, 1
    %s139 = scalar_select %p136, %s137, %s138
    %p142 = pneg %p136
    %p143 = scmp.eq.s32.totalorder %s11, 1
    %p144 = por %p142, %p143
    %p145 = scmp.ne.s32.totalorder %s137, %s140
    %p146 = scmp.eq.s32.totalorder %s11, 0
    %p147 = por %p145, %p146
    %p148 = scmp.ne.s32.totalorder %s137, %s140
    %p149 = scmp.eq.s32.totalorder %s16, 1
    %p150 = por %p148, %p149
    %p151 = scmp.ne.s32.totalorder %s140, %s141
    %p152 = scmp.eq.s32.totalorder %s16, 0
    %p153 = por %p151, %p152
    %p154 = scmp.ne.s32.totalorder %s140, %s141
    %p155 = scmp.eq.s32.totalorder %s17, 1
    %p156 = por %p154, %p155
    %p158 = scmp.ne.s32.totalorder %s141, %s157
    %p159 = scmp.eq.s32.totalorder %s17, 0
    %p160 = por %p158, %p159
    %s161 = ssub.s32 %s18, %s30
    %s162 = ssub.s32 %s19, %s26
    %s163 = sor.u32 %s161, %s162
    %p164 = scmp.eq.s32.totalorder %s163, 0
    %s166 = sadd.s32 %s165, 1
    %s167 = scalar_select %p164, %s165, %s166
    %p170 = pneg %p164
    %p171 = scmp.eq.s32.totalorder %s11, 1
    %p172 = por %p170, %p171
    %p173 = scmp.ne.s32.totalorder %s165, %s168
    %p174 = scmp.eq.s32.totalorder %s11, 0
    %p175 = por %p173, %p174
    %p176 = scmp.ne.s32.totalorder %s165, %s168
    %p177 = scmp.eq.s32.totalorder %s16, 1
    %p178 = por %p176, %p177
    %p179 = scmp.ne.s32.totalorder %s168, %s169
    %p180 = scmp.eq.s32.totalorder %s16, 0
    %p181 = por %p179, %p180
    %p182 = scmp.ne.s32.totalorder %s168, %s169
    %p183 = scmp.eq.s32.totalorder %s17, 1
    %p184 = por %p182, %p183
    %p186 = scmp.ne.s32.totalorder %s169, %s185
    %p187 = scmp.eq.s32.totalorder %s17, 0
    %p188 = por %p186, %p187
    %p189 = scmp.le.s32.totalorder 1, %s11
    %p190 = scmp.lt.s32.totalorder %s11, 3
    %p191 = pnand %p189, %p190
    %p192 = pneg %p191
    // Predicated region
    $region9: #{ecapa_forward.26} parent=5 // pred_check
      _
    $region10: #{ecapa_forward.26} parent=5 // pred_check_branch
      %194 = sbr.rel (%p191) target = $region12
    $region11: #{ecapa_forward.26} parent=5 // pred_region
      %s195 = ssub.s32 %s11, 1
      // Predicated region
      $region13: #{ecapa_forward.26} parent=11 // pred_check
        %p196 = pneg %p75
      $region14: #{ecapa_forward.26} parent=11 // pred_check_branch
        %198 = sbr.rel (%p196) target = $region16
      $region15: #{ecapa_forward.26} parent=11 // pred_region
        %p199 = scmp.lt.s32.totalorder %s21, 0
        %s200 = scalar_select %p199, %s21, 0
        %s201 = smul.addr %s200, 4
        %s202 = scalar_lea.vmem %s1, %s201
      $region16: #{ecapa_forward.26} parent=11 // pred_fallthru
        _
      // Predicated region
      $region17: #{ecapa_forward.26} parent=11 // pred_check
        %p203 = pneg %p101
      $region18: #{ecapa_forward.26} parent=11 // pred_check_branch
        %205 = sbr.rel (%p203) target = $region20
      $region19: #{ecapa_forward.26} parent=11 // pred_region
        %p206 = scmp.lt.s32.totalorder %s21, 0
        %s207 = scalar_select %p206, %s21, 0
        %s208 = scalar_lea.vmem %s2, %s207
      $region20: #{ecapa_forward.26} parent=11 // pred_fallthru
        _
      // Predicated region
      $region21: #{ecapa_forward.26} parent=11 // pred_check
        %p209 = pneg %p127
      $region22: #{ecapa_forward.26} parent=11 // pred_check_branch
        %211 = sbr.rel (%p209) target = $region24
      $region23: #{ecapa_forward.26} parent=11 // pred_region
        %p212 = scmp.lt.s32.totalorder %s21, 0
        %s213 = scalar_select %p212, %s21, 0
        %s214 = scalar_lea.vmem %s3, %s213
      $region24: #{ecapa_forward.26} parent=11 // pred_fallthru
        _
      // Predicated region
      $region25: #{ecapa_forward.26} parent=11 // pred_check
        %p215 = pneg %p153
      $region26: #{ecapa_forward.26} parent=11 // pred_check_branch
        %217 = sbr.rel (%p215) target = $region28
      $region27: #{ecapa_forward.26} parent=11 // pred_region
        %p218 = scmp.lt.s32.totalorder %s21, 0
        %s219 = scalar_select %p218, %s21, 0
        %s220 = scalar_lea.vmem %s4, %s219
      $region28: #{ecapa_forward.26} parent=11 // pred_fallthru
        _
    $region12: #{ecapa_forward.26} parent=5 // pred_fallthru
      _
    %p221 = scmp.lt.s32.totalorder %s11, 2
    // Predicated region
    $region29: #{ecapa_forward.26} parent=5 // pred_check
      %p222 = pneg %p221
    $region30: #{ecapa_forward.26} parent=5 // pred_check_branch
      %224 = sbr.rel (%p222) target = $region32
    $region31: #{ecapa_forward.26} parent=5 // pred_region
      // Predicated region
      $region33: #{ecapa_forward.26} parent=31 // pred_check
        %p225 = pneg %p43
      $region34: #{ecapa_forward.26} parent=31 // pred_check_branch
        %227 = sbr.rel (%p225) target = $region36
      $region35: #{ecapa_forward.26} parent=31 // pred_region
        %p228 = scmp.lt.s32.totalorder %s18, 1
        %s229 = scalar_select %p228, %s18, 1
        %s230 = smul.addr %s229, 4
        %s231 = smul.addr %s230, 4
        %s232 = scalar_lea.vmem %s0, %s231
      $region36: #{ecapa_forward.26} parent=31 // pred_fallthru
        _
    $region32: #{ecapa_forward.26} parent=5 // pred_fallthru
      _
    %p233 = scmp.le.s32.totalorder 1, %s11
    %p234 = scmp.lt.s32.totalorder %s11, 3
    %p235 = pnand %p233, %p234
    %p236 = pneg %p235
    // Predicated region
    $region37: #{ecapa_forward.26} parent=5 // pred_check
      _
    $region38: #{ecapa_forward.26} parent=5 // pred_check_branch
      %238 = sbr.rel (%p235) target = $region40
    $region39: #{ecapa_forward.26} parent=5 // pred_region
      %s239 = ssub.s32 %s11, 1
      %p240 = scmp.lt.s32.totalorder %s20, 1
      %s241 = scalar_select %p240, %s20, 1
      %s242 = smul.addr %s241, 4
      %s243 = smul.addr %s242, 4
      %s244 = scalar_lea.vmem %s0, %s243
      %p245 = pneg %p49
      %p246 = pneg %p46
      %p247 = scmp.lt.s32.totalorder %s21, 0
      %s248 = scalar_select %p247, %s21, 0
      %s249 = smul.addr %s248, 4
      %s250 = scalar_lea.vmem %s1, %s249
      %p251 = pneg %p75
      %p252 = pneg %p72
      %p253 = scmp.lt.s32.totalorder %s21, 0
      %s254 = scalar_select %p253, %s21, 0
      %s255 = scalar_lea.vmem %s2, %s254
      %p256 = pneg %p101
      %p257 = pneg %p98
      %p258 = scmp.lt.s32.totalorder %s21, 0
      %s259 = scalar_select %p258, %s21, 0
      %s260 = scalar_lea.vmem %s3, %s259
      %p261 = pneg %p127
      %p262 = pneg %p124
      %p263 = scmp.lt.s32.totalorder %s21, 0
      %s264 = scalar_select %p263, %s21, 0
      %s265 = scalar_lea.vmem %s4, %s264
      %p266 = pneg %p153
      %p267 = pneg %p150
      %p268 = pneg %p181
      %p269 = pneg %p178
      %p270 = scmp.lt.s32.totalorder %s20, 1
      %s271 = scalar_select %p270, %s20, 1
      %p272 = scmp.lt.s32.totalorder %s21, 0
      %s273 = scalar_select %p272, %s21, 0
      %s274 = smul.addr %s271, 4
      %s275 = sadd.s32 %s273, %s274
      %s276 = smul.addr %s275, 4
      %s277 = scalar_lea.vmem %s5, %s276
      %p278 = scmp.lt.s32.totalorder %s20, 1
      %s279 = scalar_select %p278, %s20, 1
      %s280 = smul.addr %s279, 4
      %s281 = smul.addr %s280, 4
      %s282 = scalar_lea.vmem %s0, %s281
      %p283 = scmp.lt.s32.totalorder %s21, 0
      %s284 = scalar_select %p283, %s21, 0
      %s285 = smul.addr %s284, 4
      %s286 = scalar_lea.vmem %s1, %s285
      %p287 = scmp.lt.s32.totalorder %s21, 0
      %s288 = scalar_select %p287, %s21, 0
      %s289 = scalar_lea.vmem %s2, %s288
      %p290 = scmp.lt.s32.totalorder %s21, 0
      %s291 = scalar_select %p290, %s21, 0
      %s292 = scalar_lea.vmem %s3, %s291
      %p293 = scmp.lt.s32.totalorder %s21, 0
      %s294 = scalar_select %p293, %s21, 0
      %s295 = scalar_lea.vmem %s4, %s294
      %p296 = scmp.lt.s32.totalorder %s20, 1
      %s297 = scalar_select %p296, %s20, 1
      %p298 = scmp.lt.s32.totalorder %s21, 0
      %s299 = scalar_select %p298, %s21, 0
      %s300 = smul.addr %s297, 4
      %s301 = sadd.s32 %s299, %s300
      %s302 = smul.addr %s301, 4
      %s303 = scalar_lea.vmem %s5, %s302
      %v305 = vld [vmem:[%s282] sm:$0xf]
      %v306 = vld [vmem:[%s282 + $0x4] sm:$0xf]
      %v307 = vld [vmem:[%s282 + $0x8] sm:$0xf]
      %v308 = vld [vmem:[%s282 + $0xc] sm:$0xf]
      %309 = vst [vmem:[#allocation2] sm:$0xff] 0.0
      %310 = vst [vmem:[#allocation2 + $0x8] sm:$0xff] 0.0
      %311 = vst [vmem:[#allocation2 + $0x10] sm:$0xff] 0.0
      %312 = vst [vmem:[#allocation2 + $0x18] sm:$0xff] 0.0
      %313 = vst [vmem:[#allocation2 + $0x20] sm:$0xff] 0.0
      %v314 = vunpack.c.l.bf16 %v305
      %v315 = vunpack.c.l.bf16 %v306
      %v316 = vunpack.c.l.bf16 %v307
      %v317 = vunpack.c.l.bf16 %v308
      %318 = vst [vmem:[#allocation2 + $0x4] sm:$0xff] %v314
      %319 = vst [vmem:[#allocation2 + $0xc] sm:$0xff] %v315
      %320 = vst [vmem:[#allocation2 + $0x14] sm:$0xff] %v316
      %321 = vst [vmem:[#allocation2 + $0x1c] sm:$0xff] %v317
      %v322 = vld [vmem:[#allocation2] sm:$0xff]
      %v323 = vld [vmem:[#allocation2 + $0x8] sm:$0xff]
      %v324 = vld [vmem:[#allocation2 + $0x10] sm:$0xff]
      %v325 = vld [vmem:[#allocation2 + $0x18] sm:$0xff]
      %v326 = vpack.c.bf16 %v323, %v322
      %v327 = vpack.c.bf16 %v325, %v324
      %v328 = vld [vmem:[#allocation2 + $0x4] sm:$0xff]
      %v329 = vld [vmem:[#allocation2 + $0xc] sm:$0xff]
      %v330 = vld [vmem:[#allocation2 + $0x14] sm:$0xff]
      %v331 = vld [vmem:[#allocation2 + $0x1c] sm:$0xff]
      %v332 = vpack.c.bf16 %v329, %v328
      %v333 = vpack.c.bf16 %v331, %v330
      %v334 = vld [vmem:[#allocation2 + $0x8] sm:$0xff]
      %v335 = vld [vmem:[#allocation2 + $0x10] sm:$0xff]
      %v336 = vld [vmem:[#allocation2 + $0x18] sm:$0xff]
      %v337 = vld [vmem:[#allocation2 + $0x20] sm:$0xff]
      %v338 = vpack.c.bf16 %v335, %v334
      %v339 = vpack.c.bf16 %v337, %v336
      %v340 = vld [vmem:[%s286] sm:$0xf]
      %v341 = vld [vmem:[%s286 + $0x4] sm:$0xf]
      %v342 = vld [vmem:[%s286 + $0x8] sm:$0xf]
      %v343 = vld [vmem:[%s286 + $0xc] sm:$0xf]
      %v344 = vld [vmem:[%s286 + $0x10] sm:$0xf]
      %v345 = vld [vmem:[%s286 + $0x14] sm:$0xf]
      %v346 = vld [vmem:[%s286 + $0x18] sm:$0xf]
      %v347 = vld [vmem:[%s286 + $0x1c] sm:$0xf]
      %v348 = vld [vmem:[%s286 + $0x20] sm:$0xf]
      %v349 = vld [vmem:[%s286 + $0x24] sm:$0xf]
      %v350 = vld [vmem:[%s286 + $0x28] sm:$0xf]
      %v351 = vld [vmem:[%s286 + $0x2c] sm:$0xf]
      %v352 = vld [vmem:[%s286 + $0x30] sm:$0xf]
      %v353 = vld [vmem:[%s286 + $0x34] sm:$0xf]
      %v354 = vld [vmem:[%s286 + $0x38] sm:$0xf]
      %v355 = vld [vmem:[%s286 + $0x3c] sm:$0xf]
      %s356 = scalar_lea.vmem %s286, 64
      %v357 = vld [vmem:[%s356] sm:$0xf]
      %v358 = vld [vmem:[%s356 + $0x4] sm:$0xf]
      %v359 = vld [vmem:[%s356 + $0x8] sm:$0xf]
      %v360 = vld [vmem:[%s356 + $0xc] sm:$0xf]
      %v361 = vld [vmem:[%s356 + $0x10] sm:$0xf]
      %v362 = vld [vmem:[%s356 + $0x14] sm:$0xf]
      %v363 = vld [vmem:[%s356 + $0x18] sm:$0xf]
      %v364 = vld [vmem:[%s356 + $0x1c] sm:$0xf]
      %v365 = vld [vmem:[%s356 + $0x20] sm:$0xf]
      %v366 = vld [vmem:[%s356 + $0x24] sm:$0xf]
      %v367 = vld [vmem:[%s356 + $0x28] sm:$0xf]
      %v368 = vld [vmem:[%s356 + $0x2c] sm:$0xf]
      %v369 = vld [vmem:[%s356 + $0x30] sm:$0xf]
      %v370 = vld [vmem:[%s356 + $0x34] sm:$0xf]
      %v371 = vld [vmem:[%s356 + $0x38] sm:$0xf]
      %v372 = vld [vmem:[%s356 + $0x3c] sm:$0xf]
      %v389 = vunpack.c.l.b16 %v357
      %v390 = vunpack.c.l.b16 %v358
      %v391 = vunpack.c.l.b16 %v359
      %v392 = vunpack.c.l.b16 %v360
      %v393 = vunpack.c.l.b16 %v361
      %v394 = vunpack.c.l.b16 %v362
      %v395 = vunpack.c.l.b16 %v363
      %v396 = vunpack.c.l.b16 %v364
      %v397 = vunpack.c.l.b16 %v365
      %v398 = vunpack.c.l.b16 %v366
      %v399 = vunpack.c.l.b16 %v367
      %v400 = vunpack.c.l.b16 %v368
      %v401 = vunpack.c.l.b16 %v369
      %v402 = vunpack.c.l.b16 %v370
      %v403 = vunpack.c.l.b16 %v371
      %v404 = vunpack.c.l.b16 %v372
      %v405 = vpack.c.b16 %v390, %v389
      %v406 = vpack.c.b16 %v392, %v391
      %v407 = vpack.c.b16 %v394, %v393
      %v408 = vpack.c.b16 %v396, %v395
      %v409 = vpack.c.b16 %v398, %v397
      %v410 = vpack.c.b16 %v400, %v399
      %v411 = vpack.c.b16 %v402, %v401
      %v412 = vpack.c.b16 %v404, %v403
      %421 = vmatprep.subr.bf16.mxu0 0
      %422 = vmatpush1.bf16.msra.mxu0 %v412
      %423 = vmatprep.subr.bf16.mxu0 0
      %424 = vmatpush1.bf16.msra.mxu0 %v411
      %425 = vmatprep.subr.bf16.mxu0 0
      %426 = vmatpush1.bf16.msra.mxu0 %v410
      %427 = vmatprep.subr.bf16.mxu0 0
      %428 = vmatpush1.bf16.msra.mxu0 %v409
      %429 = vmatprep.subr.bf16.mxu0 0
      %430 = vmatpush1.bf16.msra.mxu0 %v408
      %431 = vmatprep.subr.bf16.mxu0 0
      %432 = vmatpush1.bf16.msra.mxu0 %v407
      %433 = vmatprep.subr.bf16.mxu0 0
      %434 = vmatpush1.bf16.msra.mxu0 %v406
      %435 = vmatprep.subr.bf16.mxu0 0
      %436 = vmatpush1.bf16.msra.mxu0 %v405
      %437 = vmatprep.subr.bf16.mxu0 0
      %438 = vmatpush2.bf16.msra.mxu0 0
      %439 = vmatprep.subr.bf16.mxu0 0
      %440 = vmatpush2.bf16.msra.mxu0 0
      %441 = vmatprep.subr.bf16.mxu0 0
      %442 = vmatpush2.bf16.msra.mxu0 0
      %443 = vmatprep.subr.bf16.mxu0 0
      %444 = vmatpush2.bf16.msra.mxu0 0
      %445 = vmatprep.subr.bf16.mxu0 0
      %446 = vmatpush2.bf16.msra.mxu0 0
      %447 = vmatprep.subr.bf16.mxu0 0
      %448 = vmatpush2.bf16.msra.mxu0 0
      %449 = vmatprep.subr.bf16.mxu0 0
      %450 = vmatpush2.bf16.msra.mxu0 0
      %451 = vmatprep.subr.bf16.mxu0 0
      %452 = vmatpush2.bf16.msra.mxu0 0
      %453 = vmatprep.mubr.bf16.mxu0 0
      %454 = vmatmul.mubr.bf16.gmra.mxu0 %v332
      %v455 = vpop.f32.mrf.mxu0
      %v456 = vadd.f32 0.0, %v455
      %v457 = vpop.f32.mrf.mxu0
      %v458 = vpop.f32.mrf.mxu0
      %v459 = vadd.f32 0.0, %v458
      %v460 = vpop.f32.mrf.mxu0
      %461 = vmatprep.mubr.bf16.mxu0 0
      %462 = vmatmul.mubr.bf16.gmra.mxu0 %v333
      %v463 = vpop.f32.mrf.mxu0
      %v464 = vadd.f32 0.0, %v463
      %v465 = vpop.f32.mrf.mxu0
      %v466 = vpop.f32.mrf.mxu0
      %v467 = vadd.f32 0.0, %v466
      %v468 = vpop.f32.mrf.mxu0
      %469 = vdwg.mxu0
      %v486 = vunpack.c.l.b16 %v340
      %v487 = vunpack.c.l.b16 %v341
      %v488 = vunpack.c.l.b16 %v342
      %v489 = vunpack.c.l.b16 %v343
      %v490 = vunpack.c.l.b16 %v344
      %v491 = vunpack.c.l.b16 %v345
      %v492 = vunpack.c.l.b16 %v346
      %v493 = vunpack.c.l.b16 %v347
      %v494 = vunpack.c.l.b16 %v348
      %v495 = vunpack.c.l.b16 %v349
      %v496 = vunpack.c.l.b16 %v350
      %v497 = vunpack.c.l.b16 %v351
      %v498 = vunpack.c.l.b16 %v352
      %v499 = vunpack.c.l.b16 %v353
      %v500 = vunpack.c.l.b16 %v354
      %v501 = vunpack.c.l.b16 %v355
      %v502 = vpack.c.b16 %v487, %v486
      %v503 = vpack.c.b16 %v489, %v488
      %v504 = vpack.c.b16 %v491, %v490
      %v505 = vpack.c.b16 %v493, %v492
      %v506 = vpack.c.b16 %v495, %v494
      %v507 = vpack.c.b16 %v497, %v496
      %v508 = vpack.c.b16 %v499, %v498
      %v509 = vpack.c.b16 %v501, %v500
      %518 = vmatprep.subr.bf16.mxu0 0
      %519 = vmatpush1.bf16.msra.mxu0 %v509
      %520 = vmatprep.subr.bf16.mxu0 0
      %521 = vmatpush1.bf16.msra.mxu0 %v508
      %522 = vmatprep.subr.bf16.mxu0 0
      %523 = vmatpush1.bf16.msra.mxu0 %v507
      %524 = vmatprep.subr.bf16.mxu0 0
      %525 = vmatpush1.bf16.msra.mxu0 %v506
      %526 = vmatprep.subr.bf16.mxu0 0
      %527 = vmatpush1.bf16.msra.mxu0 %v505
      %528 = vmatprep.subr.bf16.mxu0 0
      %529 = vmatpush1.bf16.msra.mxu0 %v504
      %530 = vmatprep.subr.bf16.mxu0 0
      %531 = vmatpush1.bf16.msra.mxu0 %v503
      %532 = vmatprep.subr.bf16.mxu0 0
      %533 = vmatpush1.bf16.msra.mxu0 %v502
      %534 = vmatprep.subr.bf16.mxu0 0
      %535 = vmatpush2.bf16.msra.mxu0 0
      %536 = vmatprep.subr.bf16.mxu0 0
      %537 = vmatpush2.bf16.msra.mxu0 0
      %538 = vmatprep.subr.bf16.mxu0 0
      %539 = vmatpush2.bf16.msra.mxu0 0
      %540 = vmatprep.subr.bf16.mxu0 0
      %541 = vmatpush2.bf16.msra.mxu0 0
      %542 = vmatprep.subr.bf16.mxu0 0
      %543 = vmatpush2.bf16.msra.mxu0 0
      %544 = vmatprep.subr.bf16.mxu0 0
      %545 = vmatpush2.bf16.msra.mxu0 0
      %546 = vmatprep.subr.bf16.mxu0 0
      %547 = vmatpush2.bf16.msra.mxu0 0
      %548 = vmatprep.subr.bf16.mxu0 0
      %549 = vmatpush2.bf16.msra.mxu0 0
      %550 = vmatprep.mubr.bf16.mxu0 0
      %551 = vmatmul.mubr.bf16.gmra.mxu0 %v326
      %v552 = vpop.f32.mrf.mxu0
      %v553 = vadd.f32 %v456, %v552
      %v554 = vpop.f32.mrf.mxu0
      %v555 = vpop.f32.mrf.mxu0
      %v556 = vadd.f32 %v459, %v555
      %v557 = vpop.f32.mrf.mxu0
      %558 = vmatprep.mubr.bf16.mxu0 0
      %559 = vmatmul.mubr.bf16.gmra.mxu0 %v327
      %v560 = vpop.f32.mrf.mxu0
      %v561 = vadd.f32 %v464, %v560
      %v562 = vpop.f32.mrf.mxu0
      %v563 = vpop.f32.mrf.mxu0
      %v564 = vadd.f32 %v467, %v563
      %v565 = vpop.f32.mrf.mxu0
      %566 = vdwg.mxu0
      %s567 = scalar_lea.vmem %s286, 128
      %v568 = vld [vmem:[%s567] sm:$0xf]
      %v569 = vld [vmem:[%s567 + $0x4] sm:$0xf]
      %v570 = vld [vmem:[%s567 + $0x8] sm:$0xf]
      %v571 = vld [vmem:[%s567 + $0xc] sm:$0xf]
      %v572 = vld [vmem:[%s567 + $0x10] sm:$0xf]
      %v573 = vld [vmem:[%s567 + $0x14] sm:$0xf]
      %v574 = vld [vmem:[%s567 + $0x18] sm:$0xf]
      %v575 = vld [vmem:[%s567 + $0x1c] sm:$0xf]
      %v576 = vld [vmem:[%s567 + $0x20] sm:$0xf]
      %v577 = vld [vmem:[%s567 + $0x24] sm:$0xf]
      %v578 = vld [vmem:[%s567 + $0x28] sm:$0xf]
      %v579 = vld [vmem:[%s567 + $0x2c] sm:$0xf]
      %v580 = vld [vmem:[%s567 + $0x30] sm:$0xf]
      %v581 = vld [vmem:[%s567 + $0x34] sm:$0xf]
      %v582 = vld [vmem:[%s567 + $0x38] sm:$0xf]
      %v583 = vld [vmem:[%s567 + $0x3c] sm:$0xf]
      %v600 = vunpack.c.l.b16 %v568
      %v601 = vunpack.c.l.b16 %v569
      %v602 = vunpack.c.l.b16 %v570
      %v603 = vunpack.c.l.b16 %v571
      %v604 = vunpack.c.l.b16 %v572
      %v605 = vunpack.c.l.b16 %v573
      %v606 = vunpack.c.l.b16 %v574
      %v607 = vunpack.c.l.b16 %v575
      %v608 = vunpack.c.l.b16 %v576
      %v609 = vunpack.c.l.b16 %v577
      %v610 = vunpack.c.l.b16 %v578
      %v611 = vunpack.c.l.b16 %v579
      %v612 = vunpack.c.l.b16 %v580
      %v613 = vunpack.c.l.b16 %v581
      %v614 = vunpack.c.l.b16 %v582
      %v615 = vunpack.c.l.b16 %v583
      %v616 = vpack.c.b16 %v601, %v600
      %v617 = vpack.c.b16 %v603, %v602
      %v618 = vpack.c.b16 %v605, %v604
      %v619 = vpack.c.b16 %v607, %v606
      %v620 = vpack.c.b16 %v609, %v608
      %v621 = vpack.c.b16 %v611, %v610
      %v622 = vpack.c.b16 %v613, %v612
      %v623 = vpack.c.b16 %v615, %v614
      %632 = vmatprep.subr.bf16.mxu0 0
      %633 = vmatpush1.bf16.msra.mxu0 %v623
      %634 = vmatprep.subr.bf16.mxu0 0
      %635 = vmatpush1.bf16.msra.mxu0 %v622
      %636 = vmatprep.subr.bf16.mxu0 0
      %637 = vmatpush1.bf16.msra.mxu0 %v621
      %638 = vmatprep.subr.bf16.mxu0 0
      %639 = vmatpush1.bf16.msra.mxu0 %v620
      %640 = vmatprep.subr.bf16.mxu0 0
      %641 = vmatpush1.bf16.msra.mxu0 %v619
      %642 = vmatprep.subr.bf16.mxu0 0
      %643 = vmatpush1.bf16.msra.mxu0 %v618
      %644 = vmatprep.subr.bf16.mxu0 0
      %645 = vmatpush1.bf16.msra.mxu0 %v617
      %646 = vmatprep.subr.bf16.mxu0 0
      %647 = vmatpush1.bf16.msra.mxu0 %v616
      %648 = vmatprep.subr.bf16.mxu0 0
      %649 = vmatpush2.bf16.msra.mxu0 0
      %650 = vmatprep.subr.bf16.mxu0 0
      %651 = vmatpush2.bf16.msra.mxu0 0
      %652 = vmatprep.subr.bf16.mxu0 0
      %653 = vmatpush2.bf16.msra.mxu0 0
      %654 = vmatprep.subr.bf16.mxu0 0
      %655 = vmatpush2.bf16.msra.mxu0 0
      %656 = vmatprep.subr.bf16.mxu0 0
      %657 = vmatpush2.bf16.msra.mxu0 0
      %658 = vmatprep.subr.bf16.mxu0 0
      %659 = vmatpush2.bf16.msra.mxu0 0
      %660 = vmatprep.subr.bf16.mxu0 0
      %661 = vmatpush2.bf16.msra.mxu0 0
      %662 = vmatprep.subr.bf16.mxu0 0
      %663 = vmatpush2.bf16.msra.mxu0 0
      %664 = vmatprep.mubr.bf16.mxu0 0
      %665 = vmatmul.mubr.bf16.gmra.mxu0 %v338
      %v666 = vpop.f32.mrf.mxu0
      %v667 = vadd.f32 0.0, %v666
      %v668 = vpop.f32.mrf.mxu0
      %v669 = vpop.f32.mrf.mxu0
      %v670 = vadd.f32 0.0, %v669
      %v671 = vpop.f32.mrf.mxu0
      %672 = vmatprep.mubr.bf16.mxu0 0
      %673 = vmatmul.mubr.bf16.gmra.mxu0 %v339
      %v674 = vpop.f32.mrf.mxu0
      %v675 = vadd.f32 0.0, %v674
      %v676 = vpop.f32.mrf.mxu0
      %v677 = vpop.f32.mrf.mxu0
      %v678 = vadd.f32 0.0, %v677
      %v679 = vpop.f32.mrf.mxu0
      %680 = vdwg.mxu0
      %v681 = vadd.f32 %v553, %v667
      %v682 = vadd.f32 %v556, %v670
      %v683 = vadd.f32 %v561, %v675
      %v684 = vadd.f32 %v564, %v678
      %v685 = vld [vmem:[%s289] sm:$0x1]
      %v687 = vlaneseq
      %v688 = vshrl.u32 %v687, 7
      %v689 = vsub.s32 0, %v688
      %v690 = vrot.slane %v685, %v689
      %v692 = vadd.f32 %v681, %v690
      %v693 = vadd.f32 %v682, %v690
      %v694 = vadd.f32 %v683, %v690
      %v695 = vadd.f32 %v684, %v690
      %v696 = vmax.f32 %v692, 0.0
      %v697 = vmax.f32 %v693, 0.0
      %v698 = vmax.f32 %v694, 0.0
      %v699 = vmax.f32 %v695, 0.0
      %v700 = vld [vmem:[%s292] sm:$0x1]
      %v702 = vlaneseq
      %v703 = vshrl.u32 %v702, 7
      %v704 = vsub.s32 0, %v703
      %v705 = vrot.slane %v700, %v704
      %v707 = vmul.f32 %v696, %v705
      %v708 = vmul.f32 %v697, %v705
      %v709 = vmul.f32 %v698, %v705
      %v710 = vmul.f32 %v699, %v705
      %v711 = vld [vmem:[%s295] sm:$0x1]
      %v713 = vlaneseq
      %v714 = vshrl.u32 %v713, 7
      %v715 = vsub.s32 0, %v714
      %v716 = vrot.slane %v711, %v715
      %v718 = vadd.f32 %v707, %v716
      %v719 = vadd.f32 %v708, %v716
      %v720 = vadd.f32 %v709, %v716
      %v721 = vadd.f32 %v710, %v716
      %v722 = vpack.c.bf16 %v719, %v718
      %v723 = vpack.c.bf16 %v721, %v720
      %v726 = vunpack.c.l.b16 %v722
      %v727 = vunpack.c.h.b16 %v722
      %v728 = vunpack.c.l.b16 %v723
      %v729 = vunpack.c.h.b16 %v723
      %v730 = vpack.c.b16 %v726, %v726
      %v731 = vpack.c.b16 %v727, %v727
      %v732 = vpack.c.b16 %v728, %v728
      %v733 = vpack.c.b16 %v729, %v729
      %738 = vst [vmem:[%s303] sm:$0xf] %v730
      %739 = vst [vmem:[%s303 + $0x4] sm:$0xf] %v731
      %740 = vst [vmem:[%s303 + $0x8] sm:$0xf] %v732
      %741 = vst [vmem:[%s303 + $0xc] sm:$0xf] %v733
      %p742 = scmp.lt.s32.totalorder %s20, 1
      %s743 = scalar_select %p742, %s20, 1
      %p744 = scmp.lt.s32.totalorder %s21, 0
      %s745 = scalar_select %p744, %s21, 0
      %s746 = smul.addr %s743, 4
      %s747 = sadd.s32 %s745, %s746
      %s748 = smul.addr %s747, 4
      %s749 = scalar_lea.vmem %s5, %s748
      // Predicated region
      $region41: #{ecapa_forward.26} parent=39 // pred_check
        %p750 = pneg %p178
      $region42: #{ecapa_forward.26} parent=39 // pred_check_branch
        %752 = sbr.rel (%p750) target = $region44
      $region43: #{ecapa_forward.26} parent=39 // pred_region
        _
      $region44: #{ecapa_forward.26} parent=39 // pred_fallthru
        _
    $region40: #{ecapa_forward.26} parent=5 // pred_fallthru
      _
    %p753 = scmp.le.s32.totalorder 2, %s11
    // Predicated region
    $region45: #{ecapa_forward.26} parent=5 // pred_check
      %p754 = pneg %p753
    $region46: #{ecapa_forward.26} parent=5 // pred_check_branch
      %756 = sbr.rel (%p754) target = $region48
    $region47: #{ecapa_forward.26} parent=5 // pred_region
      %s757 = ssub.s32 %s11, 2
      // Predicated region
      $region49: #{ecapa_forward.26} parent=47 // pred_check
        %p758 = pneg %p184
      $region50: #{ecapa_forward.26} parent=47 // pred_check_branch
        %760 = sbr.rel (%p758) target = $region52
      $region51: #{ecapa_forward.26} parent=47 // pred_region
        %p761 = scmp.lt.s32.totalorder %s22, 1
        %s762 = scalar_select %p761, %s22, 1
        %p763 = scmp.lt.s32.totalorder %s23, 0
        %s764 = scalar_select %p763, %s23, 0
        %s765 = smul.addr %s762, 4
        %s766 = sadd.s32 %s764, %s765
        %s767 = smul.addr %s766, 4
        %s768 = scalar_lea.vmem %s5, %s767
      $region52: #{ecapa_forward.26} parent=47 // pred_fallthru
        _
    $region48: #{ecapa_forward.26} parent=5 // pred_fallthru
      _
  $region6: #{ecapa_forward.26} parent=0 // loop_footer
    %s15 = sadd.s32 1, %s11
  $region7: #{ecapa_forward.26} parent=0 // loop_footer_branch
    %10 = sbr.rel target = $region3
  $region8: #{ecapa_forward.26} parent=0 // loop_exit
    _

// kernel: ecapa_forward.28
$region0: #{ecapa_forward.28}
  #allocation0 [shape = 'u32[]', space=smem, size = 0x4, offset = 0x4, fixed_abs, tag = 'smem constant byte address 0x4 - core index']
  #allocation1 [shape = 'u32[144,128]{1,0:T(1,128)}', space=vmem, size = 0x12000, scoped, tag = 'internal scratch']
  %s0 = inlined_call_operand.vmem [shape: bf16[2,32,128], index: 0, kind: input, shape index: {}]
  %s1 = inlined_call_operand.vmem [shape: bf16[2,32,128], index: 1, kind: input, shape index: {}]
  %s2 = inlined_call_operand.vmem [shape: bf16[2,32,128], index: 2, kind: input, shape index: {}]
  %s3 = inlined_call_operand.vmem [shape: bf16[2,32,128], index: 3, kind: input, shape index: {}]
  %s4 = inlined_call_operand.vmem [shape: bf16[128,32], index: 4, kind: input, shape index: {}]
  %s5 = inlined_call_operand.vmem [shape: f32[1,32], index: 5, kind: input, shape index: {}]
  %s6 = inlined_call_operand.vmem [shape: bf16[32,128], index: 6, kind: input, shape index: {}]
  %s7 = inlined_call_operand.vmem [shape: f32[1,128], index: 7, kind: input, shape index: {}]
  %s8 = inlined_call_operand.vmem [shape: bf16[2,32,128], index: 8, kind: output, shape index: {}]
  %s9 = sld [smem:[#allocation0]]
  $region65: #{ecapa_forward.28} parent=0
    _
  %s11 = ssub.s32 1, %s9
  %s12 = scalar_select 0, %s11, %s9
  loop: start=0, step=1, limit=4
  $region2: #{ecapa_forward.28} parent=0 // loop_pre_header
    _
  $region3: #{ecapa_forward.28} parent=0 // loop_header
    %s14 = sphi 0, %s18
    %p15 = scmp.ge.s32.totalorder %s14, 4
    %s24 = sphi 0, %s26
    %s27 = sphi 0, %s24
    %s28 = sphi 0, %s27
    %s44 = sphi 0, %s28
    %s50 = sphi 0, %s52
    %s53 = sphi 0, %s50
    %s54 = sphi 0, %s53
    %s70 = sphi 0, %s54
    %s76 = sphi 0, %s78
    %s79 = sphi 0, %s76
    %s80 = sphi 0, %s79
    %s96 = sphi 0, %s80
    %s102 = sphi 0, %s104
    %s105 = sphi 0, %s102
    %s106 = sphi 0, %s105
    %s122 = sphi 0, %s106
    %s126 = sphi 0, %s126
    %s128 = sphi 0, %s126
    %s129 = sphi 0, %s128
    %s143 = sphi 0, %s129
    %s147 = sphi 0, %s147
    %s149 = sphi 0, %s147
    %s150 = sphi 0, %s149
    %s164 = sphi 0, %s150
    %s168 = sphi 0, %s168
    %s170 = sphi 0, %s168
    %s171 = sphi 0, %s170
    %s185 = sphi 0, %s171
    %s189 = sphi 0, %s189
    %s191 = sphi 0, %s189
    %s192 = sphi 0, %s191
    %s206 = sphi 0, %s192
    %s212 = sphi 0, %s214
    %s215 = sphi 0, %s212
    %s216 = sphi 0, %s215
    %s232 = sphi 0, %s216
  $region4: #{ecapa_forward.28} parent=0 // loop_header_branch
    %17 = sbr.rel (%p15) target = $region8
  $region5: #{ecapa_forward.28} parent=0 // loop_body
    %s19 = ssub.s32 %s14, 1
    %s20 = ssub.s32 %s14, 2
    %s21 = sadd.s32 %s14, 1
    %s22 = ssub.s32 %s14, %s21
    %p23 = scmp.eq.s32.totalorder %s22, 0
    %s25 = sadd.s32 %s24, 1
    %s26 = scalar_select %p23, %s24, %s25
    %p29 = pneg %p23
    %p30 = scmp.eq.s32.totalorder %s14, 1
    %p31 = por %p29, %p30
    %p32 = scmp.ne.s32.totalorder %s24, %s27
    %p33 = scmp.eq.s32.totalorder %s14, 0
    %p34 = por %p32, %p33
    %p35 = scmp.ne.s32.totalorder %s24, %s27
    %p36 = scmp.eq.s32.totalorder %s19, 1
    %p37 = por %p35, %p36
    %p38 = scmp.ne.s32.totalorder %s27, %s28
    %p39 = scmp.eq.s32.totalorder %s19, 0
    %p40 = por %p38, %p39
    %p41 = scmp.ne.s32.totalorder %s27, %s28
    %p42 = scmp.eq.s32.totalorder %s20, 1
    %p43 = por %p41, %p42
    %p45 = scmp.ne.s32.totalorder %s28, %s44
    %p46 = scmp.eq.s32.totalorder %s20, 0
    %p47 = por %p45, %p46
    %s48 = ssub.s32 %s14, %s21
    %p49 = scmp.eq.s32.totalorder %s48, 0
    %s51 = sadd.s32 %s50, 1
    %s52 = scalar_select %p49, %s50, %s51
    %p55 = pneg %p49
    %p56 = scmp.eq.s32.totalorder %s14, 1
    %p57 = por %p55, %p56
    %p58 = scmp.ne.s32.totalorder %s50, %s53
    %p59 = scmp.eq.s32.totalorder %s14, 0
    %p60 = por %p58, %p59
    %p61 = scmp.ne.s32.totalorder %s50, %s53
    %p62 = scmp.eq.s32.totalorder %s19, 1
    %p63 = por %p61, %p62
    %p64 = scmp.ne.s32.totalorder %s53, %s54
    %p65 = scmp.eq.s32.totalorder %s19, 0
    %p66 = por %p64, %p65
    %p67 = scmp.ne.s32.totalorder %s53, %s54
    %p68 = scmp.eq.s32.totalorder %s20, 1
    %p69 = por %p67, %p68
    %p71 = scmp.ne.s32.totalorder %s54, %s70
    %p72 = scmp.eq.s32.totalorder %s20, 0
    %p73 = por %p71, %p72
    %s74 = ssub.s32 %s14, %s21
    %p75 = scmp.eq.s32.totalorder %s74, 0
    %s77 = sadd.s32 %s76, 1
    %s78 = scalar_select %p75, %s76, %s77
    %p81 = pneg %p75
    %p82 = scmp.eq.s32.totalorder %s14, 1
    %p83 = por %p81, %p82
    %p84 = scmp.ne.s32.totalorder %s76, %s79
    %p85 = scmp.eq.s32.totalorder %s14, 0
    %p86 = por %p84, %p85
    %p87 = scmp.ne.s32.totalorder %s76, %s79
    %p88 = scmp.eq.s32.totalorder %s19, 1
    %p89 = por %p87, %p88
    %p90 = scmp.ne.s32.totalorder %s79, %s80
    %p91 = scmp.eq.s32.totalorder %s19, 0
    %p92 = por %p90, %p91
    %p93 = scmp.ne.s32.totalorder %s79, %s80
    %p94 = scmp.eq.s32.totalorder %s20, 1
    %p95 = por %p93, %p94
    %p97 = scmp.ne.s32.totalorder %s80, %s96
    %p98 = scmp.eq.s32.totalorder %s20, 0
    %p99 = por %p97, %p98
    %s100 = ssub.s32 %s14, %s21
    %p101 = scmp.eq.s32.totalorder %s100, 0
    %s103 = sadd.s32 %s102, 1
    %s104 = scalar_select %p101, %s102, %s103
    %p107 = pneg %p101
    %p108 = scmp.eq.s32.totalorder %s14, 1
    %p109 = por %p107, %p108
    %p110 = scmp.ne.s32.totalorder %s102, %s105
    %p111 = scmp.eq.s32.totalorder %s14, 0
    %p112 = por %p110, %p111
    %p113 = scmp.ne.s32.totalorder %s102, %s105
    %p114 = scmp.eq.s32.totalorder %s19, 1
    %p115 = por %p113, %p114
    %p116 = scmp.ne.s32.totalorder %s105, %s106
    %p117 = scmp.eq.s32.totalorder %s19, 0
    %p118 = por %p116, %p117
    %p119 = scmp.ne.s32.totalorder %s105, %s106
    %p120 = scmp.eq.s32.totalorder %s20, 1
    %p121 = por %p119, %p120
    %p123 = scmp.ne.s32.totalorder %s106, %s122
    %p124 = scmp.eq.s32.totalorder %s20, 0
    %p125 = por %p123, %p124
    %s127 = sadd.s32 %s126, 1
    %p130 = scmp.eq.s32.totalorder %s14, 1
    %p131 = scmp.ne.s32.totalorder %s126, %s128
    %p132 = scmp.eq.s32.totalorder %s14, 0
    %p133 = por %p131, %p132
    %p134 = scmp.ne.s32.totalorder %s126, %s128
    %p135 = scmp.eq.s32.totalorder %s19, 1
    %p136 = por %p134, %p135
    %p137 = scmp.ne.s32.totalorder %s128, %s129
    %p138 = scmp.eq.s32.totalorder %s19, 0
    %p139 = por %p137, %p138
    %p140 = scmp.ne.s32.totalorder %s128, %s129
    %p141 = scmp.eq.s32.totalorder %s20, 1
    %p142 = por %p140, %p141
    %p144 = scmp.ne.s32.totalorder %s129, %s143
    %p145 = scmp.eq.s32.totalorder %s20, 0
    %p146 = por %p144, %p145
    %s148 = sadd.s32 %s147, 1
    %p151 = scmp.eq.s32.totalorder %s14, 1
    %p152 = scmp.ne.s32.totalorder %s147, %s149
    %p153 = scmp.eq.s32.totalorder %s14, 0
    %p154 = por %p152, %p153
    %p155 = scmp.ne.s32.totalorder %s147, %s149
    %p156 = scmp.eq.s32.totalorder %s19, 1
    %p157 = por %p155, %p156
    %p158 = scmp.ne.s32.totalorder %s149, %s150
    %p159 = scmp.eq.s32.totalorder %s19, 0
    %p160 = por %p158, %p159
    %p161 = scmp.ne.s32.totalorder %s149, %s150
    %p162 = scmp.eq.s32.totalorder %s20, 1
    %p163 = por %p161, %p162
    %p165 = scmp.ne.s32.totalorder %s150, %s164
    %p166 = scmp.eq.s32.totalorder %s20, 0
    %p167 = por %p165, %p166
    %s169 = sadd.s32 %s168, 1
    %p172 = scmp.eq.s32.totalorder %s14, 1
    %p173 = scmp.ne.s32.totalorder %s168, %s170
    %p174 = scmp.eq.s32.totalorder %s14, 0
    %p175 = por %p173, %p174
    %p176 = scmp.ne.s32.totalorder %s168, %s170
    %p177 = scmp.eq.s32.totalorder %s19, 1
    %p178 = por %p176, %p177
    %p179 = scmp.ne.s32.totalorder %s170, %s171
    %p180 = scmp.eq.s32.totalorder %s19, 0
    %p181 = por %p179, %p180
    %p182 = scmp.ne.s32.totalorder %s170, %s171
    %p183 = scmp.eq.s32.totalorder %s20, 1
    %p184 = por %p182, %p183
    %p186 = scmp.ne.s32.totalorder %s171, %s185
    %p187 = scmp.eq.s32.totalorder %s20, 0
    %p188 = por %p186, %p187
    %s190 = sadd.s32 %s189, 1
    %p193 = scmp.eq.s32.totalorder %s14, 1
    %p194 = scmp.ne.s32.totalorder %s189, %s191
    %p195 = scmp.eq.s32.totalorder %s14, 0
    %p196 = por %p194, %p195
    %p197 = scmp.ne.s32.totalorder %s189, %s191
    %p198 = scmp.eq.s32.totalorder %s19, 1
    %p199 = por %p197, %p198
    %p200 = scmp.ne.s32.totalorder %s191, %s192
    %p201 = scmp.eq.s32.totalorder %s19, 0
    %p202 = por %p200, %p201
    %p203 = scmp.ne.s32.totalorder %s191, %s192
    %p204 = scmp.eq.s32.totalorder %s20, 1
    %p205 = por %p203, %p204
    %p207 = scmp.ne.s32.totalorder %s192, %s206
    %p208 = scmp.eq.s32.totalorder %s20, 0
    %p209 = por %p207, %p208
    %s210 = ssub.s32 %s14, %s21
    %p211 = scmp.eq.s32.totalorder %s210, 0
    %s213 = sadd.s32 %s212, 1
    %s214 = scalar_select %p211, %s212, %s213
    %p217 = pneg %p211
    %p218 = scmp.eq.s32.totalorder %s14, 1
    %p219 = por %p217, %p218
    %p220 = scmp.ne.s32.totalorder %s212, %s215
    %p221 = scmp.eq.s32.totalorder %s14, 0
    %p222 = por %p220, %p221
    %p223 = scmp.ne.s32.totalorder %s212, %s215
    %p224 = scmp.eq.s32.totalorder %s19, 1
    %p225 = por %p223, %p224
    %p226 = scmp.ne.s32.totalorder %s215, %s216
    %p227 = scmp.eq.s32.totalorder %s19, 0
    %p228 = por %p226, %p227
    %p229 = scmp.ne.s32.totalorder %s215, %s216
    %p230 = scmp.eq.s32.totalorder %s20, 1
    %p231 = por %p229, %p230
    %p233 = scmp.ne.s32.totalorder %s216, %s232
    %p234 = scmp.eq.s32.totalorder %s20, 0
    %p235 = por %p233, %p234
    %p236 = scmp.le.s32.totalorder 1, %s14
    %p237 = scmp.lt.s32.totalorder %s14, 3
    %p238 = pnand %p236, %p237
    %p239 = pneg %p238
    // Predicated region
    $region9: #{ecapa_forward.28} parent=5 // pred_check
      _
    $region10: #{ecapa_forward.28} parent=5 // pred_check_branch
      %241 = sbr.rel (%p238) target = $region12
    $region11: #{ecapa_forward.28} parent=5 // pred_region
      %s242 = ssub.s32 %s14, 1
      // Predicated region
      $region13: #{ecapa_forward.28} parent=11 // pred_check
        %p243 = pneg %p139
      $region14: #{ecapa_forward.28} parent=11 // pred_check_branch
        %245 = sbr.rel (%p243) target = $region16
      $region15: #{ecapa_forward.28} parent=11 // pred_region
        _
      $region16: #{ecapa_forward.28} parent=11 // pred_fallthru
        _
      // Predicated region
      $region17: #{ecapa_forward.28} parent=11 // pred_check
        %p246 = pneg %p160
      $region18: #{ecapa_forward.28} parent=11 // pred_check_branch
        %248 = sbr.rel (%p246) target = $region20
      $region19: #{ecapa_forward.28} parent=11 // pred_region
        _
      $region20: #{ecapa_forward.28} parent=11 // pred_fallthru
        _
      // Predicated region
      $region21: #{ecapa_forward.28} parent=11 // pred_check
        %p249 = pneg %p181
      $region22: #{ecapa_forward.28} parent=11 // pred_check_branch
        %251 = sbr.rel (%p249) target = $region24
      $region23: #{ecapa_forward.28} parent=11 // pred_region
        _
      $region24: #{ecapa_forward.28} parent=11 // pred_fallthru
        _
      // Predicated region
      $region25: #{ecapa_forward.28} parent=11 // pred_check
        %p252 = pneg %p202
      $region26: #{ecapa_forward.28} parent=11 // pred_check_branch
        %254 = sbr.rel (%p252) target = $region28
      $region27: #{ecapa_forward.28} parent=11 // pred_region
        _
      $region28: #{ecapa_forward.28} parent=11 // pred_fallthru
        _
    $region12: #{ecapa_forward.28} parent=5 // pred_fallthru
      _
    %p255 = scmp.lt.s32.totalorder %s14, 2
    // Predicated region
    $region29: #{ecapa_forward.28} parent=5 // pred_check
      %p256 = pneg %p255
    $region30: #{ecapa_forward.28} parent=5 // pred_check_branch
      %258 = sbr.rel (%p256) target = $region32
    $region31: #{ecapa_forward.28} parent=5 // pred_region
      // Predicated region
      $region33: #{ecapa_forward.28} parent=31 // pred_check
        %p259 = pneg %p34
      $region34: #{ecapa_forward.28} parent=31 // pred_check_branch
        %261 = sbr.rel (%p259) target = $region36
      $region35: #{ecapa_forward.28} parent=31 // pred_region
        %p262 = scmp.lt.s32.totalorder %s14, 1
        %s263 = scalar_select %p262, %s14, 1
        %s264 = smul.addr %s263, 4
        %s265 = smul.addr %s264, 4
        %s266 = scalar_lea.vmem %s0, %s265
      $region36: #{ecapa_forward.28} parent=31 // pred_fallthru
        _
      // Predicated region
      $region37: #{ecapa_forward.28} parent=31 // pred_check
        %p267 = pneg %p60
      $region38: #{ecapa_forward.28} parent=31 // pred_check_branch
        %269 = sbr.rel (%p267) target = $region40
      $region39: #{ecapa_forward.28} parent=31 // pred_region
        %p270 = scmp.lt.s32.totalorder %s14, 1
        %s271 = scalar_select %p270, %s14, 1
        %s272 = smul.addr %s271, 4
        %s273 = smul.addr %s272, 4
        %s274 = scalar_lea.vmem %s1, %s273
      $region40: #{ecapa_forward.28} parent=31 // pred_fallthru
        _
      // Predicated region
      $region41: #{ecapa_forward.28} parent=31 // pred_check
        %p275 = pneg %p86
      $region42: #{ecapa_forward.28} parent=31 // pred_check_branch
        %277 = sbr.rel (%p275) target = $region44
      $region43: #{ecapa_forward.28} parent=31 // pred_region
        %p278 = scmp.lt.s32.totalorder %s14, 1
        %s279 = scalar_select %p278, %s14, 1
        %s280 = smul.addr %s279, 4
        %s281 = smul.addr %s280, 4
        %s282 = scalar_lea.vmem %s2, %s281
      $region44: #{ecapa_forward.28} parent=31 // pred_fallthru
        _
      // Predicated region
      $region45: #{ecapa_forward.28} parent=31 // pred_check
        %p283 = pneg %p112
      $region46: #{ecapa_forward.28} parent=31 // pred_check_branch
        %285 = sbr.rel (%p283) target = $region48
      $region47: #{ecapa_forward.28} parent=31 // pred_region
        %p286 = scmp.lt.s32.totalorder %s14, 1
        %s287 = scalar_select %p286, %s14, 1
        %s288 = smul.addr %s287, 4
        %s289 = smul.addr %s288, 4
        %s290 = scalar_lea.vmem %s3, %s289
      $region48: #{ecapa_forward.28} parent=31 // pred_fallthru
        _
    $region32: #{ecapa_forward.28} parent=5 // pred_fallthru
      _
    %p291 = scmp.le.s32.totalorder 1, %s14
    %p292 = scmp.lt.s32.totalorder %s14, 3
    %p293 = pnand %p291, %p292
    %p294 = pneg %p293
    // Predicated region
    $region49: #{ecapa_forward.28} parent=5 // pred_check
      _
    $region50: #{ecapa_forward.28} parent=5 // pred_check_branch
      %296 = sbr.rel (%p293) target = $region52
    $region51: #{ecapa_forward.28} parent=5 // pred_region
      %s297 = ssub.s32 %s14, 1
      %p298 = scmp.lt.s32.totalorder %s19, 1
      %s299 = scalar_select %p298, %s19, 1
      %s300 = smul.addr %s299, 4
      %s301 = smul.addr %s300, 4
      %s302 = scalar_lea.vmem %s0, %s301
      %p303 = pneg %p40
      %p304 = pneg %p37
      %p305 = scmp.lt.s32.totalorder %s19, 1
      %s306 = scalar_select %p305, %s19, 1
      %s307 = smul.addr %s306, 4
      %s308 = smul.addr %s307, 4
      %s309 = scalar_lea.vmem %s1, %s308
      %p310 = pneg %p66
      %p311 = pneg %p63
      %p312 = scmp.lt.s32.totalorder %s19, 1
      %s313 = scalar_select %p312, %s19, 1
      %s314 = smul.addr %s313, 4
      %s315 = smul.addr %s314, 4
      %s316 = scalar_lea.vmem %s2, %s315
      %p317 = pneg %p92
      %p318 = pneg %p89
      %p319 = scmp.lt.s32.totalorder %s19, 1
      %s320 = scalar_select %p319, %s19, 1
      %s321 = smul.addr %s320, 4
      %s322 = smul.addr %s321, 4
      %s323 = scalar_lea.vmem %s3, %s322
      %p324 = pneg %p118
      %p325 = pneg %p115
      %p326 = pneg %p139
      %p327 = pneg %p136
      %p328 = pneg %p160
      %p329 = pneg %p157
      %p330 = pneg %p181
      %p331 = pneg %p178
      %p332 = pneg %p202
      %p333 = pneg %p199
      %p334 = pneg %p228
      %p335 = pneg %p225
      %p336 = scmp.lt.s32.totalorder %s19, 1
      %s337 = scalar_select %p336, %s19, 1
      %s338 = smul.addr %s337, 4
      %s339 = smul.addr %s338, 4
      %s340 = scalar_lea.vmem %s8, %s339
      %p341 = scmp.lt.s32.totalorder %s19, 1
      %s342 = scalar_select %p341, %s19, 1
      %s343 = smul.addr %s342, 4
      %s344 = smul.addr %s343, 4
      %s345 = scalar_lea.vmem %s0, %s344
      %p346 = scmp.lt.s32.totalorder %s19, 1
      %s347 = scalar_select %p346, %s19, 1
      %s348 = smul.addr %s347, 4
      %s349 = smul.addr %s348, 4
      %s350 = scalar_lea.vmem %s1, %s349
      %p351 = scmp.lt.s32.totalorder %s19, 1
      %s352 = scalar_select %p351, %s19, 1
      %s353 = smul.addr %s352, 4
      %s354 = smul.addr %s353, 4
      %s355 = scalar_lea.vmem %s2, %s354
      %p356 = scmp.lt.s32.totalorder %s19, 1
      %s357 = scalar_select %p356, %s19, 1
      %s358 = smul.addr %s357, 4
      %s359 = smul.addr %s358, 4
      %s360 = scalar_lea.vmem %s3, %s359
      %p361 = scmp.lt.s32.totalorder %s19, 1
      %s362 = scalar_select %p361, %s19, 1
      %s363 = smul.addr %s362, 4
      %s364 = smul.addr %s363, 4
      %s365 = scalar_lea.vmem %s8, %s364
      %v367 = vld [vmem:[%s345] sm:$0xf]
      %v368 = vld [vmem:[%s345 + $0x4] sm:$0xf]
      %v369 = vld [vmem:[%s345 + $0x8] sm:$0xf]
      %v370 = vld [vmem:[%s345 + $0xc] sm:$0xf]
      %v371 = vunpack.c.l.bf16 %v367
      %v372 = vunpack.c.l.bf16 %v368
      %v373 = vunpack.c.l.bf16 %v369
      %v374 = vunpack.c.l.bf16 %v370
      %v375 = vld [vmem:[%s350] sm:$0xf]
      %v376 = vld [vmem:[%s350 + $0x4] sm:$0xf]
      %v377 = vld [vmem:[%s350 + $0x8] sm:$0xf]
      %v378 = vld [vmem:[%s350 + $0xc] sm:$0xf]
      %v379 = vunpack.c.l.bf16 %v375
      %v380 = vunpack.c.l.bf16 %v376
      %v381 = vunpack.c.l.bf16 %v377
      %v382 = vunpack.c.l.bf16 %v378
      %v383 = vadd.f32 %v371, %v379
      %v384 = vadd.f32 %v372, %v380
      %v385 = vadd.f32 %v373, %v381
      %v386 = vadd.f32 %v374, %v382
      %v387 = vld [vmem:[%s355] sm:$0xf]
      %v388 = vld [vmem:[%s355 + $0x4] sm:$0xf]
      %v389 = vld [vmem:[%s355 + $0x8] sm:$0xf]
      %v390 = vld [vmem:[%s355 + $0xc] sm:$0xf]
      %v391 = vunpack.c.l.bf16 %v387
      %v392 = vunpack.c.l.bf16 %v388
      %v393 = vunpack.c.l.bf16 %v389
      %v394 = vunpack.c.l.bf16 %v390
      %v395 = vadd.f32 %v383, %v391
      %v396 = vadd.f32 %v384, %v392
      %v397 = vadd.f32 %v385, %v393
      %v398 = vadd.f32 %v386, %v394
      %v399 = vld [vmem:[%s360] sm:$0xf]
      %v400 = vld [vmem:[%s360 + $0x4] sm:$0xf]
      %v401 = vld [vmem:[%s360 + $0x8] sm:$0xf]
      %v402 = vld [vmem:[%s360 + $0xc] sm:$0xf]
      %v403 = vunpack.c.l.bf16 %v399
      %v404 = vunpack.c.l.bf16 %v400
      %v405 = vunpack.c.l.bf16 %v401
      %v406 = vunpack.c.l.bf16 %v402
      %v407 = vadd.f32 %v395, %v403
      %v408 = vadd.f32 %v396, %v404
      %v409 = vadd.f32 %v397, %v405
      %v410 = vadd.f32 %v398, %v406
      %v411 = vadd.f32 %v407, %v408
      %v412 = vadd.f32 %v411, %v409
      %v413 = vadd.f32 %v412, %v410
      %v414 = vrot.slane %v413, 4
      %v415 = vadd.f32 %v413, %v414
      %v416 = vrot.slane %v415, 2
      %v417 = vadd.f32 %v415, %v416
      %v418 = vrot.slane %v417, 1
      %v419 = vadd.f32 %v417, %v418
      %v420 = vmul.f32 %v419, 0.03125
      %v421 = vpack.c.bf16 %v420, %v420
      %v422 = vld [vmem:[%s4] sm:$0xf]
      %v423 = vld [vmem:[%s4 + $0x4] sm:$0xf]
      %v424 = vld [vmem:[%s4 + $0x8] sm:$0xf]
      %v425 = vld [vmem:[%s4 + $0xc] sm:$0xf]
      %v426 = vld [vmem:[%s4 + $0x10] sm:$0xf]
      %v427 = vld [vmem:[%s4 + $0x14] sm:$0xf]
      %v428 = vld [vmem:[%s4 + $0x18] sm:$0xf]
      %v429 = vld [vmem:[%s4 + $0x1c] sm:$0xf]
      %v430 = vld [vmem:[%s4 + $0x20] sm:$0xf]
      %v431 = vld [vmem:[%s4 + $0x24] sm:$0xf]
      %v432 = vld [vmem:[%s4 + $0x28] sm:$0xf]
      %v433 = vld [vmem:[%s4 + $0x2c] sm:$0xf]
      %v434 = vld [vmem:[%s4 + $0x30] sm:$0xf]
      %v435 = vld [vmem:[%s4 + $0x34] sm:$0xf]
      %v436 = vld [vmem:[%s4 + $0x38] sm:$0xf]
      %v437 = vld [vmem:[%s4 + $0x3c] sm:$0xf]
      %v438 = vld [vmem:[%s5] sm:$0x1]
      %v455 = vunpack.c.l.b16 %v422
      %v456 = vunpack.c.l.b16 %v423
      %v457 = vunpack.c.l.b16 %v424
      %v458 = vunpack.c.l.b16 %v425
      %v459 = vunpack.c.l.b16 %v426
      %v460 = vunpack.c.l.b16 %v427
      %v461 = vunpack.c.l.b16 %v428
      %v462 = vunpack.c.l.b16 %v429
      %v463 = vunpack.c.l.b16 %v430
      %v464 = vunpack.c.l.b16 %v431
      %v465 = vunpack.c.l.b16 %v432
      %v466 = vunpack.c.l.b16 %v433
      %v467 = vunpack.c.l.b16 %v434
      %v468 = vunpack.c.l.b16 %v435
      %v469 = vunpack.c.l.b16 %v436
      %v470 = vunpack.c.l.b16 %v437
      %v471 = vpack.c.b16 %v456, %v455
      %v472 = vpack.c.b16 %v458, %v457
      %v473 = vpack.c.b16 %v460, %v459
      %v474 = vpack.c.b16 %v462, %v461
      %v475 = vpack.c.b16 %v464, %v463
      %v476 = vpack.c.b16 %v466, %v465
      %v477 = vpack.c.b16 %v468, %v467
      %v478 = vpack.c.b16 %v470, %v469
      %487 = vmatprep.subr.bf16.mxu0 0
      %488 = vmatpush1.bf16.msra.mxu0 %v478
      %489 = vmatprep.subr.bf16.mxu0 0
      %490 = vmatpush1.bf16.msra.mxu0 %v477
      %491 = vmatprep.subr.bf16.mxu0 0
      %492 = vmatpush1.bf16.msra.mxu0 %v476
      %493 = vmatprep.subr.bf16.mxu0 0
      %494 = vmatpush1.bf16.msra.mxu0 %v475
      %495 = vmatprep.subr.bf16.mxu0 0
      %496 = vmatpush1.bf16.msra.mxu0 %v474
      %497 = vmatprep.subr.bf16.mxu0 0
      %498 = vmatpush1.bf16.msra.mxu0 %v473
      %499 = vmatprep.subr.bf16.mxu0 0
      %500 = vmatpush1.bf16.msra.mxu0 %v472
      %501 = vmatprep.subr.bf16.mxu0 0
      %502 = vmatpush1.bf16.msra.mxu0 %v471
      %503 = vmatprep.subr.bf16.mxu0 0
      %504 = vmatpush2.bf16.msra.mxu0 0
      %505 = vmatprep.subr.bf16.mxu0 0
      %506 = vmatpush2.bf16.msra.mxu0 0
      %507 = vmatprep.subr.bf16.mxu0 0
      %508 = vmatpush2.bf16.msra.mxu0 0
      %509 = vmatprep.subr.bf16.mxu0 0
      %510 = vmatpush2.bf16.msra.mxu0 0
      %511 = vmatprep.subr.bf16.mxu0 0
      %512 = vmatpush2.bf16.msra.mxu0 0
      %513 = vmatprep.subr.bf16.mxu0 0
      %514 = vmatpush2.bf16.msra.mxu0 0
      %515 = vmatprep.subr.bf16.mxu0 0
      %516 = vmatpush2.bf16.msra.mxu0 0
      %517 = vmatprep.subr.bf16.mxu0 0
      %518 = vmatpush2.bf16.msra.mxu0 0
      %519 = vmatprep.mubr.bf16.mxu0 0
      %520 = vmatmul.mubr.bf16.gmra.mxu0 %v421
      %v521 = vpop.f32.mrf.mxu0
      %v522 = vadd.f32 %v438, %v521
      %v523 = vpop.f32.mrf.mxu0
      %v524 = vpop.f32.mrf.mxu0
      %v525 = vpop.f32.mrf.mxu0
      %526 = vdwg.mxu0
      %v527 = vmax.f32 %v522, 0.0
      %v528 = vpack.c.bf16 %v527, %v527
      %v529 = vld [vmem:[%s6] sm:$0xf]
      %v530 = vld [vmem:[%s6 + $0x4] sm:$0xf]
      %v531 = vld [vmem:[%s6 + $0x8] sm:$0xf]
      %v532 = vld [vmem:[%s6 + $0xc] sm:$0xf]
      %v533 = vld [vmem:[%s7] sm:$0x1]
      %v538 = vunpack.c.l.b16 %v529
      %v539 = vunpack.c.l.b16 %v530
      %v540 = vunpack.c.l.b16 %v531
      %v541 = vunpack.c.l.b16 %v532
      %v542 = vpack.c.b16 %v539, %v538
      %v543 = vpack.c.b16 %v541, %v540
      %vm546 = vcmask 261120
      %v548 = vsel %vm546, %v528, 0
      %550 = vmatprep.subr.bf16.mxu0 0
      %551 = vmatpush1.bf16.msra.mxu0 0
      %552 = vmatprep.subr.bf16.mxu0 0
      %553 = vmatpush1.bf16.msra.mxu0 0
      %554 = vmatprep.subr.bf16.mxu0 0
      %555 = vmatpush1.bf16.msra.mxu0 0
      %556 = vmatprep.subr.bf16.mxu0 0
      %557 = vmatpush1.bf16.msra.mxu0 0
      %558 = vmatprep.subr.bf16.mxu0 0
      %559 = vmatpush1.bf16.msra.mxu0 0
      %560 = vmatprep.subr.bf16.mxu0 0
      %561 = vmatpush1.bf16.msra.mxu0 0
      %562 = vmatprep.subr.bf16.mxu0 0
      %563 = vmatpush1.bf16.msra.mxu0 %v543
      %564 = vmatprep.subr.bf16.mxu0 0
      %565 = vmatpush1.bf16.msra.mxu0 %v542
      %566 = vmatprep.subr.bf16.mxu0 0
      %567 = vmatpush2.bf16.msra.mxu0 0
      %568 = vmatprep.subr.bf16.mxu0 0
      %569 = vmatpush2.bf16.msra.mxu0 0
      %570 = vmatprep.subr.bf16.mxu0 0
      %571 = vmatpush2.bf16.msra.mxu0 0
      %572 = vmatprep.subr.bf16.mxu0 0
      %573 = vmatpush2.bf16.msra.mxu0 0
      %574 = vmatprep.subr.bf16.mxu0 0
      %575 = vmatpush2.bf16.msra.mxu0 0
      %576 = vmatprep.subr.bf16.mxu0 0
      %577 = vmatpush2.bf16.msra.mxu0 0
      %578 = vmatprep.subr.bf16.mxu0 0
      %579 = vmatpush2.bf16.msra.mxu0 0
      %580 = vmatprep.subr.bf16.mxu0 0
      %581 = vmatpush2.bf16.msra.mxu0 0
      %582 = vmatprep.mubr.bf16.mxu0 0
      %583 = vmatmul.mubr.bf16.gmra.mxu0 %v548
      %v584 = vpop.f32.mrf.mxu0
      %v585 = vadd.f32 %v533, %v584
      %v586 = vpop.f32.mrf.mxu0
      %v587 = vpop.f32.mrf.mxu0
      %v588 = vpop.f32.mrf.mxu0
      %589 = vdwg.mxu0
      %v590 = vxor.u32 %v585, 2147483648
      %v591 = vmul.f32 %v590, 1.442695
      %v592 = vpow.pop %v591
      %v593 = vadd.f32 %v592, 1.0
      %v594 = vrcp.pop %v593
      %v595 = vmul.f32 1.0, %v594
      %v596 = vlaneseq
      %v597 = vshrl.u32 %v596, 7
      %v598 = vsub.s32 0, %v597
      %v599 = vrot.slane %v595, %v598
      %v600 = vmul.f32 %v407, %v599
      %v601 = vmul.f32 %v408, %v599
      %v602 = vmul.f32 %v409, %v599
      %v603 = vmul.f32 %v410, %v599
      %v604 = vpack.c.bf16 %v601, %v600
      %v605 = vpack.c.bf16 %v603, %v602
      %v608 = vunpack.c.l.b16 %v604
      %v609 = vunpack.c.h.b16 %v604
      %v610 = vunpack.c.l.b16 %v605
      %v611 = vunpack.c.h.b16 %v605
      %v612 = vpack.c.b16 %v608, %v608
      %v613 = vpack.c.b16 %v609, %v609
      %v614 = vpack.c.b16 %v610, %v610
      %v615 = vpack.c.b16 %v611, %v611
      %620 = vst [vmem:[%s365] sm:$0xf] %v612
      %621 = vst [vmem:[%s365 + $0x4] sm:$0xf] %v613
      %622 = vst [vmem:[%s365 + $0x8] sm:$0xf] %v614
      %623 = vst [vmem:[%s365 + $0xc] sm:$0xf] %v615
      %p624 = scmp.lt.s32.totalorder %s19, 1
      %s625 = scalar_select %p624, %s19, 1
      %s626 = smul.addr %s625, 4
      %s627 = smul.addr %s626, 4
      %s628 = scalar_lea.vmem %s8, %s627
      // Predicated region
      $region53: #{ecapa_forward.28} parent=51 // pred_check
        %p629 = pneg %p225
      $region54: #{ecapa_forward.28} parent=51 // pred_check_branch
        %631 = sbr.rel (%p629) target = $region56
      $region55: #{ecapa_forward.28} parent=51 // pred_region
        _
      $region56: #{ecapa_forward.28} parent=51 // pred_fallthru
        _
    $region52: #{ecapa_forward.28} parent=5 // pred_fallthru
      _
    %p632 = scmp.le.s32.totalorder 2, %s14
    // Predicated region
    $region57: #{ecapa_forward.28} parent=5 // pred_check
      %p633 = pneg %p632
    $region58: #{ecapa_forward.28} parent=5 // pred_check_branch
      %635 = sbr.rel (%p633) target = $region60
    $region59: #{ecapa_forward.28} parent=5 // pred_region
      %s636 = ssub.s32 %s14, 2
      // Predicated region
      $region61: #{ecapa_forward.28} parent=59 // pred_check
        %p637 = pneg %p231
      $region62: #{ecapa_forward.28} parent=59 // pred_check_branch
        %639 = sbr.rel (%p637) target = $region64
      $region63: #{ecapa_forward.28} parent=59 // pred_region
        %p640 = scmp.lt.s32.totalorder %s20, 1
        %s641 = scalar_select %p640, %s20, 1
        %s642 = smul.addr %s641, 4
        %s643 = smul.addr %s642, 4
        %s644 = scalar_lea.vmem %s8, %s643
      $region64: #{ecapa_forward.28} parent=59 // pred_fallthru
        _
    $region60: #{ecapa_forward.28} parent=5 // pred_fallthru
      _
  $region6: #{ecapa_forward.28} parent=0 // loop_footer
    %s18 = sadd.s32 1, %s14
  $region7: #{ecapa_forward.28} parent=0 // loop_footer_branch
    %13 = sbr.rel target = $region3
  $region8: #{ecapa_forward.28} parent=0 // loop_exit
    _

// kernel: ecapa_forward.29
$region0: #{ecapa_forward.29}
  #allocation0 [shape = 'u32[]', space=smem, size = 0x4, offset = 0x4, fixed_abs, tag = 'smem constant byte address 0x4 - core index']
  #allocation1 [shape = 'u32[144,128]{1,0:T(1,128)}', space=vmem, size = 0x12000, scoped, tag = 'internal scratch']
  %s0 = inlined_call_operand.vmem [shape: bf16[2,32,128], index: 0, kind: input, shape index: {}]
  %s1 = inlined_call_operand.vmem [shape: bf16[2,32,128], index: 1, kind: input, shape index: {}]
  %s2 = inlined_call_operand.vmem [shape: bf16[2,32,128], index: 2, kind: input, shape index: {}]
  %s3 = inlined_call_operand.vmem [shape: bf16[3,128,128], index: 3, kind: input, shape index: {}]
  %s4 = inlined_call_operand.vmem [shape: f32[1,128], index: 4, kind: input, shape index: {}]
  %s5 = inlined_call_operand.vmem [shape: bf16[2,32,128], index: 5, kind: output, shape index: {}]
  %s6 = sld [smem:[#allocation0]]
  $region53: #{ecapa_forward.29} parent=0
    _
  %s8 = ssub.s32 1, %s6
  %s9 = scalar_select 0, %s8, %s6
  loop: start=0, step=1, limit=4
  $region2: #{ecapa_forward.29} parent=0 // loop_pre_header
    _
  $region3: #{ecapa_forward.29} parent=0 // loop_header
    %s11 = sphi 0, %s15
    %p12 = scmp.ge.s32.totalorder %s11, 4
    %s18 = sphi 0, %s30
    %s19 = sphi 0, %s26
    %s20 = sphi 0, %s18
    %s21 = sphi 0, %s19
    %s22 = sphi 0, %s20
    %s23 = sphi 0, %s21
    %s33 = sphi 0, %s35
    %s36 = sphi 0, %s33
    %s37 = sphi 0, %s36
    %s53 = sphi 0, %s37
    %s59 = sphi 0, %s61
    %s62 = sphi 0, %s59
    %s63 = sphi 0, %s62
    %s79 = sphi 0, %s63
    %s85 = sphi 0, %s87
    %s88 = sphi 0, %s85
    %s89 = sphi 0, %s88
    %s105 = sphi 0, %s89
    %s111 = sphi 0, %s113
    %s114 = sphi 0, %s111
    %s115 = sphi 0, %s114
    %s131 = sphi 0, %s115
    %s137 = sphi 0, %s139
    %s140 = sphi 0, %s137
    %s141 = sphi 0, %s140
    %s157 = sphi 0, %s141
    %s165 = sphi 0, %s167
    %s168 = sphi 0, %s165
    %s169 = sphi 0, %s168
    %s185 = sphi 0, %s169
  $region4: #{ecapa_forward.29} parent=0 // loop_header_branch
    %14 = sbr.rel (%p12) target = $region8
  $region5: #{ecapa_forward.29} parent=0 // loop_body
    %s16 = ssub.s32 %s11, 1
    %s17 = ssub.s32 %s11, 2
    %s24 = sadd.s32 1, %s19
    %p25 = scmp.ge.s32.totalorder %s24, 1
    %s26 = scalar_select %p25, 0, %s24
    %s27 = sadd.s32 1, %s18
    %s28 = scalar_select %p25, %s27, %s18
    %p29 = scmp.ge.s32.totalorder %s28, 2
    %s30 = scalar_select %p29, 0, %s28
    %s31 = ssub.s32 %s18, %s30
    %p32 = scmp.eq.s32.totalorder %s31, 0
    %s34 = sadd.s32 %s33, 1
    %s35 = scalar_select %p32, %s33, %s34
    %p38 = pneg %p32
    %p39 = scmp.eq.s32.totalorder %s11, 1
    %p40 = por %p38, %p39
    %p41 = scmp.ne.s32.totalorder %s33, %s36
    %p42 = scmp.eq.s32.totalorder %s11, 0
    %p43 = por %p41, %p42
    %p44 = scmp.ne.s32.totalorder %s33, %s36
    %p45 = scmp.eq.s32.totalorder %s16, 1
    %p46 = por %p44, %p45
    %p47 = scmp.ne.s32.totalorder %s36, %s37
    %p48 = scmp.eq.s32.totalorder %s16, 0
    %p49 = por %p47, %p48
    %p50 = scmp.ne.s32.totalorder %s36, %s37
    %p51 = scmp.eq.s32.totalorder %s17, 1
    %p52 = por %p50, %p51
    %p54 = scmp.ne.s32.totalorder %s37, %s53
    %p55 = scmp.eq.s32.totalorder %s17, 0
    %p56 = por %p54, %p55
    %s57 = ssub.s32 %s18, %s30
    %p58 = scmp.eq.s32.totalorder %s57, 0
    %s60 = sadd.s32 %s59, 1
    %s61 = scalar_select %p58, %s59, %s60
    %p64 = pneg %p58
    %p65 = scmp.eq.s32.totalorder %s11, 1
    %p66 = por %p64, %p65
    %p67 = scmp.ne.s32.totalorder %s59, %s62
    %p68 = scmp.eq.s32.totalorder %s11, 0
    %p69 = por %p67, %p68
    %p70 = scmp.ne.s32.totalorder %s59, %s62
    %p71 = scmp.eq.s32.totalorder %s16, 1
    %p72 = por %p70, %p71
    %p73 = scmp.ne.s32.totalorder %s62, %s63
    %p74 = scmp.eq.s32.totalorder %s16, 0
    %p75 = por %p73, %p74
    %p76 = scmp.ne.s32.totalorder %s62, %s63
    %p77 = scmp.eq.s32.totalorder %s17, 1
    %p78 = por %p76, %p77
    %p80 = scmp.ne.s32.totalorder %s63, %s79
    %p81 = scmp.eq.s32.totalorder %s17, 0
    %p82 = por %p80, %p81
    %s83 = ssub.s32 %s18, %s30
    %p84 = scmp.eq.s32.totalorder %s83, 0
    %s86 = sadd.s32 %s85, 1
    %s87 = scalar_select %p84, %s85, %s86
    %p90 = pneg %p84
    %p91 = scmp.eq.s32.totalorder %s11, 1
    %p92 = por %p90, %p91
    %p93 = scmp.ne.s32.totalorder %s85, %s88
    %p94 = scmp.eq.s32.totalorder %s11, 0
    %p95 = por %p93, %p94
    %p96 = scmp.ne.s32.totalorder %s85, %s88
    %p97 = scmp.eq.s32.totalorder %s16, 1
    %p98 = por %p96, %p97
    %p99 = scmp.ne.s32.totalorder %s88, %s89
    %p100 = scmp.eq.s32.totalorder %s16, 0
    %p101 = por %p99, %p100
    %p102 = scmp.ne.s32.totalorder %s88, %s89
    %p103 = scmp.eq.s32.totalorder %s17, 1
    %p104 = por %p102, %p103
    %p106 = scmp.ne.s32.totalorder %s89, %s105
    %p107 = scmp.eq.s32.totalorder %s17, 0
    %p108 = por %p106, %p107
    %s109 = ssub.s32 %s19, %s26
    %p110 = scmp.eq.s32.totalorder %s109, 0
    %s112 = sadd.s32 %s111, 1
    %s113 = scalar_select %p110, %s111, %s112
    %p116 = pneg %p110
    %p117 = scmp.eq.s32.totalorder %s11, 1
    %p118 = por %p116, %p117
    %p119 = scmp.ne.s32.totalorder %s111, %s114
    %p120 = scmp.eq.s32.totalorder %s11, 0
    %p121 = por %p119, %p120
    %p122 = scmp.ne.s32.totalorder %s111, %s114
    %p123 = scmp.eq.s32.totalorder %s16, 1
    %p124 = por %p122, %p123
    %p125 = scmp.ne.s32.totalorder %s114, %s115
    %p126 = scmp.eq.s32.totalorder %s16, 0
    %p127 = por %p125, %p126
    %p128 = scmp.ne.s32.totalorder %s114, %s115
    %p129 = scmp.eq.s32.totalorder %s17, 1
    %p130 = por %p128, %p129
    %p132 = scmp.ne.s32.totalorder %s115, %s131
    %p133 = scmp.eq.s32.totalorder %s17, 0
    %p134 = por %p132, %p133
    %s135 = ssub.s32 %s19, %s26
    %p136 = scmp.eq.s32.totalorder %s135, 0
    %s138 = sadd.s32 %s137, 1
    %s139 = scalar_select %p136, %s137, %s138
    %p142 = pneg %p136
    %p143 = scmp.eq.s32.totalorder %s11, 1
    %p144 = por %p142, %p143
    %p145 = scmp.ne.s32.totalorder %s137, %s140
    %p146 = scmp.eq.s32.totalorder %s11, 0
    %p147 = por %p145, %p146
    %p148 = scmp.ne.s32.totalorder %s137, %s140
    %p149 = scmp.eq.s32.totalorder %s16, 1
    %p150 = por %p148, %p149
    %p151 = scmp.ne.s32.totalorder %s140, %s141
    %p152 = scmp.eq.s32.totalorder %s16, 0
    %p153 = por %p151, %p152
    %p154 = scmp.ne.s32.totalorder %s140, %s141
    %p155 = scmp.eq.s32.totalorder %s17, 1
    %p156 = por %p154, %p155
    %p158 = scmp.ne.s32.totalorder %s141, %s157
    %p159 = scmp.eq.s32.totalorder %s17, 0
    %p160 = por %p158, %p159
    %s161 = ssub.s32 %s18, %s30
    %s162 = ssub.s32 %s19, %s26
    %s163 = sor.u32 %s161, %s162
    %p164 = scmp.eq.s32.totalorder %s163, 0
    %s166 = sadd.s32 %s165, 1
    %s167 = scalar_select %p164, %s165, %s166
    %p170 = pneg %p164
    %p171 = scmp.eq.s32.totalorder %s11, 1
    %p172 = por %p170, %p171
    %p173 = scmp.ne.s32.totalorder %s165, %s168
    %p174 = scmp.eq.s32.totalorder %s11, 0
    %p175 = por %p173, %p174
    %p176 = scmp.ne.s32.totalorder %s165, %s168
    %p177 = scmp.eq.s32.totalorder %s16, 1
    %p178 = por %p176, %p177
    %p179 = scmp.ne.s32.totalorder %s168, %s169
    %p180 = scmp.eq.s32.totalorder %s16, 0
    %p181 = por %p179, %p180
    %p182 = scmp.ne.s32.totalorder %s168, %s169
    %p183 = scmp.eq.s32.totalorder %s17, 1
    %p184 = por %p182, %p183
    %p186 = scmp.ne.s32.totalorder %s169, %s185
    %p187 = scmp.eq.s32.totalorder %s17, 0
    %p188 = por %p186, %p187
    %p189 = scmp.le.s32.totalorder 1, %s11
    %p190 = scmp.lt.s32.totalorder %s11, 3
    %p191 = pnand %p189, %p190
    %p192 = pneg %p191
    // Predicated region
    $region9: #{ecapa_forward.29} parent=5 // pred_check
      _
    $region10: #{ecapa_forward.29} parent=5 // pred_check_branch
      %194 = sbr.rel (%p191) target = $region12
    $region11: #{ecapa_forward.29} parent=5 // pred_region
      %s195 = ssub.s32 %s11, 1
      // Predicated region
      $region13: #{ecapa_forward.29} parent=11 // pred_check
        %p196 = pneg %p127
      $region14: #{ecapa_forward.29} parent=11 // pred_check_branch
        %198 = sbr.rel (%p196) target = $region16
      $region15: #{ecapa_forward.29} parent=11 // pred_region
        %p199 = scmp.lt.s32.totalorder %s21, 0
        %s200 = scalar_select %p199, %s21, 0
        %s201 = smul.addr %s200, 4
        %s202 = scalar_lea.vmem %s3, %s201
      $region16: #{ecapa_forward.29} parent=11 // pred_fallthru
        _
      // Predicated region
      $region17: #{ecapa_forward.29} parent=11 // pred_check
        %p203 = pneg %p153
      $region18: #{ecapa_forward.29} parent=11 // pred_check_branch
        %205 = sbr.rel (%p203) target = $region20
      $region19: #{ecapa_forward.29} parent=11 // pred_region
        %p206 = scmp.lt.s32.totalorder %s21, 0
        %s207 = scalar_select %p206, %s21, 0
        %s208 = scalar_lea.vmem %s4, %s207
      $region20: #{ecapa_forward.29} parent=11 // pred_fallthru
        _
    $region12: #{ecapa_forward.29} parent=5 // pred_fallthru
      _
    %p209 = scmp.lt.s32.totalorder %s11, 2
    // Predicated region
    $region21: #{ecapa_forward.29} parent=5 // pred_check
      %p210 = pneg %p209
    $region22: #{ecapa_forward.29} parent=5 // pred_check_branch
      %212 = sbr.rel (%p210) target = $region24
    $region23: #{ecapa_forward.29} parent=5 // pred_region
      // Predicated region
      $region25: #{ecapa_forward.29} parent=23 // pred_check
        %p213 = pneg %p43
      $region26: #{ecapa_forward.29} parent=23 // pred_check_branch
        %215 = sbr.rel (%p213) target = $region28
      $region27: #{ecapa_forward.29} parent=23 // pred_region
        %p216 = scmp.lt.s32.totalorder %s18, 1
        %s217 = scalar_select %p216, %s18, 1
        %s218 = smul.addr %s217, 4
        %s219 = smul.addr %s218, 4
        %s220 = scalar_lea.vmem %s0, %s219
      $region28: #{ecapa_forward.29} parent=23 // pred_fallthru
        _
      // Predicated region
      $region29: #{ecapa_forward.29} parent=23 // pred_check
        %p221 = pneg %p69
      $region30: #{ecapa_forward.29} parent=23 // pred_check_branch
        %223 = sbr.rel (%p221) target = $region32
      $region31: #{ecapa_forward.29} parent=23 // pred_region
        %p224 = scmp.lt.s32.totalorder %s18, 1
        %s225 = scalar_select %p224, %s18, 1
        %s226 = smul.addr %s225, 4
        %s227 = smul.addr %s226, 4
        %s228 = scalar_lea.vmem %s1, %s227
      $region32: #{ecapa_forward.29} parent=23 // pred_fallthru
        _
      // Predicated region
      $region33: #{ecapa_forward.29} parent=23 // pred_check
        %p229 = pneg %p95
      $region34: #{ecapa_forward.29} parent=23 // pred_check_branch
        %231 = sbr.rel (%p229) target = $region36
      $region35: #{ecapa_forward.29} parent=23 // pred_region
        %p232 = scmp.lt.s32.totalorder %s18, 1
        %s233 = scalar_select %p232, %s18, 1
        %s234 = smul.addr %s233, 4
        %s235 = smul.addr %s234, 4
        %s236 = scalar_lea.vmem %s2, %s235
      $region36: #{ecapa_forward.29} parent=23 // pred_fallthru
        _
    $region24: #{ecapa_forward.29} parent=5 // pred_fallthru
      _
    %p237 = scmp.le.s32.totalorder 1, %s11
    %p238 = scmp.lt.s32.totalorder %s11, 3
    %p239 = pnand %p237, %p238
    %p240 = pneg %p239
    // Predicated region
    $region37: #{ecapa_forward.29} parent=5 // pred_check
      _
    $region38: #{ecapa_forward.29} parent=5 // pred_check_branch
      %242 = sbr.rel (%p239) target = $region40
    $region39: #{ecapa_forward.29} parent=5 // pred_region
      %s243 = ssub.s32 %s11, 1
      %p244 = scmp.lt.s32.totalorder %s20, 1
      %s245 = scalar_select %p244, %s20, 1
      %s246 = smul.addr %s245, 4
      %s247 = smul.addr %s246, 4
      %s248 = scalar_lea.vmem %s0, %s247
      %p249 = pneg %p49
      %p250 = pneg %p46
      %p251 = scmp.lt.s32.totalorder %s20, 1
      %s252 = scalar_select %p251, %s20, 1
      %s253 = smul.addr %s252, 4
      %s254 = smul.addr %s253, 4
      %s255 = scalar_lea.vmem %s1, %s254
      %p256 = pneg %p75
      %p257 = pneg %p72
      %p258 = scmp.lt.s32.totalorder %s20, 1
      %s259 = scalar_select %p258, %s20, 1
      %s260 = smul.addr %s259, 4
      %s261 = smul.addr %s260, 4
      %s262 = scalar_lea.vmem %s2, %s261
      %p263 = pneg %p101
      %p264 = pneg %p98
      %p265 = scmp.lt.s32.totalorder %s21, 0
      %s266 = scalar_select %p265, %s21, 0
      %s267 = smul.addr %s266, 4
      %s268 = scalar_lea.vmem %s3, %s267
      %p269 = pneg %p127
      %p270 = pneg %p124
      %p271 = scmp.lt.s32.totalorder %s21, 0
      %s272 = scalar_select %p271, %s21, 0
      %s273 = scalar_lea.vmem %s4, %s272
      %p274 = pneg %p153
      %p275 = pneg %p150
      %p276 = pneg %p181
      %p277 = pneg %p178
      %p278 = scmp.lt.s32.totalorder %s20, 1
      %s279 = scalar_select %p278, %s20, 1
      %p280 = scmp.lt.s32.totalorder %s21, 0
      %s281 = scalar_select %p280, %s21, 0
      %s282 = smul.addr %s279, 4
      %s283 = sadd.s32 %s281, %s282
      %s284 = smul.addr %s283, 4
      %s285 = scalar_lea.vmem %s5, %s284
      %p286 = scmp.lt.s32.totalorder %s20, 1
      %s287 = scalar_select %p286, %s20, 1
      %s288 = smul.addr %s287, 4
      %s289 = smul.addr %s288, 4
      %s290 = scalar_lea.vmem %s0, %s289
      %p291 = scmp.lt.s32.totalorder %s20, 1
      %s292 = scalar_select %p291, %s20, 1
      %s293 = smul.addr %s292, 4
      %s294 = smul.addr %s293, 4
      %s295 = scalar_lea.vmem %s1, %s294
      %p296 = scmp.lt.s32.totalorder %s20, 1
      %s297 = scalar_select %p296, %s20, 1
      %s298 = smul.addr %s297, 4
      %s299 = smul.addr %s298, 4
      %s300 = scalar_lea.vmem %s2, %s299
      %p301 = scmp.lt.s32.totalorder %s21, 0
      %s302 = scalar_select %p301, %s21, 0
      %s303 = smul.addr %s302, 4
      %s304 = scalar_lea.vmem %s3, %s303
      %p305 = scmp.lt.s32.totalorder %s21, 0
      %s306 = scalar_select %p305, %s21, 0
      %s307 = scalar_lea.vmem %s4, %s306
      %p308 = scmp.lt.s32.totalorder %s20, 1
      %s309 = scalar_select %p308, %s20, 1
      %p310 = scmp.lt.s32.totalorder %s21, 0
      %s311 = scalar_select %p310, %s21, 0
      %s312 = smul.addr %s309, 4
      %s313 = sadd.s32 %s311, %s312
      %s314 = smul.addr %s313, 4
      %s315 = scalar_lea.vmem %s5, %s314
      %v317 = vld [vmem:[%s290] sm:$0xf]
      %v318 = vld [vmem:[%s290 + $0x4] sm:$0xf]
      %v319 = vld [vmem:[%s290 + $0x8] sm:$0xf]
      %v320 = vld [vmem:[%s290 + $0xc] sm:$0xf]
      %v321 = vld [vmem:[%s304] sm:$0xf]
      %v322 = vld [vmem:[%s304 + $0x4] sm:$0xf]
      %v323 = vld [vmem:[%s304 + $0x8] sm:$0xf]
      %v324 = vld [vmem:[%s304 + $0xc] sm:$0xf]
      %v325 = vld [vmem:[%s304 + $0x10] sm:$0xf]
      %v326 = vld [vmem:[%s304 + $0x14] sm:$0xf]
      %v327 = vld [vmem:[%s304 + $0x18] sm:$0xf]
      %v328 = vld [vmem:[%s304 + $0x1c] sm:$0xf]
      %v329 = vld [vmem:[%s304 + $0x20] sm:$0xf]
      %v330 = vld [vmem:[%s304 + $0x24] sm:$0xf]
      %v331 = vld [vmem:[%s304 + $0x28] sm:$0xf]
      %v332 = vld [vmem:[%s304 + $0x2c] sm:$0xf]
      %v333 = vld [vmem:[%s304 + $0x30] sm:$0xf]
      %v334 = vld [vmem:[%s304 + $0x34] sm:$0xf]
      %v335 = vld [vmem:[%s304 + $0x38] sm:$0xf]
      %v336 = vld [vmem:[%s304 + $0x3c] sm:$0xf]
      %v337 = vld [vmem:[%s295] sm:$0xf]
      %v338 = vld [vmem:[%s295 + $0x4] sm:$0xf]
      %v339 = vld [vmem:[%s295 + $0x8] sm:$0xf]
      %v340 = vld [vmem:[%s295 + $0xc] sm:$0xf]
      %s341 = scalar_lea.vmem %s304, 64
      %v342 = vld [vmem:[%s341] sm:$0xf]
      %v343 = vld [vmem:[%s341 + $0x4] sm:$0xf]
      %v344 = vld [vmem:[%s341 + $0x8] sm:$0xf]
      %v345 = vld [vmem:[%s341 + $0xc] sm:$0xf]
      %v346 = vld [vmem:[%s341 + $0x10] sm:$0xf]
      %v347 = vld [vmem:[%s341 + $0x14] sm:$0xf]
      %v348 = vld [vmem:[%s341 + $0x18] sm:$0xf]
      %v349 = vld [vmem:[%s341 + $0x1c] sm:$0xf]
      %v350 = vld [vmem:[%s341 + $0x20] sm:$0xf]
      %v351 = vld [vmem:[%s341 + $0x24] sm:$0xf]
      %v352 = vld [vmem:[%s341 + $0x28] sm:$0xf]
      %v353 = vld [vmem:[%s341 + $0x2c] sm:$0xf]
      %v354 = vld [vmem:[%s341 + $0x30] sm:$0xf]
      %v355 = vld [vmem:[%s341 + $0x34] sm:$0xf]
      %v356 = vld [vmem:[%s341 + $0x38] sm:$0xf]
      %v357 = vld [vmem:[%s341 + $0x3c] sm:$0xf]
      %v362 = vunpack.c.l.b16 %v337
      %v363 = vunpack.c.l.b16 %v338
      %v364 = vunpack.c.l.b16 %v339
      %v365 = vunpack.c.l.b16 %v340
      %v366 = vpack.c.b16 %v363, %v362
      %v367 = vpack.c.b16 %v365, %v364
      %v386 = vunpack.c.l.b16 %v342
      %v387 = vunpack.c.l.b16 %v343
      %v388 = vunpack.c.l.b16 %v344
      %v389 = vunpack.c.l.b16 %v345
      %v390 = vunpack.c.l.b16 %v346
      %v391 = vunpack.c.l.b16 %v347
      %v392 = vunpack.c.l.b16 %v348
      %v393 = vunpack.c.l.b16 %v349
      %v394 = vunpack.c.l.b16 %v350
      %v395 = vunpack.c.l.b16 %v351
      %v396 = vunpack.c.l.b16 %v352
      %v397 = vunpack.c.l.b16 %v353
      %v398 = vunpack.c.l.b16 %v354
      %v399 = vunpack.c.l.b16 %v355
      %v400 = vunpack.c.l.b16 %v356
      %v401 = vunpack.c.l.b16 %v357
      %v402 = vpack.c.b16 %v387, %v386
      %v403 = vpack.c.b16 %v389, %v388
      %v404 = vpack.c.b16 %v391, %v390
      %v405 = vpack.c.b16 %v393, %v392
      %v406 = vpack.c.b16 %v395, %v394
      %v407 = vpack.c.b16 %v397, %v396
      %v408 = vpack.c.b16 %v399, %v398
      %v409 = vpack.c.b16 %v401, %v400
      %418 = vmatprep.subr.bf16.mxu0 0
      %419 = vmatpush1.bf16.msra.mxu0 %v409
      %420 = vmatprep.subr.bf16.mxu0 0
      %421 = vmatpush1.bf16.msra.mxu0 %v408
      %422 = vmatprep.subr.bf16.mxu0 0
      %423 = vmatpush1.bf16.msra.mxu0 %v407
      %424 = vmatprep.subr.bf16.mxu0 0
      %425 = vmatpush1.bf16.msra.mxu0 %v406
      %426 = vmatprep.subr.bf16.mxu0 0
      %427 = vmatpush1.bf16.msra.mxu0 %v405
      %428 = vmatprep.subr.bf16.mxu0 0
      %429 = vmatpush1.bf16.msra.mxu0 %v404
      %430 = vmatprep.subr.bf16.mxu0 0
      %431 = vmatpush1.bf16.msra.mxu0 %v403
      %432 = vmatprep.subr.bf16.mxu0 0
      %433 = vmatpush1.bf16.msra.mxu0 %v402
      %434 = vmatprep.subr.bf16.mxu0 0
      %435 = vmatpush2.bf16.msra.mxu0 0
      %436 = vmatprep.subr.bf16.mxu0 0
      %437 = vmatpush2.bf16.msra.mxu0 0
      %438 = vmatprep.subr.bf16.mxu0 0
      %439 = vmatpush2.bf16.msra.mxu0 0
      %440 = vmatprep.subr.bf16.mxu0 0
      %441 = vmatpush2.bf16.msra.mxu0 0
      %442 = vmatprep.subr.bf16.mxu0 0
      %443 = vmatpush2.bf16.msra.mxu0 0
      %444 = vmatprep.subr.bf16.mxu0 0
      %445 = vmatpush2.bf16.msra.mxu0 0
      %446 = vmatprep.subr.bf16.mxu0 0
      %447 = vmatpush2.bf16.msra.mxu0 0
      %448 = vmatprep.subr.bf16.mxu0 0
      %449 = vmatpush2.bf16.msra.mxu0 0
      %450 = vmatprep.mubr.bf16.mxu0 0
      %451 = vmatmul.mubr.bf16.gmra.mxu0 %v366
      %v452 = vpop.f32.mrf.mxu0
      %v453 = vadd.f32 0.0, %v452
      %v454 = vpop.f32.mrf.mxu0
      %v455 = vpop.f32.mrf.mxu0
      %v456 = vadd.f32 0.0, %v455
      %v457 = vpop.f32.mrf.mxu0
      %458 = vmatprep.mubr.bf16.mxu0 0
      %459 = vmatmul.mubr.bf16.gmra.mxu0 %v367
      %v460 = vpop.f32.mrf.mxu0
      %v461 = vadd.f32 0.0, %v460
      %v462 = vpop.f32.mrf.mxu0
      %v463 = vpop.f32.mrf.mxu0
      %v464 = vadd.f32 0.0, %v463
      %v465 = vpop.f32.mrf.mxu0
      %466 = vdwg.mxu0
      %v471 = vunpack.c.l.b16 %v317
      %v472 = vunpack.c.l.b16 %v318
      %v473 = vunpack.c.l.b16 %v319
      %v474 = vunpack.c.l.b16 %v320
      %v475 = vpack.c.b16 %v472, %v471
      %v476 = vpack.c.b16 %v474, %v473
      %v495 = vunpack.c.l.b16 %v321
      %v496 = vunpack.c.l.b16 %v322
      %v497 = vunpack.c.l.b16 %v323
      %v498 = vunpack.c.l.b16 %v324
      %v499 = vunpack.c.l.b16 %v325
      %v500 = vunpack.c.l.b16 %v326
      %v501 = vunpack.c.l.b16 %v327
      %v502 = vunpack.c.l.b16 %v328
      %v503 = vunpack.c.l.b16 %v329
      %v504 = vunpack.c.l.b16 %v330
      %v505 = vunpack.c.l.b16 %v331
      %v506 = vunpack.c.l.b16 %v332
      %v507 = vunpack.c.l.b16 %v333
      %v508 = vunpack.c.l.b16 %v334
      %v509 = vunpack.c.l.b16 %v335
      %v510 = vunpack.c.l.b16 %v336
      %v511 = vpack.c.b16 %v496, %v495
      %v512 = vpack.c.b16 %v498, %v497
      %v513 = vpack.c.b16 %v500, %v499
      %v514 = vpack.c.b16 %v502, %v501
      %v515 = vpack.c.b16 %v504, %v503
      %v516 = vpack.c.b16 %v506, %v505
      %v517 = vpack.c.b16 %v508, %v507
      %v518 = vpack.c.b16 %v510, %v509
      %527 = vmatprep.subr.bf16.mxu0 0
      %528 = vmatpush1.bf16.msra.mxu0 %v518
      %529 = vmatprep.subr.bf16.mxu0 0
      %530 = vmatpush1.bf16.msra.mxu0 %v517
      %531 = vmatprep.subr.bf16.mxu0 0
      %532 = vmatpush1.bf16.msra.mxu0 %v516
      %533 = vmatprep.subr.bf16.mxu0 0
      %534 = vmatpush1.bf16.msra.mxu0 %v515
      %535 = vmatprep.subr.bf16.mxu0 0
      %536 = vmatpush1.bf16.msra.mxu0 %v514
      %537 = vmatprep.subr.bf16.mxu0 0
      %538 = vmatpush1.bf16.msra.mxu0 %v513
      %539 = vmatprep.subr.bf16.mxu0 0
      %540 = vmatpush1.bf16.msra.mxu0 %v512
      %541 = vmatprep.subr.bf16.mxu0 0
      %542 = vmatpush1.bf16.msra.mxu0 %v511
      %543 = vmatprep.subr.bf16.mxu0 0
      %544 = vmatpush2.bf16.msra.mxu0 0
      %545 = vmatprep.subr.bf16.mxu0 0
      %546 = vmatpush2.bf16.msra.mxu0 0
      %547 = vmatprep.subr.bf16.mxu0 0
      %548 = vmatpush2.bf16.msra.mxu0 0
      %549 = vmatprep.subr.bf16.mxu0 0
      %550 = vmatpush2.bf16.msra.mxu0 0
      %551 = vmatprep.subr.bf16.mxu0 0
      %552 = vmatpush2.bf16.msra.mxu0 0
      %553 = vmatprep.subr.bf16.mxu0 0
      %554 = vmatpush2.bf16.msra.mxu0 0
      %555 = vmatprep.subr.bf16.mxu0 0
      %556 = vmatpush2.bf16.msra.mxu0 0
      %557 = vmatprep.subr.bf16.mxu0 0
      %558 = vmatpush2.bf16.msra.mxu0 0
      %559 = vmatprep.mubr.bf16.mxu0 0
      %560 = vmatmul.mubr.bf16.gmra.mxu0 %v475
      %v561 = vpop.f32.mrf.mxu0
      %v562 = vadd.f32 %v453, %v561
      %v563 = vpop.f32.mrf.mxu0
      %v564 = vpop.f32.mrf.mxu0
      %v565 = vadd.f32 %v456, %v564
      %v566 = vpop.f32.mrf.mxu0
      %567 = vmatprep.mubr.bf16.mxu0 0
      %568 = vmatmul.mubr.bf16.gmra.mxu0 %v476
      %v569 = vpop.f32.mrf.mxu0
      %v570 = vadd.f32 %v461, %v569
      %v571 = vpop.f32.mrf.mxu0
      %v572 = vpop.f32.mrf.mxu0
      %v573 = vadd.f32 %v464, %v572
      %v574 = vpop.f32.mrf.mxu0
      %575 = vdwg.mxu0
      %v576 = vld [vmem:[%s300] sm:$0xf]
      %v577 = vld [vmem:[%s300 + $0x4] sm:$0xf]
      %v578 = vld [vmem:[%s300 + $0x8] sm:$0xf]
      %v579 = vld [vmem:[%s300 + $0xc] sm:$0xf]
      %s580 = scalar_lea.vmem %s304, 128
      %v581 = vld [vmem:[%s580] sm:$0xf]
      %v582 = vld [vmem:[%s580 + $0x4] sm:$0xf]
      %v583 = vld [vmem:[%s580 + $0x8] sm:$0xf]
      %v584 = vld [vmem:[%s580 + $0xc] sm:$0xf]
      %v585 = vld [vmem:[%s580 + $0x10] sm:$0xf]
      %v586 = vld [vmem:[%s580 + $0x14] sm:$0xf]
      %v587 = vld [vmem:[%s580 + $0x18] sm:$0xf]
      %v588 = vld [vmem:[%s580 + $0x1c] sm:$0xf]
      %v589 = vld [vmem:[%s580 + $0x20] sm:$0xf]
      %v590 = vld [vmem:[%s580 + $0x24] sm:$0xf]
      %v591 = vld [vmem:[%s580 + $0x28] sm:$0xf]
      %v592 = vld [vmem:[%s580 + $0x2c] sm:$0xf]
      %v593 = vld [vmem:[%s580 + $0x30] sm:$0xf]
      %v594 = vld [vmem:[%s580 + $0x34] sm:$0xf]
      %v595 = vld [vmem:[%s580 + $0x38] sm:$0xf]
      %v596 = vld [vmem:[%s580 + $0x3c] sm:$0xf]
      %v601 = vunpack.c.l.b16 %v576
      %v602 = vunpack.c.l.b16 %v577
      %v603 = vunpack.c.l.b16 %v578
      %v604 = vunpack.c.l.b16 %v579
      %v605 = vpack.c.b16 %v602, %v601
      %v606 = vpack.c.b16 %v604, %v603
      %v625 = vunpack.c.l.b16 %v581
      %v626 = vunpack.c.l.b16 %v582
      %v627 = vunpack.c.l.b16 %v583
      %v628 = vunpack.c.l.b16 %v584
      %v629 = vunpack.c.l.b16 %v585
      %v630 = vunpack.c.l.b16 %v586
      %v631 = vunpack.c.l.b16 %v587
      %v632 = vunpack.c.l.b16 %v588
      %v633 = vunpack.c.l.b16 %v589
      %v634 = vunpack.c.l.b16 %v590
      %v635 = vunpack.c.l.b16 %v591
      %v636 = vunpack.c.l.b16 %v592
      %v637 = vunpack.c.l.b16 %v593
      %v638 = vunpack.c.l.b16 %v594
      %v639 = vunpack.c.l.b16 %v595
      %v640 = vunpack.c.l.b16 %v596
      %v641 = vpack.c.b16 %v626, %v625
      %v642 = vpack.c.b16 %v628, %v627
      %v643 = vpack.c.b16 %v630, %v629
      %v644 = vpack.c.b16 %v632, %v631
      %v645 = vpack.c.b16 %v634, %v633
      %v646 = vpack.c.b16 %v636, %v635
      %v647 = vpack.c.b16 %v638, %v637
      %v648 = vpack.c.b16 %v640, %v639
      %657 = vmatprep.subr.bf16.mxu0 0
      %658 = vmatpush1.bf16.msra.mxu0 %v648
      %659 = vmatprep.subr.bf16.mxu0 0
      %660 = vmatpush1.bf16.msra.mxu0 %v647
      %661 = vmatprep.subr.bf16.mxu0 0
      %662 = vmatpush1.bf16.msra.mxu0 %v646
      %663 = vmatprep.subr.bf16.mxu0 0
      %664 = vmatpush1.bf16.msra.mxu0 %v645
      %665 = vmatprep.subr.bf16.mxu0 0
      %666 = vmatpush1.bf16.msra.mxu0 %v644
      %667 = vmatprep.subr.bf16.mxu0 0
      %668 = vmatpush1.bf16.msra.mxu0 %v643
      %669 = vmatprep.subr.bf16.mxu0 0
      %670 = vmatpush1.bf16.msra.mxu0 %v642
      %671 = vmatprep.subr.bf16.mxu0 0
      %672 = vmatpush1.bf16.msra.mxu0 %v641
      %673 = vmatprep.subr.bf16.mxu0 0
      %674 = vmatpush2.bf16.msra.mxu0 0
      %675 = vmatprep.subr.bf16.mxu0 0
      %676 = vmatpush2.bf16.msra.mxu0 0
      %677 = vmatprep.subr.bf16.mxu0 0
      %678 = vmatpush2.bf16.msra.mxu0 0
      %679 = vmatprep.subr.bf16.mxu0 0
      %680 = vmatpush2.bf16.msra.mxu0 0
      %681 = vmatprep.subr.bf16.mxu0 0
      %682 = vmatpush2.bf16.msra.mxu0 0
      %683 = vmatprep.subr.bf16.mxu0 0
      %684 = vmatpush2.bf16.msra.mxu0 0
      %685 = vmatprep.subr.bf16.mxu0 0
      %686 = vmatpush2.bf16.msra.mxu0 0
      %687 = vmatprep.subr.bf16.mxu0 0
      %688 = vmatpush2.bf16.msra.mxu0 0
      %689 = vmatprep.mubr.bf16.mxu0 0
      %690 = vmatmul.mubr.bf16.gmra.mxu0 %v605
      %v691 = vpop.f32.mrf.mxu0
      %v692 = vadd.f32 0.0, %v691
      %v693 = vpop.f32.mrf.mxu0
      %v694 = vpop.f32.mrf.mxu0
      %v695 = vadd.f32 0.0, %v694
      %v696 = vpop.f32.mrf.mxu0
      %697 = vmatprep.mubr.bf16.mxu0 0
      %698 = vmatmul.mubr.bf16.gmra.mxu0 %v606
      %v699 = vpop.f32.mrf.mxu0
      %v700 = vadd.f32 0.0, %v699
      %v701 = vpop.f32.mrf.mxu0
      %v702 = vpop.f32.mrf.mxu0
      %v703 = vadd.f32 0.0, %v702
      %v704 = vpop.f32.mrf.mxu0
      %705 = vdwg.mxu0
      %v706 = vadd.f32 %v562, %v692
      %v707 = vadd.f32 %v565, %v695
      %v708 = vadd.f32 %v570, %v700
      %v709 = vadd.f32 %v573, %v703
      %v710 = vld [vmem:[%s307] sm:$0x1]
      %v712 = vlaneseq
      %v713 = vshrl.u32 %v712, 7
      %v714 = vsub.s32 0, %v713
      %v715 = vrot.slane %v710, %v714
      %v717 = vadd.f32 %v706, %v715
      %v718 = vadd.f32 %v707, %v715
      %v719 = vadd.f32 %v708, %v715
      %v720 = vadd.f32 %v709, %v715
      %v721 = vmax.f32 %v717, 0.0
      %v722 = vmax.f32 %v718, 0.0
      %v723 = vmax.f32 %v719, 0.0
      %v724 = vmax.f32 %v720, 0.0
      %v725 = vpack.c.bf16 %v722, %v721
      %v726 = vpack.c.bf16 %v724, %v723
      %v729 = vunpack.c.l.b16 %v725
      %v730 = vunpack.c.h.b16 %v725
      %v731 = vunpack.c.l.b16 %v726
      %v732 = vunpack.c.h.b16 %v726
      %v733 = vpack.c.b16 %v729, %v729
      %v734 = vpack.c.b16 %v730, %v730
      %v735 = vpack.c.b16 %v731, %v731
      %v736 = vpack.c.b16 %v732, %v732
      %741 = vst [vmem:[%s315] sm:$0xf] %v733
      %742 = vst [vmem:[%s315 + $0x4] sm:$0xf] %v734
      %743 = vst [vmem:[%s315 + $0x8] sm:$0xf] %v735
      %744 = vst [vmem:[%s315 + $0xc] sm:$0xf] %v736
      %p745 = scmp.lt.s32.totalorder %s20, 1
      %s746 = scalar_select %p745, %s20, 1
      %p747 = scmp.lt.s32.totalorder %s21, 0
      %s748 = scalar_select %p747, %s21, 0
      %s749 = smul.addr %s746, 4
      %s750 = sadd.s32 %s748, %s749
      %s751 = smul.addr %s750, 4
      %s752 = scalar_lea.vmem %s5, %s751
      // Predicated region
      $region41: #{ecapa_forward.29} parent=39 // pred_check
        %p753 = pneg %p178
      $region42: #{ecapa_forward.29} parent=39 // pred_check_branch
        %755 = sbr.rel (%p753) target = $region44
      $region43: #{ecapa_forward.29} parent=39 // pred_region
        _
      $region44: #{ecapa_forward.29} parent=39 // pred_fallthru
        _
    $region40: #{ecapa_forward.29} parent=5 // pred_fallthru
      _
    %p756 = scmp.le.s32.totalorder 2, %s11
    // Predicated region
    $region45: #{ecapa_forward.29} parent=5 // pred_check
      %p757 = pneg %p756
    $region46: #{ecapa_forward.29} parent=5 // pred_check_branch
      %759 = sbr.rel (%p757) target = $region48
    $region47: #{ecapa_forward.29} parent=5 // pred_region
      %s760 = ssub.s32 %s11, 2
      // Predicated region
      $region49: #{ecapa_forward.29} parent=47 // pred_check
        %p761 = pneg %p184
      $region50: #{ecapa_forward.29} parent=47 // pred_check_branch
        %763 = sbr.rel (%p761) target = $region52
      $region51: #{ecapa_forward.29} parent=47 // pred_region
        %p764 = scmp.lt.s32.totalorder %s22, 1
        %s765 = scalar_select %p764, %s22, 1
        %p766 = scmp.lt.s32.totalorder %s23, 0
        %s767 = scalar_select %p766, %s23, 0
        %s768 = smul.addr %s765, 4
        %s769 = sadd.s32 %s767, %s768
        %s770 = smul.addr %s769, 4
        %s771 = scalar_lea.vmem %s5, %s770
      $region52: #{ecapa_forward.29} parent=47 // pred_fallthru
        _
    $region48: #{ecapa_forward.29} parent=5 // pred_fallthru
      _
  $region6: #{ecapa_forward.29} parent=0 // loop_footer
    %s15 = sadd.s32 1, %s11
  $region7: #{ecapa_forward.29} parent=0 // loop_footer_branch
    %10 = sbr.rel target = $region3
  $region8: #{ecapa_forward.29} parent=0 // loop_exit
    _

// kernel: ecapa_forward.30
$region0: #{ecapa_forward.30}
  #allocation0 [shape = 'u32[]', space=smem, size = 0x4, offset = 0x4, fixed_abs, tag = 'smem constant byte address 0x4 - core index']
  #allocation1 [shape = 'u32[144,128]{1,0:T(1,128)}', space=vmem, size = 0x12000, scoped, tag = 'internal scratch']
  %s0 = inlined_call_operand.vmem [shape: bf16[2,32,128], index: 0, kind: input, shape index: {}]
  %s1 = inlined_call_operand.vmem [shape: bf16[128,32], index: 1, kind: input, shape index: {}]
  %s2 = inlined_call_operand.vmem [shape: f32[1,32], index: 2, kind: input, shape index: {}]
  %s3 = inlined_call_operand.vmem [shape: f32[1,32], index: 3, kind: input, shape index: {}]
  %s4 = inlined_call_operand.vmem [shape: f32[1,32], index: 4, kind: input, shape index: {}]
  %s5 = inlined_call_operand.vmem [shape: bf16[32,128], index: 5, kind: input, shape index: {}]
  %s6 = inlined_call_operand.vmem [shape: f32[1,128], index: 6, kind: input, shape index: {}]
  %s7 = inlined_call_operand.vmem [shape: f32[2,1,128], index: 7, kind: output, shape index: {0}]
  %s8 = inlined_call_operand.vmem [shape: f32[2,1,128], index: 8, kind: output, shape index: {1}]
  %9 = xla_tuple %s7, %s8
  %s10 = sld [smem:[#allocation0]]
  $region69: #{ecapa_forward.30} parent=0
    _
  %s12 = ssub.s32 1, %s10
  %s13 = scalar_select 0, %s12, %s10
  loop: start=0, step=1, limit=4
  $region2: #{ecapa_forward.30} parent=0 // loop_pre_header
    _
  $region3: #{ecapa_forward.30} parent=0 // loop_header
    %s15 = sphi 0, %s19
    %p16 = scmp.ge.s32.totalorder %s15, 4
    %s25 = sphi 0, %s27
    %s28 = sphi 0, %s25
    %s29 = sphi 0, %s28
    %s45 = sphi 0, %s29
    %s49 = sphi 0, %s49
    %s51 = sphi 0, %s49
    %s52 = sphi 0, %s51
    %s66 = sphi 0, %s52
    %s70 = sphi 0, %s70
    %s72 = sphi 0, %s70
    %s73 = sphi 0, %s72
    %s87 = sphi 0, %s73
    %s91 = sphi 0, %s91
    %s93 = sphi 0, %s91
    %s94 = sphi 0, %s93
    %s108 = sphi 0, %s94
    %s112 = sphi 0, %s112
    %s114 = sphi 0, %s112
    %s115 = sphi 0, %s114
    %s129 = sphi 0, %s115
    %s133 = sphi 0, %s133
    %s135 = sphi 0, %s133
    %s136 = sphi 0, %s135
    %s150 = sphi 0, %s136
    %s154 = sphi 0, %s154
    %s156 = sphi 0, %s154
    %s157 = sphi 0, %s156
    %s171 = sphi 0, %s157
    %s177 = sphi 0, %s179
    %s180 = sphi 0, %s177
    %s181 = sphi 0, %s180
    %s197 = sphi 0, %s181
    %s203 = sphi 0, %s205
    %s206 = sphi 0, %s203
    %s207 = sphi 0, %s206
    %s223 = sphi 0, %s207
  $region4: #{ecapa_forward.30} parent=0 // loop_header_branch
    %18 = sbr.rel (%p16) target = $region8
  $region5: #{ecapa_forward.30} parent=0 // loop_body
    %s20 = ssub.s32 %s15, 1
    %s21 = ssub.s32 %s15, 2
    %s22 = sadd.s32 %s15, 1
    %s23 = ssub.s32 %s15, %s22
    %p24 = scmp.eq.s32.totalorder %s23, 0
    %s26 = sadd.s32 %s25, 1
    %s27 = scalar_select %p24, %s25, %s26
    %p30 = pneg %p24
    %p31 = scmp.eq.s32.totalorder %s15, 1
    %p32 = por %p30, %p31
    %p33 = scmp.ne.s32.totalorder %s25, %s28
    %p34 = scmp.eq.s32.totalorder %s15, 0
    %p35 = por %p33, %p34
    %p36 = scmp.ne.s32.totalorder %s25, %s28
    %p37 = scmp.eq.s32.totalorder %s20, 1
    %p38 = por %p36, %p37
    %p39 = scmp.ne.s32.totalorder %s28, %s29
    %p40 = scmp.eq.s32.totalorder %s20, 0
    %p41 = por %p39, %p40
    %p42 = scmp.ne.s32.totalorder %s28, %s29
    %p43 = scmp.eq.s32.totalorder %s21, 1
    %p44 = por %p42, %p43
    %p46 = scmp.ne.s32.totalorder %s29, %s45
    %p47 = scmp.eq.s32.totalorder %s21, 0
    %p48 = por %p46, %p47
    %s50 = sadd.s32 %s49, 1
    %p53 = scmp.eq.s32.totalorder %s15, 1
    %p54 = scmp.ne.s32.totalorder %s49, %s51
    %p55 = scmp.eq.s32.totalorder %s15, 0
    %p56 = por %p54, %p55
    %p57 = scmp.ne.s32.totalorder %s49, %s51
    %p58 = scmp.eq.s32.totalorder %s20, 1
    %p59 = por %p57, %p58
    %p60 = scmp.ne.s32.totalorder %s51, %s52
    %p61 = scmp.eq.s32.totalorder %s20, 0
    %p62 = por %p60, %p61
    %p63 = scmp.ne.s32.totalorder %s51, %s52
    %p64 = scmp.eq.s32.totalorder %s21, 1
    %p65 = por %p63, %p64
    %p67 = scmp.ne.s32.totalorder %s52, %s66
    %p68 = scmp.eq.s32.totalorder %s21, 0
    %p69 = por %p67, %p68
    %s71 = sadd.s32 %s70, 1
    %p74 = scmp.eq.s32.totalorder %s15, 1
    %p75 = scmp.ne.s32.totalorder %s70, %s72
    %p76 = scmp.eq.s32.totalorder %s15, 0
    %p77 = por %p75, %p76
    %p78 = scmp.ne.s32.totalorder %s70, %s72
    %p79 = scmp.eq.s32.totalorder %s20, 1
    %p80 = por %p78, %p79
    %p81 = scmp.ne.s32.totalorder %s72, %s73
    %p82 = scmp.eq.s32.totalorder %s20, 0
    %p83 = por %p81, %p82
    %p84 = scmp.ne.s32.totalorder %s72, %s73
    %p85 = scmp.eq.s32.totalorder %s21, 1
    %p86 = por %p84, %p85
    %p88 = scmp.ne.s32.totalorder %s73, %s87
    %p89 = scmp.eq.s32.totalorder %s21, 0
    %p90 = por %p88, %p89
    %s92 = sadd.s32 %s91, 1
    %p95 = scmp.eq.s32.totalorder %s15, 1
    %p96 = scmp.ne.s32.totalorder %s91, %s93
    %p97 = scmp.eq.s32.totalorder %s15, 0
    %p98 = por %p96, %p97
    %p99 = scmp.ne.s32.totalorder %s91, %s93
    %p100 = scmp.eq.s32.totalorder %s20, 1
    %p101 = por %p99, %p100
    %p102 = scmp.ne.s32.totalorder %s93, %s94
    %p103 = scmp.eq.s32.totalorder %s20, 0
    %p104 = por %p102, %p103
    %p105 = scmp.ne.s32.totalorder %s93, %s94
    %p106 = scmp.eq.s32.totalorder %s21, 1
    %p107 = por %p105, %p106
    %p109 = scmp.ne.s32.totalorder %s94, %s108
    %p110 = scmp.eq.s32.totalorder %s21, 0
    %p111 = por %p109, %p110
    %s113 = sadd.s32 %s112, 1
    %p116 = scmp.eq.s32.totalorder %s15, 1
    %p117 = scmp.ne.s32.totalorder %s112, %s114
    %p118 = scmp.eq.s32.totalorder %s15, 0
    %p119 = por %p117, %p118
    %p120 = scmp.ne.s32.totalorder %s112, %s114
    %p121 = scmp.eq.s32.totalorder %s20, 1
    %p122 = por %p120, %p121
    %p123 = scmp.ne.s32.totalorder %s114, %s115
    %p124 = scmp.eq.s32.totalorder %s20, 0
    %p125 = por %p123, %p124
    %p126 = scmp.ne.s32.totalorder %s114, %s115
    %p127 = scmp.eq.s32.totalorder %s21, 1
    %p128 = por %p126, %p127
    %p130 = scmp.ne.s32.totalorder %s115, %s129
    %p131 = scmp.eq.s32.totalorder %s21, 0
    %p132 = por %p130, %p131
    %s134 = sadd.s32 %s133, 1
    %p137 = scmp.eq.s32.totalorder %s15, 1
    %p138 = scmp.ne.s32.totalorder %s133, %s135
    %p139 = scmp.eq.s32.totalorder %s15, 0
    %p140 = por %p138, %p139
    %p141 = scmp.ne.s32.totalorder %s133, %s135
    %p142 = scmp.eq.s32.totalorder %s20, 1
    %p143 = por %p141, %p142
    %p144 = scmp.ne.s32.totalorder %s135, %s136
    %p145 = scmp.eq.s32.totalorder %s20, 0
    %p146 = por %p144, %p145
    %p147 = scmp.ne.s32.totalorder %s135, %s136
    %p148 = scmp.eq.s32.totalorder %s21, 1
    %p149 = por %p147, %p148
    %p151 = scmp.ne.s32.totalorder %s136, %s150
    %p152 = scmp.eq.s32.totalorder %s21, 0
    %p153 = por %p151, %p152
    %s155 = sadd.s32 %s154, 1
    %p158 = scmp.eq.s32.totalorder %s15, 1
    %p159 = scmp.ne.s32.totalorder %s154, %s156
    %p160 = scmp.eq.s32.totalorder %s15, 0
    %p161 = por %p159, %p160
    %p162 = scmp.ne.s32.totalorder %s154, %s156
    %p163 = scmp.eq.s32.totalorder %s20, 1
    %p164 = por %p162, %p163
    %p165 = scmp.ne.s32.totalorder %s156, %s157
    %p166 = scmp.eq.s32.totalorder %s20, 0
    %p167 = por %p165, %p166
    %p168 = scmp.ne.s32.totalorder %s156, %s157
    %p169 = scmp.eq.s32.totalorder %s21, 1
    %p170 = por %p168, %p169
    %p172 = scmp.ne.s32.totalorder %s157, %s171
    %p173 = scmp.eq.s32.totalorder %s21, 0
    %p174 = por %p172, %p173
    %s175 = ssub.s32 %s15, %s22
    %p176 = scmp.eq.s32.totalorder %s175, 0
    %s178 = sadd.s32 %s177, 1
    %s179 = scalar_select %p176, %s177, %s178
    %p182 = pneg %p176
    %p183 = scmp.eq.s32.totalorder %s15, 1
    %p184 = por %p182, %p183
    %p185 = scmp.ne.s32.totalorder %s177, %s180
    %p186 = scmp.eq.s32.totalorder %s15, 0
    %p187 = por %p185, %p186
    %p188 = scmp.ne.s32.totalorder %s177, %s180
    %p189 = scmp.eq.s32.totalorder %s20, 1
    %p190 = por %p188, %p189
    %p191 = scmp.ne.s32.totalorder %s180, %s181
    %p192 = scmp.eq.s32.totalorder %s20, 0
    %p193 = por %p191, %p192
    %p194 = scmp.ne.s32.totalorder %s180, %s181
    %p195 = scmp.eq.s32.totalorder %s21, 1
    %p196 = por %p194, %p195
    %p198 = scmp.ne.s32.totalorder %s181, %s197
    %p199 = scmp.eq.s32.totalorder %s21, 0
    %p200 = por %p198, %p199
    %s201 = ssub.s32 %s15, %s22
    %p202 = scmp.eq.s32.totalorder %s201, 0
    %s204 = sadd.s32 %s203, 1
    %s205 = scalar_select %p202, %s203, %s204
    %p208 = pneg %p202
    %p209 = scmp.eq.s32.totalorder %s15, 1
    %p210 = por %p208, %p209
    %p211 = scmp.ne.s32.totalorder %s203, %s206
    %p212 = scmp.eq.s32.totalorder %s15, 0
    %p213 = por %p211, %p212
    %p214 = scmp.ne.s32.totalorder %s203, %s206
    %p215 = scmp.eq.s32.totalorder %s20, 1
    %p216 = por %p214, %p215
    %p217 = scmp.ne.s32.totalorder %s206, %s207
    %p218 = scmp.eq.s32.totalorder %s20, 0
    %p219 = por %p217, %p218
    %p220 = scmp.ne.s32.totalorder %s206, %s207
    %p221 = scmp.eq.s32.totalorder %s21, 1
    %p222 = por %p220, %p221
    %p224 = scmp.ne.s32.totalorder %s207, %s223
    %p225 = scmp.eq.s32.totalorder %s21, 0
    %p226 = por %p224, %p225
    %p227 = scmp.le.s32.totalorder 1, %s15
    %p228 = scmp.lt.s32.totalorder %s15, 3
    %p229 = pnand %p227, %p228
    %p230 = pneg %p229
    // Predicated region
    $region9: #{ecapa_forward.30} parent=5 // pred_check
      _
    $region10: #{ecapa_forward.30} parent=5 // pred_check_branch
      %232 = sbr.rel (%p229) target = $region12
    $region11: #{ecapa_forward.30} parent=5 // pred_region
      %s233 = ssub.s32 %s15, 1
      // Predicated region
      $region13: #{ecapa_forward.30} parent=11 // pred_check
        %p234 = pneg %p62
      $region14: #{ecapa_forward.30} parent=11 // pred_check_branch
        %236 = sbr.rel (%p234) target = $region16
      $region15: #{ecapa_forward.30} parent=11 // pred_region
        _
      $region16: #{ecapa_forward.30} parent=11 // pred_fallthru
        _
      // Predicated region
      $region17: #{ecapa_forward.30} parent=11 // pred_check
        %p237 = pneg %p83
      $region18: #{ecapa_forward.30} parent=11 // pred_check_branch
        %239 = sbr.rel (%p237) target = $region20
      $region19: #{ecapa_forward.30} parent=11 // pred_region
        _
      $region20: #{ecapa_forward.30} parent=11 // pred_fallthru
        _
      // Predicated region
      $region21: #{ecapa_forward.30} parent=11 // pred_check
        %p240 = pneg %p104
      $region22: #{ecapa_forward.30} parent=11 // pred_check_branch
        %242 = sbr.rel (%p240) target = $region24
      $region23: #{ecapa_forward.30} parent=11 // pred_region
        _
      $region24: #{ecapa_forward.30} parent=11 // pred_fallthru
        _
      // Predicated region
      $region25: #{ecapa_forward.30} parent=11 // pred_check
        %p243 = pneg %p125
      $region26: #{ecapa_forward.30} parent=11 // pred_check_branch
        %245 = sbr.rel (%p243) target = $region28
      $region27: #{ecapa_forward.30} parent=11 // pred_region
        _
      $region28: #{ecapa_forward.30} parent=11 // pred_fallthru
        _
      // Predicated region
      $region29: #{ecapa_forward.30} parent=11 // pred_check
        %p246 = pneg %p146
      $region30: #{ecapa_forward.30} parent=11 // pred_check_branch
        %248 = sbr.rel (%p246) target = $region32
      $region31: #{ecapa_forward.30} parent=11 // pred_region
        _
      $region32: #{ecapa_forward.30} parent=11 // pred_fallthru
        _
      // Predicated region
      $region33: #{ecapa_forward.30} parent=11 // pred_check
        %p249 = pneg %p167
      $region34: #{ecapa_forward.30} parent=11 // pred_check_branch
        %251 = sbr.rel (%p249) target = $region36
      $region35: #{ecapa_forward.30} parent=11 // pred_region
        _
      $region36: #{ecapa_forward.30} parent=11 // pred_fallthru
        _
    $region12: #{ecapa_forward.30} parent=5 // pred_fallthru
      _
    %p252 = scmp.lt.s32.totalorder %s15, 2
    // Predicated region
    $region37: #{ecapa_forward.30} parent=5 // pred_check
      %p253 = pneg %p252
    $region38: #{ecapa_forward.30} parent=5 // pred_check_branch
      %255 = sbr.rel (%p253) target = $region40
    $region39: #{ecapa_forward.30} parent=5 // pred_region
      // Predicated region
      $region41: #{ecapa_forward.30} parent=39 // pred_check
        %p256 = pneg %p35
      $region42: #{ecapa_forward.30} parent=39 // pred_check_branch
        %258 = sbr.rel (%p256) target = $region44
      $region43: #{ecapa_forward.30} parent=39 // pred_region
        %p259 = scmp.lt.s32.totalorder %s15, 1
        %s260 = scalar_select %p259, %s15, 1
        %s261 = smul.addr %s260, 4
        %s262 = smul.addr %s261, 4
        %s263 = scalar_lea.vmem %s0, %s262
      $region44: #{ecapa_forward.30} parent=39 // pred_fallthru
        _
    $region40: #{ecapa_forward.30} parent=5 // pred_fallthru
      _
    %p264 = scmp.le.s32.totalorder 1, %s15
    %p265 = scmp.lt.s32.totalorder %s15, 3
    %p266 = pnand %p264, %p265
    %p267 = pneg %p266
    // Predicated region
    $region45: #{ecapa_forward.30} parent=5 // pred_check
      _
    $region46: #{ecapa_forward.30} parent=5 // pred_check_branch
      %269 = sbr.rel (%p266) target = $region48
    $region47: #{ecapa_forward.30} parent=5 // pred_region
      %s270 = ssub.s32 %s15, 1
      %p271 = scmp.lt.s32.totalorder %s20, 1
      %s272 = scalar_select %p271, %s20, 1
      %s273 = smul.addr %s272, 4
      %s274 = smul.addr %s273, 4
      %s275 = scalar_lea.vmem %s0, %s274
      %p276 = pneg %p41
      %p277 = pneg %p38
      %p278 = pneg %p62
      %p279 = pneg %p59
      %p280 = pneg %p83
      %p281 = pneg %p80
      %p282 = pneg %p104
      %p283 = pneg %p101
      %p284 = pneg %p125
      %p285 = pneg %p122
      %p286 = pneg %p146
      %p287 = pneg %p143
      %p288 = pneg %p167
      %p289 = pneg %p164
      %p290 = pneg %p193
      %p291 = pneg %p190
      %p292 = scmp.lt.s32.totalorder %s20, 1
      %s293 = scalar_select %p292, %s20, 1
      %s294 = scalar_lea.vmem %s7, %s293
      %p295 = pneg %p219
      %p296 = pneg %p216
      %p297 = scmp.lt.s32.totalorder %s20, 1
      %s298 = scalar_select %p297, %s20, 1
      %s299 = scalar_lea.vmem %s8, %s298
      %p300 = scmp.lt.s32.totalorder %s20, 1
      %s301 = scalar_select %p300, %s20, 1
      %s302 = smul.addr %s301, 4
      %s303 = smul.addr %s302, 4
      %s304 = scalar_lea.vmem %s0, %s303
      %p305 = scmp.lt.s32.totalorder %s20, 1
      %s306 = scalar_select %p305, %s20, 1
      %s307 = scalar_lea.vmem %s7, %s306
      %p308 = scmp.lt.s32.totalorder %s20, 1
      %s309 = scalar_select %p308, %s20, 1
      %s310 = scalar_lea.vmem %s8, %s309
      %v312 = vld [vmem:[%s304] sm:$0xf]
      %v313 = vld [vmem:[%s304 + $0x4] sm:$0xf]
      %v314 = vld [vmem:[%s304 + $0x8] sm:$0xf]
      %v315 = vld [vmem:[%s304 + $0xc] sm:$0xf]
      %v316 = vld [vmem:[%s1] sm:$0xf]
      %v317 = vld [vmem:[%s1 + $0x4] sm:$0xf]
      %v318 = vld [vmem:[%s1 + $0x8] sm:$0xf]
      %v319 = vld [vmem:[%s1 + $0xc] sm:$0xf]
      %v320 = vld [vmem:[%s1 + $0x10] sm:$0xf]
      %v321 = vld [vmem:[%s1 + $0x14] sm:$0xf]
      %v322 = vld [vmem:[%s1 + $0x18] sm:$0xf]
      %v323 = vld [vmem:[%s1 + $0x1c] sm:$0xf]
      %v324 = vld [vmem:[%s1 + $0x20] sm:$0xf]
      %v325 = vld [vmem:[%s1 + $0x24] sm:$0xf]
      %v326 = vld [vmem:[%s1 + $0x28] sm:$0xf]
      %v327 = vld [vmem:[%s1 + $0x2c] sm:$0xf]
      %v328 = vld [vmem:[%s1 + $0x30] sm:$0xf]
      %v329 = vld [vmem:[%s1 + $0x34] sm:$0xf]
      %v330 = vld [vmem:[%s1 + $0x38] sm:$0xf]
      %v331 = vld [vmem:[%s1 + $0x3c] sm:$0xf]
      %v332 = vld [vmem:[%s2] sm:$0x1]
      %v334 = vlaneseq
      %v335 = vshrl.u32 %v334, 7
      %v336 = vsub.s32 0, %v335
      %v337 = vrot.slane %v332, %v336
      %v343 = vunpack.c.l.b16 %v312
      %v344 = vunpack.c.l.b16 %v313
      %v345 = vunpack.c.l.b16 %v314
      %v346 = vunpack.c.l.b16 %v315
      %v347 = vpack.c.b16 %v344, %v343
      %v348 = vpack.c.b16 %v346, %v345
      %v367 = vunpack.c.l.b16 %v316
      %v368 = vunpack.c.l.b16 %v317
      %v369 = vunpack.c.l.b16 %v318
      %v370 = vunpack.c.l.b16 %v319
      %v371 = vunpack.c.l.b16 %v320
      %v372 = vunpack.c.l.b16 %v321
      %v373 = vunpack.c.l.b16 %v322
      %v374 = vunpack.c.l.b16 %v323
      %v375 = vunpack.c.l.b16 %v324
      %v376 = vunpack.c.l.b16 %v325
      %v377 = vunpack.c.l.b16 %v326
      %v378 = vunpack.c.l.b16 %v327
      %v379 = vunpack.c.l.b16 %v328
      %v380 = vunpack.c.l.b16 %v329
      %v381 = vunpack.c.l.b16 %v330
      %v382 = vunpack.c.l.b16 %v331
      %v383 = vpack.c.b16 %v368, %v367
      %v384 = vpack.c.b16 %v370, %v369
      %v385 = vpack.c.b16 %v372, %v371
      %v386 = vpack.c.b16 %v374, %v373
      %v387 = vpack.c.b16 %v376, %v375
      %v388 = vpack.c.b16 %v378, %v377
      %v389 = vpack.c.b16 %v380, %v379
      %v390 = vpack.c.b16 %v382, %v381
      %399 = vmatprep.subr.bf16.mxu0 0
      %400 = vmatpush1.bf16.msra.mxu0 %v390
      %401 = vmatprep.subr.bf16.mxu0 0
      %402 = vmatpush1.bf16.msra.mxu0 %v389
      %403 = vmatprep.subr.bf16.mxu0 0
      %404 = vmatpush1.bf16.msra.mxu0 %v388
      %405 = vmatprep.subr.bf16.mxu0 0
      %406 = vmatpush1.bf16.msra.mxu0 %v387
      %407 = vmatprep.subr.bf16.mxu0 0
      %408 = vmatpush1.bf16.msra.mxu0 %v386
      %409 = vmatprep.subr.bf16.mxu0 0
      %410 = vmatpush1.bf16.msra.mxu0 %v385
      %411 = vmatprep.subr.bf16.mxu0 0
      %412 = vmatpush1.bf16.msra.mxu0 %v384
      %413 = vmatprep.subr.bf16.mxu0 0
      %414 = vmatpush1.bf16.msra.mxu0 %v383
      %415 = vmatprep.subr.bf16.mxu0 0
      %416 = vmatpush2.bf16.msra.mxu0 0
      %417 = vmatprep.subr.bf16.mxu0 0
      %418 = vmatpush2.bf16.msra.mxu0 0
      %419 = vmatprep.subr.bf16.mxu0 0
      %420 = vmatpush2.bf16.msra.mxu0 0
      %421 = vmatprep.subr.bf16.mxu0 0
      %422 = vmatpush2.bf16.msra.mxu0 0
      %423 = vmatprep.subr.bf16.mxu0 0
      %424 = vmatpush2.bf16.msra.mxu0 0
      %425 = vmatprep.subr.bf16.mxu0 0
      %426 = vmatpush2.bf16.msra.mxu0 0
      %427 = vmatprep.subr.bf16.mxu0 0
      %428 = vmatpush2.bf16.msra.mxu0 0
      %429 = vmatprep.subr.bf16.mxu0 0
      %430 = vmatpush2.bf16.msra.mxu0 0
      %431 = vmatprep.mubr.bf16.mxu0 0
      %432 = vmatmul.mubr.bf16.gmra.mxu0 %v347
      %v433 = vpop.f32.mrf.mxu0
      %v434 = vadd.f32 %v337, %v433
      %v435 = vpop.f32.mrf.mxu0
      %v436 = vpop.f32.mrf.mxu0
      %v437 = vadd.f32 %v337, %v436
      %v438 = vpop.f32.mrf.mxu0
      %439 = vmatprep.mubr.bf16.mxu0 0
      %440 = vmatmul.mubr.bf16.gmra.mxu0 %v348
      %v441 = vpop.f32.mrf.mxu0
      %v442 = vadd.f32 %v337, %v441
      %v443 = vpop.f32.mrf.mxu0
      %v444 = vpop.f32.mrf.mxu0
      %v445 = vadd.f32 %v337, %v444
      %v446 = vpop.f32.mrf.mxu0
      %447 = vdwg.mxu0
      %v448 = vmax.f32 %v434, 0.0
      %v449 = vmax.f32 %v437, 0.0
      %v450 = vmax.f32 %v442, 0.0
      %v451 = vmax.f32 %v445, 0.0
      %v452 = vld [vmem:[%s3] sm:$0x1]
      %v454 = vlaneseq
      %v455 = vshrl.u32 %v454, 7
      %v456 = vsub.s32 0, %v455
      %v457 = vrot.slane %v452, %v456
      %v459 = vmul.f32 %v448, %v457
      %v460 = vmul.f32 %v449, %v457
      %v461 = vmul.f32 %v450, %v457
      %v462 = vmul.f32 %v451, %v457
      %v463 = vld [vmem:[%s4] sm:$0x1]
      %v465 = vlaneseq
      %v466 = vshrl.u32 %v465, 7
      %v467 = vsub.s32 0, %v466
      %v468 = vrot.slane %v463, %v467
      %v470 = vadd.f32 %v459, %v468
      %v471 = vadd.f32 %v460, %v468
      %v472 = vadd.f32 %v461, %v468
      %v473 = vadd.f32 %v462, %v468
      %v474 = vtanh.pop %v470
      %v475 = vtanh.pop %v471
      %v476 = vtanh.pop %v472
      %v477 = vtanh.pop %v473
      %v478 = vpack.c.bf16 %v475, %v474
      %v479 = vpack.c.bf16 %v477, %v476
      %v480 = vld [vmem:[%s5] sm:$0xf]
      %v481 = vld [vmem:[%s5 + $0x4] sm:$0xf]
      %v482 = vld [vmem:[%s5 + $0x8] sm:$0xf]
      %v483 = vld [vmem:[%s5 + $0xc] sm:$0xf]
      %v484 = vld [vmem:[%s6] sm:$0x1]
      %v486 = vlaneseq
      %v487 = vshrl.u32 %v486, 7
      %v488 = vsub.s32 0, %v487
      %v489 = vrot.slane %v484, %v488
      %v495 = vunpack.c.l.b16 %v480
      %v496 = vunpack.c.l.b16 %v481
      %v497 = vunpack.c.l.b16 %v482
      %v498 = vunpack.c.l.b16 %v483
      %v499 = vpack.c.b16 %v496, %v495
      %v500 = vpack.c.b16 %v498, %v497
      %vm503 = vcmask 261120
      %v505 = vsel %vm503, %v478, 0
      %v508 = vsel %vm503, %v479, 0
      %510 = vmatprep.subr.bf16.mxu0 0
      %511 = vmatpush1.bf16.msra.mxu0 0
      %512 = vmatprep.subr.bf16.mxu0 0
      %513 = vmatpush1.bf16.msra.mxu0 0
      %514 = vmatprep.subr.bf16.mxu0 0
      %515 = vmatpush1.bf16.msra.mxu0 0
      %516 = vmatprep.subr.bf16.mxu0 0
      %517 = vmatpush1.bf16.msra.mxu0 0
      %518 = vmatprep.subr.bf16.mxu0 0
      %519 = vmatpush1.bf16.msra.mxu0 0
      %520 = vmatprep.subr.bf16.mxu0 0
      %521 = vmatpush1.bf16.msra.mxu0 0
      %522 = vmatprep.subr.bf16.mxu0 0
      %523 = vmatpush1.bf16.msra.mxu0 %v500
      %524 = vmatprep.subr.bf16.mxu0 0
      %525 = vmatpush1.bf16.msra.mxu0 %v499
      %526 = vmatprep.subr.bf16.mxu0 0
      %527 = vmatpush2.bf16.msra.mxu0 0
      %528 = vmatprep.subr.bf16.mxu0 0
      %529 = vmatpush2.bf16.msra.mxu0 0
      %530 = vmatprep.subr.bf16.mxu0 0
      %531 = vmatpush2.bf16.msra.mxu0 0
      %532 = vmatprep.subr.bf16.mxu0 0
      %533 = vmatpush2.bf16.msra.mxu0 0
      %534 = vmatprep.subr.bf16.mxu0 0
      %535 = vmatpush2.bf16.msra.mxu0 0
      %536 = vmatprep.subr.bf16.mxu0 0
      %537 = vmatpush2.bf16.msra.mxu0 0
      %538 = vmatprep.subr.bf16.mxu0 0
      %539 = vmatpush2.bf16.msra.mxu0 0
      %540 = vmatprep.subr.bf16.mxu0 0
      %541 = vmatpush2.bf16.msra.mxu0 0
      %542 = vmatprep.mubr.bf16.mxu0 0
      %543 = vmatmul.mubr.bf16.gmra.mxu0 %v505
      %v544 = vpop.f32.mrf.mxu0
      %v545 = vadd.f32 %v489, %v544
      %v546 = vpop.f32.mrf.mxu0
      %v547 = vpop.f32.mrf.mxu0
      %v548 = vadd.f32 %v489, %v547
      %v549 = vpop.f32.mrf.mxu0
      %550 = vmatprep.mubr.bf16.mxu0 0
      %551 = vmatmul.mubr.bf16.gmra.mxu0 %v508
      %v552 = vpop.f32.mrf.mxu0
      %v553 = vadd.f32 %v489, %v552
      %v554 = vpop.f32.mrf.mxu0
      %v555 = vpop.f32.mrf.mxu0
      %v556 = vadd.f32 %v489, %v555
      %v557 = vpop.f32.mrf.mxu0
      %558 = vdwg.mxu0
      %v559 = vmax.f32 %v545, %v548
      %v560 = vmax.f32 %v553, %v556
      %v561 = vmax.f32 %v559, %v560
      %v562 = vrot.slane %v561, 4
      %v563 = vmax.f32 %v561, %v562
      %v564 = vrot.slane %v563, 2
      %v565 = vmax.f32 %v563, %v564
      %v566 = vrot.slane %v565, 1
      %v567 = vmax.f32 %v565, %v566
      %v568 = vsub.f32 %v545, %v567
      %v569 = vsub.f32 %v548, %v567
      %v570 = vsub.f32 %v553, %v567
      %v571 = vsub.f32 %v556, %v567
      %v572 = vmul.f32 %v568, 1.442695
      %v573 = vpow.pop %v572
      %v574 = vmul.f32 %v569, 1.442695
      %v575 = vpow.pop %v574
      %v576 = vmul.f32 %v570, 1.442695
      %v577 = vpow.pop %v576
      %v578 = vmul.f32 %v571, 1.442695
      %v579 = vpow.pop %v578
      %v580 = vadd.f32 %v573, %v575
      %v581 = vadd.f32 %v580, %v577
      %v582 = vadd.f32 %v581, %v579
      %v583 = vrot.slane %v582, 4
      %v584 = vadd.f32 %v582, %v583
      %v585 = vrot.slane %v584, 2
      %v586 = vadd.f32 %v584, %v585
      %v587 = vrot.slane %v586, 1
      %v588 = vadd.f32 %v586, %v587
      %v589 = vrcp.pop %v588
      %v590 = vmul.f32 %v573, %v589
      %v591 = vmul.f32 %v575, %v589
      %v592 = vmul.f32 %v577, %v589
      %v593 = vmul.f32 %v579, %v589
      %v594 = vunpack.c.l.bf16 %v312
      %v595 = vunpack.c.l.bf16 %v313
      %v596 = vunpack.c.l.bf16 %v314
      %v597 = vunpack.c.l.bf16 %v315
      %v598 = vmul.f32 %v594, %v590
      %v599 = vmul.f32 %v595, %v591
      %v600 = vmul.f32 %v596, %v592
      %v601 = vmul.f32 %v597, %v593
      %v602 = vadd.f32 %v598, %v599
      %v603 = vadd.f32 %v602, %v600
      %v604 = vadd.f32 %v603, %v601
      %v605 = vrot.slane %v604, 4
      %v606 = vadd.f32 %v604, %v605
      %v607 = vrot.slane %v606, 2
      %v608 = vadd.f32 %v606, %v607
      %v609 = vrot.slane %v608, 1
      %v610 = vadd.f32 %v608, %v609
      %v611 = vmul.f32 %v594, %v594
      %v612 = vmul.f32 %v595, %v595
      %v613 = vmul.f32 %v596, %v596
      %v614 = vmul.f32 %v597, %v597
      %v615 = vmul.f32 %v611, %v590
      %v616 = vmul.f32 %v612, %v591
      %v617 = vmul.f32 %v613, %v592
      %v618 = vmul.f32 %v614, %v593
      %v619 = vadd.f32 %v615, %v616
      %v620 = vadd.f32 %v619, %v617
      %v621 = vadd.f32 %v620, %v618
      %v622 = vrot.slane %v621, 4
      %v623 = vadd.f32 %v621, %v622
      %v624 = vrot.slane %v623, 2
      %v625 = vadd.f32 %v623, %v624
      %v626 = vrot.slane %v625, 1
      %v627 = vadd.f32 %v625, %v626
      %628 = vst [vmem:[%s307] sm:$0x1] %v610
      %v629 = vmul.f32 %v610, %v610
      %v630 = vsub.f32 %v627, %v629
      %v631 = vmax.f32 %v630, 1e-09
      %v632 = vrsqrt.pop %v631
      %v633 = vmul.f32 %v631, %v632
      %vm634 = vcmp.eq.f32.partialorder %v631, inf
      %v635 = vsel %vm634, %v631, %v633
      %vm636 = vcmp.eq.f32.partialorder %v631, 0.0
      %v637 = vand.u32 %v631, 2147483648
      %v638 = vsel %vm636, %v637, %v635
      %639 = vst [vmem:[%s310] sm:$0x1] %v638
      %p640 = scmp.lt.s32.totalorder %s20, 1
      %s641 = scalar_select %p640, %s20, 1
      %s642 = scalar_lea.vmem %s7, %s641
      %p643 = scmp.lt.s32.totalorder %s20, 1
      %s644 = scalar_select %p643, %s20, 1
      %s645 = scalar_lea.vmem %s8, %s644
      // Predicated region
      $region49: #{ecapa_forward.30} parent=47 // pred_check
        %p646 = pneg %p190
      $region50: #{ecapa_forward.30} parent=47 // pred_check_branch
        %648 = sbr.rel (%p646) target = $region52
      $region51: #{ecapa_forward.30} parent=47 // pred_region
        _
      $region52: #{ecapa_forward.30} parent=47 // pred_fallthru
        _
      // Predicated region
      $region53: #{ecapa_forward.30} parent=47 // pred_check
        %p649 = pneg %p216
      $region54: #{ecapa_forward.30} parent=47 // pred_check_branch
        %651 = sbr.rel (%p649) target = $region56
      $region55: #{ecapa_forward.30} parent=47 // pred_region
        _
      $region56: #{ecapa_forward.30} parent=47 // pred_fallthru
        _
    $region48: #{ecapa_forward.30} parent=5 // pred_fallthru
      _
    %p652 = scmp.le.s32.totalorder 2, %s15
    // Predicated region
    $region57: #{ecapa_forward.30} parent=5 // pred_check
      %p653 = pneg %p652
    $region58: #{ecapa_forward.30} parent=5 // pred_check_branch
      %655 = sbr.rel (%p653) target = $region60
    $region59: #{ecapa_forward.30} parent=5 // pred_region
      %s656 = ssub.s32 %s15, 2
      // Predicated region
      $region61: #{ecapa_forward.30} parent=59 // pred_check
        %p657 = pneg %p196
      $region62: #{ecapa_forward.30} parent=59 // pred_check_branch
        %659 = sbr.rel (%p657) target = $region64
      $region63: #{ecapa_forward.30} parent=59 // pred_region
        %p660 = scmp.lt.s32.totalorder %s21, 1
        %s661 = scalar_select %p660, %s21, 1
        %s662 = scalar_lea.vmem %s7, %s661
      $region64: #{ecapa_forward.30} parent=59 // pred_fallthru
        _
      // Predicated region
      $region65: #{ecapa_forward.30} parent=59 // pred_check
        %p663 = pneg %p222
      $region66: #{ecapa_forward.30} parent=59 // pred_check_branch
        %665 = sbr.rel (%p663) target = $region68
      $region67: #{ecapa_forward.30} parent=59 // pred_region
        %p666 = scmp.lt.s32.totalorder %s21, 1
        %s667 = scalar_select %p666, %s21, 1
        %s668 = scalar_lea.vmem %s8, %s667
      $region68: #{ecapa_forward.30} parent=59 // pred_fallthru
        _
    $region60: #{ecapa_forward.30} parent=5 // pred_fallthru
      _
  $region6: #{ecapa_forward.30} parent=0 // loop_footer
    %s19 = sadd.s32 1, %s15
  $region7: #{ecapa_forward.30} parent=0 // loop_footer_branch
    %14 = sbr.rel target = $region3
  $region8: #{ecapa_forward.30} parent=0 // loop_exit
    _

// kernel: ecapa_forward.31
$region0: #{ecapa_forward.31}
  #allocation0 [shape = 'u32[]', space=smem, size = 0x4, offset = 0x4, fixed_abs, tag = 'smem constant byte address 0x4 - core index']
  #allocation1 [shape = 'u32[144,128]{1,0:T(1,128)}', space=vmem, size = 0x12000, scoped, tag = 'internal scratch']
  %s0 = inlined_call_operand.vmem [shape: f32[2,256], index: 0, kind: input, shape index: {}]
  %s1 = inlined_call_operand.vmem [shape: f32[1,256], index: 1, kind: input, shape index: {}]
  %s2 = inlined_call_operand.vmem [shape: f32[1,256], index: 2, kind: input, shape index: {}]
  %s3 = inlined_call_operand.vmem [shape: bf16[256,32], index: 3, kind: input, shape index: {}]
  %s4 = inlined_call_operand.vmem [shape: f32[1,32], index: 4, kind: input, shape index: {}]
  %s5 = inlined_call_operand.vmem [shape: f32[1,32], index: 5, kind: input, shape index: {}]
  %s6 = inlined_call_operand.vmem [shape: f32[1,32], index: 6, kind: input, shape index: {}]
  %s7 = inlined_call_operand.hbm [shape: f32[2,32], index: 7, kind: output, shape index: {}]
  %s8 = sld [smem:[#allocation0]]
  $region38: #{ecapa_forward.31} parent=0
    _
  %s10 = ssub.s32 1, %s8
  %s11 = scalar_select 0, %s10, %s8
  $region1: #{ecapa_forward.31} parent=0
    #allocation2 [shape = 'u8[1024]{0}', space=vmem, size = 0x400, scoped, tag = 'output window, operand 0, single buffered']
    #allocation3 [shape = 's32[1]{0}', space=sflag, size = 0x4, scoped, tag = 'scoped memory for ecapa_forward.31']
    %12 = vsyncpa [#allocation3], 0
    // Predicated region
    $region2: #{ecapa_forward.31} parent=1 // pred_check
      _
    $region3: #{ecapa_forward.31} parent=1 // pred_check_branch
      %14 = sbr.rel (0) target = $region5
    $region4: #{ecapa_forward.31} parent=1 // pred_region
      _
    $region5: #{ecapa_forward.31} parent=1 // pred_fallthru
      _
    // Predicated region
    $region6: #{ecapa_forward.31} parent=1 // pred_check
      _
    $region7: #{ecapa_forward.31} parent=1 // pred_check_branch
      %16 = sbr.rel (0) target = $region9
    $region8: #{ecapa_forward.31} parent=1 // pred_region
      _
    $region9: #{ecapa_forward.31} parent=1 // pred_fallthru
      _
    // Predicated region
    $region10: #{ecapa_forward.31} parent=1 // pred_check
      _
    $region11: #{ecapa_forward.31} parent=1 // pred_check_branch
      %18 = sbr.rel (0) target = $region13
    $region12: #{ecapa_forward.31} parent=1 // pred_region
      _
    $region13: #{ecapa_forward.31} parent=1 // pred_fallthru
      _
    // Predicated region
    $region14: #{ecapa_forward.31} parent=1 // pred_check
      _
    $region15: #{ecapa_forward.31} parent=1 // pred_check_branch
      %20 = sbr.rel (0) target = $region17
    $region16: #{ecapa_forward.31} parent=1 // pred_region
      _
    $region17: #{ecapa_forward.31} parent=1 // pred_fallthru
      _
    // Predicated region
    $region18: #{ecapa_forward.31} parent=1 // pred_check
      _
    $region19: #{ecapa_forward.31} parent=1 // pred_check_branch
      %22 = sbr.rel (0) target = $region21
    $region20: #{ecapa_forward.31} parent=1 // pred_region
      _
    $region21: #{ecapa_forward.31} parent=1 // pred_fallthru
      _
    // Predicated region
    $region22: #{ecapa_forward.31} parent=1 // pred_check
      _
    $region23: #{ecapa_forward.31} parent=1 // pred_check_branch
      %24 = sbr.rel (0) target = $region25
    $region24: #{ecapa_forward.31} parent=1 // pred_region
      _
    $region25: #{ecapa_forward.31} parent=1 // pred_fallthru
      _
    // Predicated region
    $region26: #{ecapa_forward.31} parent=1 // pred_check
      _
    $region27: #{ecapa_forward.31} parent=1 // pred_check_branch
      %26 = sbr.rel (0) target = $region29
    $region28: #{ecapa_forward.31} parent=1 // pred_region
      _
    $region29: #{ecapa_forward.31} parent=1 // pred_fallthru
      _
    %v28 = vld [vmem:[%s0] sm:$0xf]
    %v29 = vld [vmem:[%s1] sm:$0x3]
    %v31 = vlaneseq
    %v32 = vshrl.u32 %v31, 7
    %v33 = vsub.s32 0, %v32
    %v34 = vrot.slane %v29, %v33
    %v35 = vlaneseq
    %v36 = vshrl.u32 %v35, 7
    %v37 = vsub.s32 1, %v36
    %v38 = vrot.slane %v29, %v37
    %v39 = vcombine.low %v34, %v38
    %v41 = vunpack.c.l.s4 1983009808
    %v42 = vunpack.c.0.s8 %v41
    %v43 = vlaneseq
    %v44 = vshrl.u32 %v43, 7
    %v45 = vsub.s32 %v42, %v44
    %v46 = vrot.slane %v39, %v45
    %v48 = vmul.f32 %v28, %v46
    %v49 = vld [vmem:[%s2] sm:$0x3]
    %v51 = vlaneseq
    %v52 = vshrl.u32 %v51, 7
    %v53 = vsub.s32 0, %v52
    %v54 = vrot.slane %v49, %v53
    %v55 = vlaneseq
    %v56 = vshrl.u32 %v55, 7
    %v57 = vsub.s32 1, %v56
    %v58 = vrot.slane %v49, %v57
    %v59 = vcombine.low %v54, %v58
    %v61 = vunpack.c.l.s4 1983009808
    %v62 = vunpack.c.0.s8 %v61
    %v63 = vlaneseq
    %v64 = vshrl.u32 %v63, 7
    %v65 = vsub.s32 %v62, %v64
    %v66 = vrot.slane %v59, %v65
    %v68 = vadd.f32 %v48, %v66
    %v71 = vunpack.c.l.s4 1983009808
    %v72 = vunpack.c.0.s8 %v71
    %v73 = vlaneseq
    %v74 = vshrl.u32 %v73, 7
    %v75 = vsub.s32 %v72, %v74
    %v76 = vrot.slane %v68, %v75
    %v77 = vcombine.high %v76, %v76
    %v80 = vpack.c.bf16 %v76, %v76
    %v81 = vpack.c.bf16 %v77, %v77
    %v82 = vld [vmem:[%s3] sm:$0xf]
    %v83 = vld [vmem:[%s3 + $0x4] sm:$0xf]
    %v84 = vld [vmem:[%s3 + $0x8] sm:$0xf]
    %v85 = vld [vmem:[%s3 + $0xc] sm:$0xf]
    %v86 = vld [vmem:[%s3 + $0x10] sm:$0xf]
    %v87 = vld [vmem:[%s3 + $0x14] sm:$0xf]
    %v88 = vld [vmem:[%s3 + $0x18] sm:$0xf]
    %v89 = vld [vmem:[%s3 + $0x1c] sm:$0xf]
    %v90 = vld [vmem:[%s3 + $0x20] sm:$0xf]
    %v91 = vld [vmem:[%s3 + $0x24] sm:$0xf]
    %v92 = vld [vmem:[%s3 + $0x28] sm:$0xf]
    %v93 = vld [vmem:[%s3 + $0x2c] sm:$0xf]
    %v94 = vld [vmem:[%s3 + $0x30] sm:$0xf]
    %v95 = vld [vmem:[%s3 + $0x34] sm:$0xf]
    %v96 = vld [vmem:[%s3 + $0x38] sm:$0xf]
    %v97 = vld [vmem:[%s3 + $0x3c] sm:$0xf]
    %v98 = vld [vmem:[%s3 + $0x40] sm:$0xf]
    %v99 = vld [vmem:[%s3 + $0x44] sm:$0xf]
    %v100 = vld [vmem:[%s3 + $0x48] sm:$0xf]
    %v101 = vld [vmem:[%s3 + $0x4c] sm:$0xf]
    %v102 = vld [vmem:[%s3 + $0x50] sm:$0xf]
    %v103 = vld [vmem:[%s3 + $0x54] sm:$0xf]
    %v104 = vld [vmem:[%s3 + $0x58] sm:$0xf]
    %v105 = vld [vmem:[%s3 + $0x5c] sm:$0xf]
    %v106 = vld [vmem:[%s3 + $0x60] sm:$0xf]
    %v107 = vld [vmem:[%s3 + $0x64] sm:$0xf]
    %v108 = vld [vmem:[%s3 + $0x68] sm:$0xf]
    %v109 = vld [vmem:[%s3 + $0x6c] sm:$0xf]
    %v110 = vld [vmem:[%s3 + $0x70] sm:$0xf]
    %v111 = vld [vmem:[%s3 + $0x74] sm:$0xf]
    %v112 = vld [vmem:[%s3 + $0x78] sm:$0xf]
    %v113 = vld [vmem:[%s3 + $0x7c] sm:$0xf]
    %v114 = vld [vmem:[%s4] sm:$0x1]
    %v116 = vlaneseq
    %v117 = vshrl.u32 %v116, 7
    %v118 = vsub.s32 0, %v117
    %v119 = vrot.slane %v114, %v118
    %v153 = vunpack.c.l.b16 %v82
    %v154 = vunpack.c.l.b16 %v83
    %v155 = vunpack.c.l.b16 %v84
    %v156 = vunpack.c.l.b16 %v85
    %v157 = vunpack.c.l.b16 %v86
    %v158 = vunpack.c.l.b16 %v87
    %v159 = vunpack.c.l.b16 %v88
    %v160 = vunpack.c.l.b16 %v89
    %v161 = vunpack.c.l.b16 %v90
    %v162 = vunpack.c.l.b16 %v91
    %v163 = vunpack.c.l.b16 %v92
    %v164 = vunpack.c.l.b16 %v93
    %v165 = vunpack.c.l.b16 %v94
    %v166 = vunpack.c.l.b16 %v95
    %v167 = vunpack.c.l.b16 %v96
    %v168 = vunpack.c.l.b16 %v97
    %v169 = vunpack.c.l.b16 %v98
    %v170 = vunpack.c.l.b16 %v99
    %v171 = vunpack.c.l.b16 %v100
    %v172 = vunpack.c.l.b16 %v101
    %v173 = vunpack.c.l.b16 %v102
    %v174 = vunpack.c.l.b16 %v103
    %v175 = vunpack.c.l.b16 %v104
    %v176 = vunpack.c.l.b16 %v105
    %v177 = vunpack.c.l.b16 %v106
    %v178 = vunpack.c.l.b16 %v107
    %v179 = vunpack.c.l.b16 %v108
    %v180 = vunpack.c.l.b16 %v109
    %v181 = vunpack.c.l.b16 %v110
    %v182 = vunpack.c.l.b16 %v111
    %v183 = vunpack.c.l.b16 %v112
    %v184 = vunpack.c.l.b16 %v113
    %v185 = vpack.c.b16 %v154, %v153
    %v186 = vpack.c.b16 %v156, %v155
    %v187 = vpack.c.b16 %v158, %v157
    %v188 = vpack.c.b16 %v160, %v159
    %v189 = vpack.c.b16 %v162, %v161
    %v190 = vpack.c.b16 %v164, %v163
    %v191 = vpack.c.b16 %v166, %v165
    %v192 = vpack.c.b16 %v168, %v167
    %v193 = vpack.c.b16 %v170, %v169
    %v194 = vpack.c.b16 %v172, %v171
    %v195 = vpack.c.b16 %v174, %v173
    %v196 = vpack.c.b16 %v176, %v175
    %v197 = vpack.c.b16 %v178, %v177
    %v198 = vpack.c.b16 %v180, %v179
    %v199 = vpack.c.b16 %v182, %v181
    %v200 = vpack.c.b16 %v184, %v183
    %217 = vmatprep.subr.bf16.mxu0 0
    %218 = vmatpush1.bf16.msra.mxu0 %v192
    %219 = vmatprep.subr.bf16.mxu0 0
    %220 = vmatpush1.bf16.msra.mxu0 %v191
    %221 = vmatprep.subr.bf16.mxu0 0
    %222 = vmatpush1.bf16.msra.mxu0 %v190
    %223 = vmatprep.subr.bf16.mxu0 0
    %224 = vmatpush1.bf16.msra.mxu0 %v189
    %225 = vmatprep.subr.bf16.mxu0 0
    %226 = vmatpush1.bf16.msra.mxu0 %v188
    %227 = vmatprep.subr.bf16.mxu0 0
    %228 = vmatpush1.bf16.msra.mxu0 %v187
    %229 = vmatprep.subr.bf16.mxu0 0
    %230 = vmatpush1.bf16.msra.mxu0 %v186
    %231 = vmatprep.subr.bf16.mxu0 0
    %232 = vmatpush1.bf16.msra.mxu0 %v185
    %233 = vmatprep.subr.bf16.mxu0 0
    %234 = vmatpush2.bf16.msra.mxu0 %v200
    %235 = vmatprep.subr.bf16.mxu0 0
    %236 = vmatpush2.bf16.msra.mxu0 %v199
    %237 = vmatprep.subr.bf16.mxu0 0
    %238 = vmatpush2.bf16.msra.mxu0 %v198
    %239 = vmatprep.subr.bf16.mxu0 0
    %240 = vmatpush2.bf16.msra.mxu0 %v197
    %241 = vmatprep.subr.bf16.mxu0 0
    %242 = vmatpush2.bf16.msra.mxu0 %v196
    %243 = vmatprep.subr.bf16.mxu0 0
    %244 = vmatpush2.bf16.msra.mxu0 %v195
    %245 = vmatprep.subr.bf16.mxu0 0
    %246 = vmatpush2.bf16.msra.mxu0 %v194
    %247 = vmatprep.subr.bf16.mxu0 0
    %248 = vmatpush2.bf16.msra.mxu0 %v193
    %249 = vmatprep.mubr.bf16.mxu0 %v81
    %250 = vmatmul.mubr.bf16.gmra.mxu0 %v80
    %v251 = vpop.f32.mrf.mxu0
    %v252 = vadd.f32 %v119, %v251
    %v253 = vpop.f32.mrf.mxu0
    %v254 = vpop.f32.mrf.mxu0
    %v255 = vpop.f32.mrf.mxu0
    %256 = vdwg.mxu0
    %v257 = vld [vmem:[%s5] sm:$0x1]
    %v259 = vlaneseq
    %v260 = vshrl.u32 %v259, 7
    %v261 = vsub.s32 0, %v260
    %v262 = vrot.slane %v257, %v261
    %v264 = vmul.f32 %v252, %v262
    %v265 = vld [vmem:[%s6] sm:$0x1]
    %v267 = vlaneseq
    %v268 = vshrl.u32 %v267, 7
    %v269 = vsub.s32 0, %v268
    %v270 = vrot.slane %v265, %v269
    %v272 = vadd.f32 %v264, %v270
    %vm273 = vcmask 254976
    %274 = vst.msk [vmem:[#allocation2] sm:$0x3] %vm273, %v272
    // Predicated region
    $region30: #{ecapa_forward.31} parent=1 // pred_check
      _
    $region31: #{ecapa_forward.31} parent=1 // pred_check_branch
      %276 = sbr.rel (0) target = $region33
    $region32: #{ecapa_forward.31} parent=1 // pred_region
      %s278 = ssub.s32 32, 32
      %279 = vsyncadd [#allocation3], %s278
      %s281 = sshll.u32 [#allocation2], 4
      %s282 = int_to_ptr.vmem [resolvable:$true] %s281
      %284 = dma.vmem_to_hbm [thread:$0]  %s282, 32, %s7, [#allocation3]
    $region33: #{ecapa_forward.31} parent=1 // pred_fallthru
      _
    // Predicated region
    $region34: #{ecapa_forward.31} parent=1 // pred_check
      _
    $region35: #{ecapa_forward.31} parent=1 // pred_check_branch
      %286 = sbr.rel (0) target = $region37
    $region36: #{ecapa_forward.31} parent=1 // pred_region
      %287 = dma.done [#allocation3], 32
    $region37: #{ecapa_forward.31} parent=1 // pred_fallthru
      _
    %288 = vsyncpa [#allocation3], 1

</llo_original>
